<compile_context>
chip_gen: v7x
topology: tpu7x:2x2x1
jax: 0.10.0
libtpu: 0.0.40
codegen_flags: <defaults>
</compile_context>

<pallas_src>
import math
import numpy as np
import jax
import jax.numpy as jnp
from jax.experimental import pallas as pl
from jax.experimental.pallas import tpu as pltpu

BN_EPS = 1e-5

# v7x has 64 MiB physical VMEM per TensorCore -> keep the scoped limit (and the
# asserted per-step footprint) <= 48 MiB so the same kernel carries across
# v5e/v6e (128 MiB physical) and v7x.
VMEM_LIMIT_BYTES = 48 * 1024 * 1024
VMEM_BUDGET_BYTES = 44 * 1024 * 1024


# ----------------------------- static helpers -------------------------------

def _bilinear_1d(f):
    # 1-D profile of fill_up_weights (kernel size 2f).
    k = 2 * f
    fm = math.ceil(k / 2)
    c = (2 * fm - 1 - fm % 2) / (2.0 * fm)
    return [1.0 - abs(i / fm - c) for i in range(k)]


def _phase_taps(f):
    # For output phase p (output row = f*h + p) the transposed conv reduces to
    # two input taps h+t with static weights w1d[p + pad - f*t].
    pad = f // 2
    w1d = _bilinear_1d(f)
    taps = []
    for p in range(f):
        m = (p + pad) // f
        taps.append(tuple((t, float(w1d[p + pad - f * t])) for t in (m - 1, m)))
    return taps


def _lane_pad(c):
    return ((c + 127) // 128) * 128


def _fused_vmem_bytes(f, Hl, Wl, Cin, Co):
    """Rough per-grid-step VMEM footprint of the fused level kernel (f32)."""
    Ho, Wo = f * Hl, f * Wl
    B = 4
    cin_l, co_l = _lane_pad(Cin), _lane_pad(Co)
    blocks = 2 * B * (Hl * Wl * cin_l + Ho * Wo * co_l + Ho * Wo * Co)
    scratch = B * ((Hl + 2) * (Wl + 2) * (cin_l + co_l)
                   + (Ho + 2) * (Wo + 2) * co_l)
    temps = B * (9 * Ho * Wo * co_l + Ho * Wo * _lane_pad(9 * Co)
                 + 9 * Hl * Wl * cin_l + Hl * Wl * _lane_pad(9 * Cin)
                 + 4 * Ho * Wo * co_l)
    weights = 2 * B * (9 * Cin * co_l + 9 * Co * co_l + 4 * co_l)
    return blocks + scratch + temps + weights


# ----------------------------- fused level kernel ----------------------------

def _make_ida_level_kernel(f, Hl, Wl, Cin, Co):
    """Fused IDAUp level step:
         proj DeformConv(init) -> bilinear x f up (phase decomposition)
         -> + residual -> node DeformConv(init),
       with every intermediate kept in VMEM."""
    assert f >= 2 and f % 2 == 0  # TODO(synk): odd up factors change output size
    taps = _phase_taps(f)
    Ho, Wo = f * Hl, f * Wl

    def conv3x3_affine_relu(xpad, w_ref, s_ref, b_ref, H, W, C):
        # xpad: (H+2, W+2, C) f32 zero-padded map; returns (H*W, Cout) f32.
        # scale/bias fold DCN's 0.5 mask + DCN bias + BatchNorm(eval) affine.
        cols = []
        for dy in range(3):
            for dx in range(3):
                cols.append(xpad[dy:dy + H, dx:dx + W, :].reshape(H * W, C))
        patch = jnp.concatenate(cols, axis=-1)                 # (H*W, 9*C) im2col
        y = jnp.dot(patch, w_ref[...].astype(jnp.float32),
                    preferred_element_type=jnp.float32)        # one K-packed MXU matmul
        return jnp.maximum(y * s_ref[...] + b_ref[...], 0.0)   # affine + ReLU
        # TODO(synk): roll-based (lane-folded) im2col build to cut relayout work.

    def fold_w_into_lanes(y3):
        # (H, W, C) -> (H, W*C) lane-dense value via minor-dim-preserving slices
        # + lane-axis concatenation (the relayout rides the XLU slot).
        _, W, _ = y3.shape
        return jnp.concatenate([y3[:, w, :] for w in range(W)], axis=-1)
        # TODO(synk): for W >= 64 replace with a native minor-dim reshape.

    def kernel(x_ref, r_ref, wp_ref, sp_ref, bp_ref, wn_ref, sn_ref, bn_ref,
               o_ref, xp_ref, pp_ref, up_ref):
        # x_ref : (Hl, Wl, Cin)  low-res input  (layers[i])
        # r_ref : (Ho, Wo, Co)   residual       (layers[i-1])
        # o_ref : (Ho, Wo*Co)    lane-dense output (new layers[i])
        # xp/pp/up: zero-padded VMEM staging buffers (the conv halo lives here;
        #           no wrapper-side halo slabs / extra HBM pass).

        # ---- proj: DeformConv at init == 0.5*conv3x3 + bias -> BN(eval) -> ReLU
        xp_ref[...] = jnp.zeros_like(xp_ref)
        xp_ref[1:Hl + 1, 1:Wl + 1, :] = x_ref[...].astype(jnp.float32)
        p = conv3x3_affine_relu(xp_ref[...], wp_ref, sp_ref, bp_ref, Hl, Wl, Cin)

        # ---- bilinear x f upsample (phase decomposition; no f^2 zero-inserted
        #      intermediate), fused with the residual add -----------------------
        pp_ref[...] = jnp.zeros_like(pp_ref)
        pp_ref[1:Hl + 1, 1:Wl + 1, :] = p.reshape(Hl, Wl, Co)
        pp = pp_ref[...]
        rows = []
        for ph in range(f):
            (ty0, wy0), (ty1, wy1) = taps[ph]
            g = (wy0 * pp[1 + ty0:1 + ty0 + Hl]
                 + wy1 * pp[1 + ty1:1 + ty1 + Hl])               # (Hl, Wl+2, Co)
            cols = []
            for q in range(f):
                (tx0, wx0), (tx1, wx1) = taps[q]
                cols.append(wx0 * g[:, 1 + tx0:1 + tx0 + Wl]
                            + wx1 * g[:, 1 + tx1:1 + tx1 + Wl])  # (Hl, Wl, Co)
            rows.append(jnp.stack(cols, axis=2))                 # (Hl, Wl, f, Co)
        up = jnp.stack(rows, axis=1)                             # (Hl, f, Wl, f, Co)
        up = up.reshape(Ho, Wo, Co)                              # phase interleave (minor dim kept)
        u = up + r_ref[...].astype(jnp.float32)                  # fused residual add

        # ---- node: DeformConv(init) on up(proj(x)) + residual ------------------
        up_ref[...] = jnp.zeros_like(up_ref)
        up_ref[1:Ho + 1, 1:Wo + 1, :] = u
        out = conv3x3_affine_relu(up_ref[...], wn_ref, sn_ref, bn_ref, Ho, Wo, Co)

        # Lane-dense store: fold (Wo, Co) onto the 128-lane axis so the store is
        # unmasked and the HBM write-back DMA is dense.
        o_ref[...] = fold_w_into_lanes(out.reshape(Ho, Wo, Co)).astype(o_ref.dtype)

    return kernel


def ida_level_step(x_low, residual, f, proj_params, node_params):
    """One fused IDAUp level step:  node( up_f(proj(x_low)) + residual )."""
    N, Hl, Wl, Cin = x_low.shape
    Nr, Ho, Wo, Co = residual.shape
    assert Nr == N and Ho == f * Hl and Wo == f * Wl
    wp, sp, bp = proj_params
    wn, sn, bn = node_params
    assert wp.shape == (9 * Cin, Co) and wn.shape == (9 * Co, Co)

    vmem_est = _fused_vmem_bytes(f, Hl, Wl, Cin, Co)
    # TODO(synk): row-tile with in-kernel halo DMA once maps are too large for a
    # whole-map-per-step schedule (also gives >1 grid step per TC on v7x).
    assert vmem_est <= VMEM_BUDGET_BYTES, (
        f"fused IDAUp step needs ~{vmem_est >> 20} MiB VMEM; add row tiling")

    flops = 2 * N * (Hl * Wl * 9 * Cin * Co + Ho * Wo * 9 * Co * Co) \
        + 9 * N * Ho * Wo * Co
    bytes_accessed = 4 * (N * (Hl * Wl * Cin + 2 * Ho * Wo * Co)
                          + 9 * Cin * Co + 9 * Co * Co + 4 * Co)

    out = pl.pallas_call(
        _make_ida_level_kernel(f, Hl, Wl, Cin, Co),
        out_shape=jax.ShapeDtypeStruct((N, Ho, Wo * Co), x_low.dtype),
        grid=(N,),
        in_specs=[
            pl.BlockSpec((None, Hl, Wl, Cin), lambda n: (n, 0, 0, 0)),
            pl.BlockSpec((None, Ho, Wo, Co), lambda n: (n, 0, 0, 0)),
            pl.BlockSpec((9 * Cin, Co), lambda n: (0, 0)),
            pl.BlockSpec((1, Co), lambda n: (0, 0)),
            pl.BlockSpec((1, Co), lambda n: (0, 0)),
            pl.BlockSpec((9 * Co, Co), lambda n: (0, 0)),
            pl.BlockSpec((1, Co), lambda n: (0, 0)),
            pl.BlockSpec((1, Co), lambda n: (0, 0)),
        ],
        out_specs=pl.BlockSpec((None, Ho, Wo * Co), lambda n: (n, 0, 0)),
        scratch_shapes=[
            pltpu.VMEM((Hl + 2, Wl + 2, Cin), jnp.float32),   # padded x
            pltpu.VMEM((Hl + 2, Wl + 2, Co), jnp.float32),    # padded proj output
            pltpu.VMEM((Ho + 2, Wo + 2, Co), jnp.float32),    # padded up+residual
        ],
        compiler_params=pltpu.CompilerParams(
            dimension_semantics=("parallel",),
            vmem_limit_bytes=VMEM_LIMIT_BYTES,
        ),
        cost_estimate=pl.CostEstimate(
            flops=int(flops), transcendentals=0,
            bytes_accessed=int(bytes_accessed)),
    )(x_low, residual, wp, sp, bp, wn, sn, bn)
    # Free adjacent-dim reshape at the XLA boundary back to NHWC.
    return out.reshape(N, Ho, Wo, Co)


# ------------------------------ parameter setup -----------------------------

class _KeyGen:
    def __init__(self, seed):
        self.key = jax.random.PRNGKey(seed)

    def next(self):
        self.key, sub = jax.random.split(self.key)
        return sub


def make_deform_conv_params(kg, chi, cho):
    # DCNv2 init: weight ~ U(-stdv, stdv), bias = 0, offset/mask conv = 0.
    stdv = 1.0 / math.sqrt(chi * 3 * 3)
    w_pt = jax.random.uniform(kg.next(), (cho, chi, 3, 3), jnp.float32, -stdv, stdv)
    # im2col weight: row index = (dy*3 + dx)*Cin + ci, matching the in-kernel patch.
    w = jnp.transpose(w_pt, (2, 3, 1, 0)).reshape(9 * chi, cho)
    dcn_bias = jnp.zeros((cho,), jnp.float32)
    # BatchNorm2d default init (eval mode): gamma=1, beta=0, mean=0, var=1.
    gamma = jnp.ones((cho,), jnp.float32)
    beta = jnp.zeros((cho,), jnp.float32)
    mean = jnp.zeros((cho,), jnp.float32)
    var = jnp.ones((cho,), jnp.float32)
    inv = gamma / jnp.sqrt(var + BN_EPS)
    scale = (0.5 * inv).reshape(1, cho)              # 0.5 = sigmoid(0) DCN mask
    bias = (beta + (dcn_bias - mean) * inv).reshape(1, cho)
    return (w, scale, bias)


class IDAUp:
    def __init__(self, kg, o, channels, up_f):
        self.proj, self.node, self.f = {}, {}, {}
        for i in range(1, len(channels)):
            c = int(channels[i])
            self.proj[i] = make_deform_conv_params(kg, c, o)
            self.node[i] = make_deform_conv_params(kg, o, o)
            self.f[i] = int(up_f[i])

    def __call__(self, layers, startp, endp):
        for i in range(startp + 1, endp):
            idx = i - startp
            # proj -> bilinear up -> +layers[i-1] -> node, one fused pallas_call.
            layers[i] = ida_level_step(layers[i], layers[i - 1], self.f[idx],
                                       self.proj[idx], self.node[idx])


class DLAUp:
    def __init__(self, kg, startp, channels, scales, in_channels=None):
        self.startp = startp
        if in_channels is None:
            in_channels = list(channels)
        self.channels = channels
        channels = list(channels)
        scales = np.array(scales, dtype=int)
        self.idas = {}
        for i in range(len(channels) - 1):
            j = -i - 2
            self.idas[i] = IDAUp(kg, channels[j], in_channels[j:],
                                 scales[j:] // scales[j])
            scales[j + 1:] = scales[j]
            in_channels[j + 1:] = [channels[j] for _ in channels[j + 1:]]

    def __call__(self, layers):
        out = [layers[-1]]
        for i in range(len(layers) - self.startp - 1):
            self.idas[i](layers, len(layers) - i - 2, len(layers))
            out.insert(0, layers[-1])
        return out


# ----------------------------------- main -----------------------------------

if __name__ == "__main__":
    N = 2
    channels = [8, 16, 32]
    scales = [1, 2, 4]
    sizes = [32, 16, 8]

    key = jax.random.PRNGKey(0)
    ikeys = jax.random.split(key, len(channels))
    # Inputs follow PyTorch NCHW convention.
    layers_nchw = [
        jax.random.normal(ikeys[i], (N, channels[i], sizes[i], sizes[i]),
                          jnp.float32)
        for i in range(len(channels))
    ]
    # layout: NCHW -> NHWC at the kernel boundary.
    layers = [jnp.transpose(x, (0, 2, 3, 1)) for x in layers_nchw]

    kg = _KeyGen(42)
    dla_up = DLAUp(kg, startp=0, channels=channels, scales=scales)

    out_nhwc = dla_up(list(layers))
    out_nchw = [jnp.transpose(o, (0, 3, 1, 2)) for o in out_nhwc]

    for o in out_nchw:
        jax.block_until_ready(o)
    # sanity: expected shapes of the returned pyramid
    assert [tuple(o.shape) for o in out_nchw] == [
        (N, 8, 32, 32), (N, 16, 16, 16), (N, 32, 8, 8)]
    print("KERNEL_OK")
</pallas_src>

<mosaic_0001>
module attributes {stable_mosaic.version = 11 : i64} {
  func.func @kernel(%arg0: i32, %arg1: memref<1x8x8x32xf32, #tpu.memory_space<vmem>>, %arg2: memref<1x16x16x16xf32, #tpu.memory_space<vmem>>, %arg3: memref<288x16xf32, #tpu.memory_space<vmem>>, %arg4: memref<1x16xf32, #tpu.memory_space<vmem>>, %arg5: memref<1x16xf32, #tpu.memory_space<vmem>>, %arg6: memref<144x16xf32, #tpu.memory_space<vmem>>, %arg7: memref<1x16xf32, #tpu.memory_space<vmem>>, %arg8: memref<1x16xf32, #tpu.memory_space<vmem>>, %arg9: memref<1x16x256xf32, #tpu.memory_space<vmem>>, %arg10: memref<10x10x32xf32, #tpu.memory_space<vmem>>, %arg11: memref<10x10x16xf32, #tpu.memory_space<vmem>>, %arg12: memref<18x18x16xf32, #tpu.memory_space<vmem>>) attributes {dimension_semantics = [#tpu.dimension_semantics<parallel>], iteration_bounds = array<i64: 2>, scalar_prefetch = 0 : i64, scratch_operands = 3 : i64, tpu.core_type = #tpu.core_type<tc>, window_params = [{transform_indices = @transform_0, window_bounds = array<i64: 1, 8, 8, 32>}, {transform_indices = @transform_1, window_bounds = array<i64: 1, 16, 16, 16>}, {pipeline_mode = #tpu.pipeline_mode<synchronous>, transform_indices = @transform_2, window_bounds = array<i64: 288, 16>}, {pipeline_mode = #tpu.pipeline_mode<synchronous>, transform_indices = @transform_3, window_bounds = array<i64: 1, 16>}, {pipeline_mode = #tpu.pipeline_mode<synchronous>, transform_indices = @transform_4, window_bounds = array<i64: 1, 16>}, {pipeline_mode = #tpu.pipeline_mode<synchronous>, transform_indices = @transform_5, window_bounds = array<i64: 144, 16>}, {pipeline_mode = #tpu.pipeline_mode<synchronous>, transform_indices = @transform_6, window_bounds = array<i64: 1, 16>}, {pipeline_mode = #tpu.pipeline_mode<synchronous>, transform_indices = @transform_7, window_bounds = array<i64: 1, 16>}, {transform_indices = @transform_8, window_bounds = array<i64: 1, 16, 256>}]} {
    %cst = arith.constant 0.000000e+00 : f32
    %0 = vector.broadcast %cst : f32 to vector<10x10x32xf32>
    %c0 = arith.constant 0 : index
    %c0_0 = arith.constant 0 : index
    %c0_1 = arith.constant 0 : index
    %1 = vector.load %arg10[%c0, %c0_0, %c0_1] : memref<10x10x32xf32, #tpu.memory_space<vmem>>, vector<10x10x32xf32>
    tpu.vector_store %arg10[%c0, %c0_0, %c0_1], %0 {strides = array<i32>} : memref<10x10x32xf32, #tpu.memory_space<vmem>>, vector<10x10x32xf32>,
    %c0_2 = arith.constant 0 : index
    %c0_3 = arith.constant 0 : index
    %c0_4 = arith.constant 0 : index
    %c0_5 = arith.constant 0 : index
    %2 = vector.load %arg1[%c0_2, %c0_3, %c0_4, %c0_5] : memref<1x8x8x32xf32, #tpu.memory_space<vmem>>, vector<1x8x8x32xf32>
    %3 = vector.shape_cast %2 : vector<1x8x8x32xf32> to vector<8x8x32xf32>
    %c1 = arith.constant 1 : index
    %c1_6 = arith.constant 1 : index
    %c0_7 = arith.constant 0 : index
    %4 = vector.load %arg10[%c1, %c1_6, %c0_7] : memref<10x10x32xf32, #tpu.memory_space<vmem>>, vector<8x8x32xf32>
    tpu.vector_store %arg10[%c1, %c1_6, %c0_7], %3 {strides = array<i32>} : memref<10x10x32xf32, #tpu.memory_space<vmem>>, vector<8x8x32xf32>,
    %c0_8 = arith.constant 0 : index
    %c0_9 = arith.constant 0 : index
    %c0_10 = arith.constant 0 : index
    %5 = vector.load %arg10[%c0_8, %c0_9, %c0_10] : memref<10x10x32xf32, #tpu.memory_space<vmem>>, vector<10x10x32xf32>
    %6 = vector.extract_strided_slice %5 {offsets = [0, 0, 0], sizes = [8, 8, 32], strides = [1, 1, 1]} : vector<10x10x32xf32> to vector<8x8x32xf32>
    %7 = vector.shape_cast %6 : vector<8x8x32xf32> to vector<64x32xf32>
    %8 = vector.extract_strided_slice %5 {offsets = [0, 1, 0], sizes = [8, 8, 32], strides = [1, 1, 1]} : vector<10x10x32xf32> to vector<8x8x32xf32>
    %9 = vector.shape_cast %8 : vector<8x8x32xf32> to vector<64x32xf32>
    %10 = vector.extract_strided_slice %5 {offsets = [0, 2, 0], sizes = [8, 8, 32], strides = [1, 1, 1]} : vector<10x10x32xf32> to vector<8x8x32xf32>
    %11 = vector.shape_cast %10 : vector<8x8x32xf32> to vector<64x32xf32>
    %12 = vector.extract_strided_slice %5 {offsets = [1, 0, 0], sizes = [8, 8, 32], strides = [1, 1, 1]} : vector<10x10x32xf32> to vector<8x8x32xf32>
    %13 = vector.shape_cast %12 : vector<8x8x32xf32> to vector<64x32xf32>
    %14 = vector.extract_strided_slice %5 {offsets = [1, 1, 0], sizes = [8, 8, 32], strides = [1, 1, 1]} : vector<10x10x32xf32> to vector<8x8x32xf32>
    %15 = vector.shape_cast %14 : vector<8x8x32xf32> to vector<64x32xf32>
    %16 = vector.extract_strided_slice %5 {offsets = [1, 2, 0], sizes = [8, 8, 32], strides = [1, 1, 1]} : vector<10x10x32xf32> to vector<8x8x32xf32>
    %17 = vector.shape_cast %16 : vector<8x8x32xf32> to vector<64x32xf32>
    %18 = vector.extract_strided_slice %5 {offsets = [2, 0, 0], sizes = [8, 8, 32], strides = [1, 1, 1]} : vector<10x10x32xf32> to vector<8x8x32xf32>
    %19 = vector.shape_cast %18 : vector<8x8x32xf32> to vector<64x32xf32>
    %20 = vector.extract_strided_slice %5 {offsets = [2, 1, 0], sizes = [8, 8, 32], strides = [1, 1, 1]} : vector<10x10x32xf32> to vector<8x8x32xf32>
    %21 = vector.shape_cast %20 : vector<8x8x32xf32> to vector<64x32xf32>
    %22 = vector.extract_strided_slice %5 {offsets = [2, 2, 0], sizes = [8, 8, 32], strides = [1, 1, 1]} : vector<10x10x32xf32> to vector<8x8x32xf32>
    %23 = vector.shape_cast %22 : vector<8x8x32xf32> to vector<64x32xf32>
    %24 = tpu.concatenate %7, %9, %11, %13, %15, %17, %19, %21, %23 in 1 : vector<64x32xf32>, vector<64x32xf32>, vector<64x32xf32>, vector<64x32xf32>, vector<64x32xf32>, vector<64x32xf32>, vector<64x32xf32>, vector<64x32xf32>, vector<64x32xf32> -> vector<64x288xf32>
    %c0_11 = arith.constant 0 : index
    %c0_12 = arith.constant 0 : index
    %25 = vector.load %arg3[%c0_11, %c0_12] : memref<288x16xf32, #tpu.memory_space<vmem>>, vector<288x16xf32>
    %cst_13 = arith.constant dense<0.000000e+00> : vector<64x16xf32>
    %26 = tpu.matmul %24, %25, %cst_13 {dimension_numbers = #tpu.dot_dimension_numbers<[1], [0], [0], [1], [0, 0, 1, 1], [], []>} : vector<64x288xf32>, vector<288x16xf32>, vector<64x16xf32> -> vector<64x16xf32>
    %c0_14 = arith.constant 0 : index
    %c0_15 = arith.constant 0 : index
    %27 = vector.load %arg4[%c0_14, %c0_15] : memref<1x16xf32, #tpu.memory_space<vmem>>, vector<1x16xf32>
    %28 = vector.broadcast %27 : vector<1x16xf32> to vector<64x16xf32>
    %29 = arith.mulf %26, %28 : vector<64x16xf32>
    %c0_16 = arith.constant 0 : index
    %c0_17 = arith.constant 0 : index
    %30 = vector.load %arg5[%c0_16, %c0_17] : memref<1x16xf32, #tpu.memory_space<vmem>>, vector<1x16xf32>
    %31 = vector.broadcast %30 : vector<1x16xf32> to vector<64x16xf32>
    %32 = arith.addf %29, %31 : vector<64x16xf32>
    %cst_18 = arith.constant 0.000000e+00 : f32
    %33 = vector.broadcast %cst_18 : f32 to vector<64x16xf32>
    %34 = arith.maximumf %32, %33 : vector<64x16xf32>
    %cst_19 = arith.constant 0.000000e+00 : f32
    %35 = vector.broadcast %cst_19 : f32 to vector<10x10x16xf32>
    %c0_20 = arith.constant 0 : index
    %c0_21 = arith.constant 0 : index
    %c0_22 = arith.constant 0 : index
    %36 = vector.load %arg11[%c0_20, %c0_21, %c0_22] : memref<10x10x16xf32, #tpu.memory_space<vmem>>, vector<10x10x16xf32>
    tpu.vector_store %arg11[%c0_20, %c0_21, %c0_22], %35 {strides = array<i32>} : memref<10x10x16xf32, #tpu.memory_space<vmem>>, vector<10x10x16xf32>,
    %37 = vector.shape_cast %34 : vector<64x16xf32> to vector<8x8x16xf32>
    %c1_23 = arith.constant 1 : index
    %c1_24 = arith.constant 1 : index
    %c0_25 = arith.constant 0 : index
    %38 = vector.load %arg11[%c1_23, %c1_24, %c0_25] : memref<10x10x16xf32, #tpu.memory_space<vmem>>, vector<8x8x16xf32>
    tpu.vector_store %arg11[%c1_23, %c1_24, %c0_25], %37 {strides = array<i32>} : memref<10x10x16xf32, #tpu.memory_space<vmem>>, vector<8x8x16xf32>,
    %c0_26 = arith.constant 0 : index
    %c0_27 = arith.constant 0 : index
    %c0_28 = arith.constant 0 : index
    %39 = vector.load %arg11[%c0_26, %c0_27, %c0_28] : memref<10x10x16xf32, #tpu.memory_space<vmem>>, vector<10x10x16xf32>
    %40 = vector.extract_strided_slice %39 {offsets = [0, 0, 0], sizes = [8, 10, 16], strides = [1, 1, 1]} : vector<10x10x16xf32> to vector<8x10x16xf32>
    %cst_29 = arith.constant 2.500000e-01 : f32
    %41 = vector.broadcast %cst_29 : f32 to vector<8x10x16xf32>
    %42 = arith.mulf %41, %40 : vector<8x10x16xf32>
    %43 = vector.extract_strided_slice %39 {offsets = [1, 0, 0], sizes = [8, 10, 16], strides = [1, 1, 1]} : vector<10x10x16xf32> to vector<8x10x16xf32>
    %cst_30 = arith.constant 7.500000e-01 : f32
    %44 = vector.broadcast %cst_30 : f32 to vector<8x10x16xf32>
    %45 = arith.mulf %44, %43 : vector<8x10x16xf32>
    %46 = arith.addf %42, %45 : vector<8x10x16xf32>
    %47 = vector.extract_strided_slice %46 {offsets = [0, 0, 0], sizes = [8, 8, 16], strides = [1, 1, 1]} : vector<8x10x16xf32> to vector<8x8x16xf32>
    %cst_31 = arith.constant 2.500000e-01 : f32
    %48 = vector.broadcast %cst_31 : f32 to vector<8x8x16xf32>
    %49 = arith.mulf %48, %47 : vector<8x8x16xf32>
    %50 = vector.extract_strided_slice %46 {offsets = [0, 1, 0], sizes = [8, 8, 16], strides = [1, 1, 1]} : vector<8x10x16xf32> to vector<8x8x16xf32>
    %cst_32 = arith.constant 7.500000e-01 : f32
    %51 = vector.broadcast %cst_32 : f32 to vector<8x8x16xf32>
    %52 = arith.mulf %51, %50 : vector<8x8x16xf32>
    %53 = arith.addf %49, %52 : vector<8x8x16xf32>
    %54 = vector.extract_strided_slice %46 {offsets = [0, 1, 0], sizes = [8, 8, 16], strides = [1, 1, 1]} : vector<8x10x16xf32> to vector<8x8x16xf32>
    %cst_33 = arith.constant 7.500000e-01 : f32
    %55 = vector.broadcast %cst_33 : f32 to vector<8x8x16xf32>
    %56 = arith.mulf %55, %54 : vector<8x8x16xf32>
    %57 = vector.extract_strided_slice %46 {offsets = [0, 2, 0], sizes = [8, 8, 16], strides = [1, 1, 1]} : vector<8x10x16xf32> to vector<8x8x16xf32>
    %cst_34 = arith.constant 2.500000e-01 : f32
    %58 = vector.broadcast %cst_34 : f32 to vector<8x8x16xf32>
    %59 = arith.mulf %58, %57 : vector<8x8x16xf32>
    %60 = arith.addf %56, %59 : vector<8x8x16xf32>
    %61 = vector.shape_cast %53 : vector<8x8x16xf32> to vector<8x8x1x16xf32>
    %62 = vector.shape_cast %60 : vector<8x8x16xf32> to vector<8x8x1x16xf32>
    %63 = tpu.concatenate %61, %62 in 2 : vector<8x8x1x16xf32>, vector<8x8x1x16xf32> -> vector<8x8x2x16xf32>
    %64 = vector.extract_strided_slice %39 {offsets = [1, 0, 0], sizes = [8, 10, 16], strides = [1, 1, 1]} : vector<10x10x16xf32> to vector<8x10x16xf32>
    %cst_35 = arith.constant 7.500000e-01 : f32
    %65 = vector.broadcast %cst_35 : f32 to vector<8x10x16xf32>
    %66 = arith.mulf %65, %64 : vector<8x10x16xf32>
    %67 = vector.extract_strided_slice %39 {offsets = [2, 0, 0], sizes = [8, 10, 16], strides = [1, 1, 1]} : vector<10x10x16xf32> to vector<8x10x16xf32>
    %cst_36 = arith.constant 2.500000e-01 : f32
    %68 = vector.broadcast %cst_36 : f32 to vector<8x10x16xf32>
    %69 = arith.mulf %68, %67 : vector<8x10x16xf32>
    %70 = arith.addf %66, %69 : vector<8x10x16xf32>
    %71 = vector.extract_strided_slice %70 {offsets = [0, 0, 0], sizes = [8, 8, 16], strides = [1, 1, 1]} : vector<8x10x16xf32> to vector<8x8x16xf32>
    %cst_37 = arith.constant 2.500000e-01 : f32
    %72 = vector.broadcast %cst_37 : f32 to vector<8x8x16xf32>
    %73 = arith.mulf %72, %71 : vector<8x8x16xf32>
    %74 = vector.extract_strided_slice %70 {offsets = [0, 1, 0], sizes = [8, 8, 16], strides = [1, 1, 1]} : vector<8x10x16xf32> to vector<8x8x16xf32>
    %cst_38 = arith.constant 7.500000e-01 : f32
    %75 = vector.broadcast %cst_38 : f32 to vector<8x8x16xf32>
    %76 = arith.mulf %75, %74 : vector<8x8x16xf32>
    %77 = arith.addf %73, %76 : vector<8x8x16xf32>
    %78 = vector.extract_strided_slice %70 {offsets = [0, 1, 0], sizes = [8, 8, 16], strides = [1, 1, 1]} : vector<8x10x16xf32> to vector<8x8x16xf32>
    %cst_39 = arith.constant 7.500000e-01 : f32
    %79 = vector.broadcast %cst_39 : f32 to vector<8x8x16xf32>
    %80 = arith.mulf %79, %78 : vector<8x8x16xf32>
    %81 = vector.extract_strided_slice %70 {offsets = [0, 2, 0], sizes = [8, 8, 16], strides = [1, 1, 1]} : vector<8x10x16xf32> to vector<8x8x16xf32>
    %cst_40 = arith.constant 2.500000e-01 : f32
    %82 = vector.broadcast %cst_40 : f32 to vector<8x8x16xf32>
    %83 = arith.mulf %82, %81 : vector<8x8x16xf32>
    %84 = arith.addf %80, %83 : vector<8x8x16xf32>
    %85 = vector.shape_cast %77 : vector<8x8x16xf32> to vector<8x8x1x16xf32>
    %86 = vector.shape_cast %84 : vector<8x8x16xf32> to vector<8x8x1x16xf32>
    %87 = tpu.concatenate %85, %86 in 2 : vector<8x8x1x16xf32>, vector<8x8x1x16xf32> -> vector<8x8x2x16xf32>
    %88 = vector.shape_cast %63 : vector<8x8x2x16xf32> to vector<8x1x8x2x16xf32>
    %89 = vector.shape_cast %87 : vector<8x8x2x16xf32> to vector<8x1x8x2x16xf32>
    %90 = tpu.concatenate %88, %89 in 1 : vector<8x1x8x2x16xf32>, vector<8x1x8x2x16xf32> -> vector<8x2x8x2x16xf32>
    %91 = vector.shape_cast %90 : vector<8x2x8x2x16xf32> to vector<16x16x16xf32>
    %c0_41 = arith.constant 0 : index
    %c0_42 = arith.constant 0 : index
    %c0_43 = arith.constant 0 : index
    %c0_44 = arith.constant 0 : index
    %92 = vector.load %arg2[%c0_41, %c0_42, %c0_43, %c0_44] : memref<1x16x16x16xf32, #tpu.memory_space<vmem>>, vector<1x16x16x16xf32>
    %93 = vector.shape_cast %92 : vector<1x16x16x16xf32> to vector<16x16x16xf32>
    %94 = arith.addf %91, %93 : vector<16x16x16xf32>
    %cst_45 = arith.constant 0.000000e+00 : f32
    %95 = vector.broadcast %cst_45 : f32 to vector<18x18x16xf32>
    %c0_46 = arith.constant 0 : index
    %c0_47 = arith.constant 0 : index
    %c0_48 = arith.constant 0 : index
    %96 = vector.load %arg12[%c0_46, %c0_47, %c0_48] : memref<18x18x16xf32, #tpu.memory_space<vmem>>, vector<18x18x16xf32>
    tpu.vector_store %arg12[%c0_46, %c0_47, %c0_48], %95 {strides = array<i32>} : memref<18x18x16xf32, #tpu.memory_space<vmem>>, vector<18x18x16xf32>,
    %c1_49 = arith.constant 1 : index
    %c1_50 = arith.constant 1 : index
    %c0_51 = arith.constant 0 : index
    %97 = vector.load %arg12[%c1_49, %c1_50, %c0_51] : memref<18x18x16xf32, #tpu.memory_space<vmem>>, vector<16x16x16xf32>
    tpu.vector_store %arg12[%c1_49, %c1_50, %c0_51], %94 {strides = array<i32>} : memref<18x18x16xf32, #tpu.memory_space<vmem>>, vector<16x16x16xf32>,
    %c0_52 = arith.constant 0 : index
    %c0_53 = arith.constant 0 : index
    %c0_54 = arith.constant 0 : index
    %98 = vector.load %arg12[%c0_52, %c0_53, %c0_54] : memref<18x18x16xf32, #tpu.memory_space<vmem>>, vector<18x18x16xf32>
    %99 = vector.extract_strided_slice %98 {offsets = [0, 0, 0], sizes = [16, 16, 16], strides = [1, 1, 1]} : vector<18x18x16xf32> to vector<16x16x16xf32>
    %100 = vector.shape_cast %99 : vector<16x16x16xf32> to vector<256x16xf32>
    %101 = vector.extract_strided_slice %98 {offsets = [0, 1, 0], sizes = [16, 16, 16], strides = [1, 1, 1]} : vector<18x18x16xf32> to vector<16x16x16xf32>
    %102 = vector.shape_cast %101 : vector<16x16x16xf32> to vector<256x16xf32>
    %103 = vector.extract_strided_slice %98 {offsets = [0, 2, 0], sizes = [16, 16, 16], strides = [1, 1, 1]} : vector<18x18x16xf32> to vector<16x16x16xf32>
    %104 = vector.shape_cast %103 : vector<16x16x16xf32> to vector<256x16xf32>
    %105 = vector.extract_strided_slice %98 {offsets = [1, 0, 0], sizes = [16, 16, 16], strides = [1, 1, 1]} : vector<18x18x16xf32> to vector<16x16x16xf32>
    %106 = vector.shape_cast %105 : vector<16x16x16xf32> to vector<256x16xf32>
    %107 = vector.extract_strided_slice %98 {offsets = [1, 1, 0], sizes = [16, 16, 16], strides = [1, 1, 1]} : vector<18x18x16xf32> to vector<16x16x16xf32>
    %108 = vector.shape_cast %107 : vector<16x16x16xf32> to vector<256x16xf32>
    %109 = vector.extract_strided_slice %98 {offsets = [1, 2, 0], sizes = [16, 16, 16], strides = [1, 1, 1]} : vector<18x18x16xf32> to vector<16x16x16xf32>
    %110 = vector.shape_cast %109 : vector<16x16x16xf32> to vector<256x16xf32>
    %111 = vector.extract_strided_slice %98 {offsets = [2, 0, 0], sizes = [16, 16, 16], strides = [1, 1, 1]} : vector<18x18x16xf32> to vector<16x16x16xf32>
    %112 = vector.shape_cast %111 : vector<16x16x16xf32> to vector<256x16xf32>
    %113 = vector.extract_strided_slice %98 {offsets = [2, 1, 0], sizes = [16, 16, 16], strides = [1, 1, 1]} : vector<18x18x16xf32> to vector<16x16x16xf32>
    %114 = vector.shape_cast %113 : vector<16x16x16xf32> to vector<256x16xf32>
    %115 = vector.extract_strided_slice %98 {offsets = [2, 2, 0], sizes = [16, 16, 16], strides = [1, 1, 1]} : vector<18x18x16xf32> to vector<16x16x16xf32>
    %116 = vector.shape_cast %115 : vector<16x16x16xf32> to vector<256x16xf32>
    %117 = tpu.concatenate %100, %102, %104, %106, %108, %110, %112, %114, %116 in 1 : vector<256x16xf32>, vector<256x16xf32>, vector<256x16xf32>, vector<256x16xf32>, vector<256x16xf32>, vector<256x16xf32>, vector<256x16xf32>, vector<256x16xf32>, vector<256x16xf32> -> vector<256x144xf32>
    %c0_55 = arith.constant 0 : index
    %c0_56 = arith.constant 0 : index
    %118 = vector.load %arg6[%c0_55, %c0_56] : memref<144x16xf32, #tpu.memory_space<vmem>>, vector<144x16xf32>
    %cst_57 = arith.constant dense<0.000000e+00> : vector<256x16xf32>
    %119 = tpu.matmul %117, %118, %cst_57 {dimension_numbers = #tpu.dot_dimension_numbers<[1], [0], [0], [1], [0, 0, 1, 1], [], []>} : vector<256x144xf32>, vector<144x16xf32>, vector<256x16xf32> -> vector<256x16xf32>
    %c0_58 = arith.constant 0 : index
    %c0_59 = arith.constant 0 : index
    %120 = vector.load %arg7[%c0_58, %c0_59] : memref<1x16xf32, #tpu.memory_space<vmem>>, vector<1x16xf32>
    %121 = vector.broadcast %120 : vector<1x16xf32> to vector<256x16xf32>
    %122 = arith.mulf %119, %121 : vector<256x16xf32>
    %c0_60 = arith.constant 0 : index
    %c0_61 = arith.constant 0 : index
    %123 = vector.load %arg8[%c0_60, %c0_61] : memref<1x16xf32, #tpu.memory_space<vmem>>, vector<1x16xf32>
    %124 = vector.broadcast %123 : vector<1x16xf32> to vector<256x16xf32>
    %125 = arith.addf %122, %124 : vector<256x16xf32>
    %cst_62 = arith.constant 0.000000e+00 : f32
    %126 = vector.broadcast %cst_62 : f32 to vector<256x16xf32>
    %127 = arith.maximumf %125, %126 : vector<256x16xf32>
    %128 = vector.shape_cast %127 : vector<256x16xf32> to vector<16x16x16xf32>
    %129 = vector.extract_strided_slice %128 {offsets = [0, 0, 0], sizes = [16, 1, 16], strides = [1, 1, 1]} : vector<16x16x16xf32> to vector<16x1x16xf32>
    %130 = vector.shape_cast %129 : vector<16x1x16xf32> to vector<16x16xf32>
    %131 = vector.extract_strided_slice %128 {offsets = [0, 1, 0], sizes = [16, 1, 16], strides = [1, 1, 1]} : vector<16x16x16xf32> to vector<16x1x16xf32>
    %132 = vector.shape_cast %131 : vector<16x1x16xf32> to vector<16x16xf32>
    %133 = vector.extract_strided_slice %128 {offsets = [0, 2, 0], sizes = [16, 1, 16], strides = [1, 1, 1]} : vector<16x16x16xf32> to vector<16x1x16xf32>
    %134 = vector.shape_cast %133 : vector<16x1x16xf32> to vector<16x16xf32>
    %135 = vector.extract_strided_slice %128 {offsets = [0, 3, 0], sizes = [16, 1, 16], strides = [1, 1, 1]} : vector<16x16x16xf32> to vector<16x1x16xf32>
    %136 = vector.shape_cast %135 : vector<16x1x16xf32> to vector<16x16xf32>
    %137 = vector.extract_strided_slice %128 {offsets = [0, 4, 0], sizes = [16, 1, 16], strides = [1, 1, 1]} : vector<16x16x16xf32> to vector<16x1x16xf32>
    %138 = vector.shape_cast %137 : vector<16x1x16xf32> to vector<16x16xf32>
    %139 = vector.extract_strided_slice %128 {offsets = [0, 5, 0], sizes = [16, 1, 16], strides = [1, 1, 1]} : vector<16x16x16xf32> to vector<16x1x16xf32>
    %140 = vector.shape_cast %139 : vector<16x1x16xf32> to vector<16x16xf32>
    %141 = vector.extract_strided_slice %128 {offsets = [0, 6, 0], sizes = [16, 1, 16], strides = [1, 1, 1]} : vector<16x16x16xf32> to vector<16x1x16xf32>
    %142 = vector.shape_cast %141 : vector<16x1x16xf32> to vector<16x16xf32>
    %143 = vector.extract_strided_slice %128 {offsets = [0, 7, 0], sizes = [16, 1, 16], strides = [1, 1, 1]} : vector<16x16x16xf32> to vector<16x1x16xf32>
    %144 = vector.shape_cast %143 : vector<16x1x16xf32> to vector<16x16xf32>
    %145 = vector.extract_strided_slice %128 {offsets = [0, 8, 0], sizes = [16, 1, 16], strides = [1, 1, 1]} : vector<16x16x16xf32> to vector<16x1x16xf32>
    %146 = vector.shape_cast %145 : vector<16x1x16xf32> to vector<16x16xf32>
    %147 = vector.extract_strided_slice %128 {offsets = [0, 9, 0], sizes = [16, 1, 16], strides = [1, 1, 1]} : vector<16x16x16xf32> to vector<16x1x16xf32>
    %148 = vector.shape_cast %147 : vector<16x1x16xf32> to vector<16x16xf32>
    %149 = vector.extract_strided_slice %128 {offsets = [0, 10, 0], sizes = [16, 1, 16], strides = [1, 1, 1]} : vector<16x16x16xf32> to vector<16x1x16xf32>
    %150 = vector.shape_cast %149 : vector<16x1x16xf32> to vector<16x16xf32>
    %151 = vector.extract_strided_slice %128 {offsets = [0, 11, 0], sizes = [16, 1, 16], strides = [1, 1, 1]} : vector<16x16x16xf32> to vector<16x1x16xf32>
    %152 = vector.shape_cast %151 : vector<16x1x16xf32> to vector<16x16xf32>
    %153 = vector.extract_strided_slice %128 {offsets = [0, 12, 0], sizes = [16, 1, 16], strides = [1, 1, 1]} : vector<16x16x16xf32> to vector<16x1x16xf32>
    %154 = vector.shape_cast %153 : vector<16x1x16xf32> to vector<16x16xf32>
    %155 = vector.extract_strided_slice %128 {offsets = [0, 13, 0], sizes = [16, 1, 16], strides = [1, 1, 1]} : vector<16x16x16xf32> to vector<16x1x16xf32>
    %156 = vector.shape_cast %155 : vector<16x1x16xf32> to vector<16x16xf32>
    %157 = vector.extract_strided_slice %128 {offsets = [0, 14, 0], sizes = [16, 1, 16], strides = [1, 1, 1]} : vector<16x16x16xf32> to vector<16x1x16xf32>
    %158 = vector.shape_cast %157 : vector<16x1x16xf32> to vector<16x16xf32>
    %159 = vector.extract_strided_slice %128 {offsets = [0, 15, 0], sizes = [16, 1, 16], strides = [1, 1, 1]} : vector<16x16x16xf32> to vector<16x1x16xf32>
    %160 = vector.shape_cast %159 : vector<16x1x16xf32> to vector<16x16xf32>
    %161 = tpu.concatenate %130, %132, %134, %136, %138, %140, %142, %144, %146, %148, %150, %152, %154, %156, %158, %160 in 1 : vector<16x16xf32>, vector<16x16xf32>, vector<16x16xf32>, vector<16x16xf32>, vector<16x16xf32>, vector<16x16xf32>, vector<16x16xf32>, vector<16x16xf32>, vector<16x16xf32>, vector<16x16xf32>, vector<16x16xf32>, vector<16x16xf32>, vector<16x16xf32>, vector<16x16xf32>, vector<16x16xf32>, vector<16x16xf32> -> vector<16x256xf32>
    %c0_63 = arith.constant 0 : index
    %c0_64 = arith.constant 0 : index
    %c0_65 = arith.constant 0 : index
    %162 = vector.load %arg9[%c0_63, %c0_64, %c0_65] : memref<1x16x256xf32, #tpu.memory_space<vmem>>, vector<1x16x256xf32>
    %163 = vector.shape_cast %162 : vector<1x16x256xf32> to vector<16x256xf32>
    %164 = vector.shape_cast %161 : vector<16x256xf32> to vector<1x16x256xf32>
    tpu.vector_store %arg9[%c0_63, %c0_64, %c0_65], %164 {strides = array<i32>} : memref<1x16x256xf32, #tpu.memory_space<vmem>>, vector<1x16x256xf32>,
    return
  }
  func.func @transform_0(%arg0: i32) -> (i32, i32, i32, i32) {
    %c0_i32 = arith.constant 0 : i32
    %c0_i32_0 = arith.constant 0 : i32
    %c0_i32_1 = arith.constant 0 : i32
    %c0_i32_2 = arith.constant 0 : i32
    return %arg0, %c0_i32, %c0_i32_0, %c0_i32_1 : i32, i32, i32, i32
  }
  func.func @transform_1(%arg0: i32) -> (i32, i32, i32, i32) {
    %c0_i32 = arith.constant 0 : i32
    %c0_i32_0 = arith.constant 0 : i32
    %c0_i32_1 = arith.constant 0 : i32
    %c0_i32_2 = arith.constant 0 : i32
    return %arg0, %c0_i32, %c0_i32_0, %c0_i32_1 : i32, i32, i32, i32
  }
  func.func @transform_2(%arg0: i32) -> (i32, i32) {
    %c0_i32 = arith.constant 0 : i32
    %c0_i32_0 = arith.constant 0 : i32
    %c0_i32_1 = arith.constant 0 : i32
    return %c0_i32, %c0_i32_0 : i32, i32
  }
  func.func @transform_3(%arg0: i32) -> (i32, i32) {
    %c0_i32 = arith.constant 0 : i32
    %c0_i32_0 = arith.constant 0 : i32
    %c0_i32_1 = arith.constant 0 : i32
    return %c0_i32, %c0_i32_0 : i32, i32
  }
  func.func @transform_4(%arg0: i32) -> (i32, i32) {
    %c0_i32 = arith.constant 0 : i32
    %c0_i32_0 = arith.constant 0 : i32
    %c0_i32_1 = arith.constant 0 : i32
    return %c0_i32, %c0_i32_0 : i32, i32
  }
  func.func @transform_5(%arg0: i32) -> (i32, i32) {
    %c0_i32 = arith.constant 0 : i32
    %c0_i32_0 = arith.constant 0 : i32
    %c0_i32_1 = arith.constant 0 : i32
    return %c0_i32, %c0_i32_0 : i32, i32
  }
  func.func @transform_6(%arg0: i32) -> (i32, i32) {
    %c0_i32 = arith.constant 0 : i32
    %c0_i32_0 = arith.constant 0 : i32
    %c0_i32_1 = arith.constant 0 : i32
    return %c0_i32, %c0_i32_0 : i32, i32
  }
  func.func @transform_7(%arg0: i32) -> (i32, i32) {
    %c0_i32 = arith.constant 0 : i32
    %c0_i32_0 = arith.constant 0 : i32
    %c0_i32_1 = arith.constant 0 : i32
    return %c0_i32, %c0_i32_0 : i32, i32
  }
  func.func @transform_8(%arg0: i32) -> (i32, i32, i32) {
    %c0_i32 = arith.constant 0 : i32
    %c0_i32_0 = arith.constant 0 : i32
    %c0_i32_1 = arith.constant 0 : i32
    return %arg0, %c0_i32, %c0_i32_0 : i32, i32, i32
  }
}

</mosaic_0001>

<llo_original>
// kernel: tpu_custom_call.1
$region0: #{tpu_custom_call.1}
  #allocation0 [shape = 'u32[]', space=smem, size = 0x4, offset = 0x4, fixed_abs, tag = 'smem constant byte address 0x4 - core index']
  #allocation1 [shape = 'u32[144,128]{1,0:T(1,128)}', space=vmem, size = 0x12000, scoped, tag = 'internal scratch']
  #allocation2 [shape = 'f32[10,10,32]{2,1,0:T(8,128)}', space=vmem, size = 0x14000, scoped, tag = 'scratch operand']
  #allocation3 [shape = 'f32[10,10,16]{2,1,0:T(8,128)}', space=vmem, size = 0x14000, scoped, tag = 'scratch operand']
  #allocation4 [shape = 'f32[18,18,16]{2,1,0:T(8,128)}', space=vmem, size = 0x36000, scoped, tag = 'scratch operand']
  %s0 = inlined_call_operand.hbm [shape: f32[2,8,8,32], index: 0, kind: input, shape index: {}]
  %s1 = inlined_call_operand.vmem [shape: f32[2,16,16,16], index: 1, kind: input, shape index: {}]
  %s2 = inlined_call_operand.vmem [shape: f32[288,16], index: 2, kind: input, shape index: {}]
  %s3 = inlined_call_operand.vmem [shape: f32[1,16], index: 3, kind: input, shape index: {}]
  %s4 = inlined_call_operand.vmem [shape: f32[1,16], index: 4, kind: input, shape index: {}]
  %s5 = inlined_call_operand.vmem [shape: f32[144,16], index: 5, kind: input, shape index: {}]
  %s6 = inlined_call_operand.vmem [shape: f32[1,16], index: 6, kind: input, shape index: {}]
  %s7 = inlined_call_operand.vmem [shape: f32[1,16], index: 7, kind: input, shape index: {}]
  %s8 = inlined_call_operand.hbm [shape: f32[2,16,256], index: 8, kind: output, shape index: {}]
  %s9 = sld [smem:[#allocation0]]
  $region69: #{tpu_custom_call.1} parent=0
    _
  %s11 = ssub.s32 1, %s9
  %s12 = scalar_select 0, %s11, %s9
  $region1: #{tpu_custom_call.1} parent=0
    #allocation5 [shape = 'u8[65536]{0}', space=vmem, size = 0x10000, scoped, tag = 'input window, operand 0']
    #allocation6 [shape = 's32[2]{0}', space=sflag, size = 0x8, scoped, tag = 'scoped memory for tpu_custom_call.1']
    #allocation7 [shape = 's32[2]{0}', space=sflag, size = 0x8, scoped, tag = 'scoped memory for tpu_custom_call.1']
    #allocation8 [shape = 'u8[32768]{0}', space=vmem, size = 0x8000, scoped, tag = 'output window, operand 0']
    %13 = vsyncpa [#allocation6], 0
    %s14 = scalar_lea.sflag [#allocation6], 1
    %15 = vsyncpa %s14, 0
    %16 = vsyncpa [#allocation7], 0
    %s17 = scalar_lea.sflag [#allocation7], 1
    %18 = vsyncpa %s17, 0
    loop: start=0, step=1, limit=4
    $region2: #{tpu_custom_call.1} parent=1 // loop_pre_header
      _
    $region3: #{tpu_custom_call.1} parent=1 // loop_header
      %s20 = sphi 0, %s24
      %p21 = scmp.ge.s32.totalorder %s20, 4
      %s30 = sphi 0, %s32
      %s33 = sphi 0, %s30
      %s34 = sphi 0, %s33
      %s50 = sphi 0, %s34
      %s56 = sphi 0, %s58
      %s59 = sphi 0, %s56
      %s60 = sphi 0, %s59
      %s76 = sphi 0, %s60
      %s80 = sphi 0, %s80
      %s82 = sphi 0, %s80
      %s83 = sphi 0, %s82
      %s97 = sphi 0, %s83
      %s101 = sphi 0, %s101
      %s103 = sphi 0, %s101
      %s104 = sphi 0, %s103
      %s118 = sphi 0, %s104
      %s122 = sphi 0, %s122
      %s124 = sphi 0, %s122
      %s125 = sphi 0, %s124
      %s139 = sphi 0, %s125
      %s143 = sphi 0, %s143
      %s145 = sphi 0, %s143
      %s146 = sphi 0, %s145
      %s160 = sphi 0, %s146
      %s164 = sphi 0, %s164
      %s166 = sphi 0, %s164
      %s167 = sphi 0, %s166
      %s181 = sphi 0, %s167
      %s185 = sphi 0, %s185
      %s187 = sphi 0, %s185
      %s188 = sphi 0, %s187
      %s202 = sphi 0, %s188
      %s208 = sphi 0, %s210
      %s211 = sphi 0, %s208
      %s212 = sphi 0, %s211
      %s228 = sphi 0, %s212
    $region4: #{tpu_custom_call.1} parent=1 // loop_header_branch
      %23 = sbr.rel (%p21) target = $region8
    $region5: #{tpu_custom_call.1} parent=1 // loop_body
      %s25 = ssub.s32 %s20, 1
      %s26 = ssub.s32 %s20, 2
      %s27 = sadd.s32 %s20, 1
      %s28 = ssub.s32 %s20, %s27
      %p29 = scmp.eq.s32.totalorder %s28, 0
      %s31 = sadd.s32 %s30, 1
      %s32 = scalar_select %p29, %s30, %s31
      %p35 = pneg %p29
      %p36 = scmp.eq.s32.totalorder %s20, 1
      %p37 = por %p35, %p36
      %p38 = scmp.ne.s32.totalorder %s30, %s33
      %p39 = scmp.eq.s32.totalorder %s20, 0
      %p40 = por %p38, %p39
      %p41 = scmp.ne.s32.totalorder %s30, %s33
      %p42 = scmp.eq.s32.totalorder %s25, 1
      %p43 = por %p41, %p42
      %p44 = scmp.ne.s32.totalorder %s33, %s34
      %p45 = scmp.eq.s32.totalorder %s25, 0
      %p46 = por %p44, %p45
      %p47 = scmp.ne.s32.totalorder %s33, %s34
      %p48 = scmp.eq.s32.totalorder %s26, 1
      %p49 = por %p47, %p48
      %p51 = scmp.ne.s32.totalorder %s34, %s50
      %p52 = scmp.eq.s32.totalorder %s26, 0
      %p53 = por %p51, %p52
      %s54 = ssub.s32 %s20, %s27
      %p55 = scmp.eq.s32.totalorder %s54, 0
      %s57 = sadd.s32 %s56, 1
      %s58 = scalar_select %p55, %s56, %s57
      %p61 = pneg %p55
      %p62 = scmp.eq.s32.totalorder %s20, 1
      %p63 = por %p61, %p62
      %p64 = scmp.ne.s32.totalorder %s56, %s59
      %p65 = scmp.eq.s32.totalorder %s20, 0
      %p66 = por %p64, %p65
      %p67 = scmp.ne.s32.totalorder %s56, %s59
      %p68 = scmp.eq.s32.totalorder %s25, 1
      %p69 = por %p67, %p68
      %p70 = scmp.ne.s32.totalorder %s59, %s60
      %p71 = scmp.eq.s32.totalorder %s25, 0
      %p72 = por %p70, %p71
      %p73 = scmp.ne.s32.totalorder %s59, %s60
      %p74 = scmp.eq.s32.totalorder %s26, 1
      %p75 = por %p73, %p74
      %p77 = scmp.ne.s32.totalorder %s60, %s76
      %p78 = scmp.eq.s32.totalorder %s26, 0
      %p79 = por %p77, %p78
      %s81 = sadd.s32 %s80, 1
      %p84 = scmp.eq.s32.totalorder %s20, 1
      %p85 = scmp.ne.s32.totalorder %s80, %s82
      %p86 = scmp.eq.s32.totalorder %s20, 0
      %p87 = por %p85, %p86
      %p88 = scmp.ne.s32.totalorder %s80, %s82
      %p89 = scmp.eq.s32.totalorder %s25, 1
      %p90 = por %p88, %p89
      %p91 = scmp.ne.s32.totalorder %s82, %s83
      %p92 = scmp.eq.s32.totalorder %s25, 0
      %p93 = por %p91, %p92
      %p94 = scmp.ne.s32.totalorder %s82, %s83
      %p95 = scmp.eq.s32.totalorder %s26, 1
      %p96 = por %p94, %p95
      %p98 = scmp.ne.s32.totalorder %s83, %s97
      %p99 = scmp.eq.s32.totalorder %s26, 0
      %p100 = por %p98, %p99
      %s102 = sadd.s32 %s101, 1
      %p105 = scmp.eq.s32.totalorder %s20, 1
      %p106 = scmp.ne.s32.totalorder %s101, %s103
      %p107 = scmp.eq.s32.totalorder %s20, 0
      %p108 = por %p106, %p107
      %p109 = scmp.ne.s32.totalorder %s101, %s103
      %p110 = scmp.eq.s32.totalorder %s25, 1
      %p111 = por %p109, %p110
      %p112 = scmp.ne.s32.totalorder %s103, %s104
      %p113 = scmp.eq.s32.totalorder %s25, 0
      %p114 = por %p112, %p113
      %p115 = scmp.ne.s32.totalorder %s103, %s104
      %p116 = scmp.eq.s32.totalorder %s26, 1
      %p117 = por %p115, %p116
      %p119 = scmp.ne.s32.totalorder %s104, %s118
      %p120 = scmp.eq.s32.totalorder %s26, 0
      %p121 = por %p119, %p120
      %s123 = sadd.s32 %s122, 1
      %p126 = scmp.eq.s32.totalorder %s20, 1
      %p127 = scmp.ne.s32.totalorder %s122, %s124
      %p128 = scmp.eq.s32.totalorder %s20, 0
      %p129 = por %p127, %p128
      %p130 = scmp.ne.s32.totalorder %s122, %s124
      %p131 = scmp.eq.s32.totalorder %s25, 1
      %p132 = por %p130, %p131
      %p133 = scmp.ne.s32.totalorder %s124, %s125
      %p134 = scmp.eq.s32.totalorder %s25, 0
      %p135 = por %p133, %p134
      %p136 = scmp.ne.s32.totalorder %s124, %s125
      %p137 = scmp.eq.s32.totalorder %s26, 1
      %p138 = por %p136, %p137
      %p140 = scmp.ne.s32.totalorder %s125, %s139
      %p141 = scmp.eq.s32.totalorder %s26, 0
      %p142 = por %p140, %p141
      %s144 = sadd.s32 %s143, 1
      %p147 = scmp.eq.s32.totalorder %s20, 1
      %p148 = scmp.ne.s32.totalorder %s143, %s145
      %p149 = scmp.eq.s32.totalorder %s20, 0
      %p150 = por %p148, %p149
      %p151 = scmp.ne.s32.totalorder %s143, %s145
      %p152 = scmp.eq.s32.totalorder %s25, 1
      %p153 = por %p151, %p152
      %p154 = scmp.ne.s32.totalorder %s145, %s146
      %p155 = scmp.eq.s32.totalorder %s25, 0
      %p156 = por %p154, %p155
      %p157 = scmp.ne.s32.totalorder %s145, %s146
      %p158 = scmp.eq.s32.totalorder %s26, 1
      %p159 = por %p157, %p158
      %p161 = scmp.ne.s32.totalorder %s146, %s160
      %p162 = scmp.eq.s32.totalorder %s26, 0
      %p163 = por %p161, %p162
      %s165 = sadd.s32 %s164, 1
      %p168 = scmp.eq.s32.totalorder %s20, 1
      %p169 = scmp.ne.s32.totalorder %s164, %s166
      %p170 = scmp.eq.s32.totalorder %s20, 0
      %p171 = por %p169, %p170
      %p172 = scmp.ne.s32.totalorder %s164, %s166
      %p173 = scmp.eq.s32.totalorder %s25, 1
      %p174 = por %p172, %p173
      %p175 = scmp.ne.s32.totalorder %s166, %s167
      %p176 = scmp.eq.s32.totalorder %s25, 0
      %p177 = por %p175, %p176
      %p178 = scmp.ne.s32.totalorder %s166, %s167
      %p179 = scmp.eq.s32.totalorder %s26, 1
      %p180 = por %p178, %p179
      %p182 = scmp.ne.s32.totalorder %s167, %s181
      %p183 = scmp.eq.s32.totalorder %s26, 0
      %p184 = por %p182, %p183
      %s186 = sadd.s32 %s185, 1
      %p189 = scmp.eq.s32.totalorder %s20, 1
      %p190 = scmp.ne.s32.totalorder %s185, %s187
      %p191 = scmp.eq.s32.totalorder %s20, 0
      %p192 = por %p190, %p191
      %p193 = scmp.ne.s32.totalorder %s185, %s187
      %p194 = scmp.eq.s32.totalorder %s25, 1
      %p195 = por %p193, %p194
      %p196 = scmp.ne.s32.totalorder %s187, %s188
      %p197 = scmp.eq.s32.totalorder %s25, 0
      %p198 = por %p196, %p197
      %p199 = scmp.ne.s32.totalorder %s187, %s188
      %p200 = scmp.eq.s32.totalorder %s26, 1
      %p201 = por %p199, %p200
      %p203 = scmp.ne.s32.totalorder %s188, %s202
      %p204 = scmp.eq.s32.totalorder %s26, 0
      %p205 = por %p203, %p204
      %s206 = ssub.s32 %s20, %s27
      %p207 = scmp.eq.s32.totalorder %s206, 0
      %s209 = sadd.s32 %s208, 1
      %s210 = scalar_select %p207, %s208, %s209
      %p213 = pneg %p207
      %p214 = scmp.eq.s32.totalorder %s20, 1
      %p215 = por %p213, %p214
      %p216 = scmp.ne.s32.totalorder %s208, %s211
      %p217 = scmp.eq.s32.totalorder %s20, 0
      %p218 = por %p216, %p217
      %p219 = scmp.ne.s32.totalorder %s208, %s211
      %p220 = scmp.eq.s32.totalorder %s25, 1
      %p221 = por %p219, %p220
      %p222 = scmp.ne.s32.totalorder %s211, %s212
      %p223 = scmp.eq.s32.totalorder %s25, 0
      %p224 = por %p222, %p223
      %p225 = scmp.ne.s32.totalorder %s211, %s212
      %p226 = scmp.eq.s32.totalorder %s26, 1
      %p227 = por %p225, %p226
      %p229 = scmp.ne.s32.totalorder %s212, %s228
      %p230 = scmp.eq.s32.totalorder %s26, 0
      %p231 = por %p229, %p230
      %p232 = scmp.le.s32.totalorder 1, %s20
      %p233 = scmp.lt.s32.totalorder %s20, 3
      %p234 = pnand %p232, %p233
      %p235 = pneg %p234
      // Predicated region
      $region9: #{tpu_custom_call.1} parent=5 // pred_check
        _
      $region10: #{tpu_custom_call.1} parent=5 // pred_check_branch
        %237 = sbr.rel (%p234) target = $region12
      $region11: #{tpu_custom_call.1} parent=5 // pred_region
        %s238 = ssub.s32 %s20, 1
        // Predicated region
        $region13: #{tpu_custom_call.1} parent=11 // pred_check
          %p239 = pneg %p93
        $region14: #{tpu_custom_call.1} parent=11 // pred_check_branch
          %241 = sbr.rel (%p239) target = $region16
        $region15: #{tpu_custom_call.1} parent=11 // pred_region
          _
        $region16: #{tpu_custom_call.1} parent=11 // pred_fallthru
          _
        // Predicated region
        $region17: #{tpu_custom_call.1} parent=11 // pred_check
          %p242 = pneg %p114
        $region18: #{tpu_custom_call.1} parent=11 // pred_check_branch
          %244 = sbr.rel (%p242) target = $region20
        $region19: #{tpu_custom_call.1} parent=11 // pred_region
          _
        $region20: #{tpu_custom_call.1} parent=11 // pred_fallthru
          _
        // Predicated region
        $region21: #{tpu_custom_call.1} parent=11 // pred_check
          %p245 = pneg %p135
        $region22: #{tpu_custom_call.1} parent=11 // pred_check_branch
          %247 = sbr.rel (%p245) target = $region24
        $region23: #{tpu_custom_call.1} parent=11 // pred_region
          _
        $region24: #{tpu_custom_call.1} parent=11 // pred_fallthru
          _
        // Predicated region
        $region25: #{tpu_custom_call.1} parent=11 // pred_check
          %p248 = pneg %p156
        $region26: #{tpu_custom_call.1} parent=11 // pred_check_branch
          %250 = sbr.rel (%p248) target = $region28
        $region27: #{tpu_custom_call.1} parent=11 // pred_region
          _
        $region28: #{tpu_custom_call.1} parent=11 // pred_fallthru
          _
        // Predicated region
        $region29: #{tpu_custom_call.1} parent=11 // pred_check
          %p251 = pneg %p177
        $region30: #{tpu_custom_call.1} parent=11 // pred_check_branch
          %253 = sbr.rel (%p251) target = $region32
        $region31: #{tpu_custom_call.1} parent=11 // pred_region
          _
        $region32: #{tpu_custom_call.1} parent=11 // pred_fallthru
          _
        // Predicated region
        $region33: #{tpu_custom_call.1} parent=11 // pred_check
          %p254 = pneg %p198
        $region34: #{tpu_custom_call.1} parent=11 // pred_check_branch
          %256 = sbr.rel (%p254) target = $region36
        $region35: #{tpu_custom_call.1} parent=11 // pred_region
          _
        $region36: #{tpu_custom_call.1} parent=11 // pred_fallthru
          _
      $region12: #{tpu_custom_call.1} parent=5 // pred_fallthru
        _
      %p257 = scmp.lt.s32.totalorder %s20, 2
      // Predicated region
      $region37: #{tpu_custom_call.1} parent=5 // pred_check
        %p258 = pneg %p257
      $region38: #{tpu_custom_call.1} parent=5 // pred_check_branch
        %260 = sbr.rel (%p258) target = $region40
      $region39: #{tpu_custom_call.1} parent=5 // pred_region
        // Predicated region
        $region41: #{tpu_custom_call.1} parent=39 // pred_check
          %p261 = pneg %p40
        $region42: #{tpu_custom_call.1} parent=39 // pred_check_branch
          %263 = sbr.rel (%p261) target = $region44
        $region43: #{tpu_custom_call.1} parent=39 // pred_region
          %s264 = sand.u32 %s30, 1
          %s265 = scalar_lea.sflag [#allocation6], %s264
          %s266 = sand.u32 %s30, 1
          %s267 = smul.addr %s266, 64
          %s268 = scalar_lea.vmem [#allocation5], %s267
          %s270 = ssub.s32 1024, 1024
          %271 = vsyncadd %s265, %s270
          %s272 = smul.addr %s20, 8
          %s273 = smul.addr %s272, 128
          %s274 = scalar_lea.hbm %s0, %s273
          %s275 = sshll.u32 %s268, 4
          %s276 = int_to_ptr.vmem [resolvable:$true] %s275
          %281 = dma.hbm_to_vmem [thread:$0]  %s274, 1024, %s276, %s265, 128, 128, 8
        $region44: #{tpu_custom_call.1} parent=39 // pred_fallthru
          _
        // Predicated region
        $region45: #{tpu_custom_call.1} parent=39 // pred_check
          %p282 = pneg %p66
        $region46: #{tpu_custom_call.1} parent=39 // pred_check_branch
          %284 = sbr.rel (%p282) target = $region48
        $region47: #{tpu_custom_call.1} parent=39 // pred_region
          %p285 = scmp.lt.s32.totalorder %s20, 1
          %s286 = scalar_select %p285, %s20, 1
          %s287 = smul.addr %s286, 32
          %s288 = smul.addr %s287, 8
          %s289 = scalar_lea.vmem %s1, %s288
        $region48: #{tpu_custom_call.1} parent=39 // pred_fallthru
          _
      $region40: #{tpu_custom_call.1} parent=5 // pred_fallthru
        _
      %p290 = scmp.le.s32.totalorder 1, %s20
      %p291 = scmp.lt.s32.totalorder %s20, 3
      %p292 = pnand %p290, %p291
      %p293 = pneg %p292
      // Predicated region
      $region49: #{tpu_custom_call.1} parent=5 // pred_check
        _
      $region50: #{tpu_custom_call.1} parent=5 // pred_check_branch
        %295 = sbr.rel (%p292) target = $region52
      $region51: #{tpu_custom_call.1} parent=5 // pred_region
        %s296 = ssub.s32 %s20, 1
        %s297 = sand.u32 %s33, 1
        %s298 = scalar_lea.sflag [#allocation6], %s297
        %s299 = sand.u32 %s33, 1
        %s300 = smul.addr %s299, 64
        %s301 = scalar_lea.vmem [#allocation5], %s300
        // Predicated region
        $region53: #{tpu_custom_call.1} parent=51 // pred_check
          %p302 = pneg %p46
        $region54: #{tpu_custom_call.1} parent=51 // pred_check_branch
          %304 = sbr.rel (%p302) target = $region56
        $region55: #{tpu_custom_call.1} parent=51 // pred_region
          %305 = dma.done %s298, 1024
        $region56: #{tpu_custom_call.1} parent=51 // pred_fallthru
          _
        %s306 = sand.u32 %s33, 1
        %s307 = scalar_lea.sflag [#allocation6], %s306
        %s308 = sand.u32 %s33, 1
        %s309 = smul.addr %s308, 64
        %s310 = scalar_lea.vmem [#allocation5], %s309
        %p311 = pneg %p46
        %p312 = pneg %p43
        %p313 = scmp.lt.s32.totalorder %s25, 1
        %s314 = scalar_select %p313, %s25, 1
        %s315 = smul.addr %s314, 32
        %s316 = smul.addr %s315, 8
        %s317 = scalar_lea.vmem %s1, %s316
        %p318 = pneg %p72
        %p319 = pneg %p69
        %p320 = pneg %p93
        %p321 = pneg %p90
        %p322 = pneg %p114
        %p323 = pneg %p111
        %p324 = pneg %p135
        %p325 = pneg %p132
        %p326 = pneg %p156
        %p327 = pneg %p153
        %p328 = pneg %p177
        %p329 = pneg %p174
        %p330 = pneg %p198
        %p331 = pneg %p195
        %p332 = pneg %p224
        %p333 = pneg %p221
        %s334 = sand.u32 %s211, 1
        %s335 = scalar_lea.sflag [#allocation7], %s334
        %s336 = sand.u32 %s211, 1
        %s337 = smul.addr %s336, 32
        %s338 = scalar_lea.vmem [#allocation8], %s337
        %p339 = scmp.lt.s32.totalorder %s25, 1
        %s340 = scalar_select %p339, %s25, 1
        %s341 = smul.addr %s340, 32
        %s342 = smul.addr %s341, 8
        %s343 = scalar_lea.vmem %s1, %s342
        %vm344 = vcmask 261120
        %345 = vst.msk [vmem:[#allocation2] sm:$0xff] %vm344, 0.0
        %vm346 = vcmask 254976
        %347 = vst.msk [vmem:[#allocation2 + $0x8] sm:$0x3] %vm346, 0.0
        %348 = vst.msk [vmem:[#allocation2 + $0x10] sm:$0xff] %vm344, 0.0
        %349 = vst.msk [vmem:[#allocation2 + $0x18] sm:$0x3] %vm346, 0.0
        %350 = vst.msk [vmem:[#allocation2 + $0x20] sm:$0xff] %vm344, 0.0
        %351 = vst.msk [vmem:[#allocation2 + $0x28] sm:$0x3] %vm346, 0.0
        %352 = vst.msk [vmem:[#allocation2 + $0x30] sm:$0xff] %vm344, 0.0
        %353 = vst.msk [vmem:[#allocation2 + $0x38] sm:$0x3] %vm346, 0.0
        %354 = vst.msk [vmem:[#allocation2 + $0x40] sm:$0xff] %vm344, 0.0
        %355 = vst.msk [vmem:[#allocation2 + $0x48] sm:$0x3] %vm346, 0.0
        %356 = vst.msk [vmem:[#allocation2 + $0x50] sm:$0xff] %vm344, 0.0
        %357 = vst.msk [vmem:[#allocation2 + $0x58] sm:$0x3] %vm346, 0.0
        %358 = vst.msk [vmem:[#allocation2 + $0x60] sm:$0xff] %vm344, 0.0
        %359 = vst.msk [vmem:[#allocation2 + $0x68] sm:$0x3] %vm346, 0.0
        %360 = vst.msk [vmem:[#allocation2 + $0x70] sm:$0xff] %vm344, 0.0
        %361 = vst.msk [vmem:[#allocation2 + $0x78] sm:$0x3] %vm346, 0.0
        %362 = vst.msk [vmem:[#allocation2 + $0x80] sm:$0xff] %vm344, 0.0
        %363 = vst.msk [vmem:[#allocation2 + $0x88] sm:$0x3] %vm346, 0.0
        %364 = vst.msk [vmem:[#allocation2 + $0x90] sm:$0xff] %vm344, 0.0
        %365 = vst.msk [vmem:[#allocation2 + $0x98] sm:$0x3] %vm346, 0.0
        %v366 = vld [vmem:[%s301] sm:$0xff]
        %v367 = vld [vmem:[%s301 + $0x8] sm:$0xff]
        %v368 = vld [vmem:[%s301 + $0x10] sm:$0xff]
        %v369 = vld [vmem:[%s301 + $0x18] sm:$0xff]
        %v370 = vld [vmem:[%s301 + $0x20] sm:$0xff]
        %v371 = vld [vmem:[%s301 + $0x28] sm:$0xff]
        %v372 = vld [vmem:[%s301 + $0x30] sm:$0xff]
        %v373 = vld [vmem:[%s301 + $0x38] sm:$0xff]
        %s374 = scalar_lea.vmem [#allocation2], 16
        %375 = vst.msk [vmem:[%s374 + $0x1] sm:$0xff] %vm344, %v366
        %376 = vst.msk [vmem:[%s374 + $0x11] sm:$0xff] %vm344, %v367
        %377 = vst.msk [vmem:[%s374 + $0x21] sm:$0xff] %vm344, %v368
        %378 = vst.msk [vmem:[%s374 + $0x31] sm:$0xff] %vm344, %v369
        %379 = vst.msk [vmem:[%s374 + $0x41] sm:$0xff] %vm344, %v370
        %380 = vst.msk [vmem:[%s374 + $0x51] sm:$0xff] %vm344, %v371
        %381 = vst.msk [vmem:[%s374 + $0x61] sm:$0xff] %vm344, %v372
        %382 = vst.msk [vmem:[%s374 + $0x71] sm:$0xff] %vm344, %v373
        %v383 = vld [vmem:[#allocation2] sm:$0xff]
        %v384 = vld [vmem:[#allocation2 + $0x8] sm:$0x3]
        %v385 = vld [vmem:[#allocation2 + $0x10] sm:$0xff]
        %v386 = vld [vmem:[#allocation2 + $0x18] sm:$0x3]
        %v387 = vld [vmem:[#allocation2 + $0x20] sm:$0xff]
        %v388 = vld [vmem:[#allocation2 + $0x28] sm:$0x3]
        %v389 = vld [vmem:[#allocation2 + $0x30] sm:$0xff]
        %v390 = vld [vmem:[#allocation2 + $0x38] sm:$0x3]
        %v391 = vld [vmem:[#allocation2 + $0x40] sm:$0xff]
        %v392 = vld [vmem:[#allocation2 + $0x48] sm:$0x3]
        %v393 = vld [vmem:[#allocation2 + $0x50] sm:$0xff]
        %v394 = vld [vmem:[#allocation2 + $0x58] sm:$0x3]
        %v395 = vld [vmem:[#allocation2 + $0x60] sm:$0xff]
        %v396 = vld [vmem:[#allocation2 + $0x68] sm:$0x3]
        %v397 = vld [vmem:[#allocation2 + $0x70] sm:$0xff]
        %v398 = vld [vmem:[#allocation2 + $0x78] sm:$0x3]
        %v399 = vld [vmem:[#allocation2 + $0x80] sm:$0xff]
        %v400 = vld [vmem:[#allocation2 + $0x88] sm:$0x3]
        %v401 = vld [vmem:[#allocation2 + $0x90] sm:$0xff]
        %v402 = vld [vmem:[#allocation2 + $0x98] sm:$0x3]
        %vm419 = vcmask 1046528
        %v420 = vrot.slane %v383, 1
        %v421 = vrot.slane %v384, 1
        %v422 = vsel %vm419, %v420, %v421
        %v423 = vrot.slane %v385, 1
        %v424 = vrot.slane %v386, 1
        %v425 = vsel %vm419, %v423, %v424
        %v426 = vrot.slane %v387, 1
        %v427 = vrot.slane %v388, 1
        %v428 = vsel %vm419, %v426, %v427
        %v429 = vrot.slane %v389, 1
        %v430 = vrot.slane %v390, 1
        %v431 = vsel %vm419, %v429, %v430
        %v432 = vrot.slane %v391, 1
        %v433 = vrot.slane %v392, 1
        %v434 = vsel %vm419, %v432, %v433
        %v435 = vrot.slane %v393, 1
        %v436 = vrot.slane %v394, 1
        %v437 = vsel %vm419, %v435, %v436
        %v438 = vrot.slane %v395, 1
        %v439 = vrot.slane %v396, 1
        %v440 = vsel %vm419, %v438, %v439
        %v441 = vrot.slane %v397, 1
        %v442 = vrot.slane %v398, 1
        %v443 = vsel %vm419, %v441, %v442
        %vm444 = vcmask 1045504
        %v445 = vrot.slane %v383, 2
        %v446 = vrot.slane %v384, 2
        %v447 = vsel %vm444, %v445, %v446
        %v448 = vrot.slane %v385, 2
        %v449 = vrot.slane %v386, 2
        %v450 = vsel %vm444, %v448, %v449
        %v451 = vrot.slane %v387, 2
        %v452 = vrot.slane %v388, 2
        %v453 = vsel %vm444, %v451, %v452
        %v454 = vrot.slane %v389, 2
        %v455 = vrot.slane %v390, 2
        %v456 = vsel %vm444, %v454, %v455
        %v457 = vrot.slane %v391, 2
        %v458 = vrot.slane %v392, 2
        %v459 = vsel %vm444, %v457, %v458
        %v460 = vrot.slane %v393, 2
        %v461 = vrot.slane %v394, 2
        %v462 = vsel %vm444, %v460, %v461
        %v463 = vrot.slane %v395, 2
        %v464 = vrot.slane %v396, 2
        %v465 = vsel %vm444, %v463, %v464
        %v466 = vrot.slane %v397, 2
        %v467 = vrot.slane %v398, 2
        %v468 = vsel %vm444, %v466, %v467
        %v471 = vrot.slane %v399, 1
        %v472 = vrot.slane %v400, 1
        %v473 = vsel %vm419, %v471, %v472
        %v482 = vrot.slane %v399, 2
        %v483 = vrot.slane %v400, 2
        %v484 = vsel %vm444, %v482, %v483
        %v487 = vrot.slane %v401, 1
        %v488 = vrot.slane %v402, 1
        %v489 = vsel %vm419, %v487, %v488
        %v490 = vrot.slane %v401, 2
        %v491 = vrot.slane %v402, 2
        %v492 = vsel %vm444, %v490, %v491
        %493 = vrot.lane.b32.xlu0 %v422, 32
        %v494 = vpop.permute.xlu0 %493
        %495 = vrot.lane.b32.xlu0 %v425, 32
        %v496 = vpop.permute.xlu0 %495
        %497 = vrot.lane.b32.xlu0 %v428, 32
        %v498 = vpop.permute.xlu0 %497
        %499 = vrot.lane.b32.xlu0 %v431, 32
        %v500 = vpop.permute.xlu0 %499
        %501 = vrot.lane.b32.xlu0 %v434, 32
        %v502 = vpop.permute.xlu0 %501
        %503 = vrot.lane.b32.xlu0 %v437, 32
        %v504 = vpop.permute.xlu0 %503
        %505 = vrot.lane.b32.xlu0 %v440, 32
        %v506 = vpop.permute.xlu0 %505
        %507 = vrot.lane.b32.xlu0 %v443, 32
        %v508 = vpop.permute.xlu0 %507
        %517 = vrot.lane.b32.xlu0 %v447, 64
        %v518 = vpop.permute.xlu0 %517
        %519 = vrot.lane.b32.xlu0 %v450, 64
        %v520 = vpop.permute.xlu0 %519
        %521 = vrot.lane.b32.xlu0 %v453, 64
        %v522 = vpop.permute.xlu0 %521
        %523 = vrot.lane.b32.xlu0 %v456, 64
        %v524 = vpop.permute.xlu0 %523
        %525 = vrot.lane.b32.xlu0 %v459, 64
        %v526 = vpop.permute.xlu0 %525
        %527 = vrot.lane.b32.xlu0 %v462, 64
        %v528 = vpop.permute.xlu0 %527
        %529 = vrot.lane.b32.xlu0 %v465, 64
        %v530 = vpop.permute.xlu0 %529
        %531 = vrot.lane.b32.xlu0 %v468, 64
        %v532 = vpop.permute.xlu0 %531
        %541 = vrot.lane.b32.xlu0 %v385, 96
        %v542 = vpop.permute.xlu0 %541
        %543 = vrot.lane.b32.xlu0 %v387, 96
        %v544 = vpop.permute.xlu0 %543
        %545 = vrot.lane.b32.xlu0 %v389, 96
        %v546 = vpop.permute.xlu0 %545
        %547 = vrot.lane.b32.xlu0 %v391, 96
        %v548 = vpop.permute.xlu0 %547
        %549 = vrot.lane.b32.xlu0 %v393, 96
        %v550 = vpop.permute.xlu0 %549
        %551 = vrot.lane.b32.xlu0 %v395, 96
        %v552 = vpop.permute.xlu0 %551
        %553 = vrot.lane.b32.xlu0 %v397, 96
        %v554 = vpop.permute.xlu0 %553
        %555 = vrot.lane.b32.xlu0 %v399, 96
        %v556 = vpop.permute.xlu0 %555
        %565 = vrot.lane.b32.xlu0 %v450, 32
        %v566 = vpop.permute.xlu0 %565
        %567 = vrot.lane.b32.xlu0 %v453, 32
        %v568 = vpop.permute.xlu0 %567
        %569 = vrot.lane.b32.xlu0 %v456, 32
        %v570 = vpop.permute.xlu0 %569
        %571 = vrot.lane.b32.xlu0 %v459, 32
        %v572 = vpop.permute.xlu0 %571
        %573 = vrot.lane.b32.xlu0 %v462, 32
        %v574 = vpop.permute.xlu0 %573
        %575 = vrot.lane.b32.xlu0 %v465, 32
        %v576 = vpop.permute.xlu0 %575
        %577 = vrot.lane.b32.xlu0 %v468, 32
        %v578 = vpop.permute.xlu0 %577
        %579 = vrot.lane.b32.xlu0 %v484, 32
        %v580 = vpop.permute.xlu0 %579
        %589 = vrot.lane.b32.xlu0 %v387, 64
        %v590 = vpop.permute.xlu0 %589
        %591 = vrot.lane.b32.xlu0 %v389, 64
        %v592 = vpop.permute.xlu0 %591
        %593 = vrot.lane.b32.xlu0 %v391, 64
        %v594 = vpop.permute.xlu0 %593
        %595 = vrot.lane.b32.xlu0 %v393, 64
        %v596 = vpop.permute.xlu0 %595
        %597 = vrot.lane.b32.xlu0 %v395, 64
        %v598 = vpop.permute.xlu0 %597
        %599 = vrot.lane.b32.xlu0 %v397, 64
        %v600 = vpop.permute.xlu0 %599
        %601 = vrot.lane.b32.xlu0 %v399, 64
        %v602 = vpop.permute.xlu0 %601
        %603 = vrot.lane.b32.xlu0 %v401, 64
        %v604 = vpop.permute.xlu0 %603
        %613 = vrot.lane.b32.xlu0 %v428, 96
        %v614 = vpop.permute.xlu0 %613
        %615 = vrot.lane.b32.xlu0 %v431, 96
        %v616 = vpop.permute.xlu0 %615
        %617 = vrot.lane.b32.xlu0 %v434, 96
        %v618 = vpop.permute.xlu0 %617
        %619 = vrot.lane.b32.xlu0 %v437, 96
        %v620 = vpop.permute.xlu0 %619
        %621 = vrot.lane.b32.xlu0 %v440, 96
        %v622 = vpop.permute.xlu0 %621
        %623 = vrot.lane.b32.xlu0 %v443, 96
        %v624 = vpop.permute.xlu0 %623
        %625 = vrot.lane.b32.xlu0 %v473, 96
        %v626 = vpop.permute.xlu0 %625
        %627 = vrot.lane.b32.xlu0 %v489, 96
        %v628 = vpop.permute.xlu0 %627
        %v637 = vsel %vm344, %v383, %v494
        %v638 = vsel %vm344, %v385, %v496
        %v639 = vsel %vm344, %v387, %v498
        %v640 = vsel %vm344, %v389, %v500
        %v641 = vsel %vm344, %v391, %v502
        %v642 = vsel %vm344, %v393, %v504
        %v643 = vsel %vm344, %v395, %v506
        %v644 = vsel %vm344, %v397, %v508
        %vm645 = vcmask 523264
        %v646 = vsel %vm645, %v637, %v518
        %v647 = vsel %vm645, %v638, %v520
        %v648 = vsel %vm645, %v639, %v522
        %v649 = vsel %vm645, %v640, %v524
        %v650 = vsel %vm645, %v641, %v526
        %v651 = vsel %vm645, %v642, %v528
        %v652 = vsel %vm645, %v643, %v530
        %v653 = vsel %vm645, %v644, %v532
        %vm654 = vcmask 785408
        %v655 = vsel %vm654, %v646, %v542
        %v656 = vsel %vm654, %v647, %v544
        %v657 = vsel %vm654, %v648, %v546
        %v658 = vsel %vm654, %v649, %v548
        %v659 = vsel %vm654, %v650, %v550
        %v660 = vsel %vm654, %v651, %v552
        %v661 = vsel %vm654, %v652, %v554
        %v662 = vsel %vm654, %v653, %v556
        %v663 = vsel %vm344, %v425, %v566
        %v664 = vsel %vm344, %v428, %v568
        %v665 = vsel %vm344, %v431, %v570
        %v666 = vsel %vm344, %v434, %v572
        %v667 = vsel %vm344, %v437, %v574
        %v668 = vsel %vm344, %v440, %v576
        %v669 = vsel %vm344, %v443, %v578
        %v670 = vsel %vm344, %v473, %v580
        %v671 = vsel %vm645, %v663, %v590
        %v672 = vsel %vm645, %v664, %v592
        %v673 = vsel %vm645, %v665, %v594
        %v674 = vsel %vm645, %v666, %v596
        %v675 = vsel %vm645, %v667, %v598
        %v676 = vsel %vm645, %v668, %v600
        %v677 = vsel %vm645, %v669, %v602
        %v678 = vsel %vm645, %v670, %v604
        %v679 = vsel %vm654, %v671, %v614
        %v680 = vsel %vm654, %v672, %v616
        %v681 = vsel %vm654, %v673, %v618
        %v682 = vsel %vm654, %v674, %v620
        %v683 = vsel %vm654, %v675, %v622
        %v684 = vsel %vm654, %v676, %v624
        %v685 = vsel %vm654, %v677, %v626
        %v686 = vsel %vm654, %v678, %v628
        %v687 = vld [vmem:[%s2] sm:$0xff]
        %v688 = vld [vmem:[%s2 + $0x8] sm:$0xff]
        %v689 = vld [vmem:[%s2 + $0x10] sm:$0xff]
        %v690 = vld [vmem:[%s2 + $0x18] sm:$0xff]
        %v691 = vld [vmem:[%s2 + $0x20] sm:$0xff]
        %v692 = vld [vmem:[%s2 + $0x28] sm:$0xff]
        %v693 = vld [vmem:[%s2 + $0x30] sm:$0xff]
        %v694 = vld [vmem:[%s2 + $0x38] sm:$0xff]
        %v695 = vld [vmem:[%s2 + $0x40] sm:$0xff]
        %v696 = vld [vmem:[%s2 + $0x48] sm:$0xff]
        %v697 = vld [vmem:[%s2 + $0x50] sm:$0xff]
        %v698 = vld [vmem:[%s2 + $0x58] sm:$0xff]
        %v699 = vld [vmem:[%s2 + $0x60] sm:$0xff]
        %v700 = vld [vmem:[%s2 + $0x68] sm:$0xff]
        %v701 = vld [vmem:[%s2 + $0x70] sm:$0xff]
        %v702 = vld [vmem:[%s2 + $0x78] sm:$0xff]
        %v703 = vld [vmem:[%s2 + $0x80] sm:$0xff]
        %v704 = vld [vmem:[%s2 + $0x88] sm:$0xff]
        %v705 = vld [vmem:[%s2 + $0x90] sm:$0xff]
        %v706 = vld [vmem:[%s2 + $0x98] sm:$0xff]
        %v707 = vld [vmem:[%s2 + $0xa0] sm:$0xff]
        %v708 = vld [vmem:[%s2 + $0xa8] sm:$0xff]
        %v709 = vld [vmem:[%s2 + $0xb0] sm:$0xff]
        %v710 = vld [vmem:[%s2 + $0xb8] sm:$0xff]
        %v711 = vld [vmem:[%s2 + $0xc0] sm:$0xff]
        %v712 = vld [vmem:[%s2 + $0xc8] sm:$0xff]
        %v713 = vld [vmem:[%s2 + $0xd0] sm:$0xff]
        %v714 = vld [vmem:[%s2 + $0xd8] sm:$0xff]
        %v715 = vld [vmem:[%s2 + $0xe0] sm:$0xff]
        %v716 = vld [vmem:[%s2 + $0xe8] sm:$0xff]
        %v717 = vld [vmem:[%s2 + $0xf0] sm:$0xff]
        %v718 = vld [vmem:[%s2 + $0xf8] sm:$0xff]
        %v719 = vld [vmem:[%s2 + $0x100] sm:$0xff]
        %v720 = vld [vmem:[%s2 + $0x108] sm:$0xff]
        %v721 = vld [vmem:[%s2 + $0x110] sm:$0xff]
        %v722 = vld [vmem:[%s2 + $0x118] sm:$0xff]
        %v723 = vsel %vm344, %v453, 0
        %v725 = vsel %vm344, %v456, 0
        %v727 = vsel %vm344, %v459, 0
        %v729 = vsel %vm344, %v462, 0
        %v731 = vsel %vm344, %v465, 0
        %v733 = vsel %vm344, %v468, 0
        %v735 = vsel %vm344, %v484, 0
        %v737 = vsel %vm344, %v492, 0
        %739 = vmatprep.subr.mxu0 0.0
        %740 = vmatpush1.msra.mxu0 %v687
        %741 = vmatprep.subr.mxu0 0.0
        %742 = vmatpush1.msra.mxu0 %v688
        %743 = vmatprep.subr.mxu0 0.0
        %744 = vmatpush1.msra.mxu0 %v689
        %745 = vmatprep.subr.mxu0 0.0
        %746 = vmatpush1.msra.mxu0 %v690
        %747 = vmatprep.subr.mxu0 0.0
        %748 = vmatpush1.msra.mxu0 %v691
        %749 = vmatprep.subr.mxu0 0.0
        %750 = vmatpush1.msra.mxu0 %v692
        %751 = vmatprep.subr.mxu0 0.0
        %752 = vmatpush1.msra.mxu0 %v693
        %753 = vmatprep.subr.mxu0 0.0
        %754 = vmatpush1.msra.mxu0 %v694
        %755 = vmatprep.subr.mxu0 0.0
        %756 = vmatpush1.msra.mxu0 %v695
        %757 = vmatprep.subr.mxu0 0.0
        %758 = vmatpush1.msra.mxu0 %v696
        %759 = vmatprep.subr.mxu0 0.0
        %760 = vmatpush1.msra.mxu0 %v697
        %761 = vmatprep.subr.mxu0 0.0
        %762 = vmatpush1.msra.mxu0 %v698
        %763 = vmatprep.subr.mxu0 0.0
        %764 = vmatpush1.msra.mxu0 %v699
        %765 = vmatprep.subr.mxu0 0.0
        %766 = vmatpush1.msra.mxu0 %v700
        %767 = vmatprep.subr.mxu0 0.0
        %768 = vmatpush1.msra.mxu0 %v701
        %769 = vmatprep.subr.mxu0 0.0
        %770 = vmatpush1.msra.mxu0 %v702
        %771 = vmatprep.subr.mxu0 0.0
        %772 = vmatpush1.msra.mxu0 %v703
        %773 = vmatprep.subr.mxu0 0.0
        %774 = vmatpush1.msra.mxu0 %v704
        %775 = vmatprep.subr.mxu0 0.0
        %776 = vmatpush1.msra.mxu0 %v705
        %777 = vmatprep.subr.mxu0 0.0
        %778 = vmatpush1.msra.mxu0 %v706
        %779 = vmatprep.subr.mxu0 0.0
        %780 = vmatpush1.msra.mxu0 %v707
        %781 = vmatprep.subr.mxu0 0.0
        %782 = vmatpush1.msra.mxu0 %v708
        %783 = vmatprep.subr.mxu0 0.0
        %784 = vmatpush1.msra.mxu0 %v709
        %785 = vmatprep.subr.mxu0 0.0
        %786 = vmatpush1.msra.mxu0 %v710
        %787 = vmatprep.subr.mxu0 0.0
        %788 = vmatpush1.msra.mxu0 %v711
        %789 = vmatprep.subr.mxu0 0.0
        %790 = vmatpush1.msra.mxu0 %v712
        %791 = vmatprep.subr.mxu0 0.0
        %792 = vmatpush1.msra.mxu0 %v713
        %793 = vmatprep.subr.mxu0 0.0
        %794 = vmatpush1.msra.mxu0 %v714
        %795 = vmatprep.subr.mxu0 0.0
        %796 = vmatpush1.msra.mxu0 %v715
        %797 = vmatprep.subr.mxu0 0.0
        %798 = vmatpush1.msra.mxu0 %v716
        %799 = vmatprep.subr.mxu0 0.0
        %800 = vmatpush1.msra.mxu0 %v717
        %801 = vmatprep.subr.mxu0 0.0
        %802 = vmatpush1.msra.mxu0 %v718
        %803 = vmatprep.mubr.f32.mxu0 %v679
        %804 = vmatmul.mubr.f32.gmra.mrb[0].mxu0 %v655
        %v805 = vpop.f32.mrb[0].mxu0
        %v806 = vadd.f32 0.0, %v805
        %v807 = vpop.f32.mrb[0].mxu0
        %808 = vmatprep.mubr.f32.mxu0 %v680
        %809 = vmatmul.mubr.f32.gmra.mrb[0].mxu0 %v656
        %v810 = vpop.f32.mrb[0].mxu0
        %v811 = vadd.f32 0.0, %v810
        %v812 = vpop.f32.mrb[0].mxu0
        %813 = vmatprep.mubr.f32.mxu0 %v681
        %814 = vmatmul.mubr.f32.gmra.mrb[0].mxu0 %v657
        %v815 = vpop.f32.mrb[0].mxu0
        %v816 = vadd.f32 0.0, %v815
        %v817 = vpop.f32.mrb[0].mxu0
        %818 = vmatprep.mubr.f32.mxu0 %v682
        %819 = vmatmul.mubr.f32.gmra.mrb[0].mxu0 %v658
        %v820 = vpop.f32.mrb[0].mxu0
        %v821 = vadd.f32 0.0, %v820
        %v822 = vpop.f32.mrb[0].mxu0
        %823 = vmatprep.mubr.f32.mxu0 %v683
        %824 = vmatmul.mubr.f32.gmra.mrb[0].mxu0 %v659
        %v825 = vpop.f32.mrb[0].mxu0
        %v826 = vadd.f32 0.0, %v825
        %v827 = vpop.f32.mrb[0].mxu0
        %828 = vmatprep.mubr.f32.mxu0 %v684
        %829 = vmatmul.mubr.f32.gmra.mrb[0].mxu0 %v660
        %v830 = vpop.f32.mrb[0].mxu0
        %v831 = vadd.f32 0.0, %v830
        %v832 = vpop.f32.mrb[0].mxu0
        %833 = vmatprep.mubr.f32.mxu0 %v685
        %834 = vmatmul.mubr.f32.gmra.mrb[0].mxu0 %v661
        %v835 = vpop.f32.mrb[0].mxu0
        %v836 = vadd.f32 0.0, %v835
        %v837 = vpop.f32.mrb[0].mxu0
        %838 = vmatprep.mubr.f32.mxu0 %v686
        %839 = vmatmul.mubr.f32.gmra.mrb[0].mxu0 %v662
        %v840 = vpop.f32.mrb[0].mxu0
        %v841 = vadd.f32 0.0, %v840
        %v842 = vpop.f32.mrb[0].mxu0
        %843 = vdwg.mxu0
        %844 = vmatprep.subr.mxu0 0.0
        %845 = vmatpush1.msra.mxu0 %v719
        %846 = vmatprep.subr.mxu0 0.0
        %847 = vmatpush1.msra.mxu0 %v720
        %848 = vmatprep.subr.mxu0 0.0
        %849 = vmatpush1.msra.mxu0 %v721
        %850 = vmatprep.subr.mxu0 0.0
        %851 = vmatpush1.msra.mxu0 %v722
        %852 = vmatprep.subr.mxu0 0.0
        %853 = vmatpush1.msra.mxu0 0.0
        %854 = vmatprep.subr.mxu0 0.0
        %855 = vmatpush1.msra.mxu0 0.0
        %856 = vmatprep.subr.mxu0 0.0
        %857 = vmatpush1.msra.mxu0 0.0
        %858 = vmatprep.subr.mxu0 0.0
        %859 = vmatpush1.msra.mxu0 0.0
        %860 = vmatprep.subr.mxu0 0.0
        %861 = vmatpush1.msra.mxu0 0.0
        %862 = vmatprep.subr.mxu0 0.0
        %863 = vmatpush1.msra.mxu0 0.0
        %864 = vmatprep.subr.mxu0 0.0
        %865 = vmatpush1.msra.mxu0 0.0
        %866 = vmatprep.subr.mxu0 0.0
        %867 = vmatpush1.msra.mxu0 0.0
        %868 = vmatprep.subr.mxu0 0.0
        %869 = vmatpush1.msra.mxu0 0.0
        %870 = vmatprep.subr.mxu0 0.0
        %871 = vmatpush1.msra.mxu0 0.0
        %872 = vmatprep.subr.mxu0 0.0
        %873 = vmatpush1.msra.mxu0 0.0
        %874 = vmatprep.subr.mxu0 0.0
        %875 = vmatpush1.msra.mxu0 0.0
        %876 = vmatprep.subr.mxu0 0.0
        %877 = vmatpush1.msra.mxu0 0.0
        %878 = vmatprep.subr.mxu0 0.0
        %879 = vmatpush1.msra.mxu0 0.0
        %880 = vmatprep.subr.mxu0 0.0
        %881 = vmatpush1.msra.mxu0 0.0
        %882 = vmatprep.subr.mxu0 0.0
        %883 = vmatpush1.msra.mxu0 0.0
        %884 = vmatprep.subr.mxu0 0.0
        %885 = vmatpush1.msra.mxu0 0.0
        %886 = vmatprep.subr.mxu0 0.0
        %887 = vmatpush1.msra.mxu0 0.0
        %888 = vmatprep.subr.mxu0 0.0
        %889 = vmatpush1.msra.mxu0 0.0
        %890 = vmatprep.subr.mxu0 0.0
        %891 = vmatpush1.msra.mxu0 0.0
        %892 = vmatprep.subr.mxu0 0.0
        %893 = vmatpush1.msra.mxu0 0.0
        %894 = vmatprep.subr.mxu0 0.0
        %895 = vmatpush1.msra.mxu0 0.0
        %896 = vmatprep.subr.mxu0 0.0
        %897 = vmatpush1.msra.mxu0 0.0
        %898 = vmatprep.subr.mxu0 0.0
        %899 = vmatpush1.msra.mxu0 0.0
        %900 = vmatprep.subr.mxu0 0.0
        %901 = vmatpush1.msra.mxu0 0.0
        %902 = vmatprep.subr.mxu0 0.0
        %903 = vmatpush1.msra.mxu0 0.0
        %904 = vmatprep.subr.mxu0 0.0
        %905 = vmatpush1.msra.mxu0 0.0
        %906 = vmatprep.subr.mxu0 0.0
        %907 = vmatpush1.msra.mxu0 0.0
        %908 = vmatprep.mubr.f32.mxu0 0.0
        %909 = vmatmul.mubr.f32.gmra.mrb[0].mxu0 %v723
        %v910 = vpop.f32.mrb[0].mxu0
        %v911 = vadd.f32 %v806, %v910
        %v912 = vpop.f32.mrb[0].mxu0
        %913 = vmatprep.mubr.f32.mxu0 0.0
        %914 = vmatmul.mubr.f32.gmra.mrb[0].mxu0 %v725
        %v915 = vpop.f32.mrb[0].mxu0
        %v916 = vadd.f32 %v811, %v915
        %v917 = vpop.f32.mrb[0].mxu0
        %918 = vmatprep.mubr.f32.mxu0 0.0
        %919 = vmatmul.mubr.f32.gmra.mrb[0].mxu0 %v727
        %v920 = vpop.f32.mrb[0].mxu0
        %v921 = vadd.f32 %v816, %v920
        %v922 = vpop.f32.mrb[0].mxu0
        %923 = vmatprep.mubr.f32.mxu0 0.0
        %924 = vmatmul.mubr.f32.gmra.mrb[0].mxu0 %v729
        %v925 = vpop.f32.mrb[0].mxu0
        %v926 = vadd.f32 %v821, %v925
        %v927 = vpop.f32.mrb[0].mxu0
        %928 = vmatprep.mubr.f32.mxu0 0.0
        %929 = vmatmul.mubr.f32.gmra.mrb[0].mxu0 %v731
        %v930 = vpop.f32.mrb[0].mxu0
        %v931 = vadd.f32 %v826, %v930
        %v932 = vpop.f32.mrb[0].mxu0
        %933 = vmatprep.mubr.f32.mxu0 0.0
        %934 = vmatmul.mubr.f32.gmra.mrb[0].mxu0 %v733
        %v935 = vpop.f32.mrb[0].mxu0
        %v936 = vadd.f32 %v831, %v935
        %v937 = vpop.f32.mrb[0].mxu0
        %938 = vmatprep.mubr.f32.mxu0 0.0
        %939 = vmatmul.mubr.f32.gmra.mrb[0].mxu0 %v735
        %v940 = vpop.f32.mrb[0].mxu0
        %v941 = vadd.f32 %v836, %v940
        %v942 = vpop.f32.mrb[0].mxu0
        %943 = vmatprep.mubr.f32.mxu0 0.0
        %944 = vmatmul.mubr.f32.gmra.mrb[0].mxu0 %v737
        %v945 = vpop.f32.mrb[0].mxu0
        %v946 = vadd.f32 %v841, %v945
        %v947 = vpop.f32.mrb[0].mxu0
        %948 = vdwg.mxu0
        %v949 = vld [vmem:[%s3] sm:$0x1]
        %v951 = vlaneseq
        %v952 = vshrl.u32 %v951, 7
        %v953 = vsub.s32 0, %v952
        %v954 = vrot.slane %v949, %v953
        %v956 = vmul.f32 %v911, %v954
        %v957 = vmul.f32 %v916, %v954
        %v958 = vmul.f32 %v921, %v954
        %v959 = vmul.f32 %v926, %v954
        %v960 = vmul.f32 %v931, %v954
        %v961 = vmul.f32 %v936, %v954
        %v962 = vmul.f32 %v941, %v954
        %v963 = vmul.f32 %v946, %v954
        %v964 = vld [vmem:[%s4] sm:$0x1]
        %v966 = vlaneseq
        %v967 = vshrl.u32 %v966, 7
        %v968 = vsub.s32 0, %v967
        %v969 = vrot.slane %v964, %v968
        %v971 = vadd.f32 %v956, %v969
        %v972 = vadd.f32 %v957, %v969
        %v973 = vadd.f32 %v958, %v969
        %v974 = vadd.f32 %v959, %v969
        %v975 = vadd.f32 %v960, %v969
        %v976 = vadd.f32 %v961, %v969
        %v977 = vadd.f32 %v962, %v969
        %v978 = vadd.f32 %v963, %v969
        %v979 = vmax.f32 %v971, 0.0
        %v980 = vmax.f32 %v972, 0.0
        %v981 = vmax.f32 %v973, 0.0
        %v982 = vmax.f32 %v974, 0.0
        %v983 = vmax.f32 %v975, 0.0
        %v984 = vmax.f32 %v976, 0.0
        %v985 = vmax.f32 %v977, 0.0
        %v986 = vmax.f32 %v978, 0.0
        %vm987 = vcmask 130048
        %988 = vst.msk [vmem:[#allocation3] sm:$0xff] %vm987, 0.0
        %vm989 = vcmask 123904
        %990 = vst.msk [vmem:[#allocation3 + $0x8] sm:$0x3] %vm989, 0.0
        %991 = vst.msk [vmem:[#allocation3 + $0x10] sm:$0xff] %vm987, 0.0
        %992 = vst.msk [vmem:[#allocation3 + $0x18] sm:$0x3] %vm989, 0.0
        %993 = vst.msk [vmem:[#allocation3 + $0x20] sm:$0xff] %vm987, 0.0
        %994 = vst.msk [vmem:[#allocation3 + $0x28] sm:$0x3] %vm989, 0.0
        %995 = vst.msk [vmem:[#allocation3 + $0x30] sm:$0xff] %vm987, 0.0
        %996 = vst.msk [vmem:[#allocation3 + $0x38] sm:$0x3] %vm989, 0.0
        %997 = vst.msk [vmem:[#allocation3 + $0x40] sm:$0xff] %vm987, 0.0
        %998 = vst.msk [vmem:[#allocation3 + $0x48] sm:$0x3] %vm989, 0.0
        %999 = vst.msk [vmem:[#allocation3 + $0x50] sm:$0xff] %vm987, 0.0
        %1000 = vst.msk [vmem:[#allocation3 + $0x58] sm:$0x3] %vm989, 0.0
        %1001 = vst.msk [vmem:[#allocation3 + $0x60] sm:$0xff] %vm987, 0.0
        %1002 = vst.msk [vmem:[#allocation3 + $0x68] sm:$0x3] %vm989, 0.0
        %1003 = vst.msk [vmem:[#allocation3 + $0x70] sm:$0xff] %vm987, 0.0
        %1004 = vst.msk [vmem:[#allocation3 + $0x78] sm:$0x3] %vm989, 0.0
        %1005 = vst.msk [vmem:[#allocation3 + $0x80] sm:$0xff] %vm987, 0.0
        %1006 = vst.msk [vmem:[#allocation3 + $0x88] sm:$0x3] %vm989, 0.0
        %1007 = vst.msk [vmem:[#allocation3 + $0x90] sm:$0xff] %vm987, 0.0
        %1008 = vst.msk [vmem:[#allocation3 + $0x98] sm:$0x3] %vm989, 0.0
        %s1009 = scalar_lea.vmem [#allocation3], 16
        %1010 = vst.msk [vmem:[%s1009 + $0x1] sm:$0xff] %vm987, %v979
        %1011 = vst.msk [vmem:[%s1009 + $0x11] sm:$0xff] %vm987, %v980
        %1012 = vst.msk [vmem:[%s1009 + $0x21] sm:$0xff] %vm987, %v981
        %1013 = vst.msk [vmem:[%s1009 + $0x31] sm:$0xff] %vm987, %v982
        %1014 = vst.msk [vmem:[%s1009 + $0x41] sm:$0xff] %vm987, %v983
        %1015 = vst.msk [vmem:[%s1009 + $0x51] sm:$0xff] %vm987, %v984
        %1016 = vst.msk [vmem:[%s1009 + $0x61] sm:$0xff] %vm987, %v985
        %1017 = vst.msk [vmem:[%s1009 + $0x71] sm:$0xff] %vm987, %v986
        %v1018 = vld [vmem:[#allocation3] sm:$0xff]
        %v1019 = vld [vmem:[#allocation3 + $0x8] sm:$0x3]
        %v1020 = vld [vmem:[#allocation3 + $0x10] sm:$0xff]
        %v1021 = vld [vmem:[#allocation3 + $0x18] sm:$0x3]
        %v1022 = vld [vmem:[#allocation3 + $0x20] sm:$0xff]
        %v1023 = vld [vmem:[#allocation3 + $0x28] sm:$0x3]
        %v1024 = vld [vmem:[#allocation3 + $0x30] sm:$0xff]
        %v1025 = vld [vmem:[#allocation3 + $0x38] sm:$0x3]
        %v1026 = vld [vmem:[#allocation3 + $0x40] sm:$0xff]
        %v1027 = vld [vmem:[#allocation3 + $0x48] sm:$0x3]
        %v1028 = vld [vmem:[#allocation3 + $0x50] sm:$0xff]
        %v1029 = vld [vmem:[#allocation3 + $0x58] sm:$0x3]
        %v1030 = vld [vmem:[#allocation3 + $0x60] sm:$0xff]
        %v1031 = vld [vmem:[#allocation3 + $0x68] sm:$0x3]
        %v1032 = vld [vmem:[#allocation3 + $0x70] sm:$0xff]
        %v1033 = vld [vmem:[#allocation3 + $0x78] sm:$0x3]
        %v1034 = vld [vmem:[#allocation3 + $0x80] sm:$0xff]
        %v1035 = vld [vmem:[#allocation3 + $0x88] sm:$0x3]
        %v1036 = vld [vmem:[#allocation3 + $0x90] sm:$0xff]
        %v1037 = vld [vmem:[#allocation3 + $0x98] sm:$0x3]
        %v1038 = vmul.f32 %v1018, 0.25
        %v1039 = vmul.f32 %v1019, 0.25
        %v1040 = vmul.f32 %v1020, 0.25
        %v1041 = vmul.f32 %v1021, 0.25
        %v1042 = vmul.f32 %v1022, 0.25
        %v1043 = vmul.f32 %v1023, 0.25
        %v1044 = vmul.f32 %v1024, 0.25
        %v1045 = vmul.f32 %v1025, 0.25
        %v1046 = vmul.f32 %v1026, 0.25
        %v1047 = vmul.f32 %v1027, 0.25
        %v1048 = vmul.f32 %v1028, 0.25
        %v1049 = vmul.f32 %v1029, 0.25
        %v1050 = vmul.f32 %v1030, 0.25
        %v1051 = vmul.f32 %v1031, 0.25
        %v1052 = vmul.f32 %v1032, 0.25
        %v1053 = vmul.f32 %v1033, 0.25
        %v1054 = vmul.f32 %v1020, 0.75
        %v1055 = vmul.f32 %v1021, 0.75
        %v1056 = vmul.f32 %v1022, 0.75
        %v1057 = vmul.f32 %v1023, 0.75
        %v1058 = vmul.f32 %v1024, 0.75
        %v1059 = vmul.f32 %v1025, 0.75
        %v1060 = vmul.f32 %v1026, 0.75
        %v1061 = vmul.f32 %v1027, 0.75
        %v1062 = vmul.f32 %v1028, 0.75
        %v1063 = vmul.f32 %v1029, 0.75
        %v1064 = vmul.f32 %v1030, 0.75
        %v1065 = vmul.f32 %v1031, 0.75
        %v1066 = vmul.f32 %v1032, 0.75
        %v1067 = vmul.f32 %v1033, 0.75
        %v1068 = vmul.f32 %v1034, 0.75
        %v1069 = vmul.f32 %v1035, 0.75
        %v1070 = vadd.f32 %v1038, %v1054
        %v1071 = vadd.f32 %v1039, %v1055
        %v1072 = vadd.f32 %v1040, %v1056
        %v1073 = vadd.f32 %v1041, %v1057
        %v1074 = vadd.f32 %v1042, %v1058
        %v1075 = vadd.f32 %v1043, %v1059
        %v1076 = vadd.f32 %v1044, %v1060
        %v1077 = vadd.f32 %v1045, %v1061
        %v1078 = vadd.f32 %v1046, %v1062
        %v1079 = vadd.f32 %v1047, %v1063
        %v1080 = vadd.f32 %v1048, %v1064
        %v1081 = vadd.f32 %v1049, %v1065
        %v1082 = vadd.f32 %v1050, %v1066
        %v1083 = vadd.f32 %v1051, %v1067
        %v1084 = vadd.f32 %v1052, %v1068
        %v1085 = vadd.f32 %v1053, %v1069
        %v1086 = vmul.f32 %v1070, 0.25
        %v1087 = vmul.f32 %v1072, 0.25
        %v1088 = vmul.f32 %v1074, 0.25
        %v1089 = vmul.f32 %v1076, 0.25
        %v1090 = vmul.f32 %v1078, 0.25
        %v1091 = vmul.f32 %v1080, 0.25
        %v1092 = vmul.f32 %v1082, 0.25
        %v1093 = vmul.f32 %v1084, 0.25
        %v1094 = vmul.f32 %v1070, 0.75
        %v1095 = vmul.f32 %v1071, 0.75
        %v1096 = vmul.f32 %v1072, 0.75
        %v1097 = vmul.f32 %v1073, 0.75
        %v1098 = vmul.f32 %v1074, 0.75
        %v1099 = vmul.f32 %v1075, 0.75
        %v1100 = vmul.f32 %v1076, 0.75
        %v1101 = vmul.f32 %v1077, 0.75
        %v1102 = vmul.f32 %v1078, 0.75
        %v1103 = vmul.f32 %v1079, 0.75
        %v1104 = vmul.f32 %v1080, 0.75
        %v1105 = vmul.f32 %v1081, 0.75
        %v1106 = vmul.f32 %v1082, 0.75
        %v1107 = vmul.f32 %v1083, 0.75
        %v1108 = vmul.f32 %v1084, 0.75
        %v1109 = vmul.f32 %v1085, 0.75
        %v1126 = vrot.slane %v1094, 1
        %v1127 = vrot.slane %v1095, 1
        %v1128 = vsel %vm419, %v1126, %v1127
        %v1129 = vrot.slane %v1096, 1
        %v1130 = vrot.slane %v1097, 1
        %v1131 = vsel %vm419, %v1129, %v1130
        %v1132 = vrot.slane %v1098, 1
        %v1133 = vrot.slane %v1099, 1
        %v1134 = vsel %vm419, %v1132, %v1133
        %v1135 = vrot.slane %v1100, 1
        %v1136 = vrot.slane %v1101, 1
        %v1137 = vsel %vm419, %v1135, %v1136
        %v1138 = vrot.slane %v1102, 1
        %v1139 = vrot.slane %v1103, 1
        %v1140 = vsel %vm419, %v1138, %v1139
        %v1141 = vrot.slane %v1104, 1
        %v1142 = vrot.slane %v1105, 1
        %v1143 = vsel %vm419, %v1141, %v1142
        %v1144 = vrot.slane %v1106, 1
        %v1145 = vrot.slane %v1107, 1
        %v1146 = vsel %vm419, %v1144, %v1145
        %v1147 = vrot.slane %v1108, 1
        %v1148 = vrot.slane %v1109, 1
        %v1149 = vsel %vm419, %v1147, %v1148
        %v1158 = vadd.f32 %v1086, %v1128
        %v1159 = vadd.f32 %v1087, %v1131
        %v1160 = vadd.f32 %v1088, %v1134
        %v1161 = vadd.f32 %v1089, %v1137
        %v1162 = vadd.f32 %v1090, %v1140
        %v1163 = vadd.f32 %v1091, %v1143
        %v1164 = vadd.f32 %v1092, %v1146
        %v1165 = vadd.f32 %v1093, %v1149
        %v1166 = vmul.f32 %v1071, 0.25
        %v1167 = vmul.f32 %v1073, 0.25
        %v1168 = vmul.f32 %v1075, 0.25
        %v1169 = vmul.f32 %v1077, 0.25
        %v1170 = vmul.f32 %v1079, 0.25
        %v1171 = vmul.f32 %v1081, 0.25
        %v1172 = vmul.f32 %v1083, 0.25
        %v1173 = vmul.f32 %v1085, 0.25
        %v1190 = vrot.slane %v1086, 1
        %v1191 = vrot.slane %v1166, 1
        %v1192 = vsel %vm419, %v1190, %v1191
        %v1193 = vrot.slane %v1087, 1
        %v1194 = vrot.slane %v1167, 1
        %v1195 = vsel %vm419, %v1193, %v1194
        %v1196 = vrot.slane %v1088, 1
        %v1197 = vrot.slane %v1168, 1
        %v1198 = vsel %vm419, %v1196, %v1197
        %v1199 = vrot.slane %v1089, 1
        %v1200 = vrot.slane %v1169, 1
        %v1201 = vsel %vm419, %v1199, %v1200
        %v1202 = vrot.slane %v1090, 1
        %v1203 = vrot.slane %v1170, 1
        %v1204 = vsel %vm419, %v1202, %v1203
        %v1205 = vrot.slane %v1091, 1
        %v1206 = vrot.slane %v1171, 1
        %v1207 = vsel %vm419, %v1205, %v1206
        %v1208 = vrot.slane %v1092, 1
        %v1209 = vrot.slane %v1172, 1
        %v1210 = vsel %vm419, %v1208, %v1209
        %v1211 = vrot.slane %v1093, 1
        %v1212 = vrot.slane %v1173, 1
        %v1213 = vsel %vm419, %v1211, %v1212
        %v1230 = vadd.f32 %v1094, %v1192
        %v1231 = vadd.f32 %v1095, %v1191
        %v1232 = vadd.f32 %v1096, %v1195
        %v1233 = vadd.f32 %v1097, %v1194
        %v1234 = vadd.f32 %v1098, %v1198
        %v1235 = vadd.f32 %v1099, %v1197
        %v1236 = vadd.f32 %v1100, %v1201
        %v1237 = vadd.f32 %v1101, %v1200
        %v1238 = vadd.f32 %v1102, %v1204
        %v1239 = vadd.f32 %v1103, %v1203
        %v1240 = vadd.f32 %v1104, %v1207
        %v1241 = vadd.f32 %v1105, %v1206
        %v1242 = vadd.f32 %v1106, %v1210
        %v1243 = vadd.f32 %v1107, %v1209
        %v1244 = vadd.f32 %v1108, %v1213
        %v1245 = vadd.f32 %v1109, %v1212
        %v1254 = vcombine.high %v1158, %v1158
        %v1256 = vunpack.c.l.s4 1966171168
        %v1257 = vunpack.c.0.s8 %v1256
        %v1258 = vlaneseq
        %v1259 = vshrl.u32 %v1258, 7
        %v1260 = vsub.s32 %v1257, %v1259
        %v1261 = vrot.slane %v1158, %v1260
        %v1263 = vunpack.c.l.s4 1966171168
        %v1264 = vunpack.c.0.s8 %v1263
        %v1265 = vlaneseq
        %v1266 = vshrl.u32 %v1265, 7
        %v1267 = vsub.s32 %v1264, %v1266
        %v1268 = vrot.slane %v1254, %v1267
        %v1269 = vcombine.high %v1261, %v1261
        %v1270 = vcombine.high %v1268, %v1268
        %v1272 = vunpack.c.l.s4 1966171168
        %v1273 = vunpack.c.0.s8 %v1272
        %v1274 = vlaneseq
        %v1275 = vshrl.u32 %v1274, 7
        %v1276 = vsub.s32 %v1273, %v1275
        %v1277 = vrot.slane %v1261, %v1276
        %v1279 = vunpack.c.l.s4 1966171168
        %v1280 = vunpack.c.0.s8 %v1279
        %v1281 = vlaneseq
        %v1282 = vshrl.u32 %v1281, 7
        %v1283 = vsub.s32 %v1280, %v1282
        %v1284 = vrot.slane %v1268, %v1283
        %v1286 = vunpack.c.l.s4 1966171168
        %v1287 = vunpack.c.0.s8 %v1286
        %v1288 = vlaneseq
        %v1289 = vshrl.u32 %v1288, 7
        %v1290 = vsub.s32 %v1287, %v1289
        %v1291 = vrot.slane %v1269, %v1290
        %v1293 = vunpack.c.l.s4 1966171168
        %v1294 = vunpack.c.0.s8 %v1293
        %v1295 = vlaneseq
        %v1296 = vshrl.u32 %v1295, 7
        %v1297 = vsub.s32 %v1294, %v1296
        %v1298 = vrot.slane %v1270, %v1297
        %v1299 = vcombine.high %v1277, %v1277
        %v1300 = vcombine.high %v1284, %v1284
        %v1301 = vcombine.high %v1291, %v1291
        %v1302 = vcombine.high %v1298, %v1298
        %v1303 = vcombine.high %v1159, %v1159
        %v1305 = vunpack.c.l.s4 1966171168
        %v1306 = vunpack.c.0.s8 %v1305
        %v1307 = vlaneseq
        %v1308 = vshrl.u32 %v1307, 7
        %v1309 = vsub.s32 %v1306, %v1308
        %v1310 = vrot.slane %v1159, %v1309
        %v1312 = vunpack.c.l.s4 1966171168
        %v1313 = vunpack.c.0.s8 %v1312
        %v1314 = vlaneseq
        %v1315 = vshrl.u32 %v1314, 7
        %v1316 = vsub.s32 %v1313, %v1315
        %v1317 = vrot.slane %v1303, %v1316
        %v1318 = vcombine.high %v1310, %v1310
        %v1319 = vcombine.high %v1317, %v1317
        %v1321 = vunpack.c.l.s4 1966171168
        %v1322 = vunpack.c.0.s8 %v1321
        %v1323 = vlaneseq
        %v1324 = vshrl.u32 %v1323, 7
        %v1325 = vsub.s32 %v1322, %v1324
        %v1326 = vrot.slane %v1310, %v1325
        %v1328 = vunpack.c.l.s4 1966171168
        %v1329 = vunpack.c.0.s8 %v1328
        %v1330 = vlaneseq
        %v1331 = vshrl.u32 %v1330, 7
        %v1332 = vsub.s32 %v1329, %v1331
        %v1333 = vrot.slane %v1317, %v1332
        %v1335 = vunpack.c.l.s4 1966171168
        %v1336 = vunpack.c.0.s8 %v1335
        %v1337 = vlaneseq
        %v1338 = vshrl.u32 %v1337, 7
        %v1339 = vsub.s32 %v1336, %v1338
        %v1340 = vrot.slane %v1318, %v1339
        %v1342 = vunpack.c.l.s4 1966171168
        %v1343 = vunpack.c.0.s8 %v1342
        %v1344 = vlaneseq
        %v1345 = vshrl.u32 %v1344, 7
        %v1346 = vsub.s32 %v1343, %v1345
        %v1347 = vrot.slane %v1319, %v1346
        %v1348 = vcombine.high %v1326, %v1326
        %v1349 = vcombine.high %v1333, %v1333
        %v1350 = vcombine.high %v1340, %v1340
        %v1351 = vcombine.high %v1347, %v1347
        %v1352 = vcombine.high %v1160, %v1160
        %v1354 = vunpack.c.l.s4 1966171168
        %v1355 = vunpack.c.0.s8 %v1354
        %v1356 = vlaneseq
        %v1357 = vshrl.u32 %v1356, 7
        %v1358 = vsub.s32 %v1355, %v1357
        %v1359 = vrot.slane %v1160, %v1358
        %v1361 = vunpack.c.l.s4 1966171168
        %v1362 = vunpack.c.0.s8 %v1361
        %v1363 = vlaneseq
        %v1364 = vshrl.u32 %v1363, 7
        %v1365 = vsub.s32 %v1362, %v1364
        %v1366 = vrot.slane %v1352, %v1365
        %v1367 = vcombine.high %v1359, %v1359
        %v1368 = vcombine.high %v1366, %v1366
        %v1370 = vunpack.c.l.s4 1966171168
        %v1371 = vunpack.c.0.s8 %v1370
        %v1372 = vlaneseq
        %v1373 = vshrl.u32 %v1372, 7
        %v1374 = vsub.s32 %v1371, %v1373
        %v1375 = vrot.slane %v1359, %v1374
        %v1377 = vunpack.c.l.s4 1966171168
        %v1378 = vunpack.c.0.s8 %v1377
        %v1379 = vlaneseq
        %v1380 = vshrl.u32 %v1379, 7
        %v1381 = vsub.s32 %v1378, %v1380
        %v1382 = vrot.slane %v1366, %v1381
        %v1384 = vunpack.c.l.s4 1966171168
        %v1385 = vunpack.c.0.s8 %v1384
        %v1386 = vlaneseq
        %v1387 = vshrl.u32 %v1386, 7
        %v1388 = vsub.s32 %v1385, %v1387
        %v1389 = vrot.slane %v1367, %v1388
        %v1391 = vunpack.c.l.s4 1966171168
        %v1392 = vunpack.c.0.s8 %v1391
        %v1393 = vlaneseq
        %v1394 = vshrl.u32 %v1393, 7
        %v1395 = vsub.s32 %v1392, %v1394
        %v1396 = vrot.slane %v1368, %v1395
        %v1397 = vcombine.high %v1375, %v1375
        %v1398 = vcombine.high %v1382, %v1382
        %v1399 = vcombine.high %v1389, %v1389
        %v1400 = vcombine.high %v1396, %v1396
        %v1401 = vcombine.high %v1161, %v1161
        %v1403 = vunpack.c.l.s4 1966171168
        %v1404 = vunpack.c.0.s8 %v1403
        %v1405 = vlaneseq
        %v1406 = vshrl.u32 %v1405, 7
        %v1407 = vsub.s32 %v1404, %v1406
        %v1408 = vrot.slane %v1161, %v1407
        %v1410 = vunpack.c.l.s4 1966171168
        %v1411 = vunpack.c.0.s8 %v1410
        %v1412 = vlaneseq
        %v1413 = vshrl.u32 %v1412, 7
        %v1414 = vsub.s32 %v1411, %v1413
        %v1415 = vrot.slane %v1401, %v1414
        %v1416 = vcombine.high %v1408, %v1408
        %v1417 = vcombine.high %v1415, %v1415
        %v1419 = vunpack.c.l.s4 1966171168
        %v1420 = vunpack.c.0.s8 %v1419
        %v1421 = vlaneseq
        %v1422 = vshrl.u32 %v1421, 7
        %v1423 = vsub.s32 %v1420, %v1422
        %v1424 = vrot.slane %v1408, %v1423
        %v1426 = vunpack.c.l.s4 1966171168
        %v1427 = vunpack.c.0.s8 %v1426
        %v1428 = vlaneseq
        %v1429 = vshrl.u32 %v1428, 7
        %v1430 = vsub.s32 %v1427, %v1429
        %v1431 = vrot.slane %v1415, %v1430
        %v1433 = vunpack.c.l.s4 1966171168
        %v1434 = vunpack.c.0.s8 %v1433
        %v1435 = vlaneseq
        %v1436 = vshrl.u32 %v1435, 7
        %v1437 = vsub.s32 %v1434, %v1436
        %v1438 = vrot.slane %v1416, %v1437
        %v1440 = vunpack.c.l.s4 1966171168
        %v1441 = vunpack.c.0.s8 %v1440
        %v1442 = vlaneseq
        %v1443 = vshrl.u32 %v1442, 7
        %v1444 = vsub.s32 %v1441, %v1443
        %v1445 = vrot.slane %v1417, %v1444
        %v1446 = vcombine.high %v1424, %v1424
        %v1447 = vcombine.high %v1431, %v1431
        %v1448 = vcombine.high %v1438, %v1438
        %v1449 = vcombine.high %v1445, %v1445
        %v1450 = vcombine.high %v1162, %v1162
        %v1452 = vunpack.c.l.s4 1966171168
        %v1453 = vunpack.c.0.s8 %v1452
        %v1454 = vlaneseq
        %v1455 = vshrl.u32 %v1454, 7
        %v1456 = vsub.s32 %v1453, %v1455
        %v1457 = vrot.slane %v1162, %v1456
        %v1459 = vunpack.c.l.s4 1966171168
        %v1460 = vunpack.c.0.s8 %v1459
        %v1461 = vlaneseq
        %v1462 = vshrl.u32 %v1461, 7
        %v1463 = vsub.s32 %v1460, %v1462
        %v1464 = vrot.slane %v1450, %v1463
        %v1465 = vcombine.high %v1457, %v1457
        %v1466 = vcombine.high %v1464, %v1464
        %v1468 = vunpack.c.l.s4 1966171168
        %v1469 = vunpack.c.0.s8 %v1468
        %v1470 = vlaneseq
        %v1471 = vshrl.u32 %v1470, 7
        %v1472 = vsub.s32 %v1469, %v1471
        %v1473 = vrot.slane %v1457, %v1472
        %v1475 = vunpack.c.l.s4 1966171168
        %v1476 = vunpack.c.0.s8 %v1475
        %v1477 = vlaneseq
        %v1478 = vshrl.u32 %v1477, 7
        %v1479 = vsub.s32 %v1476, %v1478
        %v1480 = vrot.slane %v1464, %v1479
        %v1482 = vunpack.c.l.s4 1966171168
        %v1483 = vunpack.c.0.s8 %v1482
        %v1484 = vlaneseq
        %v1485 = vshrl.u32 %v1484, 7
        %v1486 = vsub.s32 %v1483, %v1485
        %v1487 = vrot.slane %v1465, %v1486
        %v1489 = vunpack.c.l.s4 1966171168
        %v1490 = vunpack.c.0.s8 %v1489
        %v1491 = vlaneseq
        %v1492 = vshrl.u32 %v1491, 7
        %v1493 = vsub.s32 %v1490, %v1492
        %v1494 = vrot.slane %v1466, %v1493
        %v1495 = vcombine.high %v1473, %v1473
        %v1496 = vcombine.high %v1480, %v1480
        %v1497 = vcombine.high %v1487, %v1487
        %v1498 = vcombine.high %v1494, %v1494
        %v1499 = vcombine.high %v1163, %v1163
        %v1501 = vunpack.c.l.s4 1966171168
        %v1502 = vunpack.c.0.s8 %v1501
        %v1503 = vlaneseq
        %v1504 = vshrl.u32 %v1503, 7
        %v1505 = vsub.s32 %v1502, %v1504
        %v1506 = vrot.slane %v1163, %v1505
        %v1508 = vunpack.c.l.s4 1966171168
        %v1509 = vunpack.c.0.s8 %v1508
        %v1510 = vlaneseq
        %v1511 = vshrl.u32 %v1510, 7
        %v1512 = vsub.s32 %v1509, %v1511
        %v1513 = vrot.slane %v1499, %v1512
        %v1514 = vcombine.high %v1506, %v1506
        %v1515 = vcombine.high %v1513, %v1513
        %v1517 = vunpack.c.l.s4 1966171168
        %v1518 = vunpack.c.0.s8 %v1517
        %v1519 = vlaneseq
        %v1520 = vshrl.u32 %v1519, 7
        %v1521 = vsub.s32 %v1518, %v1520
        %v1522 = vrot.slane %v1506, %v1521
        %v1524 = vunpack.c.l.s4 1966171168
        %v1525 = vunpack.c.0.s8 %v1524
        %v1526 = vlaneseq
        %v1527 = vshrl.u32 %v1526, 7
        %v1528 = vsub.s32 %v1525, %v1527
        %v1529 = vrot.slane %v1513, %v1528
        %v1531 = vunpack.c.l.s4 1966171168
        %v1532 = vunpack.c.0.s8 %v1531
        %v1533 = vlaneseq
        %v1534 = vshrl.u32 %v1533, 7
        %v1535 = vsub.s32 %v1532, %v1534
        %v1536 = vrot.slane %v1514, %v1535
        %v1538 = vunpack.c.l.s4 1966171168
        %v1539 = vunpack.c.0.s8 %v1538
        %v1540 = vlaneseq
        %v1541 = vshrl.u32 %v1540, 7
        %v1542 = vsub.s32 %v1539, %v1541
        %v1543 = vrot.slane %v1515, %v1542
        %v1544 = vcombine.high %v1522, %v1522
        %v1545 = vcombine.high %v1529, %v1529
        %v1546 = vcombine.high %v1536, %v1536
        %v1547 = vcombine.high %v1543, %v1543
        %v1548 = vcombine.high %v1164, %v1164
        %v1550 = vunpack.c.l.s4 1966171168
        %v1551 = vunpack.c.0.s8 %v1550
        %v1552 = vlaneseq
        %v1553 = vshrl.u32 %v1552, 7
        %v1554 = vsub.s32 %v1551, %v1553
        %v1555 = vrot.slane %v1164, %v1554
        %v1557 = vunpack.c.l.s4 1966171168
        %v1558 = vunpack.c.0.s8 %v1557
        %v1559 = vlaneseq
        %v1560 = vshrl.u32 %v1559, 7
        %v1561 = vsub.s32 %v1558, %v1560
        %v1562 = vrot.slane %v1548, %v1561
        %v1563 = vcombine.high %v1555, %v1555
        %v1564 = vcombine.high %v1562, %v1562
        %v1566 = vunpack.c.l.s4 1966171168
        %v1567 = vunpack.c.0.s8 %v1566
        %v1568 = vlaneseq
        %v1569 = vshrl.u32 %v1568, 7
        %v1570 = vsub.s32 %v1567, %v1569
        %v1571 = vrot.slane %v1555, %v1570
        %v1573 = vunpack.c.l.s4 1966171168
        %v1574 = vunpack.c.0.s8 %v1573
        %v1575 = vlaneseq
        %v1576 = vshrl.u32 %v1575, 7
        %v1577 = vsub.s32 %v1574, %v1576
        %v1578 = vrot.slane %v1562, %v1577
        %v1580 = vunpack.c.l.s4 1966171168
        %v1581 = vunpack.c.0.s8 %v1580
        %v1582 = vlaneseq
        %v1583 = vshrl.u32 %v1582, 7
        %v1584 = vsub.s32 %v1581, %v1583
        %v1585 = vrot.slane %v1563, %v1584
        %v1587 = vunpack.c.l.s4 1966171168
        %v1588 = vunpack.c.0.s8 %v1587
        %v1589 = vlaneseq
        %v1590 = vshrl.u32 %v1589, 7
        %v1591 = vsub.s32 %v1588, %v1590
        %v1592 = vrot.slane %v1564, %v1591
        %v1593 = vcombine.high %v1571, %v1571
        %v1594 = vcombine.high %v1578, %v1578
        %v1595 = vcombine.high %v1585, %v1585
        %v1596 = vcombine.high %v1592, %v1592
        %v1597 = vcombine.high %v1165, %v1165
        %v1599 = vunpack.c.l.s4 1966171168
        %v1600 = vunpack.c.0.s8 %v1599
        %v1601 = vlaneseq
        %v1602 = vshrl.u32 %v1601, 7
        %v1603 = vsub.s32 %v1600, %v1602
        %v1604 = vrot.slane %v1165, %v1603
        %v1606 = vunpack.c.l.s4 1966171168
        %v1607 = vunpack.c.0.s8 %v1606
        %v1608 = vlaneseq
        %v1609 = vshrl.u32 %v1608, 7
        %v1610 = vsub.s32 %v1607, %v1609
        %v1611 = vrot.slane %v1597, %v1610
        %v1612 = vcombine.high %v1604, %v1604
        %v1613 = vcombine.high %v1611, %v1611
        %v1615 = vunpack.c.l.s4 1966171168
        %v1616 = vunpack.c.0.s8 %v1615
        %v1617 = vlaneseq
        %v1618 = vshrl.u32 %v1617, 7
        %v1619 = vsub.s32 %v1616, %v1618
        %v1620 = vrot.slane %v1604, %v1619
        %v1622 = vunpack.c.l.s4 1966171168
        %v1623 = vunpack.c.0.s8 %v1622
        %v1624 = vlaneseq
        %v1625 = vshrl.u32 %v1624, 7
        %v1626 = vsub.s32 %v1623, %v1625
        %v1627 = vrot.slane %v1611, %v1626
        %v1629 = vunpack.c.l.s4 1966171168
        %v1630 = vunpack.c.0.s8 %v1629
        %v1631 = vlaneseq
        %v1632 = vshrl.u32 %v1631, 7
        %v1633 = vsub.s32 %v1630, %v1632
        %v1634 = vrot.slane %v1612, %v1633
        %v1636 = vunpack.c.l.s4 1966171168
        %v1637 = vunpack.c.0.s8 %v1636
        %v1638 = vlaneseq
        %v1639 = vshrl.u32 %v1638, 7
        %v1640 = vsub.s32 %v1637, %v1639
        %v1641 = vrot.slane %v1613, %v1640
        %v1642 = vcombine.high %v1620, %v1620
        %v1643 = vcombine.high %v1627, %v1627
        %v1644 = vcombine.high %v1634, %v1634
        %v1645 = vcombine.high %v1641, %v1641
        %v1726 = vcombine.high %v1230, %v1230
        %v1728 = vunpack.c.l.s4 1966171168
        %v1729 = vunpack.c.0.s8 %v1728
        %v1730 = vlaneseq
        %v1731 = vshrl.u32 %v1730, 7
        %v1732 = vsub.s32 %v1729, %v1731
        %v1733 = vrot.slane %v1230, %v1732
        %v1735 = vunpack.c.l.s4 1966171168
        %v1736 = vunpack.c.0.s8 %v1735
        %v1737 = vlaneseq
        %v1738 = vshrl.u32 %v1737, 7
        %v1739 = vsub.s32 %v1736, %v1738
        %v1740 = vrot.slane %v1726, %v1739
        %v1741 = vcombine.high %v1733, %v1733
        %v1742 = vcombine.high %v1740, %v1740
        %v1744 = vunpack.c.l.s4 1966171168
        %v1745 = vunpack.c.0.s8 %v1744
        %v1746 = vlaneseq
        %v1747 = vshrl.u32 %v1746, 7
        %v1748 = vsub.s32 %v1745, %v1747
        %v1749 = vrot.slane %v1733, %v1748
        %v1751 = vunpack.c.l.s4 1966171168
        %v1752 = vunpack.c.0.s8 %v1751
        %v1753 = vlaneseq
        %v1754 = vshrl.u32 %v1753, 7
        %v1755 = vsub.s32 %v1752, %v1754
        %v1756 = vrot.slane %v1740, %v1755
        %v1758 = vunpack.c.l.s4 1966171168
        %v1759 = vunpack.c.0.s8 %v1758
        %v1760 = vlaneseq
        %v1761 = vshrl.u32 %v1760, 7
        %v1762 = vsub.s32 %v1759, %v1761
        %v1763 = vrot.slane %v1741, %v1762
        %v1765 = vunpack.c.l.s4 1966171168
        %v1766 = vunpack.c.0.s8 %v1765
        %v1767 = vlaneseq
        %v1768 = vshrl.u32 %v1767, 7
        %v1769 = vsub.s32 %v1766, %v1768
        %v1770 = vrot.slane %v1742, %v1769
        %v1771 = vcombine.high %v1749, %v1749
        %v1772 = vcombine.high %v1756, %v1756
        %v1773 = vcombine.high %v1763, %v1763
        %v1774 = vcombine.high %v1770, %v1770
        %v1776 = vunpack.c.l.s4 1966171168
        %v1777 = vunpack.c.0.s8 %v1776
        %v1778 = vlaneseq
        %v1779 = vshrl.u32 %v1778, 7
        %v1780 = vsub.s32 %v1777, %v1779
        %v1781 = vrot.slane %v1231, %v1780
        %v1783 = vunpack.c.l.s4 1966171168
        %v1784 = vunpack.c.0.s8 %v1783
        %v1785 = vlaneseq
        %v1786 = vshrl.u32 %v1785, 7
        %v1787 = vsub.s32 %v1784, %v1786
        %v1788 = vrot.slane %v1781, %v1787
        %v1789 = vcombine.high %v1232, %v1232
        %v1791 = vunpack.c.l.s4 1966171168
        %v1792 = vunpack.c.0.s8 %v1791
        %v1793 = vlaneseq
        %v1794 = vshrl.u32 %v1793, 7
        %v1795 = vsub.s32 %v1792, %v1794
        %v1796 = vrot.slane %v1232, %v1795
        %v1798 = vunpack.c.l.s4 1966171168
        %v1799 = vunpack.c.0.s8 %v1798
        %v1800 = vlaneseq
        %v1801 = vshrl.u32 %v1800, 7
        %v1802 = vsub.s32 %v1799, %v1801
        %v1803 = vrot.slane %v1789, %v1802
        %v1804 = vcombine.high %v1796, %v1796
        %v1805 = vcombine.high %v1803, %v1803
        %v1807 = vunpack.c.l.s4 1966171168
        %v1808 = vunpack.c.0.s8 %v1807
        %v1809 = vlaneseq
        %v1810 = vshrl.u32 %v1809, 7
        %v1811 = vsub.s32 %v1808, %v1810
        %v1812 = vrot.slane %v1796, %v1811
        %v1814 = vunpack.c.l.s4 1966171168
        %v1815 = vunpack.c.0.s8 %v1814
        %v1816 = vlaneseq
        %v1817 = vshrl.u32 %v1816, 7
        %v1818 = vsub.s32 %v1815, %v1817
        %v1819 = vrot.slane %v1803, %v1818
        %v1821 = vunpack.c.l.s4 1966171168
        %v1822 = vunpack.c.0.s8 %v1821
        %v1823 = vlaneseq
        %v1824 = vshrl.u32 %v1823, 7
        %v1825 = vsub.s32 %v1822, %v1824
        %v1826 = vrot.slane %v1804, %v1825
        %v1828 = vunpack.c.l.s4 1966171168
        %v1829 = vunpack.c.0.s8 %v1828
        %v1830 = vlaneseq
        %v1831 = vshrl.u32 %v1830, 7
        %v1832 = vsub.s32 %v1829, %v1831
        %v1833 = vrot.slane %v1805, %v1832
        %v1834 = vcombine.high %v1812, %v1812
        %v1835 = vcombine.high %v1819, %v1819
        %v1836 = vcombine.high %v1826, %v1826
        %v1837 = vcombine.high %v1833, %v1833
        %v1839 = vunpack.c.l.s4 1966171168
        %v1840 = vunpack.c.0.s8 %v1839
        %v1841 = vlaneseq
        %v1842 = vshrl.u32 %v1841, 7
        %v1843 = vsub.s32 %v1840, %v1842
        %v1844 = vrot.slane %v1233, %v1843
        %v1846 = vunpack.c.l.s4 1966171168
        %v1847 = vunpack.c.0.s8 %v1846
        %v1848 = vlaneseq
        %v1849 = vshrl.u32 %v1848, 7
        %v1850 = vsub.s32 %v1847, %v1849
        %v1851 = vrot.slane %v1844, %v1850
        %v1852 = vcombine.high %v1234, %v1234
        %v1854 = vunpack.c.l.s4 1966171168
        %v1855 = vunpack.c.0.s8 %v1854
        %v1856 = vlaneseq
        %v1857 = vshrl.u32 %v1856, 7
        %v1858 = vsub.s32 %v1855, %v1857
        %v1859 = vrot.slane %v1234, %v1858
        %v1861 = vunpack.c.l.s4 1966171168
        %v1862 = vunpack.c.0.s8 %v1861
        %v1863 = vlaneseq
        %v1864 = vshrl.u32 %v1863, 7
        %v1865 = vsub.s32 %v1862, %v1864
        %v1866 = vrot.slane %v1852, %v1865
        %v1867 = vcombine.high %v1859, %v1859
        %v1868 = vcombine.high %v1866, %v1866
        %v1870 = vunpack.c.l.s4 1966171168
        %v1871 = vunpack.c.0.s8 %v1870
        %v1872 = vlaneseq
        %v1873 = vshrl.u32 %v1872, 7
        %v1874 = vsub.s32 %v1871, %v1873
        %v1875 = vrot.slane %v1859, %v1874
        %v1877 = vunpack.c.l.s4 1966171168
        %v1878 = vunpack.c.0.s8 %v1877
        %v1879 = vlaneseq
        %v1880 = vshrl.u32 %v1879, 7
        %v1881 = vsub.s32 %v1878, %v1880
        %v1882 = vrot.slane %v1866, %v1881
        %v1884 = vunpack.c.l.s4 1966171168
        %v1885 = vunpack.c.0.s8 %v1884
        %v1886 = vlaneseq
        %v1887 = vshrl.u32 %v1886, 7
        %v1888 = vsub.s32 %v1885, %v1887
        %v1889 = vrot.slane %v1867, %v1888
        %v1891 = vunpack.c.l.s4 1966171168
        %v1892 = vunpack.c.0.s8 %v1891
        %v1893 = vlaneseq
        %v1894 = vshrl.u32 %v1893, 7
        %v1895 = vsub.s32 %v1892, %v1894
        %v1896 = vrot.slane %v1868, %v1895
        %v1897 = vcombine.high %v1875, %v1875
        %v1898 = vcombine.high %v1882, %v1882
        %v1899 = vcombine.high %v1889, %v1889
        %v1900 = vcombine.high %v1896, %v1896
        %v1902 = vunpack.c.l.s4 1966171168
        %v1903 = vunpack.c.0.s8 %v1902
        %v1904 = vlaneseq
        %v1905 = vshrl.u32 %v1904, 7
        %v1906 = vsub.s32 %v1903, %v1905
        %v1907 = vrot.slane %v1235, %v1906
        %v1909 = vunpack.c.l.s4 1966171168
        %v1910 = vunpack.c.0.s8 %v1909
        %v1911 = vlaneseq
        %v1912 = vshrl.u32 %v1911, 7
        %v1913 = vsub.s32 %v1910, %v1912
        %v1914 = vrot.slane %v1907, %v1913
        %v1915 = vcombine.high %v1236, %v1236
        %v1917 = vunpack.c.l.s4 1966171168
        %v1918 = vunpack.c.0.s8 %v1917
        %v1919 = vlaneseq
        %v1920 = vshrl.u32 %v1919, 7
        %v1921 = vsub.s32 %v1918, %v1920
        %v1922 = vrot.slane %v1236, %v1921
        %v1924 = vunpack.c.l.s4 1966171168
        %v1925 = vunpack.c.0.s8 %v1924
        %v1926 = vlaneseq
        %v1927 = vshrl.u32 %v1926, 7
        %v1928 = vsub.s32 %v1925, %v1927
        %v1929 = vrot.slane %v1915, %v1928
        %v1930 = vcombine.high %v1922, %v1922
        %v1931 = vcombine.high %v1929, %v1929
        %v1933 = vunpack.c.l.s4 1966171168
        %v1934 = vunpack.c.0.s8 %v1933
        %v1935 = vlaneseq
        %v1936 = vshrl.u32 %v1935, 7
        %v1937 = vsub.s32 %v1934, %v1936
        %v1938 = vrot.slane %v1922, %v1937
        %v1940 = vunpack.c.l.s4 1966171168
        %v1941 = vunpack.c.0.s8 %v1940
        %v1942 = vlaneseq
        %v1943 = vshrl.u32 %v1942, 7
        %v1944 = vsub.s32 %v1941, %v1943
        %v1945 = vrot.slane %v1929, %v1944
        %v1947 = vunpack.c.l.s4 1966171168
        %v1948 = vunpack.c.0.s8 %v1947
        %v1949 = vlaneseq
        %v1950 = vshrl.u32 %v1949, 7
        %v1951 = vsub.s32 %v1948, %v1950
        %v1952 = vrot.slane %v1930, %v1951
        %v1954 = vunpack.c.l.s4 1966171168
        %v1955 = vunpack.c.0.s8 %v1954
        %v1956 = vlaneseq
        %v1957 = vshrl.u32 %v1956, 7
        %v1958 = vsub.s32 %v1955, %v1957
        %v1959 = vrot.slane %v1931, %v1958
        %v1960 = vcombine.high %v1938, %v1938
        %v1961 = vcombine.high %v1945, %v1945
        %v1962 = vcombine.high %v1952, %v1952
        %v1963 = vcombine.high %v1959, %v1959
        %v1965 = vunpack.c.l.s4 1966171168
        %v1966 = vunpack.c.0.s8 %v1965
        %v1967 = vlaneseq
        %v1968 = vshrl.u32 %v1967, 7
        %v1969 = vsub.s32 %v1966, %v1968
        %v1970 = vrot.slane %v1237, %v1969
        %v1972 = vunpack.c.l.s4 1966171168
        %v1973 = vunpack.c.0.s8 %v1972
        %v1974 = vlaneseq
        %v1975 = vshrl.u32 %v1974, 7
        %v1976 = vsub.s32 %v1973, %v1975
        %v1977 = vrot.slane %v1970, %v1976
        %v1978 = vcombine.high %v1238, %v1238
        %v1980 = vunpack.c.l.s4 1966171168
        %v1981 = vunpack.c.0.s8 %v1980
        %v1982 = vlaneseq
        %v1983 = vshrl.u32 %v1982, 7
        %v1984 = vsub.s32 %v1981, %v1983
        %v1985 = vrot.slane %v1238, %v1984
        %v1987 = vunpack.c.l.s4 1966171168
        %v1988 = vunpack.c.0.s8 %v1987
        %v1989 = vlaneseq
        %v1990 = vshrl.u32 %v1989, 7
        %v1991 = vsub.s32 %v1988, %v1990
        %v1992 = vrot.slane %v1978, %v1991
        %v1993 = vcombine.high %v1985, %v1985
        %v1994 = vcombine.high %v1992, %v1992
        %v1996 = vunpack.c.l.s4 1966171168
        %v1997 = vunpack.c.0.s8 %v1996
        %v1998 = vlaneseq
        %v1999 = vshrl.u32 %v1998, 7
        %v2000 = vsub.s32 %v1997, %v1999
        %v2001 = vrot.slane %v1985, %v2000
        %v2003 = vunpack.c.l.s4 1966171168
        %v2004 = vunpack.c.0.s8 %v2003
        %v2005 = vlaneseq
        %v2006 = vshrl.u32 %v2005, 7
        %v2007 = vsub.s32 %v2004, %v2006
        %v2008 = vrot.slane %v1992, %v2007
        %v2010 = vunpack.c.l.s4 1966171168
        %v2011 = vunpack.c.0.s8 %v2010
        %v2012 = vlaneseq
        %v2013 = vshrl.u32 %v2012, 7
        %v2014 = vsub.s32 %v2011, %v2013
        %v2015 = vrot.slane %v1993, %v2014
        %v2017 = vunpack.c.l.s4 1966171168
        %v2018 = vunpack.c.0.s8 %v2017
        %v2019 = vlaneseq
        %v2020 = vshrl.u32 %v2019, 7
        %v2021 = vsub.s32 %v2018, %v2020
        %v2022 = vrot.slane %v1994, %v2021
        %v2023 = vcombine.high %v2001, %v2001
        %v2024 = vcombine.high %v2008, %v2008
        %v2025 = vcombine.high %v2015, %v2015
        %v2026 = vcombine.high %v2022, %v2022
        %v2028 = vunpack.c.l.s4 1966171168
        %v2029 = vunpack.c.0.s8 %v2028
        %v2030 = vlaneseq
        %v2031 = vshrl.u32 %v2030, 7
        %v2032 = vsub.s32 %v2029, %v2031
        %v2033 = vrot.slane %v1239, %v2032
        %v2035 = vunpack.c.l.s4 1966171168
        %v2036 = vunpack.c.0.s8 %v2035
        %v2037 = vlaneseq
        %v2038 = vshrl.u32 %v2037, 7
        %v2039 = vsub.s32 %v2036, %v2038
        %v2040 = vrot.slane %v2033, %v2039
        %v2041 = vcombine.high %v1240, %v1240
        %v2043 = vunpack.c.l.s4 1966171168
        %v2044 = vunpack.c.0.s8 %v2043
        %v2045 = vlaneseq
        %v2046 = vshrl.u32 %v2045, 7
        %v2047 = vsub.s32 %v2044, %v2046
        %v2048 = vrot.slane %v1240, %v2047
        %v2050 = vunpack.c.l.s4 1966171168
        %v2051 = vunpack.c.0.s8 %v2050
        %v2052 = vlaneseq
        %v2053 = vshrl.u32 %v2052, 7
        %v2054 = vsub.s32 %v2051, %v2053
        %v2055 = vrot.slane %v2041, %v2054
        %v2056 = vcombine.high %v2048, %v2048
        %v2057 = vcombine.high %v2055, %v2055
        %v2059 = vunpack.c.l.s4 1966171168
        %v2060 = vunpack.c.0.s8 %v2059
        %v2061 = vlaneseq
        %v2062 = vshrl.u32 %v2061, 7
        %v2063 = vsub.s32 %v2060, %v2062
        %v2064 = vrot.slane %v2048, %v2063
        %v2066 = vunpack.c.l.s4 1966171168
        %v2067 = vunpack.c.0.s8 %v2066
        %v2068 = vlaneseq
        %v2069 = vshrl.u32 %v2068, 7
        %v2070 = vsub.s32 %v2067, %v2069
        %v2071 = vrot.slane %v2055, %v2070
        %v2073 = vunpack.c.l.s4 1966171168
        %v2074 = vunpack.c.0.s8 %v2073
        %v2075 = vlaneseq
        %v2076 = vshrl.u32 %v2075, 7
        %v2077 = vsub.s32 %v2074, %v2076
        %v2078 = vrot.slane %v2056, %v2077
        %v2080 = vunpack.c.l.s4 1966171168
        %v2081 = vunpack.c.0.s8 %v2080
        %v2082 = vlaneseq
        %v2083 = vshrl.u32 %v2082, 7
        %v2084 = vsub.s32 %v2081, %v2083
        %v2085 = vrot.slane %v2057, %v2084
        %v2086 = vcombine.high %v2064, %v2064
        %v2087 = vcombine.high %v2071, %v2071
        %v2088 = vcombine.high %v2078, %v2078
        %v2089 = vcombine.high %v2085, %v2085
        %v2091 = vunpack.c.l.s4 1966171168
        %v2092 = vunpack.c.0.s8 %v2091
        %v2093 = vlaneseq
        %v2094 = vshrl.u32 %v2093, 7
        %v2095 = vsub.s32 %v2092, %v2094
        %v2096 = vrot.slane %v1241, %v2095
        %v2098 = vunpack.c.l.s4 1966171168
        %v2099 = vunpack.c.0.s8 %v2098
        %v2100 = vlaneseq
        %v2101 = vshrl.u32 %v2100, 7
        %v2102 = vsub.s32 %v2099, %v2101
        %v2103 = vrot.slane %v2096, %v2102
        %v2104 = vcombine.high %v1242, %v1242
        %v2106 = vunpack.c.l.s4 1966171168
        %v2107 = vunpack.c.0.s8 %v2106
        %v2108 = vlaneseq
        %v2109 = vshrl.u32 %v2108, 7
        %v2110 = vsub.s32 %v2107, %v2109
        %v2111 = vrot.slane %v1242, %v2110
        %v2113 = vunpack.c.l.s4 1966171168
        %v2114 = vunpack.c.0.s8 %v2113
        %v2115 = vlaneseq
        %v2116 = vshrl.u32 %v2115, 7
        %v2117 = vsub.s32 %v2114, %v2116
        %v2118 = vrot.slane %v2104, %v2117
        %v2119 = vcombine.high %v2111, %v2111
        %v2120 = vcombine.high %v2118, %v2118
        %v2122 = vunpack.c.l.s4 1966171168
        %v2123 = vunpack.c.0.s8 %v2122
        %v2124 = vlaneseq
        %v2125 = vshrl.u32 %v2124, 7
        %v2126 = vsub.s32 %v2123, %v2125
        %v2127 = vrot.slane %v2111, %v2126
        %v2129 = vunpack.c.l.s4 1966171168
        %v2130 = vunpack.c.0.s8 %v2129
        %v2131 = vlaneseq
        %v2132 = vshrl.u32 %v2131, 7
        %v2133 = vsub.s32 %v2130, %v2132
        %v2134 = vrot.slane %v2118, %v2133
        %v2136 = vunpack.c.l.s4 1966171168
        %v2137 = vunpack.c.0.s8 %v2136
        %v2138 = vlaneseq
        %v2139 = vshrl.u32 %v2138, 7
        %v2140 = vsub.s32 %v2137, %v2139
        %v2141 = vrot.slane %v2119, %v2140
        %v2143 = vunpack.c.l.s4 1966171168
        %v2144 = vunpack.c.0.s8 %v2143
        %v2145 = vlaneseq
        %v2146 = vshrl.u32 %v2145, 7
        %v2147 = vsub.s32 %v2144, %v2146
        %v2148 = vrot.slane %v2120, %v2147
        %v2149 = vcombine.high %v2127, %v2127
        %v2150 = vcombine.high %v2134, %v2134
        %v2151 = vcombine.high %v2141, %v2141
        %v2152 = vcombine.high %v2148, %v2148
        %v2154 = vunpack.c.l.s4 1966171168
        %v2155 = vunpack.c.0.s8 %v2154
        %v2156 = vlaneseq
        %v2157 = vshrl.u32 %v2156, 7
        %v2158 = vsub.s32 %v2155, %v2157
        %v2159 = vrot.slane %v1243, %v2158
        %v2161 = vunpack.c.l.s4 1966171168
        %v2162 = vunpack.c.0.s8 %v2161
        %v2163 = vlaneseq
        %v2164 = vshrl.u32 %v2163, 7
        %v2165 = vsub.s32 %v2162, %v2164
        %v2166 = vrot.slane %v2159, %v2165
        %v2167 = vcombine.high %v1244, %v1244
        %v2169 = vunpack.c.l.s4 1966171168
        %v2170 = vunpack.c.0.s8 %v2169
        %v2171 = vlaneseq
        %v2172 = vshrl.u32 %v2171, 7
        %v2173 = vsub.s32 %v2170, %v2172
        %v2174 = vrot.slane %v1244, %v2173
        %v2176 = vunpack.c.l.s4 1966171168
        %v2177 = vunpack.c.0.s8 %v2176
        %v2178 = vlaneseq
        %v2179 = vshrl.u32 %v2178, 7
        %v2180 = vsub.s32 %v2177, %v2179
        %v2181 = vrot.slane %v2167, %v2180
        %v2182 = vcombine.high %v2174, %v2174
        %v2183 = vcombine.high %v2181, %v2181
        %v2185 = vunpack.c.l.s4 1966171168
        %v2186 = vunpack.c.0.s8 %v2185
        %v2187 = vlaneseq
        %v2188 = vshrl.u32 %v2187, 7
        %v2189 = vsub.s32 %v2186, %v2188
        %v2190 = vrot.slane %v2174, %v2189
        %v2192 = vunpack.c.l.s4 1966171168
        %v2193 = vunpack.c.0.s8 %v2192
        %v2194 = vlaneseq
        %v2195 = vshrl.u32 %v2194, 7
        %v2196 = vsub.s32 %v2193, %v2195
        %v2197 = vrot.slane %v2181, %v2196
        %v2199 = vunpack.c.l.s4 1966171168
        %v2200 = vunpack.c.0.s8 %v2199
        %v2201 = vlaneseq
        %v2202 = vshrl.u32 %v2201, 7
        %v2203 = vsub.s32 %v2200, %v2202
        %v2204 = vrot.slane %v2182, %v2203
        %v2206 = vunpack.c.l.s4 1966171168
        %v2207 = vunpack.c.0.s8 %v2206
        %v2208 = vlaneseq
        %v2209 = vshrl.u32 %v2208, 7
        %v2210 = vsub.s32 %v2207, %v2209
        %v2211 = vrot.slane %v2183, %v2210
        %v2212 = vcombine.high %v2190, %v2190
        %v2213 = vcombine.high %v2197, %v2197
        %v2214 = vcombine.high %v2204, %v2204
        %v2215 = vcombine.high %v2211, %v2211
        %v2217 = vunpack.c.l.s4 1966171168
        %v2218 = vunpack.c.0.s8 %v2217
        %v2219 = vlaneseq
        %v2220 = vshrl.u32 %v2219, 7
        %v2221 = vsub.s32 %v2218, %v2220
        %v2222 = vrot.slane %v1245, %v2221
        %v2224 = vunpack.c.l.s4 1966171168
        %v2225 = vunpack.c.0.s8 %v2224
        %v2226 = vlaneseq
        %v2227 = vshrl.u32 %v2226, 7
        %v2228 = vsub.s32 %v2225, %v2227
        %v2229 = vrot.slane %v2222, %v2228
        %v2230 = vlaneseq
        %v2231 = vshrl.u32 %v2230, 7
        %v2232 = vsub.s32 0, %v2231
        %v2233 = vrot.slane %v1763, %v2232
        %v2234 = vlaneseq
        %v2235 = vshrl.u32 %v2234, 7
        %v2236 = vsub.s32 0, %v2235
        %v2237 = vrot.slane %v1771, %v2236
        %v2238 = vlaneseq
        %v2239 = vshrl.u32 %v2238, 7
        %v2240 = vsub.s32 0, %v2239
        %v2241 = vrot.slane %v1773, %v2240
        %v2242 = vlaneseq
        %v2243 = vshrl.u32 %v2242, 7
        %v2244 = vsub.s32 0, %v2243
        %v2245 = vrot.slane %v1756, %v2244
        %v2246 = vlaneseq
        %v2247 = vshrl.u32 %v2246, 7
        %v2248 = vsub.s32 0, %v2247
        %v2249 = vrot.slane %v1770, %v2248
        %v2250 = vlaneseq
        %v2251 = vshrl.u32 %v2250, 7
        %v2252 = vsub.s32 0, %v2251
        %v2253 = vrot.slane %v1772, %v2252
        %v2254 = vlaneseq
        %v2255 = vshrl.u32 %v2254, 7
        %v2256 = vsub.s32 0, %v2255
        %v2257 = vrot.slane %v1774, %v2256
        %v2258 = vlaneseq
        %v2259 = vshrl.u32 %v2258, 7
        %v2260 = vsub.s32 0, %v2259
        %v2261 = vrot.slane %v1788, %v2260
        %v2262 = vlaneseq
        %v2263 = vshrl.u32 %v2262, 7
        %v2264 = vsub.s32 0, %v2263
        %v2265 = vrot.slane %v1826, %v2264
        %v2266 = vlaneseq
        %v2267 = vshrl.u32 %v2266, 7
        %v2268 = vsub.s32 0, %v2267
        %v2269 = vrot.slane %v1834, %v2268
        %v2270 = vlaneseq
        %v2271 = vshrl.u32 %v2270, 7
        %v2272 = vsub.s32 0, %v2271
        %v2273 = vrot.slane %v1836, %v2272
        %v2274 = vlaneseq
        %v2275 = vshrl.u32 %v2274, 7
        %v2276 = vsub.s32 0, %v2275
        %v2277 = vrot.slane %v1819, %v2276
        %v2278 = vlaneseq
        %v2279 = vshrl.u32 %v2278, 7
        %v2280 = vsub.s32 0, %v2279
        %v2281 = vrot.slane %v1833, %v2280
        %v2282 = vlaneseq
        %v2283 = vshrl.u32 %v2282, 7
        %v2284 = vsub.s32 0, %v2283
        %v2285 = vrot.slane %v1835, %v2284
        %v2286 = vlaneseq
        %v2287 = vshrl.u32 %v2286, 7
        %v2288 = vsub.s32 0, %v2287
        %v2289 = vrot.slane %v1837, %v2288
        %v2290 = vlaneseq
        %v2291 = vshrl.u32 %v2290, 7
        %v2292 = vsub.s32 0, %v2291
        %v2293 = vrot.slane %v1851, %v2292
        %v2294 = vlaneseq
        %v2295 = vshrl.u32 %v2294, 7
        %v2296 = vsub.s32 0, %v2295
        %v2297 = vrot.slane %v1889, %v2296
        %v2298 = vlaneseq
        %v2299 = vshrl.u32 %v2298, 7
        %v2300 = vsub.s32 0, %v2299
        %v2301 = vrot.slane %v1897, %v2300
        %v2302 = vlaneseq
        %v2303 = vshrl.u32 %v2302, 7
        %v2304 = vsub.s32 0, %v2303
        %v2305 = vrot.slane %v1899, %v2304
        %v2306 = vlaneseq
        %v2307 = vshrl.u32 %v2306, 7
        %v2308 = vsub.s32 0, %v2307
        %v2309 = vrot.slane %v1882, %v2308
        %v2310 = vlaneseq
        %v2311 = vshrl.u32 %v2310, 7
        %v2312 = vsub.s32 0, %v2311
        %v2313 = vrot.slane %v1896, %v2312
        %v2314 = vlaneseq
        %v2315 = vshrl.u32 %v2314, 7
        %v2316 = vsub.s32 0, %v2315
        %v2317 = vrot.slane %v1898, %v2316
        %v2318 = vlaneseq
        %v2319 = vshrl.u32 %v2318, 7
        %v2320 = vsub.s32 0, %v2319
        %v2321 = vrot.slane %v1900, %v2320
        %v2322 = vlaneseq
        %v2323 = vshrl.u32 %v2322, 7
        %v2324 = vsub.s32 0, %v2323
        %v2325 = vrot.slane %v1914, %v2324
        %v2326 = vlaneseq
        %v2327 = vshrl.u32 %v2326, 7
        %v2328 = vsub.s32 0, %v2327
        %v2329 = vrot.slane %v1952, %v2328
        %v2330 = vlaneseq
        %v2331 = vshrl.u32 %v2330, 7
        %v2332 = vsub.s32 0, %v2331
        %v2333 = vrot.slane %v1960, %v2332
        %v2334 = vlaneseq
        %v2335 = vshrl.u32 %v2334, 7
        %v2336 = vsub.s32 0, %v2335
        %v2337 = vrot.slane %v1962, %v2336
        %v2338 = vlaneseq
        %v2339 = vshrl.u32 %v2338, 7
        %v2340 = vsub.s32 0, %v2339
        %v2341 = vrot.slane %v1945, %v2340
        %v2342 = vlaneseq
        %v2343 = vshrl.u32 %v2342, 7
        %v2344 = vsub.s32 0, %v2343
        %v2345 = vrot.slane %v1959, %v2344
        %v2346 = vlaneseq
        %v2347 = vshrl.u32 %v2346, 7
        %v2348 = vsub.s32 0, %v2347
        %v2349 = vrot.slane %v1961, %v2348
        %v2350 = vlaneseq
        %v2351 = vshrl.u32 %v2350, 7
        %v2352 = vsub.s32 0, %v2351
        %v2353 = vrot.slane %v1963, %v2352
        %v2354 = vlaneseq
        %v2355 = vshrl.u32 %v2354, 7
        %v2356 = vsub.s32 0, %v2355
        %v2357 = vrot.slane %v1977, %v2356
        %v2358 = vlaneseq
        %v2359 = vshrl.u32 %v2358, 7
        %v2360 = vsub.s32 0, %v2359
        %v2361 = vrot.slane %v2015, %v2360
        %v2362 = vlaneseq
        %v2363 = vshrl.u32 %v2362, 7
        %v2364 = vsub.s32 0, %v2363
        %v2365 = vrot.slane %v2023, %v2364
        %v2366 = vlaneseq
        %v2367 = vshrl.u32 %v2366, 7
        %v2368 = vsub.s32 0, %v2367
        %v2369 = vrot.slane %v2025, %v2368
        %v2370 = vlaneseq
        %v2371 = vshrl.u32 %v2370, 7
        %v2372 = vsub.s32 0, %v2371
        %v2373 = vrot.slane %v2008, %v2372
        %v2374 = vlaneseq
        %v2375 = vshrl.u32 %v2374, 7
        %v2376 = vsub.s32 0, %v2375
        %v2377 = vrot.slane %v2022, %v2376
        %v2378 = vlaneseq
        %v2379 = vshrl.u32 %v2378, 7
        %v2380 = vsub.s32 0, %v2379
        %v2381 = vrot.slane %v2024, %v2380
        %v2382 = vlaneseq
        %v2383 = vshrl.u32 %v2382, 7
        %v2384 = vsub.s32 0, %v2383
        %v2385 = vrot.slane %v2026, %v2384
        %v2386 = vlaneseq
        %v2387 = vshrl.u32 %v2386, 7
        %v2388 = vsub.s32 0, %v2387
        %v2389 = vrot.slane %v2040, %v2388
        %v2390 = vlaneseq
        %v2391 = vshrl.u32 %v2390, 7
        %v2392 = vsub.s32 0, %v2391
        %v2393 = vrot.slane %v2078, %v2392
        %v2394 = vlaneseq
        %v2395 = vshrl.u32 %v2394, 7
        %v2396 = vsub.s32 0, %v2395
        %v2397 = vrot.slane %v2086, %v2396
        %v2398 = vlaneseq
        %v2399 = vshrl.u32 %v2398, 7
        %v2400 = vsub.s32 0, %v2399
        %v2401 = vrot.slane %v2088, %v2400
        %v2402 = vlaneseq
        %v2403 = vshrl.u32 %v2402, 7
        %v2404 = vsub.s32 0, %v2403
        %v2405 = vrot.slane %v2071, %v2404
        %v2406 = vlaneseq
        %v2407 = vshrl.u32 %v2406, 7
        %v2408 = vsub.s32 0, %v2407
        %v2409 = vrot.slane %v2085, %v2408
        %v2410 = vlaneseq
        %v2411 = vshrl.u32 %v2410, 7
        %v2412 = vsub.s32 0, %v2411
        %v2413 = vrot.slane %v2087, %v2412
        %v2414 = vlaneseq
        %v2415 = vshrl.u32 %v2414, 7
        %v2416 = vsub.s32 0, %v2415
        %v2417 = vrot.slane %v2089, %v2416
        %v2418 = vlaneseq
        %v2419 = vshrl.u32 %v2418, 7
        %v2420 = vsub.s32 0, %v2419
        %v2421 = vrot.slane %v2103, %v2420
        %v2422 = vlaneseq
        %v2423 = vshrl.u32 %v2422, 7
        %v2424 = vsub.s32 0, %v2423
        %v2425 = vrot.slane %v2141, %v2424
        %v2426 = vlaneseq
        %v2427 = vshrl.u32 %v2426, 7
        %v2428 = vsub.s32 0, %v2427
        %v2429 = vrot.slane %v2149, %v2428
        %v2430 = vlaneseq
        %v2431 = vshrl.u32 %v2430, 7
        %v2432 = vsub.s32 0, %v2431
        %v2433 = vrot.slane %v2151, %v2432
        %v2434 = vlaneseq
        %v2435 = vshrl.u32 %v2434, 7
        %v2436 = vsub.s32 0, %v2435
        %v2437 = vrot.slane %v2134, %v2436
        %v2438 = vlaneseq
        %v2439 = vshrl.u32 %v2438, 7
        %v2440 = vsub.s32 0, %v2439
        %v2441 = vrot.slane %v2148, %v2440
        %v2442 = vlaneseq
        %v2443 = vshrl.u32 %v2442, 7
        %v2444 = vsub.s32 0, %v2443
        %v2445 = vrot.slane %v2150, %v2444
        %v2446 = vlaneseq
        %v2447 = vshrl.u32 %v2446, 7
        %v2448 = vsub.s32 0, %v2447
        %v2449 = vrot.slane %v2152, %v2448
        %v2450 = vlaneseq
        %v2451 = vshrl.u32 %v2450, 7
        %v2452 = vsub.s32 0, %v2451
        %v2453 = vrot.slane %v2166, %v2452
        %v2454 = vlaneseq
        %v2455 = vshrl.u32 %v2454, 7
        %v2456 = vsub.s32 0, %v2455
        %v2457 = vrot.slane %v2204, %v2456
        %v2458 = vlaneseq
        %v2459 = vshrl.u32 %v2458, 7
        %v2460 = vsub.s32 0, %v2459
        %v2461 = vrot.slane %v2212, %v2460
        %v2462 = vlaneseq
        %v2463 = vshrl.u32 %v2462, 7
        %v2464 = vsub.s32 0, %v2463
        %v2465 = vrot.slane %v2214, %v2464
        %v2466 = vlaneseq
        %v2467 = vshrl.u32 %v2466, 7
        %v2468 = vsub.s32 0, %v2467
        %v2469 = vrot.slane %v2197, %v2468
        %v2470 = vlaneseq
        %v2471 = vshrl.u32 %v2470, 7
        %v2472 = vsub.s32 0, %v2471
        %v2473 = vrot.slane %v2211, %v2472
        %v2474 = vlaneseq
        %v2475 = vshrl.u32 %v2474, 7
        %v2476 = vsub.s32 0, %v2475
        %v2477 = vrot.slane %v2213, %v2476
        %v2478 = vlaneseq
        %v2479 = vshrl.u32 %v2478, 7
        %v2480 = vsub.s32 0, %v2479
        %v2481 = vrot.slane %v2215, %v2480
        %v2482 = vlaneseq
        %v2483 = vshrl.u32 %v2482, 7
        %v2484 = vsub.s32 0, %v2483
        %v2485 = vrot.slane %v2229, %v2484
        %vm2550 = vcmask 1040384
        %v2551 = vsel %vm2550, %v1277, %v2233
        %v2552 = vsel %vm2550, %v1291, %v2237
        %v2553 = vsel %vm2550, %v1299, %v2241
        %v2554 = vsel %vm2550, %v1301, %v2245
        %v2555 = vsel %vm2550, %v1284, %v2249
        %v2556 = vsel %vm2550, %v1298, %v2253
        %v2557 = vsel %vm2550, %v1300, %v2257
        %v2558 = vsel %vm2550, %v1302, %v2261
        %v2559 = vsel %vm2550, %v1326, %v2265
        %v2560 = vsel %vm2550, %v1340, %v2269
        %v2561 = vsel %vm2550, %v1348, %v2273
        %v2562 = vsel %vm2550, %v1350, %v2277
        %v2563 = vsel %vm2550, %v1333, %v2281
        %v2564 = vsel %vm2550, %v1347, %v2285
        %v2565 = vsel %vm2550, %v1349, %v2289
        %v2566 = vsel %vm2550, %v1351, %v2293
        %v2567 = vsel %vm2550, %v1375, %v2297
        %v2568 = vsel %vm2550, %v1389, %v2301
        %v2569 = vsel %vm2550, %v1397, %v2305
        %v2570 = vsel %vm2550, %v1399, %v2309
        %v2571 = vsel %vm2550, %v1382, %v2313
        %v2572 = vsel %vm2550, %v1396, %v2317
        %v2573 = vsel %vm2550, %v1398, %v2321
        %v2574 = vsel %vm2550, %v1400, %v2325
        %v2575 = vsel %vm2550, %v1424, %v2329
        %v2576 = vsel %vm2550, %v1438, %v2333
        %v2577 = vsel %vm2550, %v1446, %v2337
        %v2578 = vsel %vm2550, %v1448, %v2341
        %v2579 = vsel %vm2550, %v1431, %v2345
        %v2580 = vsel %vm2550, %v1445, %v2349
        %v2581 = vsel %vm2550, %v1447, %v2353
        %v2582 = vsel %vm2550, %v1449, %v2357
        %v2583 = vsel %vm2550, %v1473, %v2361
        %v2584 = vsel %vm2550, %v1487, %v2365
        %v2585 = vsel %vm2550, %v1495, %v2369
        %v2586 = vsel %vm2550, %v1497, %v2373
        %v2587 = vsel %vm2550, %v1480, %v2377
        %v2588 = vsel %vm2550, %v1494, %v2381
        %v2589 = vsel %vm2550, %v1496, %v2385
        %v2590 = vsel %vm2550, %v1498, %v2389
        %v2591 = vsel %vm2550, %v1522, %v2393
        %v2592 = vsel %vm2550, %v1536, %v2397
        %v2593 = vsel %vm2550, %v1544, %v2401
        %v2594 = vsel %vm2550, %v1546, %v2405
        %v2595 = vsel %vm2550, %v1529, %v2409
        %v2596 = vsel %vm2550, %v1543, %v2413
        %v2597 = vsel %vm2550, %v1545, %v2417
        %v2598 = vsel %vm2550, %v1547, %v2421
        %v2599 = vsel %vm2550, %v1571, %v2425
        %v2600 = vsel %vm2550, %v1585, %v2429
        %v2601 = vsel %vm2550, %v1593, %v2433
        %v2602 = vsel %vm2550, %v1595, %v2437
        %v2603 = vsel %vm2550, %v1578, %v2441
        %v2604 = vsel %vm2550, %v1592, %v2445
        %v2605 = vsel %vm2550, %v1594, %v2449
        %v2606 = vsel %vm2550, %v1596, %v2453
        %v2607 = vsel %vm2550, %v1620, %v2457
        %v2608 = vsel %vm2550, %v1634, %v2461
        %v2609 = vsel %vm2550, %v1642, %v2465
        %v2610 = vsel %vm2550, %v1644, %v2469
        %v2611 = vsel %vm2550, %v1627, %v2473
        %v2612 = vsel %vm2550, %v1641, %v2477
        %v2613 = vsel %vm2550, %v1643, %v2481
        %v2614 = vsel %vm2550, %v1645, %v2485
        %v2615 = vmul.f32 %v1034, 0.25
        %v2616 = vmul.f32 %v1035, 0.25
        %v2617 = vmul.f32 %v1036, 0.25
        %v2618 = vmul.f32 %v1037, 0.25
        %v2619 = vadd.f32 %v1054, %v1042
        %v2620 = vadd.f32 %v1055, %v1043
        %v2621 = vadd.f32 %v1056, %v1044
        %v2622 = vadd.f32 %v1057, %v1045
        %v2623 = vadd.f32 %v1058, %v1046
        %v2624 = vadd.f32 %v1059, %v1047
        %v2625 = vadd.f32 %v1060, %v1048
        %v2626 = vadd.f32 %v1061, %v1049
        %v2627 = vadd.f32 %v1062, %v1050
        %v2628 = vadd.f32 %v1063, %v1051
        %v2629 = vadd.f32 %v1064, %v1052
        %v2630 = vadd.f32 %v1065, %v1053
        %v2631 = vadd.f32 %v1066, %v2615
        %v2632 = vadd.f32 %v1067, %v2616
        %v2633 = vadd.f32 %v1068, %v2617
        %v2634 = vadd.f32 %v1069, %v2618
        %v2635 = vmul.f32 %v2619, 0.25
        %v2636 = vmul.f32 %v2621, 0.25
        %v2637 = vmul.f32 %v2623, 0.25
        %v2638 = vmul.f32 %v2625, 0.25
        %v2639 = vmul.f32 %v2627, 0.25
        %v2640 = vmul.f32 %v2629, 0.25
        %v2641 = vmul.f32 %v2631, 0.25
        %v2642 = vmul.f32 %v2633, 0.25
        %v2643 = vmul.f32 %v2619, 0.75
        %v2644 = vmul.f32 %v2620, 0.75
        %v2645 = vmul.f32 %v2621, 0.75
        %v2646 = vmul.f32 %v2622, 0.75
        %v2647 = vmul.f32 %v2623, 0.75
        %v2648 = vmul.f32 %v2624, 0.75
        %v2649 = vmul.f32 %v2625, 0.75
        %v2650 = vmul.f32 %v2626, 0.75
        %v2651 = vmul.f32 %v2627, 0.75
        %v2652 = vmul.f32 %v2628, 0.75
        %v2653 = vmul.f32 %v2629, 0.75
        %v2654 = vmul.f32 %v2630, 0.75
        %v2655 = vmul.f32 %v2631, 0.75
        %v2656 = vmul.f32 %v2632, 0.75
        %v2657 = vmul.f32 %v2633, 0.75
        %v2658 = vmul.f32 %v2634, 0.75
        %v2675 = vrot.slane %v2643, 1
        %v2676 = vrot.slane %v2644, 1
        %v2677 = vsel %vm419, %v2675, %v2676
        %v2678 = vrot.slane %v2645, 1
        %v2679 = vrot.slane %v2646, 1
        %v2680 = vsel %vm419, %v2678, %v2679
        %v2681 = vrot.slane %v2647, 1
        %v2682 = vrot.slane %v2648, 1
        %v2683 = vsel %vm419, %v2681, %v2682
        %v2684 = vrot.slane %v2649, 1
        %v2685 = vrot.slane %v2650, 1
        %v2686 = vsel %vm419, %v2684, %v2685
        %v2687 = vrot.slane %v2651, 1
        %v2688 = vrot.slane %v2652, 1
        %v2689 = vsel %vm419, %v2687, %v2688
        %v2690 = vrot.slane %v2653, 1
        %v2691 = vrot.slane %v2654, 1
        %v2692 = vsel %vm419, %v2690, %v2691
        %v2693 = vrot.slane %v2655, 1
        %v2694 = vrot.slane %v2656, 1
        %v2695 = vsel %vm419, %v2693, %v2694
        %v2696 = vrot.slane %v2657, 1
        %v2697 = vrot.slane %v2658, 1
        %v2698 = vsel %vm419, %v2696, %v2697
        %v2707 = vadd.f32 %v2635, %v2677
        %v2708 = vadd.f32 %v2636, %v2680
        %v2709 = vadd.f32 %v2637, %v2683
        %v2710 = vadd.f32 %v2638, %v2686
        %v2711 = vadd.f32 %v2639, %v2689
        %v2712 = vadd.f32 %v2640, %v2692
        %v2713 = vadd.f32 %v2641, %v2695
        %v2714 = vadd.f32 %v2642, %v2698
        %v2715 = vmul.f32 %v2620, 0.25
        %v2716 = vmul.f32 %v2622, 0.25
        %v2717 = vmul.f32 %v2624, 0.25
        %v2718 = vmul.f32 %v2626, 0.25
        %v2719 = vmul.f32 %v2628, 0.25
        %v2720 = vmul.f32 %v2630, 0.25
        %v2721 = vmul.f32 %v2632, 0.25
        %v2722 = vmul.f32 %v2634, 0.25
        %v2739 = vrot.slane %v2635, 1
        %v2740 = vrot.slane %v2715, 1
        %v2741 = vsel %vm419, %v2739, %v2740
        %v2742 = vrot.slane %v2636, 1
        %v2743 = vrot.slane %v2716, 1
        %v2744 = vsel %vm419, %v2742, %v2743
        %v2745 = vrot.slane %v2637, 1
        %v2746 = vrot.slane %v2717, 1
        %v2747 = vsel %vm419, %v2745, %v2746
        %v2748 = vrot.slane %v2638, 1
        %v2749 = vrot.slane %v2718, 1
        %v2750 = vsel %vm419, %v2748, %v2749
        %v2751 = vrot.slane %v2639, 1
        %v2752 = vrot.slane %v2719, 1
        %v2753 = vsel %vm419, %v2751, %v2752
        %v2754 = vrot.slane %v2640, 1
        %v2755 = vrot.slane %v2720, 1
        %v2756 = vsel %vm419, %v2754, %v2755
        %v2757 = vrot.slane %v2641, 1
        %v2758 = vrot.slane %v2721, 1
        %v2759 = vsel %vm419, %v2757, %v2758
        %v2760 = vrot.slane %v2642, 1
        %v2761 = vrot.slane %v2722, 1
        %v2762 = vsel %vm419, %v2760, %v2761
        %v2779 = vadd.f32 %v2643, %v2741
        %v2780 = vadd.f32 %v2644, %v2740
        %v2781 = vadd.f32 %v2645, %v2744
        %v2782 = vadd.f32 %v2646, %v2743
        %v2783 = vadd.f32 %v2647, %v2747
        %v2784 = vadd.f32 %v2648, %v2746
        %v2785 = vadd.f32 %v2649, %v2750
        %v2786 = vadd.f32 %v2650, %v2749
        %v2787 = vadd.f32 %v2651, %v2753
        %v2788 = vadd.f32 %v2652, %v2752
        %v2789 = vadd.f32 %v2653, %v2756
        %v2790 = vadd.f32 %v2654, %v2755
        %v2791 = vadd.f32 %v2655, %v2759
        %v2792 = vadd.f32 %v2656, %v2758
        %v2793 = vadd.f32 %v2657, %v2762
        %v2794 = vadd.f32 %v2658, %v2761
        %v2803 = vcombine.high %v2707, %v2707
        %v2805 = vunpack.c.l.s4 1966171168
        %v2806 = vunpack.c.0.s8 %v2805
        %v2807 = vlaneseq
        %v2808 = vshrl.u32 %v2807, 7
        %v2809 = vsub.s32 %v2806, %v2808
        %v2810 = vrot.slane %v2707, %v2809
        %v2812 = vunpack.c.l.s4 1966171168
        %v2813 = vunpack.c.0.s8 %v2812
        %v2814 = vlaneseq
        %v2815 = vshrl.u32 %v2814, 7
        %v2816 = vsub.s32 %v2813, %v2815
        %v2817 = vrot.slane %v2803, %v2816
        %v2818 = vcombine.high %v2810, %v2810
        %v2819 = vcombine.high %v2817, %v2817
        %v2821 = vunpack.c.l.s4 1966171168
        %v2822 = vunpack.c.0.s8 %v2821
        %v2823 = vlaneseq
        %v2824 = vshrl.u32 %v2823, 7
        %v2825 = vsub.s32 %v2822, %v2824
        %v2826 = vrot.slane %v2810, %v2825
        %v2828 = vunpack.c.l.s4 1966171168
        %v2829 = vunpack.c.0.s8 %v2828
        %v2830 = vlaneseq
        %v2831 = vshrl.u32 %v2830, 7
        %v2832 = vsub.s32 %v2829, %v2831
        %v2833 = vrot.slane %v2817, %v2832
        %v2835 = vunpack.c.l.s4 1966171168
        %v2836 = vunpack.c.0.s8 %v2835
        %v2837 = vlaneseq
        %v2838 = vshrl.u32 %v2837, 7
        %v2839 = vsub.s32 %v2836, %v2838
        %v2840 = vrot.slane %v2818, %v2839
        %v2842 = vunpack.c.l.s4 1966171168
        %v2843 = vunpack.c.0.s8 %v2842
        %v2844 = vlaneseq
        %v2845 = vshrl.u32 %v2844, 7
        %v2846 = vsub.s32 %v2843, %v2845
        %v2847 = vrot.slane %v2819, %v2846
        %v2848 = vcombine.high %v2826, %v2826
        %v2849 = vcombine.high %v2833, %v2833
        %v2850 = vcombine.high %v2840, %v2840
        %v2851 = vcombine.high %v2847, %v2847
        %v2852 = vcombine.high %v2708, %v2708
        %v2854 = vunpack.c.l.s4 1966171168
        %v2855 = vunpack.c.0.s8 %v2854
        %v2856 = vlaneseq
        %v2857 = vshrl.u32 %v2856, 7
        %v2858 = vsub.s32 %v2855, %v2857
        %v2859 = vrot.slane %v2708, %v2858
        %v2861 = vunpack.c.l.s4 1966171168
        %v2862 = vunpack.c.0.s8 %v2861
        %v2863 = vlaneseq
        %v2864 = vshrl.u32 %v2863, 7
        %v2865 = vsub.s32 %v2862, %v2864
        %v2866 = vrot.slane %v2852, %v2865
        %v2867 = vcombine.high %v2859, %v2859
        %v2868 = vcombine.high %v2866, %v2866
        %v2870 = vunpack.c.l.s4 1966171168
        %v2871 = vunpack.c.0.s8 %v2870
        %v2872 = vlaneseq
        %v2873 = vshrl.u32 %v2872, 7
        %v2874 = vsub.s32 %v2871, %v2873
        %v2875 = vrot.slane %v2859, %v2874
        %v2877 = vunpack.c.l.s4 1966171168
        %v2878 = vunpack.c.0.s8 %v2877
        %v2879 = vlaneseq
        %v2880 = vshrl.u32 %v2879, 7
        %v2881 = vsub.s32 %v2878, %v2880
        %v2882 = vrot.slane %v2866, %v2881
        %v2884 = vunpack.c.l.s4 1966171168
        %v2885 = vunpack.c.0.s8 %v2884
        %v2886 = vlaneseq
        %v2887 = vshrl.u32 %v2886, 7
        %v2888 = vsub.s32 %v2885, %v2887
        %v2889 = vrot.slane %v2867, %v2888
        %v2891 = vunpack.c.l.s4 1966171168
        %v2892 = vunpack.c.0.s8 %v2891
        %v2893 = vlaneseq
        %v2894 = vshrl.u32 %v2893, 7
        %v2895 = vsub.s32 %v2892, %v2894
        %v2896 = vrot.slane %v2868, %v2895
        %v2897 = vcombine.high %v2875, %v2875
        %v2898 = vcombine.high %v2882, %v2882
        %v2899 = vcombine.high %v2889, %v2889
        %v2900 = vcombine.high %v2896, %v2896
        %v2901 = vcombine.high %v2709, %v2709
        %v2903 = vunpack.c.l.s4 1966171168
        %v2904 = vunpack.c.0.s8 %v2903
        %v2905 = vlaneseq
        %v2906 = vshrl.u32 %v2905, 7
        %v2907 = vsub.s32 %v2904, %v2906
        %v2908 = vrot.slane %v2709, %v2907
        %v2910 = vunpack.c.l.s4 1966171168
        %v2911 = vunpack.c.0.s8 %v2910
        %v2912 = vlaneseq
        %v2913 = vshrl.u32 %v2912, 7
        %v2914 = vsub.s32 %v2911, %v2913
        %v2915 = vrot.slane %v2901, %v2914
        %v2916 = vcombine.high %v2908, %v2908
        %v2917 = vcombine.high %v2915, %v2915
        %v2919 = vunpack.c.l.s4 1966171168
        %v2920 = vunpack.c.0.s8 %v2919
        %v2921 = vlaneseq
        %v2922 = vshrl.u32 %v2921, 7
        %v2923 = vsub.s32 %v2920, %v2922
        %v2924 = vrot.slane %v2908, %v2923
        %v2926 = vunpack.c.l.s4 1966171168
        %v2927 = vunpack.c.0.s8 %v2926
        %v2928 = vlaneseq
        %v2929 = vshrl.u32 %v2928, 7
        %v2930 = vsub.s32 %v2927, %v2929
        %v2931 = vrot.slane %v2915, %v2930
        %v2933 = vunpack.c.l.s4 1966171168
        %v2934 = vunpack.c.0.s8 %v2933
        %v2935 = vlaneseq
        %v2936 = vshrl.u32 %v2935, 7
        %v2937 = vsub.s32 %v2934, %v2936
        %v2938 = vrot.slane %v2916, %v2937
        %v2940 = vunpack.c.l.s4 1966171168
        %v2941 = vunpack.c.0.s8 %v2940
        %v2942 = vlaneseq
        %v2943 = vshrl.u32 %v2942, 7
        %v2944 = vsub.s32 %v2941, %v2943
        %v2945 = vrot.slane %v2917, %v2944
        %v2946 = vcombine.high %v2924, %v2924
        %v2947 = vcombine.high %v2931, %v2931
        %v2948 = vcombine.high %v2938, %v2938
        %v2949 = vcombine.high %v2945, %v2945
        %v2950 = vcombine.high %v2710, %v2710
        %v2952 = vunpack.c.l.s4 1966171168
        %v2953 = vunpack.c.0.s8 %v2952
        %v2954 = vlaneseq
        %v2955 = vshrl.u32 %v2954, 7
        %v2956 = vsub.s32 %v2953, %v2955
        %v2957 = vrot.slane %v2710, %v2956
        %v2959 = vunpack.c.l.s4 1966171168
        %v2960 = vunpack.c.0.s8 %v2959
        %v2961 = vlaneseq
        %v2962 = vshrl.u32 %v2961, 7
        %v2963 = vsub.s32 %v2960, %v2962
        %v2964 = vrot.slane %v2950, %v2963
        %v2965 = vcombine.high %v2957, %v2957
        %v2966 = vcombine.high %v2964, %v2964
        %v2968 = vunpack.c.l.s4 1966171168
        %v2969 = vunpack.c.0.s8 %v2968
        %v2970 = vlaneseq
        %v2971 = vshrl.u32 %v2970, 7
        %v2972 = vsub.s32 %v2969, %v2971
        %v2973 = vrot.slane %v2957, %v2972
        %v2975 = vunpack.c.l.s4 1966171168
        %v2976 = vunpack.c.0.s8 %v2975
        %v2977 = vlaneseq
        %v2978 = vshrl.u32 %v2977, 7
        %v2979 = vsub.s32 %v2976, %v2978
        %v2980 = vrot.slane %v2964, %v2979
        %v2982 = vunpack.c.l.s4 1966171168
        %v2983 = vunpack.c.0.s8 %v2982
        %v2984 = vlaneseq
        %v2985 = vshrl.u32 %v2984, 7
        %v2986 = vsub.s32 %v2983, %v2985
        %v2987 = vrot.slane %v2965, %v2986
        %v2989 = vunpack.c.l.s4 1966171168
        %v2990 = vunpack.c.0.s8 %v2989
        %v2991 = vlaneseq
        %v2992 = vshrl.u32 %v2991, 7
        %v2993 = vsub.s32 %v2990, %v2992
        %v2994 = vrot.slane %v2966, %v2993
        %v2995 = vcombine.high %v2973, %v2973
        %v2996 = vcombine.high %v2980, %v2980
        %v2997 = vcombine.high %v2987, %v2987
        %v2998 = vcombine.high %v2994, %v2994
        %v2999 = vcombine.high %v2711, %v2711
        %v3001 = vunpack.c.l.s4 1966171168
        %v3002 = vunpack.c.0.s8 %v3001
        %v3003 = vlaneseq
        %v3004 = vshrl.u32 %v3003, 7
        %v3005 = vsub.s32 %v3002, %v3004
        %v3006 = vrot.slane %v2711, %v3005
        %v3008 = vunpack.c.l.s4 1966171168
        %v3009 = vunpack.c.0.s8 %v3008
        %v3010 = vlaneseq
        %v3011 = vshrl.u32 %v3010, 7
        %v3012 = vsub.s32 %v3009, %v3011
        %v3013 = vrot.slane %v2999, %v3012
        %v3014 = vcombine.high %v3006, %v3006
        %v3015 = vcombine.high %v3013, %v3013
        %v3017 = vunpack.c.l.s4 1966171168
        %v3018 = vunpack.c.0.s8 %v3017
        %v3019 = vlaneseq
        %v3020 = vshrl.u32 %v3019, 7
        %v3021 = vsub.s32 %v3018, %v3020
        %v3022 = vrot.slane %v3006, %v3021
        %v3024 = vunpack.c.l.s4 1966171168
        %v3025 = vunpack.c.0.s8 %v3024
        %v3026 = vlaneseq
        %v3027 = vshrl.u32 %v3026, 7
        %v3028 = vsub.s32 %v3025, %v3027
        %v3029 = vrot.slane %v3013, %v3028
        %v3031 = vunpack.c.l.s4 1966171168
        %v3032 = vunpack.c.0.s8 %v3031
        %v3033 = vlaneseq
        %v3034 = vshrl.u32 %v3033, 7
        %v3035 = vsub.s32 %v3032, %v3034
        %v3036 = vrot.slane %v3014, %v3035
        %v3038 = vunpack.c.l.s4 1966171168
        %v3039 = vunpack.c.0.s8 %v3038
        %v3040 = vlaneseq
        %v3041 = vshrl.u32 %v3040, 7
        %v3042 = vsub.s32 %v3039, %v3041
        %v3043 = vrot.slane %v3015, %v3042
        %v3044 = vcombine.high %v3022, %v3022
        %v3045 = vcombine.high %v3029, %v3029
        %v3046 = vcombine.high %v3036, %v3036
        %v3047 = vcombine.high %v3043, %v3043
        %v3048 = vcombine.high %v2712, %v2712
        %v3050 = vunpack.c.l.s4 1966171168
        %v3051 = vunpack.c.0.s8 %v3050
        %v3052 = vlaneseq
        %v3053 = vshrl.u32 %v3052, 7
        %v3054 = vsub.s32 %v3051, %v3053
        %v3055 = vrot.slane %v2712, %v3054
        %v3057 = vunpack.c.l.s4 1966171168
        %v3058 = vunpack.c.0.s8 %v3057
        %v3059 = vlaneseq
        %v3060 = vshrl.u32 %v3059, 7
        %v3061 = vsub.s32 %v3058, %v3060
        %v3062 = vrot.slane %v3048, %v3061
        %v3063 = vcombine.high %v3055, %v3055
        %v3064 = vcombine.high %v3062, %v3062
        %v3066 = vunpack.c.l.s4 1966171168
        %v3067 = vunpack.c.0.s8 %v3066
        %v3068 = vlaneseq
        %v3069 = vshrl.u32 %v3068, 7
        %v3070 = vsub.s32 %v3067, %v3069
        %v3071 = vrot.slane %v3055, %v3070
        %v3073 = vunpack.c.l.s4 1966171168
        %v3074 = vunpack.c.0.s8 %v3073
        %v3075 = vlaneseq
        %v3076 = vshrl.u32 %v3075, 7
        %v3077 = vsub.s32 %v3074, %v3076
        %v3078 = vrot.slane %v3062, %v3077
        %v3080 = vunpack.c.l.s4 1966171168
        %v3081 = vunpack.c.0.s8 %v3080
        %v3082 = vlaneseq
        %v3083 = vshrl.u32 %v3082, 7
        %v3084 = vsub.s32 %v3081, %v3083
        %v3085 = vrot.slane %v3063, %v3084
        %v3087 = vunpack.c.l.s4 1966171168
        %v3088 = vunpack.c.0.s8 %v3087
        %v3089 = vlaneseq
        %v3090 = vshrl.u32 %v3089, 7
        %v3091 = vsub.s32 %v3088, %v3090
        %v3092 = vrot.slane %v3064, %v3091
        %v3093 = vcombine.high %v3071, %v3071
        %v3094 = vcombine.high %v3078, %v3078
        %v3095 = vcombine.high %v3085, %v3085
        %v3096 = vcombine.high %v3092, %v3092
        %v3097 = vcombine.high %v2713, %v2713
        %v3099 = vunpack.c.l.s4 1966171168
        %v3100 = vunpack.c.0.s8 %v3099
        %v3101 = vlaneseq
        %v3102 = vshrl.u32 %v3101, 7
        %v3103 = vsub.s32 %v3100, %v3102
        %v3104 = vrot.slane %v2713, %v3103
        %v3106 = vunpack.c.l.s4 1966171168
        %v3107 = vunpack.c.0.s8 %v3106
        %v3108 = vlaneseq
        %v3109 = vshrl.u32 %v3108, 7
        %v3110 = vsub.s32 %v3107, %v3109
        %v3111 = vrot.slane %v3097, %v3110
        %v3112 = vcombine.high %v3104, %v3104
        %v3113 = vcombine.high %v3111, %v3111
        %v3115 = vunpack.c.l.s4 1966171168
        %v3116 = vunpack.c.0.s8 %v3115
        %v3117 = vlaneseq
        %v3118 = vshrl.u32 %v3117, 7
        %v3119 = vsub.s32 %v3116, %v3118
        %v3120 = vrot.slane %v3104, %v3119
        %v3122 = vunpack.c.l.s4 1966171168
        %v3123 = vunpack.c.0.s8 %v3122
        %v3124 = vlaneseq
        %v3125 = vshrl.u32 %v3124, 7
        %v3126 = vsub.s32 %v3123, %v3125
        %v3127 = vrot.slane %v3111, %v3126
        %v3129 = vunpack.c.l.s4 1966171168
        %v3130 = vunpack.c.0.s8 %v3129
        %v3131 = vlaneseq
        %v3132 = vshrl.u32 %v3131, 7
        %v3133 = vsub.s32 %v3130, %v3132
        %v3134 = vrot.slane %v3112, %v3133
        %v3136 = vunpack.c.l.s4 1966171168
        %v3137 = vunpack.c.0.s8 %v3136
        %v3138 = vlaneseq
        %v3139 = vshrl.u32 %v3138, 7
        %v3140 = vsub.s32 %v3137, %v3139
        %v3141 = vrot.slane %v3113, %v3140
        %v3142 = vcombine.high %v3120, %v3120
        %v3143 = vcombine.high %v3127, %v3127
        %v3144 = vcombine.high %v3134, %v3134
        %v3145 = vcombine.high %v3141, %v3141
        %v3146 = vcombine.high %v2714, %v2714
        %v3148 = vunpack.c.l.s4 1966171168
        %v3149 = vunpack.c.0.s8 %v3148
        %v3150 = vlaneseq
        %v3151 = vshrl.u32 %v3150, 7
        %v3152 = vsub.s32 %v3149, %v3151
        %v3153 = vrot.slane %v2714, %v3152
        %v3155 = vunpack.c.l.s4 1966171168
        %v3156 = vunpack.c.0.s8 %v3155
        %v3157 = vlaneseq
        %v3158 = vshrl.u32 %v3157, 7
        %v3159 = vsub.s32 %v3156, %v3158
        %v3160 = vrot.slane %v3146, %v3159
        %v3161 = vcombine.high %v3153, %v3153
        %v3162 = vcombine.high %v3160, %v3160
        %v3164 = vunpack.c.l.s4 1966171168
        %v3165 = vunpack.c.0.s8 %v3164
        %v3166 = vlaneseq
        %v3167 = vshrl.u32 %v3166, 7
        %v3168 = vsub.s32 %v3165, %v3167
        %v3169 = vrot.slane %v3153, %v3168
        %v3171 = vunpack.c.l.s4 1966171168
        %v3172 = vunpack.c.0.s8 %v3171
        %v3173 = vlaneseq
        %v3174 = vshrl.u32 %v3173, 7
        %v3175 = vsub.s32 %v3172, %v3174
        %v3176 = vrot.slane %v3160, %v3175
        %v3178 = vunpack.c.l.s4 1966171168
        %v3179 = vunpack.c.0.s8 %v3178
        %v3180 = vlaneseq
        %v3181 = vshrl.u32 %v3180, 7
        %v3182 = vsub.s32 %v3179, %v3181
        %v3183 = vrot.slane %v3161, %v3182
        %v3185 = vunpack.c.l.s4 1966171168
        %v3186 = vunpack.c.0.s8 %v3185
        %v3187 = vlaneseq
        %v3188 = vshrl.u32 %v3187, 7
        %v3189 = vsub.s32 %v3186, %v3188
        %v3190 = vrot.slane %v3162, %v3189
        %v3191 = vcombine.high %v3169, %v3169
        %v3192 = vcombine.high %v3176, %v3176
        %v3193 = vcombine.high %v3183, %v3183
        %v3194 = vcombine.high %v3190, %v3190
        %v3275 = vcombine.high %v2779, %v2779
        %v3277 = vunpack.c.l.s4 1966171168
        %v3278 = vunpack.c.0.s8 %v3277
        %v3279 = vlaneseq
        %v3280 = vshrl.u32 %v3279, 7
        %v3281 = vsub.s32 %v3278, %v3280
        %v3282 = vrot.slane %v2779, %v3281
        %v3284 = vunpack.c.l.s4 1966171168
        %v3285 = vunpack.c.0.s8 %v3284
        %v3286 = vlaneseq
        %v3287 = vshrl.u32 %v3286, 7
        %v3288 = vsub.s32 %v3285, %v3287
        %v3289 = vrot.slane %v3275, %v3288
        %v3290 = vcombine.high %v3282, %v3282
        %v3291 = vcombine.high %v3289, %v3289
        %v3293 = vunpack.c.l.s4 1966171168
        %v3294 = vunpack.c.0.s8 %v3293
        %v3295 = vlaneseq
        %v3296 = vshrl.u32 %v3295, 7
        %v3297 = vsub.s32 %v3294, %v3296
        %v3298 = vrot.slane %v3282, %v3297
        %v3300 = vunpack.c.l.s4 1966171168
        %v3301 = vunpack.c.0.s8 %v3300
        %v3302 = vlaneseq
        %v3303 = vshrl.u32 %v3302, 7
        %v3304 = vsub.s32 %v3301, %v3303
        %v3305 = vrot.slane %v3289, %v3304
        %v3307 = vunpack.c.l.s4 1966171168
        %v3308 = vunpack.c.0.s8 %v3307
        %v3309 = vlaneseq
        %v3310 = vshrl.u32 %v3309, 7
        %v3311 = vsub.s32 %v3308, %v3310
        %v3312 = vrot.slane %v3290, %v3311
        %v3314 = vunpack.c.l.s4 1966171168
        %v3315 = vunpack.c.0.s8 %v3314
        %v3316 = vlaneseq
        %v3317 = vshrl.u32 %v3316, 7
        %v3318 = vsub.s32 %v3315, %v3317
        %v3319 = vrot.slane %v3291, %v3318
        %v3320 = vcombine.high %v3298, %v3298
        %v3321 = vcombine.high %v3305, %v3305
        %v3322 = vcombine.high %v3312, %v3312
        %v3323 = vcombine.high %v3319, %v3319
        %v3325 = vunpack.c.l.s4 1966171168
        %v3326 = vunpack.c.0.s8 %v3325
        %v3327 = vlaneseq
        %v3328 = vshrl.u32 %v3327, 7
        %v3329 = vsub.s32 %v3326, %v3328
        %v3330 = vrot.slane %v2780, %v3329
        %v3332 = vunpack.c.l.s4 1966171168
        %v3333 = vunpack.c.0.s8 %v3332
        %v3334 = vlaneseq
        %v3335 = vshrl.u32 %v3334, 7
        %v3336 = vsub.s32 %v3333, %v3335
        %v3337 = vrot.slane %v3330, %v3336
        %v3338 = vcombine.high %v2781, %v2781
        %v3340 = vunpack.c.l.s4 1966171168
        %v3341 = vunpack.c.0.s8 %v3340
        %v3342 = vlaneseq
        %v3343 = vshrl.u32 %v3342, 7
        %v3344 = vsub.s32 %v3341, %v3343
        %v3345 = vrot.slane %v2781, %v3344
        %v3347 = vunpack.c.l.s4 1966171168
        %v3348 = vunpack.c.0.s8 %v3347
        %v3349 = vlaneseq
        %v3350 = vshrl.u32 %v3349, 7
        %v3351 = vsub.s32 %v3348, %v3350
        %v3352 = vrot.slane %v3338, %v3351
        %v3353 = vcombine.high %v3345, %v3345
        %v3354 = vcombine.high %v3352, %v3352
        %v3356 = vunpack.c.l.s4 1966171168
        %v3357 = vunpack.c.0.s8 %v3356
        %v3358 = vlaneseq
        %v3359 = vshrl.u32 %v3358, 7
        %v3360 = vsub.s32 %v3357, %v3359
        %v3361 = vrot.slane %v3345, %v3360
        %v3363 = vunpack.c.l.s4 1966171168
        %v3364 = vunpack.c.0.s8 %v3363
        %v3365 = vlaneseq
        %v3366 = vshrl.u32 %v3365, 7
        %v3367 = vsub.s32 %v3364, %v3366
        %v3368 = vrot.slane %v3352, %v3367
        %v3370 = vunpack.c.l.s4 1966171168
        %v3371 = vunpack.c.0.s8 %v3370
        %v3372 = vlaneseq
        %v3373 = vshrl.u32 %v3372, 7
        %v3374 = vsub.s32 %v3371, %v3373
        %v3375 = vrot.slane %v3353, %v3374
        %v3377 = vunpack.c.l.s4 1966171168
        %v3378 = vunpack.c.0.s8 %v3377
        %v3379 = vlaneseq
        %v3380 = vshrl.u32 %v3379, 7
        %v3381 = vsub.s32 %v3378, %v3380
        %v3382 = vrot.slane %v3354, %v3381
        %v3383 = vcombine.high %v3361, %v3361
        %v3384 = vcombine.high %v3368, %v3368
        %v3385 = vcombine.high %v3375, %v3375
        %v3386 = vcombine.high %v3382, %v3382
        %v3388 = vunpack.c.l.s4 1966171168
        %v3389 = vunpack.c.0.s8 %v3388
        %v3390 = vlaneseq
        %v3391 = vshrl.u32 %v3390, 7
        %v3392 = vsub.s32 %v3389, %v3391
        %v3393 = vrot.slane %v2782, %v3392
        %v3395 = vunpack.c.l.s4 1966171168
        %v3396 = vunpack.c.0.s8 %v3395
        %v3397 = vlaneseq
        %v3398 = vshrl.u32 %v3397, 7
        %v3399 = vsub.s32 %v3396, %v3398
        %v3400 = vrot.slane %v3393, %v3399
        %v3401 = vcombine.high %v2783, %v2783
        %v3403 = vunpack.c.l.s4 1966171168
        %v3404 = vunpack.c.0.s8 %v3403
        %v3405 = vlaneseq
        %v3406 = vshrl.u32 %v3405, 7
        %v3407 = vsub.s32 %v3404, %v3406
        %v3408 = vrot.slane %v2783, %v3407
        %v3410 = vunpack.c.l.s4 1966171168
        %v3411 = vunpack.c.0.s8 %v3410
        %v3412 = vlaneseq
        %v3413 = vshrl.u32 %v3412, 7
        %v3414 = vsub.s32 %v3411, %v3413
        %v3415 = vrot.slane %v3401, %v3414
        %v3416 = vcombine.high %v3408, %v3408
        %v3417 = vcombine.high %v3415, %v3415
        %v3419 = vunpack.c.l.s4 1966171168
        %v3420 = vunpack.c.0.s8 %v3419
        %v3421 = vlaneseq
        %v3422 = vshrl.u32 %v3421, 7
        %v3423 = vsub.s32 %v3420, %v3422
        %v3424 = vrot.slane %v3408, %v3423
        %v3426 = vunpack.c.l.s4 1966171168
        %v3427 = vunpack.c.0.s8 %v3426
        %v3428 = vlaneseq
        %v3429 = vshrl.u32 %v3428, 7
        %v3430 = vsub.s32 %v3427, %v3429
        %v3431 = vrot.slane %v3415, %v3430
        %v3433 = vunpack.c.l.s4 1966171168
        %v3434 = vunpack.c.0.s8 %v3433
        %v3435 = vlaneseq
        %v3436 = vshrl.u32 %v3435, 7
        %v3437 = vsub.s32 %v3434, %v3436
        %v3438 = vrot.slane %v3416, %v3437
        %v3440 = vunpack.c.l.s4 1966171168
        %v3441 = vunpack.c.0.s8 %v3440
        %v3442 = vlaneseq
        %v3443 = vshrl.u32 %v3442, 7
        %v3444 = vsub.s32 %v3441, %v3443
        %v3445 = vrot.slane %v3417, %v3444
        %v3446 = vcombine.high %v3424, %v3424
        %v3447 = vcombine.high %v3431, %v3431
        %v3448 = vcombine.high %v3438, %v3438
        %v3449 = vcombine.high %v3445, %v3445
        %v3451 = vunpack.c.l.s4 1966171168
        %v3452 = vunpack.c.0.s8 %v3451
        %v3453 = vlaneseq
        %v3454 = vshrl.u32 %v3453, 7
        %v3455 = vsub.s32 %v3452, %v3454
        %v3456 = vrot.slane %v2784, %v3455
        %v3458 = vunpack.c.l.s4 1966171168
        %v3459 = vunpack.c.0.s8 %v3458
        %v3460 = vlaneseq
        %v3461 = vshrl.u32 %v3460, 7
        %v3462 = vsub.s32 %v3459, %v3461
        %v3463 = vrot.slane %v3456, %v3462
        %v3464 = vcombine.high %v2785, %v2785
        %v3466 = vunpack.c.l.s4 1966171168
        %v3467 = vunpack.c.0.s8 %v3466
        %v3468 = vlaneseq
        %v3469 = vshrl.u32 %v3468, 7
        %v3470 = vsub.s32 %v3467, %v3469
        %v3471 = vrot.slane %v2785, %v3470
        %v3473 = vunpack.c.l.s4 1966171168
        %v3474 = vunpack.c.0.s8 %v3473
        %v3475 = vlaneseq
        %v3476 = vshrl.u32 %v3475, 7
        %v3477 = vsub.s32 %v3474, %v3476
        %v3478 = vrot.slane %v3464, %v3477
        %v3479 = vcombine.high %v3471, %v3471
        %v3480 = vcombine.high %v3478, %v3478
        %v3482 = vunpack.c.l.s4 1966171168
        %v3483 = vunpack.c.0.s8 %v3482
        %v3484 = vlaneseq
        %v3485 = vshrl.u32 %v3484, 7
        %v3486 = vsub.s32 %v3483, %v3485
        %v3487 = vrot.slane %v3471, %v3486
        %v3489 = vunpack.c.l.s4 1966171168
        %v3490 = vunpack.c.0.s8 %v3489
        %v3491 = vlaneseq
        %v3492 = vshrl.u32 %v3491, 7
        %v3493 = vsub.s32 %v3490, %v3492
        %v3494 = vrot.slane %v3478, %v3493
        %v3496 = vunpack.c.l.s4 1966171168
        %v3497 = vunpack.c.0.s8 %v3496
        %v3498 = vlaneseq
        %v3499 = vshrl.u32 %v3498, 7
        %v3500 = vsub.s32 %v3497, %v3499
        %v3501 = vrot.slane %v3479, %v3500
        %v3503 = vunpack.c.l.s4 1966171168
        %v3504 = vunpack.c.0.s8 %v3503
        %v3505 = vlaneseq
        %v3506 = vshrl.u32 %v3505, 7
        %v3507 = vsub.s32 %v3504, %v3506
        %v3508 = vrot.slane %v3480, %v3507
        %v3509 = vcombine.high %v3487, %v3487
        %v3510 = vcombine.high %v3494, %v3494
        %v3511 = vcombine.high %v3501, %v3501
        %v3512 = vcombine.high %v3508, %v3508
        %v3514 = vunpack.c.l.s4 1966171168
        %v3515 = vunpack.c.0.s8 %v3514
        %v3516 = vlaneseq
        %v3517 = vshrl.u32 %v3516, 7
        %v3518 = vsub.s32 %v3515, %v3517
        %v3519 = vrot.slane %v2786, %v3518
        %v3521 = vunpack.c.l.s4 1966171168
        %v3522 = vunpack.c.0.s8 %v3521
        %v3523 = vlaneseq
        %v3524 = vshrl.u32 %v3523, 7
        %v3525 = vsub.s32 %v3522, %v3524
        %v3526 = vrot.slane %v3519, %v3525
        %v3527 = vcombine.high %v2787, %v2787
        %v3529 = vunpack.c.l.s4 1966171168
        %v3530 = vunpack.c.0.s8 %v3529
        %v3531 = vlaneseq
        %v3532 = vshrl.u32 %v3531, 7
        %v3533 = vsub.s32 %v3530, %v3532
        %v3534 = vrot.slane %v2787, %v3533
        %v3536 = vunpack.c.l.s4 1966171168
        %v3537 = vunpack.c.0.s8 %v3536
        %v3538 = vlaneseq
        %v3539 = vshrl.u32 %v3538, 7
        %v3540 = vsub.s32 %v3537, %v3539
        %v3541 = vrot.slane %v3527, %v3540
        %v3542 = vcombine.high %v3534, %v3534
        %v3543 = vcombine.high %v3541, %v3541
        %v3545 = vunpack.c.l.s4 1966171168
        %v3546 = vunpack.c.0.s8 %v3545
        %v3547 = vlaneseq
        %v3548 = vshrl.u32 %v3547, 7
        %v3549 = vsub.s32 %v3546, %v3548
        %v3550 = vrot.slane %v3534, %v3549
        %v3552 = vunpack.c.l.s4 1966171168
        %v3553 = vunpack.c.0.s8 %v3552
        %v3554 = vlaneseq
        %v3555 = vshrl.u32 %v3554, 7
        %v3556 = vsub.s32 %v3553, %v3555
        %v3557 = vrot.slane %v3541, %v3556
        %v3559 = vunpack.c.l.s4 1966171168
        %v3560 = vunpack.c.0.s8 %v3559
        %v3561 = vlaneseq
        %v3562 = vshrl.u32 %v3561, 7
        %v3563 = vsub.s32 %v3560, %v3562
        %v3564 = vrot.slane %v3542, %v3563
        %v3566 = vunpack.c.l.s4 1966171168
        %v3567 = vunpack.c.0.s8 %v3566
        %v3568 = vlaneseq
        %v3569 = vshrl.u32 %v3568, 7
        %v3570 = vsub.s32 %v3567, %v3569
        %v3571 = vrot.slane %v3543, %v3570
        %v3572 = vcombine.high %v3550, %v3550
        %v3573 = vcombine.high %v3557, %v3557
        %v3574 = vcombine.high %v3564, %v3564
        %v3575 = vcombine.high %v3571, %v3571
        %v3577 = vunpack.c.l.s4 1966171168
        %v3578 = vunpack.c.0.s8 %v3577
        %v3579 = vlaneseq
        %v3580 = vshrl.u32 %v3579, 7
        %v3581 = vsub.s32 %v3578, %v3580
        %v3582 = vrot.slane %v2788, %v3581
        %v3584 = vunpack.c.l.s4 1966171168
        %v3585 = vunpack.c.0.s8 %v3584
        %v3586 = vlaneseq
        %v3587 = vshrl.u32 %v3586, 7
        %v3588 = vsub.s32 %v3585, %v3587
        %v3589 = vrot.slane %v3582, %v3588
        %v3590 = vcombine.high %v2789, %v2789
        %v3592 = vunpack.c.l.s4 1966171168
        %v3593 = vunpack.c.0.s8 %v3592
        %v3594 = vlaneseq
        %v3595 = vshrl.u32 %v3594, 7
        %v3596 = vsub.s32 %v3593, %v3595
        %v3597 = vrot.slane %v2789, %v3596
        %v3599 = vunpack.c.l.s4 1966171168
        %v3600 = vunpack.c.0.s8 %v3599
        %v3601 = vlaneseq
        %v3602 = vshrl.u32 %v3601, 7
        %v3603 = vsub.s32 %v3600, %v3602
        %v3604 = vrot.slane %v3590, %v3603
        %v3605 = vcombine.high %v3597, %v3597
        %v3606 = vcombine.high %v3604, %v3604
        %v3608 = vunpack.c.l.s4 1966171168
        %v3609 = vunpack.c.0.s8 %v3608
        %v3610 = vlaneseq
        %v3611 = vshrl.u32 %v3610, 7
        %v3612 = vsub.s32 %v3609, %v3611
        %v3613 = vrot.slane %v3597, %v3612
        %v3615 = vunpack.c.l.s4 1966171168
        %v3616 = vunpack.c.0.s8 %v3615
        %v3617 = vlaneseq
        %v3618 = vshrl.u32 %v3617, 7
        %v3619 = vsub.s32 %v3616, %v3618
        %v3620 = vrot.slane %v3604, %v3619
        %v3622 = vunpack.c.l.s4 1966171168
        %v3623 = vunpack.c.0.s8 %v3622
        %v3624 = vlaneseq
        %v3625 = vshrl.u32 %v3624, 7
        %v3626 = vsub.s32 %v3623, %v3625
        %v3627 = vrot.slane %v3605, %v3626
        %v3629 = vunpack.c.l.s4 1966171168
        %v3630 = vunpack.c.0.s8 %v3629
        %v3631 = vlaneseq
        %v3632 = vshrl.u32 %v3631, 7
        %v3633 = vsub.s32 %v3630, %v3632
        %v3634 = vrot.slane %v3606, %v3633
        %v3635 = vcombine.high %v3613, %v3613
        %v3636 = vcombine.high %v3620, %v3620
        %v3637 = vcombine.high %v3627, %v3627
        %v3638 = vcombine.high %v3634, %v3634
        %v3640 = vunpack.c.l.s4 1966171168
        %v3641 = vunpack.c.0.s8 %v3640
        %v3642 = vlaneseq
        %v3643 = vshrl.u32 %v3642, 7
        %v3644 = vsub.s32 %v3641, %v3643
        %v3645 = vrot.slane %v2790, %v3644
        %v3647 = vunpack.c.l.s4 1966171168
        %v3648 = vunpack.c.0.s8 %v3647
        %v3649 = vlaneseq
        %v3650 = vshrl.u32 %v3649, 7
        %v3651 = vsub.s32 %v3648, %v3650
        %v3652 = vrot.slane %v3645, %v3651
        %v3653 = vcombine.high %v2791, %v2791
        %v3655 = vunpack.c.l.s4 1966171168
        %v3656 = vunpack.c.0.s8 %v3655
        %v3657 = vlaneseq
        %v3658 = vshrl.u32 %v3657, 7
        %v3659 = vsub.s32 %v3656, %v3658
        %v3660 = vrot.slane %v2791, %v3659
        %v3662 = vunpack.c.l.s4 1966171168
        %v3663 = vunpack.c.0.s8 %v3662
        %v3664 = vlaneseq
        %v3665 = vshrl.u32 %v3664, 7
        %v3666 = vsub.s32 %v3663, %v3665
        %v3667 = vrot.slane %v3653, %v3666
        %v3668 = vcombine.high %v3660, %v3660
        %v3669 = vcombine.high %v3667, %v3667
        %v3671 = vunpack.c.l.s4 1966171168
        %v3672 = vunpack.c.0.s8 %v3671
        %v3673 = vlaneseq
        %v3674 = vshrl.u32 %v3673, 7
        %v3675 = vsub.s32 %v3672, %v3674
        %v3676 = vrot.slane %v3660, %v3675
        %v3678 = vunpack.c.l.s4 1966171168
        %v3679 = vunpack.c.0.s8 %v3678
        %v3680 = vlaneseq
        %v3681 = vshrl.u32 %v3680, 7
        %v3682 = vsub.s32 %v3679, %v3681
        %v3683 = vrot.slane %v3667, %v3682
        %v3685 = vunpack.c.l.s4 1966171168
        %v3686 = vunpack.c.0.s8 %v3685
        %v3687 = vlaneseq
        %v3688 = vshrl.u32 %v3687, 7
        %v3689 = vsub.s32 %v3686, %v3688
        %v3690 = vrot.slane %v3668, %v3689
        %v3692 = vunpack.c.l.s4 1966171168
        %v3693 = vunpack.c.0.s8 %v3692
        %v3694 = vlaneseq
        %v3695 = vshrl.u32 %v3694, 7
        %v3696 = vsub.s32 %v3693, %v3695
        %v3697 = vrot.slane %v3669, %v3696
        %v3698 = vcombine.high %v3676, %v3676
        %v3699 = vcombine.high %v3683, %v3683
        %v3700 = vcombine.high %v3690, %v3690
        %v3701 = vcombine.high %v3697, %v3697
        %v3703 = vunpack.c.l.s4 1966171168
        %v3704 = vunpack.c.0.s8 %v3703
        %v3705 = vlaneseq
        %v3706 = vshrl.u32 %v3705, 7
        %v3707 = vsub.s32 %v3704, %v3706
        %v3708 = vrot.slane %v2792, %v3707
        %v3710 = vunpack.c.l.s4 1966171168
        %v3711 = vunpack.c.0.s8 %v3710
        %v3712 = vlaneseq
        %v3713 = vshrl.u32 %v3712, 7
        %v3714 = vsub.s32 %v3711, %v3713
        %v3715 = vrot.slane %v3708, %v3714
        %v3716 = vcombine.high %v2793, %v2793
        %v3718 = vunpack.c.l.s4 1966171168
        %v3719 = vunpack.c.0.s8 %v3718
        %v3720 = vlaneseq
        %v3721 = vshrl.u32 %v3720, 7
        %v3722 = vsub.s32 %v3719, %v3721
        %v3723 = vrot.slane %v2793, %v3722
        %v3725 = vunpack.c.l.s4 1966171168
        %v3726 = vunpack.c.0.s8 %v3725
        %v3727 = vlaneseq
        %v3728 = vshrl.u32 %v3727, 7
        %v3729 = vsub.s32 %v3726, %v3728
        %v3730 = vrot.slane %v3716, %v3729
        %v3731 = vcombine.high %v3723, %v3723
        %v3732 = vcombine.high %v3730, %v3730
        %v3734 = vunpack.c.l.s4 1966171168
        %v3735 = vunpack.c.0.s8 %v3734
        %v3736 = vlaneseq
        %v3737 = vshrl.u32 %v3736, 7
        %v3738 = vsub.s32 %v3735, %v3737
        %v3739 = vrot.slane %v3723, %v3738
        %v3741 = vunpack.c.l.s4 1966171168
        %v3742 = vunpack.c.0.s8 %v3741
        %v3743 = vlaneseq
        %v3744 = vshrl.u32 %v3743, 7
        %v3745 = vsub.s32 %v3742, %v3744
        %v3746 = vrot.slane %v3730, %v3745
        %v3748 = vunpack.c.l.s4 1966171168
        %v3749 = vunpack.c.0.s8 %v3748
        %v3750 = vlaneseq
        %v3751 = vshrl.u32 %v3750, 7
        %v3752 = vsub.s32 %v3749, %v3751
        %v3753 = vrot.slane %v3731, %v3752
        %v3755 = vunpack.c.l.s4 1966171168
        %v3756 = vunpack.c.0.s8 %v3755
        %v3757 = vlaneseq
        %v3758 = vshrl.u32 %v3757, 7
        %v3759 = vsub.s32 %v3756, %v3758
        %v3760 = vrot.slane %v3732, %v3759
        %v3761 = vcombine.high %v3739, %v3739
        %v3762 = vcombine.high %v3746, %v3746
        %v3763 = vcombine.high %v3753, %v3753
        %v3764 = vcombine.high %v3760, %v3760
        %v3766 = vunpack.c.l.s4 1966171168
        %v3767 = vunpack.c.0.s8 %v3766
        %v3768 = vlaneseq
        %v3769 = vshrl.u32 %v3768, 7
        %v3770 = vsub.s32 %v3767, %v3769
        %v3771 = vrot.slane %v2794, %v3770
        %v3773 = vunpack.c.l.s4 1966171168
        %v3774 = vunpack.c.0.s8 %v3773
        %v3775 = vlaneseq
        %v3776 = vshrl.u32 %v3775, 7
        %v3777 = vsub.s32 %v3774, %v3776
        %v3778 = vrot.slane %v3771, %v3777
        %v3779 = vlaneseq
        %v3780 = vshrl.u32 %v3779, 7
        %v3781 = vsub.s32 0, %v3780
        %v3782 = vrot.slane %v3312, %v3781
        %v3783 = vlaneseq
        %v3784 = vshrl.u32 %v3783, 7
        %v3785 = vsub.s32 0, %v3784
        %v3786 = vrot.slane %v3320, %v3785
        %v3787 = vlaneseq
        %v3788 = vshrl.u32 %v3787, 7
        %v3789 = vsub.s32 0, %v3788
        %v3790 = vrot.slane %v3322, %v3789
        %v3791 = vlaneseq
        %v3792 = vshrl.u32 %v3791, 7
        %v3793 = vsub.s32 0, %v3792
        %v3794 = vrot.slane %v3305, %v3793
        %v3795 = vlaneseq
        %v3796 = vshrl.u32 %v3795, 7
        %v3797 = vsub.s32 0, %v3796
        %v3798 = vrot.slane %v3319, %v3797
        %v3799 = vlaneseq
        %v3800 = vshrl.u32 %v3799, 7
        %v3801 = vsub.s32 0, %v3800
        %v3802 = vrot.slane %v3321, %v3801
        %v3803 = vlaneseq
        %v3804 = vshrl.u32 %v3803, 7
        %v3805 = vsub.s32 0, %v3804
        %v3806 = vrot.slane %v3323, %v3805
        %v3807 = vlaneseq
        %v3808 = vshrl.u32 %v3807, 7
        %v3809 = vsub.s32 0, %v3808
        %v3810 = vrot.slane %v3337, %v3809
        %v3811 = vlaneseq
        %v3812 = vshrl.u32 %v3811, 7
        %v3813 = vsub.s32 0, %v3812
        %v3814 = vrot.slane %v3375, %v3813
        %v3815 = vlaneseq
        %v3816 = vshrl.u32 %v3815, 7
        %v3817 = vsub.s32 0, %v3816
        %v3818 = vrot.slane %v3383, %v3817
        %v3819 = vlaneseq
        %v3820 = vshrl.u32 %v3819, 7
        %v3821 = vsub.s32 0, %v3820
        %v3822 = vrot.slane %v3385, %v3821
        %v3823 = vlaneseq
        %v3824 = vshrl.u32 %v3823, 7
        %v3825 = vsub.s32 0, %v3824
        %v3826 = vrot.slane %v3368, %v3825
        %v3827 = vlaneseq
        %v3828 = vshrl.u32 %v3827, 7
        %v3829 = vsub.s32 0, %v3828
        %v3830 = vrot.slane %v3382, %v3829
        %v3831 = vlaneseq
        %v3832 = vshrl.u32 %v3831, 7
        %v3833 = vsub.s32 0, %v3832
        %v3834 = vrot.slane %v3384, %v3833
        %v3835 = vlaneseq
        %v3836 = vshrl.u32 %v3835, 7
        %v3837 = vsub.s32 0, %v3836
        %v3838 = vrot.slane %v3386, %v3837
        %v3839 = vlaneseq
        %v3840 = vshrl.u32 %v3839, 7
        %v3841 = vsub.s32 0, %v3840
        %v3842 = vrot.slane %v3400, %v3841
        %v3843 = vlaneseq
        %v3844 = vshrl.u32 %v3843, 7
        %v3845 = vsub.s32 0, %v3844
        %v3846 = vrot.slane %v3438, %v3845
        %v3847 = vlaneseq
        %v3848 = vshrl.u32 %v3847, 7
        %v3849 = vsub.s32 0, %v3848
        %v3850 = vrot.slane %v3446, %v3849
        %v3851 = vlaneseq
        %v3852 = vshrl.u32 %v3851, 7
        %v3853 = vsub.s32 0, %v3852
        %v3854 = vrot.slane %v3448, %v3853
        %v3855 = vlaneseq
        %v3856 = vshrl.u32 %v3855, 7
        %v3857 = vsub.s32 0, %v3856
        %v3858 = vrot.slane %v3431, %v3857
        %v3859 = vlaneseq
        %v3860 = vshrl.u32 %v3859, 7
        %v3861 = vsub.s32 0, %v3860
        %v3862 = vrot.slane %v3445, %v3861
        %v3863 = vlaneseq
        %v3864 = vshrl.u32 %v3863, 7
        %v3865 = vsub.s32 0, %v3864
        %v3866 = vrot.slane %v3447, %v3865
        %v3867 = vlaneseq
        %v3868 = vshrl.u32 %v3867, 7
        %v3869 = vsub.s32 0, %v3868
        %v3870 = vrot.slane %v3449, %v3869
        %v3871 = vlaneseq
        %v3872 = vshrl.u32 %v3871, 7
        %v3873 = vsub.s32 0, %v3872
        %v3874 = vrot.slane %v3463, %v3873
        %v3875 = vlaneseq
        %v3876 = vshrl.u32 %v3875, 7
        %v3877 = vsub.s32 0, %v3876
        %v3878 = vrot.slane %v3501, %v3877
        %v3879 = vlaneseq
        %v3880 = vshrl.u32 %v3879, 7
        %v3881 = vsub.s32 0, %v3880
        %v3882 = vrot.slane %v3509, %v3881
        %v3883 = vlaneseq
        %v3884 = vshrl.u32 %v3883, 7
        %v3885 = vsub.s32 0, %v3884
        %v3886 = vrot.slane %v3511, %v3885
        %v3887 = vlaneseq
        %v3888 = vshrl.u32 %v3887, 7
        %v3889 = vsub.s32 0, %v3888
        %v3890 = vrot.slane %v3494, %v3889
        %v3891 = vlaneseq
        %v3892 = vshrl.u32 %v3891, 7
        %v3893 = vsub.s32 0, %v3892
        %v3894 = vrot.slane %v3508, %v3893
        %v3895 = vlaneseq
        %v3896 = vshrl.u32 %v3895, 7
        %v3897 = vsub.s32 0, %v3896
        %v3898 = vrot.slane %v3510, %v3897
        %v3899 = vlaneseq
        %v3900 = vshrl.u32 %v3899, 7
        %v3901 = vsub.s32 0, %v3900
        %v3902 = vrot.slane %v3512, %v3901
        %v3903 = vlaneseq
        %v3904 = vshrl.u32 %v3903, 7
        %v3905 = vsub.s32 0, %v3904
        %v3906 = vrot.slane %v3526, %v3905
        %v3907 = vlaneseq
        %v3908 = vshrl.u32 %v3907, 7
        %v3909 = vsub.s32 0, %v3908
        %v3910 = vrot.slane %v3564, %v3909
        %v3911 = vlaneseq
        %v3912 = vshrl.u32 %v3911, 7
        %v3913 = vsub.s32 0, %v3912
        %v3914 = vrot.slane %v3572, %v3913
        %v3915 = vlaneseq
        %v3916 = vshrl.u32 %v3915, 7
        %v3917 = vsub.s32 0, %v3916
        %v3918 = vrot.slane %v3574, %v3917
        %v3919 = vlaneseq
        %v3920 = vshrl.u32 %v3919, 7
        %v3921 = vsub.s32 0, %v3920
        %v3922 = vrot.slane %v3557, %v3921
        %v3923 = vlaneseq
        %v3924 = vshrl.u32 %v3923, 7
        %v3925 = vsub.s32 0, %v3924
        %v3926 = vrot.slane %v3571, %v3925
        %v3927 = vlaneseq
        %v3928 = vshrl.u32 %v3927, 7
        %v3929 = vsub.s32 0, %v3928
        %v3930 = vrot.slane %v3573, %v3929
        %v3931 = vlaneseq
        %v3932 = vshrl.u32 %v3931, 7
        %v3933 = vsub.s32 0, %v3932
        %v3934 = vrot.slane %v3575, %v3933
        %v3935 = vlaneseq
        %v3936 = vshrl.u32 %v3935, 7
        %v3937 = vsub.s32 0, %v3936
        %v3938 = vrot.slane %v3589, %v3937
        %v3939 = vlaneseq
        %v3940 = vshrl.u32 %v3939, 7
        %v3941 = vsub.s32 0, %v3940
        %v3942 = vrot.slane %v3627, %v3941
        %v3943 = vlaneseq
        %v3944 = vshrl.u32 %v3943, 7
        %v3945 = vsub.s32 0, %v3944
        %v3946 = vrot.slane %v3635, %v3945
        %v3947 = vlaneseq
        %v3948 = vshrl.u32 %v3947, 7
        %v3949 = vsub.s32 0, %v3948
        %v3950 = vrot.slane %v3637, %v3949
        %v3951 = vlaneseq
        %v3952 = vshrl.u32 %v3951, 7
        %v3953 = vsub.s32 0, %v3952
        %v3954 = vrot.slane %v3620, %v3953
        %v3955 = vlaneseq
        %v3956 = vshrl.u32 %v3955, 7
        %v3957 = vsub.s32 0, %v3956
        %v3958 = vrot.slane %v3634, %v3957
        %v3959 = vlaneseq
        %v3960 = vshrl.u32 %v3959, 7
        %v3961 = vsub.s32 0, %v3960
        %v3962 = vrot.slane %v3636, %v3961
        %v3963 = vlaneseq
        %v3964 = vshrl.u32 %v3963, 7
        %v3965 = vsub.s32 0, %v3964
        %v3966 = vrot.slane %v3638, %v3965
        %v3967 = vlaneseq
        %v3968 = vshrl.u32 %v3967, 7
        %v3969 = vsub.s32 0, %v3968
        %v3970 = vrot.slane %v3652, %v3969
        %v3971 = vlaneseq
        %v3972 = vshrl.u32 %v3971, 7
        %v3973 = vsub.s32 0, %v3972
        %v3974 = vrot.slane %v3690, %v3973
        %v3975 = vlaneseq
        %v3976 = vshrl.u32 %v3975, 7
        %v3977 = vsub.s32 0, %v3976
        %v3978 = vrot.slane %v3698, %v3977
        %v3979 = vlaneseq
        %v3980 = vshrl.u32 %v3979, 7
        %v3981 = vsub.s32 0, %v3980
        %v3982 = vrot.slane %v3700, %v3981
        %v3983 = vlaneseq
        %v3984 = vshrl.u32 %v3983, 7
        %v3985 = vsub.s32 0, %v3984
        %v3986 = vrot.slane %v3683, %v3985
        %v3987 = vlaneseq
        %v3988 = vshrl.u32 %v3987, 7
        %v3989 = vsub.s32 0, %v3988
        %v3990 = vrot.slane %v3697, %v3989
        %v3991 = vlaneseq
        %v3992 = vshrl.u32 %v3991, 7
        %v3993 = vsub.s32 0, %v3992
        %v3994 = vrot.slane %v3699, %v3993
        %v3995 = vlaneseq
        %v3996 = vshrl.u32 %v3995, 7
        %v3997 = vsub.s32 0, %v3996
        %v3998 = vrot.slane %v3701, %v3997
        %v3999 = vlaneseq
        %v4000 = vshrl.u32 %v3999, 7
        %v4001 = vsub.s32 0, %v4000
        %v4002 = vrot.slane %v3715, %v4001
        %v4003 = vlaneseq
        %v4004 = vshrl.u32 %v4003, 7
        %v4005 = vsub.s32 0, %v4004
        %v4006 = vrot.slane %v3753, %v4005
        %v4007 = vlaneseq
        %v4008 = vshrl.u32 %v4007, 7
        %v4009 = vsub.s32 0, %v4008
        %v4010 = vrot.slane %v3761, %v4009
        %v4011 = vlaneseq
        %v4012 = vshrl.u32 %v4011, 7
        %v4013 = vsub.s32 0, %v4012
        %v4014 = vrot.slane %v3763, %v4013
        %v4015 = vlaneseq
        %v4016 = vshrl.u32 %v4015, 7
        %v4017 = vsub.s32 0, %v4016
        %v4018 = vrot.slane %v3746, %v4017
        %v4019 = vlaneseq
        %v4020 = vshrl.u32 %v4019, 7
        %v4021 = vsub.s32 0, %v4020
        %v4022 = vrot.slane %v3760, %v4021
        %v4023 = vlaneseq
        %v4024 = vshrl.u32 %v4023, 7
        %v4025 = vsub.s32 0, %v4024
        %v4026 = vrot.slane %v3762, %v4025
        %v4027 = vlaneseq
        %v4028 = vshrl.u32 %v4027, 7
        %v4029 = vsub.s32 0, %v4028
        %v4030 = vrot.slane %v3764, %v4029
        %v4031 = vlaneseq
        %v4032 = vshrl.u32 %v4031, 7
        %v4033 = vsub.s32 0, %v4032
        %v4034 = vrot.slane %v3778, %v4033
        %v4099 = vsel %vm2550, %v2826, %v3782
        %v4100 = vsel %vm2550, %v2840, %v3786
        %v4101 = vsel %vm2550, %v2848, %v3790
        %v4102 = vsel %vm2550, %v2850, %v3794
        %v4103 = vsel %vm2550, %v2833, %v3798
        %v4104 = vsel %vm2550, %v2847, %v3802
        %v4105 = vsel %vm2550, %v2849, %v3806
        %v4106 = vsel %vm2550, %v2851, %v3810
        %v4107 = vsel %vm2550, %v2875, %v3814
        %v4108 = vsel %vm2550, %v2889, %v3818
        %v4109 = vsel %vm2550, %v2897, %v3822
        %v4110 = vsel %vm2550, %v2899, %v3826
        %v4111 = vsel %vm2550, %v2882, %v3830
        %v4112 = vsel %vm2550, %v2896, %v3834
        %v4113 = vsel %vm2550, %v2898, %v3838
        %v4114 = vsel %vm2550, %v2900, %v3842
        %v4115 = vsel %vm2550, %v2924, %v3846
        %v4116 = vsel %vm2550, %v2938, %v3850
        %v4117 = vsel %vm2550, %v2946, %v3854
        %v4118 = vsel %vm2550, %v2948, %v3858
        %v4119 = vsel %vm2550, %v2931, %v3862
        %v4120 = vsel %vm2550, %v2945, %v3866
        %v4121 = vsel %vm2550, %v2947, %v3870
        %v4122 = vsel %vm2550, %v2949, %v3874
        %v4123 = vsel %vm2550, %v2973, %v3878
        %v4124 = vsel %vm2550, %v2987, %v3882
        %v4125 = vsel %vm2550, %v2995, %v3886
        %v4126 = vsel %vm2550, %v2997, %v3890
        %v4127 = vsel %vm2550, %v2980, %v3894
        %v4128 = vsel %vm2550, %v2994, %v3898
        %v4129 = vsel %vm2550, %v2996, %v3902
        %v4130 = vsel %vm2550, %v2998, %v3906
        %v4131 = vsel %vm2550, %v3022, %v3910
        %v4132 = vsel %vm2550, %v3036, %v3914
        %v4133 = vsel %vm2550, %v3044, %v3918
        %v4134 = vsel %vm2550, %v3046, %v3922
        %v4135 = vsel %vm2550, %v3029, %v3926
        %v4136 = vsel %vm2550, %v3043, %v3930
        %v4137 = vsel %vm2550, %v3045, %v3934
        %v4138 = vsel %vm2550, %v3047, %v3938
        %v4139 = vsel %vm2550, %v3071, %v3942
        %v4140 = vsel %vm2550, %v3085, %v3946
        %v4141 = vsel %vm2550, %v3093, %v3950
        %v4142 = vsel %vm2550, %v3095, %v3954
        %v4143 = vsel %vm2550, %v3078, %v3958
        %v4144 = vsel %vm2550, %v3092, %v3962
        %v4145 = vsel %vm2550, %v3094, %v3966
        %v4146 = vsel %vm2550, %v3096, %v3970
        %v4147 = vsel %vm2550, %v3120, %v3974
        %v4148 = vsel %vm2550, %v3134, %v3978
        %v4149 = vsel %vm2550, %v3142, %v3982
        %v4150 = vsel %vm2550, %v3144, %v3986
        %v4151 = vsel %vm2550, %v3127, %v3990
        %v4152 = vsel %vm2550, %v3141, %v3994
        %v4153 = vsel %vm2550, %v3143, %v3998
        %v4154 = vsel %vm2550, %v3145, %v4002
        %v4155 = vsel %vm2550, %v3169, %v4006
        %v4156 = vsel %vm2550, %v3183, %v4010
        %v4157 = vsel %vm2550, %v3191, %v4014
        %v4158 = vsel %vm2550, %v3193, %v4018
        %v4159 = vsel %vm2550, %v3176, %v4022
        %v4160 = vsel %vm2550, %v3190, %v4026
        %v4161 = vsel %vm2550, %v3192, %v4030
        %v4162 = vsel %vm2550, %v3194, %v4034
        %v4163 = vld [vmem:[%s343] sm:$0xff]
        %v4164 = vld [vmem:[%s343 + $0x8] sm:$0xff]
        %v4165 = vld [vmem:[%s343 + $0x10] sm:$0xff]
        %v4166 = vld [vmem:[%s343 + $0x18] sm:$0xff]
        %v4167 = vld [vmem:[%s343 + $0x20] sm:$0xff]
        %v4168 = vld [vmem:[%s343 + $0x28] sm:$0xff]
        %v4169 = vld [vmem:[%s343 + $0x30] sm:$0xff]
        %v4170 = vld [vmem:[%s343 + $0x38] sm:$0xff]
        %v4171 = vld [vmem:[%s343 + $0x40] sm:$0xff]
        %v4172 = vld [vmem:[%s343 + $0x48] sm:$0xff]
        %v4173 = vld [vmem:[%s343 + $0x50] sm:$0xff]
        %v4174 = vld [vmem:[%s343 + $0x58] sm:$0xff]
        %v4175 = vld [vmem:[%s343 + $0x60] sm:$0xff]
        %v4176 = vld [vmem:[%s343 + $0x68] sm:$0xff]
        %v4177 = vld [vmem:[%s343 + $0x70] sm:$0xff]
        %v4178 = vld [vmem:[%s343 + $0x78] sm:$0xff]
        %v4179 = vld [vmem:[%s343 + $0x80] sm:$0xff]
        %v4180 = vld [vmem:[%s343 + $0x88] sm:$0xff]
        %v4181 = vld [vmem:[%s343 + $0x90] sm:$0xff]
        %v4182 = vld [vmem:[%s343 + $0x98] sm:$0xff]
        %v4183 = vld [vmem:[%s343 + $0xa0] sm:$0xff]
        %v4184 = vld [vmem:[%s343 + $0xa8] sm:$0xff]
        %v4185 = vld [vmem:[%s343 + $0xb0] sm:$0xff]
        %v4186 = vld [vmem:[%s343 + $0xb8] sm:$0xff]
        %v4187 = vld [vmem:[%s343 + $0xc0] sm:$0xff]
        %v4188 = vld [vmem:[%s343 + $0xc8] sm:$0xff]
        %v4189 = vld [vmem:[%s343 + $0xd0] sm:$0xff]
        %v4190 = vld [vmem:[%s343 + $0xd8] sm:$0xff]
        %v4191 = vld [vmem:[%s343 + $0xe0] sm:$0xff]
        %v4192 = vld [vmem:[%s343 + $0xe8] sm:$0xff]
        %v4193 = vld [vmem:[%s343 + $0xf0] sm:$0xff]
        %v4194 = vld [vmem:[%s343 + $0xf8] sm:$0xff]
        %v4227 = vcombine.high %v4163, %v4163
        %v4229 = vunpack.c.l.s4 1983009808
        %v4230 = vunpack.c.0.s8 %v4229
        %v4231 = vlaneseq
        %v4232 = vshrl.u32 %v4231, 7
        %v4233 = vsub.s32 %v4230, %v4232
        %v4234 = vrot.slane %v4163, %v4233
        %v4236 = vunpack.c.l.s4 1983009808
        %v4237 = vunpack.c.0.s8 %v4236
        %v4238 = vlaneseq
        %v4239 = vshrl.u32 %v4238, 7
        %v4240 = vsub.s32 %v4237, %v4239
        %v4241 = vrot.slane %v4227, %v4240
        %v4242 = vcombine.high %v4234, %v4234
        %v4243 = vcombine.high %v4241, %v4241
        %v4244 = vcombine.high %v4164, %v4164
        %v4246 = vunpack.c.l.s4 1983009808
        %v4247 = vunpack.c.0.s8 %v4246
        %v4248 = vlaneseq
        %v4249 = vshrl.u32 %v4248, 7
        %v4250 = vsub.s32 %v4247, %v4249
        %v4251 = vrot.slane %v4164, %v4250
        %v4253 = vunpack.c.l.s4 1983009808
        %v4254 = vunpack.c.0.s8 %v4253
        %v4255 = vlaneseq
        %v4256 = vshrl.u32 %v4255, 7
        %v4257 = vsub.s32 %v4254, %v4256
        %v4258 = vrot.slane %v4244, %v4257
        %v4259 = vcombine.high %v4251, %v4251
        %v4260 = vcombine.high %v4258, %v4258
        %v4261 = vcombine.high %v4165, %v4165
        %v4263 = vunpack.c.l.s4 1983009808
        %v4264 = vunpack.c.0.s8 %v4263
        %v4265 = vlaneseq
        %v4266 = vshrl.u32 %v4265, 7
        %v4267 = vsub.s32 %v4264, %v4266
        %v4268 = vrot.slane %v4165, %v4267
        %v4270 = vunpack.c.l.s4 1983009808
        %v4271 = vunpack.c.0.s8 %v4270
        %v4272 = vlaneseq
        %v4273 = vshrl.u32 %v4272, 7
        %v4274 = vsub.s32 %v4271, %v4273
        %v4275 = vrot.slane %v4261, %v4274
        %v4276 = vcombine.high %v4268, %v4268
        %v4277 = vcombine.high %v4275, %v4275
        %v4278 = vcombine.high %v4166, %v4166
        %v4280 = vunpack.c.l.s4 1983009808
        %v4281 = vunpack.c.0.s8 %v4280
        %v4282 = vlaneseq
        %v4283 = vshrl.u32 %v4282, 7
        %v4284 = vsub.s32 %v4281, %v4283
        %v4285 = vrot.slane %v4166, %v4284
        %v4287 = vunpack.c.l.s4 1983009808
        %v4288 = vunpack.c.0.s8 %v4287
        %v4289 = vlaneseq
        %v4290 = vshrl.u32 %v4289, 7
        %v4291 = vsub.s32 %v4288, %v4290
        %v4292 = vrot.slane %v4278, %v4291
        %v4293 = vcombine.high %v4285, %v4285
        %v4294 = vcombine.high %v4292, %v4292
        %v4295 = vcombine.high %v4167, %v4167
        %v4297 = vunpack.c.l.s4 1983009808
        %v4298 = vunpack.c.0.s8 %v4297
        %v4299 = vlaneseq
        %v4300 = vshrl.u32 %v4299, 7
        %v4301 = vsub.s32 %v4298, %v4300
        %v4302 = vrot.slane %v4167, %v4301
        %v4304 = vunpack.c.l.s4 1983009808
        %v4305 = vunpack.c.0.s8 %v4304
        %v4306 = vlaneseq
        %v4307 = vshrl.u32 %v4306, 7
        %v4308 = vsub.s32 %v4305, %v4307
        %v4309 = vrot.slane %v4295, %v4308
        %v4310 = vcombine.high %v4302, %v4302
        %v4311 = vcombine.high %v4309, %v4309
        %v4312 = vcombine.high %v4168, %v4168
        %v4314 = vunpack.c.l.s4 1983009808
        %v4315 = vunpack.c.0.s8 %v4314
        %v4316 = vlaneseq
        %v4317 = vshrl.u32 %v4316, 7
        %v4318 = vsub.s32 %v4315, %v4317
        %v4319 = vrot.slane %v4168, %v4318
        %v4321 = vunpack.c.l.s4 1983009808
        %v4322 = vunpack.c.0.s8 %v4321
        %v4323 = vlaneseq
        %v4324 = vshrl.u32 %v4323, 7
        %v4325 = vsub.s32 %v4322, %v4324
        %v4326 = vrot.slane %v4312, %v4325
        %v4327 = vcombine.high %v4319, %v4319
        %v4328 = vcombine.high %v4326, %v4326
        %v4329 = vcombine.high %v4169, %v4169
        %v4331 = vunpack.c.l.s4 1983009808
        %v4332 = vunpack.c.0.s8 %v4331
        %v4333 = vlaneseq
        %v4334 = vshrl.u32 %v4333, 7
        %v4335 = vsub.s32 %v4332, %v4334
        %v4336 = vrot.slane %v4169, %v4335
        %v4338 = vunpack.c.l.s4 1983009808
        %v4339 = vunpack.c.0.s8 %v4338
        %v4340 = vlaneseq
        %v4341 = vshrl.u32 %v4340, 7
        %v4342 = vsub.s32 %v4339, %v4341
        %v4343 = vrot.slane %v4329, %v4342
        %v4344 = vcombine.high %v4336, %v4336
        %v4345 = vcombine.high %v4343, %v4343
        %v4346 = vcombine.high %v4170, %v4170
        %v4348 = vunpack.c.l.s4 1983009808
        %v4349 = vunpack.c.0.s8 %v4348
        %v4350 = vlaneseq
        %v4351 = vshrl.u32 %v4350, 7
        %v4352 = vsub.s32 %v4349, %v4351
        %v4353 = vrot.slane %v4170, %v4352
        %v4355 = vunpack.c.l.s4 1983009808
        %v4356 = vunpack.c.0.s8 %v4355
        %v4357 = vlaneseq
        %v4358 = vshrl.u32 %v4357, 7
        %v4359 = vsub.s32 %v4356, %v4358
        %v4360 = vrot.slane %v4346, %v4359
        %v4361 = vcombine.high %v4353, %v4353
        %v4362 = vcombine.high %v4360, %v4360
        %v4363 = vcombine.high %v4171, %v4171
        %v4365 = vunpack.c.l.s4 1983009808
        %v4366 = vunpack.c.0.s8 %v4365
        %v4367 = vlaneseq
        %v4368 = vshrl.u32 %v4367, 7
        %v4369 = vsub.s32 %v4366, %v4368
        %v4370 = vrot.slane %v4171, %v4369
        %v4372 = vunpack.c.l.s4 1983009808
        %v4373 = vunpack.c.0.s8 %v4372
        %v4374 = vlaneseq
        %v4375 = vshrl.u32 %v4374, 7
        %v4376 = vsub.s32 %v4373, %v4375
        %v4377 = vrot.slane %v4363, %v4376
        %v4378 = vcombine.high %v4370, %v4370
        %v4379 = vcombine.high %v4377, %v4377
        %v4380 = vcombine.high %v4172, %v4172
        %v4382 = vunpack.c.l.s4 1983009808
        %v4383 = vunpack.c.0.s8 %v4382
        %v4384 = vlaneseq
        %v4385 = vshrl.u32 %v4384, 7
        %v4386 = vsub.s32 %v4383, %v4385
        %v4387 = vrot.slane %v4172, %v4386
        %v4389 = vunpack.c.l.s4 1983009808
        %v4390 = vunpack.c.0.s8 %v4389
        %v4391 = vlaneseq
        %v4392 = vshrl.u32 %v4391, 7
        %v4393 = vsub.s32 %v4390, %v4392
        %v4394 = vrot.slane %v4380, %v4393
        %v4395 = vcombine.high %v4387, %v4387
        %v4396 = vcombine.high %v4394, %v4394
        %v4397 = vcombine.high %v4173, %v4173
        %v4399 = vunpack.c.l.s4 1983009808
        %v4400 = vunpack.c.0.s8 %v4399
        %v4401 = vlaneseq
        %v4402 = vshrl.u32 %v4401, 7
        %v4403 = vsub.s32 %v4400, %v4402
        %v4404 = vrot.slane %v4173, %v4403
        %v4406 = vunpack.c.l.s4 1983009808
        %v4407 = vunpack.c.0.s8 %v4406
        %v4408 = vlaneseq
        %v4409 = vshrl.u32 %v4408, 7
        %v4410 = vsub.s32 %v4407, %v4409
        %v4411 = vrot.slane %v4397, %v4410
        %v4412 = vcombine.high %v4404, %v4404
        %v4413 = vcombine.high %v4411, %v4411
        %v4414 = vcombine.high %v4174, %v4174
        %v4416 = vunpack.c.l.s4 1983009808
        %v4417 = vunpack.c.0.s8 %v4416
        %v4418 = vlaneseq
        %v4419 = vshrl.u32 %v4418, 7
        %v4420 = vsub.s32 %v4417, %v4419
        %v4421 = vrot.slane %v4174, %v4420
        %v4423 = vunpack.c.l.s4 1983009808
        %v4424 = vunpack.c.0.s8 %v4423
        %v4425 = vlaneseq
        %v4426 = vshrl.u32 %v4425, 7
        %v4427 = vsub.s32 %v4424, %v4426
        %v4428 = vrot.slane %v4414, %v4427
        %v4429 = vcombine.high %v4421, %v4421
        %v4430 = vcombine.high %v4428, %v4428
        %v4431 = vcombine.high %v4175, %v4175
        %v4433 = vunpack.c.l.s4 1983009808
        %v4434 = vunpack.c.0.s8 %v4433
        %v4435 = vlaneseq
        %v4436 = vshrl.u32 %v4435, 7
        %v4437 = vsub.s32 %v4434, %v4436
        %v4438 = vrot.slane %v4175, %v4437
        %v4440 = vunpack.c.l.s4 1983009808
        %v4441 = vunpack.c.0.s8 %v4440
        %v4442 = vlaneseq
        %v4443 = vshrl.u32 %v4442, 7
        %v4444 = vsub.s32 %v4441, %v4443
        %v4445 = vrot.slane %v4431, %v4444
        %v4446 = vcombine.high %v4438, %v4438
        %v4447 = vcombine.high %v4445, %v4445
        %v4448 = vcombine.high %v4176, %v4176
        %v4450 = vunpack.c.l.s4 1983009808
        %v4451 = vunpack.c.0.s8 %v4450
        %v4452 = vlaneseq
        %v4453 = vshrl.u32 %v4452, 7
        %v4454 = vsub.s32 %v4451, %v4453
        %v4455 = vrot.slane %v4176, %v4454
        %v4457 = vunpack.c.l.s4 1983009808
        %v4458 = vunpack.c.0.s8 %v4457
        %v4459 = vlaneseq
        %v4460 = vshrl.u32 %v4459, 7
        %v4461 = vsub.s32 %v4458, %v4460
        %v4462 = vrot.slane %v4448, %v4461
        %v4463 = vcombine.high %v4455, %v4455
        %v4464 = vcombine.high %v4462, %v4462
        %v4465 = vcombine.high %v4177, %v4177
        %v4467 = vunpack.c.l.s4 1983009808
        %v4468 = vunpack.c.0.s8 %v4467
        %v4469 = vlaneseq
        %v4470 = vshrl.u32 %v4469, 7
        %v4471 = vsub.s32 %v4468, %v4470
        %v4472 = vrot.slane %v4177, %v4471
        %v4474 = vunpack.c.l.s4 1983009808
        %v4475 = vunpack.c.0.s8 %v4474
        %v4476 = vlaneseq
        %v4477 = vshrl.u32 %v4476, 7
        %v4478 = vsub.s32 %v4475, %v4477
        %v4479 = vrot.slane %v4465, %v4478
        %v4480 = vcombine.high %v4472, %v4472
        %v4481 = vcombine.high %v4479, %v4479
        %v4482 = vcombine.high %v4178, %v4178
        %v4484 = vunpack.c.l.s4 1983009808
        %v4485 = vunpack.c.0.s8 %v4484
        %v4486 = vlaneseq
        %v4487 = vshrl.u32 %v4486, 7
        %v4488 = vsub.s32 %v4485, %v4487
        %v4489 = vrot.slane %v4178, %v4488
        %v4491 = vunpack.c.l.s4 1983009808
        %v4492 = vunpack.c.0.s8 %v4491
        %v4493 = vlaneseq
        %v4494 = vshrl.u32 %v4493, 7
        %v4495 = vsub.s32 %v4492, %v4494
        %v4496 = vrot.slane %v4482, %v4495
        %v4497 = vcombine.high %v4489, %v4489
        %v4498 = vcombine.high %v4496, %v4496
        %v4499 = vcombine.high %v4179, %v4179
        %v4501 = vunpack.c.l.s4 1983009808
        %v4502 = vunpack.c.0.s8 %v4501
        %v4503 = vlaneseq
        %v4504 = vshrl.u32 %v4503, 7
        %v4505 = vsub.s32 %v4502, %v4504
        %v4506 = vrot.slane %v4179, %v4505
        %v4508 = vunpack.c.l.s4 1983009808
        %v4509 = vunpack.c.0.s8 %v4508
        %v4510 = vlaneseq
        %v4511 = vshrl.u32 %v4510, 7
        %v4512 = vsub.s32 %v4509, %v4511
        %v4513 = vrot.slane %v4499, %v4512
        %v4514 = vcombine.high %v4506, %v4506
        %v4515 = vcombine.high %v4513, %v4513
        %v4516 = vcombine.high %v4180, %v4180
        %v4518 = vunpack.c.l.s4 1983009808
        %v4519 = vunpack.c.0.s8 %v4518
        %v4520 = vlaneseq
        %v4521 = vshrl.u32 %v4520, 7
        %v4522 = vsub.s32 %v4519, %v4521
        %v4523 = vrot.slane %v4180, %v4522
        %v4525 = vunpack.c.l.s4 1983009808
        %v4526 = vunpack.c.0.s8 %v4525
        %v4527 = vlaneseq
        %v4528 = vshrl.u32 %v4527, 7
        %v4529 = vsub.s32 %v4526, %v4528
        %v4530 = vrot.slane %v4516, %v4529
        %v4531 = vcombine.high %v4523, %v4523
        %v4532 = vcombine.high %v4530, %v4530
        %v4533 = vcombine.high %v4181, %v4181
        %v4535 = vunpack.c.l.s4 1983009808
        %v4536 = vunpack.c.0.s8 %v4535
        %v4537 = vlaneseq
        %v4538 = vshrl.u32 %v4537, 7
        %v4539 = vsub.s32 %v4536, %v4538
        %v4540 = vrot.slane %v4181, %v4539
        %v4542 = vunpack.c.l.s4 1983009808
        %v4543 = vunpack.c.0.s8 %v4542
        %v4544 = vlaneseq
        %v4545 = vshrl.u32 %v4544, 7
        %v4546 = vsub.s32 %v4543, %v4545
        %v4547 = vrot.slane %v4533, %v4546
        %v4548 = vcombine.high %v4540, %v4540
        %v4549 = vcombine.high %v4547, %v4547
        %v4550 = vcombine.high %v4182, %v4182
        %v4552 = vunpack.c.l.s4 1983009808
        %v4553 = vunpack.c.0.s8 %v4552
        %v4554 = vlaneseq
        %v4555 = vshrl.u32 %v4554, 7
        %v4556 = vsub.s32 %v4553, %v4555
        %v4557 = vrot.slane %v4182, %v4556
        %v4559 = vunpack.c.l.s4 1983009808
        %v4560 = vunpack.c.0.s8 %v4559
        %v4561 = vlaneseq
        %v4562 = vshrl.u32 %v4561, 7
        %v4563 = vsub.s32 %v4560, %v4562
        %v4564 = vrot.slane %v4550, %v4563
        %v4565 = vcombine.high %v4557, %v4557
        %v4566 = vcombine.high %v4564, %v4564
        %v4567 = vcombine.high %v4183, %v4183
        %v4569 = vunpack.c.l.s4 1983009808
        %v4570 = vunpack.c.0.s8 %v4569
        %v4571 = vlaneseq
        %v4572 = vshrl.u32 %v4571, 7
        %v4573 = vsub.s32 %v4570, %v4572
        %v4574 = vrot.slane %v4183, %v4573
        %v4576 = vunpack.c.l.s4 1983009808
        %v4577 = vunpack.c.0.s8 %v4576
        %v4578 = vlaneseq
        %v4579 = vshrl.u32 %v4578, 7
        %v4580 = vsub.s32 %v4577, %v4579
        %v4581 = vrot.slane %v4567, %v4580
        %v4582 = vcombine.high %v4574, %v4574
        %v4583 = vcombine.high %v4581, %v4581
        %v4584 = vcombine.high %v4184, %v4184
        %v4586 = vunpack.c.l.s4 1983009808
        %v4587 = vunpack.c.0.s8 %v4586
        %v4588 = vlaneseq
        %v4589 = vshrl.u32 %v4588, 7
        %v4590 = vsub.s32 %v4587, %v4589
        %v4591 = vrot.slane %v4184, %v4590
        %v4593 = vunpack.c.l.s4 1983009808
        %v4594 = vunpack.c.0.s8 %v4593
        %v4595 = vlaneseq
        %v4596 = vshrl.u32 %v4595, 7
        %v4597 = vsub.s32 %v4594, %v4596
        %v4598 = vrot.slane %v4584, %v4597
        %v4599 = vcombine.high %v4591, %v4591
        %v4600 = vcombine.high %v4598, %v4598
        %v4601 = vcombine.high %v4185, %v4185
        %v4603 = vunpack.c.l.s4 1983009808
        %v4604 = vunpack.c.0.s8 %v4603
        %v4605 = vlaneseq
        %v4606 = vshrl.u32 %v4605, 7
        %v4607 = vsub.s32 %v4604, %v4606
        %v4608 = vrot.slane %v4185, %v4607
        %v4610 = vunpack.c.l.s4 1983009808
        %v4611 = vunpack.c.0.s8 %v4610
        %v4612 = vlaneseq
        %v4613 = vshrl.u32 %v4612, 7
        %v4614 = vsub.s32 %v4611, %v4613
        %v4615 = vrot.slane %v4601, %v4614
        %v4616 = vcombine.high %v4608, %v4608
        %v4617 = vcombine.high %v4615, %v4615
        %v4618 = vcombine.high %v4186, %v4186
        %v4620 = vunpack.c.l.s4 1983009808
        %v4621 = vunpack.c.0.s8 %v4620
        %v4622 = vlaneseq
        %v4623 = vshrl.u32 %v4622, 7
        %v4624 = vsub.s32 %v4621, %v4623
        %v4625 = vrot.slane %v4186, %v4624
        %v4627 = vunpack.c.l.s4 1983009808
        %v4628 = vunpack.c.0.s8 %v4627
        %v4629 = vlaneseq
        %v4630 = vshrl.u32 %v4629, 7
        %v4631 = vsub.s32 %v4628, %v4630
        %v4632 = vrot.slane %v4618, %v4631
        %v4633 = vcombine.high %v4625, %v4625
        %v4634 = vcombine.high %v4632, %v4632
        %v4635 = vcombine.high %v4187, %v4187
        %v4637 = vunpack.c.l.s4 1983009808
        %v4638 = vunpack.c.0.s8 %v4637
        %v4639 = vlaneseq
        %v4640 = vshrl.u32 %v4639, 7
        %v4641 = vsub.s32 %v4638, %v4640
        %v4642 = vrot.slane %v4187, %v4641
        %v4644 = vunpack.c.l.s4 1983009808
        %v4645 = vunpack.c.0.s8 %v4644
        %v4646 = vlaneseq
        %v4647 = vshrl.u32 %v4646, 7
        %v4648 = vsub.s32 %v4645, %v4647
        %v4649 = vrot.slane %v4635, %v4648
        %v4650 = vcombine.high %v4642, %v4642
        %v4651 = vcombine.high %v4649, %v4649
        %v4652 = vcombine.high %v4188, %v4188
        %v4654 = vunpack.c.l.s4 1983009808
        %v4655 = vunpack.c.0.s8 %v4654
        %v4656 = vlaneseq
        %v4657 = vshrl.u32 %v4656, 7
        %v4658 = vsub.s32 %v4655, %v4657
        %v4659 = vrot.slane %v4188, %v4658
        %v4661 = vunpack.c.l.s4 1983009808
        %v4662 = vunpack.c.0.s8 %v4661
        %v4663 = vlaneseq
        %v4664 = vshrl.u32 %v4663, 7
        %v4665 = vsub.s32 %v4662, %v4664
        %v4666 = vrot.slane %v4652, %v4665
        %v4667 = vcombine.high %v4659, %v4659
        %v4668 = vcombine.high %v4666, %v4666
        %v4669 = vcombine.high %v4189, %v4189
        %v4671 = vunpack.c.l.s4 1983009808
        %v4672 = vunpack.c.0.s8 %v4671
        %v4673 = vlaneseq
        %v4674 = vshrl.u32 %v4673, 7
        %v4675 = vsub.s32 %v4672, %v4674
        %v4676 = vrot.slane %v4189, %v4675
        %v4678 = vunpack.c.l.s4 1983009808
        %v4679 = vunpack.c.0.s8 %v4678
        %v4680 = vlaneseq
        %v4681 = vshrl.u32 %v4680, 7
        %v4682 = vsub.s32 %v4679, %v4681
        %v4683 = vrot.slane %v4669, %v4682
        %v4684 = vcombine.high %v4676, %v4676
        %v4685 = vcombine.high %v4683, %v4683
        %v4686 = vcombine.high %v4190, %v4190
        %v4688 = vunpack.c.l.s4 1983009808
        %v4689 = vunpack.c.0.s8 %v4688
        %v4690 = vlaneseq
        %v4691 = vshrl.u32 %v4690, 7
        %v4692 = vsub.s32 %v4689, %v4691
        %v4693 = vrot.slane %v4190, %v4692
        %v4695 = vunpack.c.l.s4 1983009808
        %v4696 = vunpack.c.0.s8 %v4695
        %v4697 = vlaneseq
        %v4698 = vshrl.u32 %v4697, 7
        %v4699 = vsub.s32 %v4696, %v4698
        %v4700 = vrot.slane %v4686, %v4699
        %v4701 = vcombine.high %v4693, %v4693
        %v4702 = vcombine.high %v4700, %v4700
        %v4703 = vcombine.high %v4191, %v4191
        %v4705 = vunpack.c.l.s4 1983009808
        %v4706 = vunpack.c.0.s8 %v4705
        %v4707 = vlaneseq
        %v4708 = vshrl.u32 %v4707, 7
        %v4709 = vsub.s32 %v4706, %v4708
        %v4710 = vrot.slane %v4191, %v4709
        %v4712 = vunpack.c.l.s4 1983009808
        %v4713 = vunpack.c.0.s8 %v4712
        %v4714 = vlaneseq
        %v4715 = vshrl.u32 %v4714, 7
        %v4716 = vsub.s32 %v4713, %v4715
        %v4717 = vrot.slane %v4703, %v4716
        %v4718 = vcombine.high %v4710, %v4710
        %v4719 = vcombine.high %v4717, %v4717
        %v4720 = vcombine.high %v4192, %v4192
        %v4722 = vunpack.c.l.s4 1983009808
        %v4723 = vunpack.c.0.s8 %v4722
        %v4724 = vlaneseq
        %v4725 = vshrl.u32 %v4724, 7
        %v4726 = vsub.s32 %v4723, %v4725
        %v4727 = vrot.slane %v4192, %v4726
        %v4729 = vunpack.c.l.s4 1983009808
        %v4730 = vunpack.c.0.s8 %v4729
        %v4731 = vlaneseq
        %v4732 = vshrl.u32 %v4731, 7
        %v4733 = vsub.s32 %v4730, %v4732
        %v4734 = vrot.slane %v4720, %v4733
        %v4735 = vcombine.high %v4727, %v4727
        %v4736 = vcombine.high %v4734, %v4734
        %v4737 = vcombine.high %v4193, %v4193
        %v4739 = vunpack.c.l.s4 1983009808
        %v4740 = vunpack.c.0.s8 %v4739
        %v4741 = vlaneseq
        %v4742 = vshrl.u32 %v4741, 7
        %v4743 = vsub.s32 %v4740, %v4742
        %v4744 = vrot.slane %v4193, %v4743
        %v4746 = vunpack.c.l.s4 1983009808
        %v4747 = vunpack.c.0.s8 %v4746
        %v4748 = vlaneseq
        %v4749 = vshrl.u32 %v4748, 7
        %v4750 = vsub.s32 %v4747, %v4749
        %v4751 = vrot.slane %v4737, %v4750
        %v4752 = vcombine.high %v4744, %v4744
        %v4753 = vcombine.high %v4751, %v4751
        %v4754 = vcombine.high %v4194, %v4194
        %v4756 = vunpack.c.l.s4 1983009808
        %v4757 = vunpack.c.0.s8 %v4756
        %v4758 = vlaneseq
        %v4759 = vshrl.u32 %v4758, 7
        %v4760 = vsub.s32 %v4757, %v4759
        %v4761 = vrot.slane %v4194, %v4760
        %v4763 = vunpack.c.l.s4 1983009808
        %v4764 = vunpack.c.0.s8 %v4763
        %v4765 = vlaneseq
        %v4766 = vshrl.u32 %v4765, 7
        %v4767 = vsub.s32 %v4764, %v4766
        %v4768 = vrot.slane %v4754, %v4767
        %v4769 = vcombine.high %v4761, %v4761
        %v4770 = vcombine.high %v4768, %v4768
        %v4899 = vadd.f32 %v2551, %v4234
        %v4900 = vadd.f32 %v2552, %v4242
        %v4901 = vadd.f32 %v2553, %v4241
        %v4902 = vadd.f32 %v2554, %v4243
        %v4903 = vadd.f32 %v2555, %v4251
        %v4904 = vadd.f32 %v2556, %v4259
        %v4905 = vadd.f32 %v2557, %v4258
        %v4906 = vadd.f32 %v2558, %v4260
        %v4907 = vadd.f32 %v4099, %v4268
        %v4908 = vadd.f32 %v4100, %v4276
        %v4909 = vadd.f32 %v4101, %v4275
        %v4910 = vadd.f32 %v4102, %v4277
        %v4911 = vadd.f32 %v4103, %v4285
        %v4912 = vadd.f32 %v4104, %v4293
        %v4913 = vadd.f32 %v4105, %v4292
        %v4914 = vadd.f32 %v4106, %v4294
        %v4915 = vadd.f32 %v2559, %v4302
        %v4916 = vadd.f32 %v2560, %v4310
        %v4917 = vadd.f32 %v2561, %v4309
        %v4918 = vadd.f32 %v2562, %v4311
        %v4919 = vadd.f32 %v2563, %v4319
        %v4920 = vadd.f32 %v2564, %v4327
        %v4921 = vadd.f32 %v2565, %v4326
        %v4922 = vadd.f32 %v2566, %v4328
        %v4923 = vadd.f32 %v4107, %v4336
        %v4924 = vadd.f32 %v4108, %v4344
        %v4925 = vadd.f32 %v4109, %v4343
        %v4926 = vadd.f32 %v4110, %v4345
        %v4927 = vadd.f32 %v4111, %v4353
        %v4928 = vadd.f32 %v4112, %v4361
        %v4929 = vadd.f32 %v4113, %v4360
        %v4930 = vadd.f32 %v4114, %v4362
        %v4931 = vadd.f32 %v2567, %v4370
        %v4932 = vadd.f32 %v2568, %v4378
        %v4933 = vadd.f32 %v2569, %v4377
        %v4934 = vadd.f32 %v2570, %v4379
        %v4935 = vadd.f32 %v2571, %v4387
        %v4936 = vadd.f32 %v2572, %v4395
        %v4937 = vadd.f32 %v2573, %v4394
        %v4938 = vadd.f32 %v2574, %v4396
        %v4939 = vadd.f32 %v4115, %v4404
        %v4940 = vadd.f32 %v4116, %v4412
        %v4941 = vadd.f32 %v4117, %v4411
        %v4942 = vadd.f32 %v4118, %v4413
        %v4943 = vadd.f32 %v4119, %v4421
        %v4944 = vadd.f32 %v4120, %v4429
        %v4945 = vadd.f32 %v4121, %v4428
        %v4946 = vadd.f32 %v4122, %v4430
        %v4947 = vadd.f32 %v2575, %v4438
        %v4948 = vadd.f32 %v2576, %v4446
        %v4949 = vadd.f32 %v2577, %v4445
        %v4950 = vadd.f32 %v2578, %v4447
        %v4951 = vadd.f32 %v2579, %v4455
        %v4952 = vadd.f32 %v2580, %v4463
        %v4953 = vadd.f32 %v2581, %v4462
        %v4954 = vadd.f32 %v2582, %v4464
        %v4955 = vadd.f32 %v4123, %v4472
        %v4956 = vadd.f32 %v4124, %v4480
        %v4957 = vadd.f32 %v4125, %v4479
        %v4958 = vadd.f32 %v4126, %v4481
        %v4959 = vadd.f32 %v4127, %v4489
        %v4960 = vadd.f32 %v4128, %v4497
        %v4961 = vadd.f32 %v4129, %v4496
        %v4962 = vadd.f32 %v4130, %v4498
        %v4963 = vadd.f32 %v2583, %v4506
        %v4964 = vadd.f32 %v2584, %v4514
        %v4965 = vadd.f32 %v2585, %v4513
        %v4966 = vadd.f32 %v2586, %v4515
        %v4967 = vadd.f32 %v2587, %v4523
        %v4968 = vadd.f32 %v2588, %v4531
        %v4969 = vadd.f32 %v2589, %v4530
        %v4970 = vadd.f32 %v2590, %v4532
        %v4971 = vadd.f32 %v4131, %v4540
        %v4972 = vadd.f32 %v4132, %v4548
        %v4973 = vadd.f32 %v4133, %v4547
        %v4974 = vadd.f32 %v4134, %v4549
        %v4975 = vadd.f32 %v4135, %v4557
        %v4976 = vadd.f32 %v4136, %v4565
        %v4977 = vadd.f32 %v4137, %v4564
        %v4978 = vadd.f32 %v4138, %v4566
        %v4979 = vadd.f32 %v2591, %v4574
        %v4980 = vadd.f32 %v2592, %v4582
        %v4981 = vadd.f32 %v2593, %v4581
        %v4982 = vadd.f32 %v2594, %v4583
        %v4983 = vadd.f32 %v2595, %v4591
        %v4984 = vadd.f32 %v2596, %v4599
        %v4985 = vadd.f32 %v2597, %v4598
        %v4986 = vadd.f32 %v2598, %v4600
        %v4987 = vadd.f32 %v4139, %v4608
        %v4988 = vadd.f32 %v4140, %v4616
        %v4989 = vadd.f32 %v4141, %v4615
        %v4990 = vadd.f32 %v4142, %v4617
        %v4991 = vadd.f32 %v4143, %v4625
        %v4992 = vadd.f32 %v4144, %v4633
        %v4993 = vadd.f32 %v4145, %v4632
        %v4994 = vadd.f32 %v4146, %v4634
        %v4995 = vadd.f32 %v2599, %v4642
        %v4996 = vadd.f32 %v2600, %v4650
        %v4997 = vadd.f32 %v2601, %v4649
        %v4998 = vadd.f32 %v2602, %v4651
        %v4999 = vadd.f32 %v2603, %v4659
        %v5000 = vadd.f32 %v2604, %v4667
        %v5001 = vadd.f32 %v2605, %v4666
        %v5002 = vadd.f32 %v2606, %v4668
        %v5003 = vadd.f32 %v4147, %v4676
        %v5004 = vadd.f32 %v4148, %v4684
        %v5005 = vadd.f32 %v4149, %v4683
        %v5006 = vadd.f32 %v4150, %v4685
        %v5007 = vadd.f32 %v4151, %v4693
        %v5008 = vadd.f32 %v4152, %v4701
        %v5009 = vadd.f32 %v4153, %v4700
        %v5010 = vadd.f32 %v4154, %v4702
        %v5011 = vadd.f32 %v2607, %v4710
        %v5012 = vadd.f32 %v2608, %v4718
        %v5013 = vadd.f32 %v2609, %v4717
        %v5014 = vadd.f32 %v2610, %v4719
        %v5015 = vadd.f32 %v2611, %v4727
        %v5016 = vadd.f32 %v2612, %v4735
        %v5017 = vadd.f32 %v2613, %v4734
        %v5018 = vadd.f32 %v2614, %v4736
        %v5019 = vadd.f32 %v4155, %v4744
        %v5020 = vadd.f32 %v4156, %v4752
        %v5021 = vadd.f32 %v4157, %v4751
        %v5022 = vadd.f32 %v4158, %v4753
        %v5023 = vadd.f32 %v4159, %v4761
        %v5024 = vadd.f32 %v4160, %v4769
        %v5025 = vadd.f32 %v4161, %v4768
        %v5026 = vadd.f32 %v4162, %v4770
        %5027 = vst.msk [vmem:[#allocation4] sm:$0xff] %vm987, 0.0
        %5028 = vst.msk [vmem:[#allocation4 + $0x8] sm:$0xff] %vm987, 0.0
        %5029 = vst.msk [vmem:[#allocation4 + $0x10] sm:$0x3] %vm989, 0.0
        %5030 = vst.msk [vmem:[#allocation4 + $0x18] sm:$0xff] %vm987, 0.0
        %5031 = vst.msk [vmem:[#allocation4 + $0x20] sm:$0xff] %vm987, 0.0
        %5032 = vst.msk [vmem:[#allocation4 + $0x28] sm:$0x3] %vm989, 0.0
        %5033 = vst.msk [vmem:[#allocation4 + $0x30] sm:$0xff] %vm987, 0.0
        %5034 = vst.msk [vmem:[#allocation4 + $0x38] sm:$0xff] %vm987, 0.0
        %5035 = vst.msk [vmem:[#allocation4 + $0x40] sm:$0x3] %vm989, 0.0
        %5036 = vst.msk [vmem:[#allocation4 + $0x48] sm:$0xff] %vm987, 0.0
        %5037 = vst.msk [vmem:[#allocation4 + $0x50] sm:$0xff] %vm987, 0.0
        %5038 = vst.msk [vmem:[#allocation4 + $0x58] sm:$0x3] %vm989, 0.0
        %5039 = vst.msk [vmem:[#allocation4 + $0x60] sm:$0xff] %vm987, 0.0
        %5040 = vst.msk [vmem:[#allocation4 + $0x68] sm:$0xff] %vm987, 0.0
        %5041 = vst.msk [vmem:[#allocation4 + $0x70] sm:$0x3] %vm989, 0.0
        %5042 = vst.msk [vmem:[#allocation4 + $0x78] sm:$0xff] %vm987, 0.0
        %5043 = vst.msk [vmem:[#allocation4 + $0x80] sm:$0xff] %vm987, 0.0
        %5044 = vst.msk [vmem:[#allocation4 + $0x88] sm:$0x3] %vm989, 0.0
        %5045 = vst.msk [vmem:[#allocation4 + $0x90] sm:$0xff] %vm987, 0.0
        %5046 = vst.msk [vmem:[#allocation4 + $0x98] sm:$0xff] %vm987, 0.0
        %5047 = vst.msk [vmem:[#allocation4 + $0xa0] sm:$0x3] %vm989, 0.0
        %5048 = vst.msk [vmem:[#allocation4 + $0xa8] sm:$0xff] %vm987, 0.0
        %5049 = vst.msk [vmem:[#allocation4 + $0xb0] sm:$0xff] %vm987, 0.0
        %5050 = vst.msk [vmem:[#allocation4 + $0xb8] sm:$0x3] %vm989, 0.0
        %5051 = vst.msk [vmem:[#allocation4 + $0xc0] sm:$0xff] %vm987, 0.0
        %5052 = vst.msk [vmem:[#allocation4 + $0xc8] sm:$0xff] %vm987, 0.0
        %5053 = vst.msk [vmem:[#allocation4 + $0xd0] sm:$0x3] %vm989, 0.0
        %5054 = vst.msk [vmem:[#allocation4 + $0xd8] sm:$0xff] %vm987, 0.0
        %5055 = vst.msk [vmem:[#allocation4 + $0xe0] sm:$0xff] %vm987, 0.0
        %5056 = vst.msk [vmem:[#allocation4 + $0xe8] sm:$0x3] %vm989, 0.0
        %5057 = vst.msk [vmem:[#allocation4 + $0xf0] sm:$0xff] %vm987, 0.0
        %5058 = vst.msk [vmem:[#allocation4 + $0xf8] sm:$0xff] %vm987, 0.0
        %5059 = vst.msk [vmem:[#allocation4 + $0x100] sm:$0x3] %vm989, 0.0
        %5060 = vst.msk [vmem:[#allocation4 + $0x108] sm:$0xff] %vm987, 0.0
        %5061 = vst.msk [vmem:[#allocation4 + $0x110] sm:$0xff] %vm987, 0.0
        %5062 = vst.msk [vmem:[#allocation4 + $0x118] sm:$0x3] %vm989, 0.0
        %5063 = vst.msk [vmem:[#allocation4 + $0x120] sm:$0xff] %vm987, 0.0
        %5064 = vst.msk [vmem:[#allocation4 + $0x128] sm:$0xff] %vm987, 0.0
        %5065 = vst.msk [vmem:[#allocation4 + $0x130] sm:$0x3] %vm989, 0.0
        %5066 = vst.msk [vmem:[#allocation4 + $0x138] sm:$0xff] %vm987, 0.0
        %5067 = vst.msk [vmem:[#allocation4 + $0x140] sm:$0xff] %vm987, 0.0
        %5068 = vst.msk [vmem:[#allocation4 + $0x148] sm:$0x3] %vm989, 0.0
        %5069 = vst.msk [vmem:[#allocation4 + $0x150] sm:$0xff] %vm987, 0.0
        %5070 = vst.msk [vmem:[#allocation4 + $0x158] sm:$0xff] %vm987, 0.0
        %5071 = vst.msk [vmem:[#allocation4 + $0x160] sm:$0x3] %vm989, 0.0
        %5072 = vst.msk [vmem:[#allocation4 + $0x168] sm:$0xff] %vm987, 0.0
        %5073 = vst.msk [vmem:[#allocation4 + $0x170] sm:$0xff] %vm987, 0.0
        %5074 = vst.msk [vmem:[#allocation4 + $0x178] sm:$0x3] %vm989, 0.0
        %5075 = vst.msk [vmem:[#allocation4 + $0x180] sm:$0xff] %vm987, 0.0
        %5076 = vst.msk [vmem:[#allocation4 + $0x188] sm:$0xff] %vm987, 0.0
        %5077 = vst.msk [vmem:[#allocation4 + $0x190] sm:$0x3] %vm989, 0.0
        %5078 = vst.msk [vmem:[#allocation4 + $0x198] sm:$0xff] %vm987, 0.0
        %5079 = vst.msk [vmem:[#allocation4 + $0x1a0] sm:$0xff] %vm987, 0.0
        %5080 = vst.msk [vmem:[#allocation4 + $0x1a8] sm:$0x3] %vm989, 0.0
        %v5209 = vcombine.low %v4899, %v4900
        %v5210 = vcombine.low %v4901, %v4902
        %v5212 = vunpack.c.l.s4 1983009808
        %v5213 = vunpack.c.0.s8 %v5212
        %v5214 = vlaneseq
        %v5215 = vshrl.u32 %v5214, 7
        %v5216 = vsub.s32 %v5213, %v5215
        %v5217 = vrot.slane %v5209, %v5216
        %v5219 = vunpack.c.l.s4 1983009808
        %v5220 = vunpack.c.0.s8 %v5219
        %v5221 = vlaneseq
        %v5222 = vshrl.u32 %v5221, 7
        %v5223 = vsub.s32 %v5220, %v5222
        %v5224 = vrot.slane %v5210, %v5223
        %v5225 = vcombine.low %v5217, %v5224
        %v5226 = vcombine.low %v4903, %v4904
        %v5227 = vcombine.low %v4905, %v4906
        %v5229 = vunpack.c.l.s4 1983009808
        %v5230 = vunpack.c.0.s8 %v5229
        %v5231 = vlaneseq
        %v5232 = vshrl.u32 %v5231, 7
        %v5233 = vsub.s32 %v5230, %v5232
        %v5234 = vrot.slane %v5226, %v5233
        %v5236 = vunpack.c.l.s4 1983009808
        %v5237 = vunpack.c.0.s8 %v5236
        %v5238 = vlaneseq
        %v5239 = vshrl.u32 %v5238, 7
        %v5240 = vsub.s32 %v5237, %v5239
        %v5241 = vrot.slane %v5227, %v5240
        %v5242 = vcombine.low %v5234, %v5241
        %v5243 = vcombine.low %v4907, %v4908
        %v5244 = vcombine.low %v4909, %v4910
        %v5246 = vunpack.c.l.s4 1983009808
        %v5247 = vunpack.c.0.s8 %v5246
        %v5248 = vlaneseq
        %v5249 = vshrl.u32 %v5248, 7
        %v5250 = vsub.s32 %v5247, %v5249
        %v5251 = vrot.slane %v5243, %v5250
        %v5253 = vunpack.c.l.s4 1983009808
        %v5254 = vunpack.c.0.s8 %v5253
        %v5255 = vlaneseq
        %v5256 = vshrl.u32 %v5255, 7
        %v5257 = vsub.s32 %v5254, %v5256
        %v5258 = vrot.slane %v5244, %v5257
        %v5259 = vcombine.low %v5251, %v5258
        %v5260 = vcombine.low %v4911, %v4912
        %v5261 = vcombine.low %v4913, %v4914
        %v5263 = vunpack.c.l.s4 1983009808
        %v5264 = vunpack.c.0.s8 %v5263
        %v5265 = vlaneseq
        %v5266 = vshrl.u32 %v5265, 7
        %v5267 = vsub.s32 %v5264, %v5266
        %v5268 = vrot.slane %v5260, %v5267
        %v5270 = vunpack.c.l.s4 1983009808
        %v5271 = vunpack.c.0.s8 %v5270
        %v5272 = vlaneseq
        %v5273 = vshrl.u32 %v5272, 7
        %v5274 = vsub.s32 %v5271, %v5273
        %v5275 = vrot.slane %v5261, %v5274
        %v5276 = vcombine.low %v5268, %v5275
        %v5277 = vcombine.low %v4915, %v4916
        %v5278 = vcombine.low %v4917, %v4918
        %v5280 = vunpack.c.l.s4 1983009808
        %v5281 = vunpack.c.0.s8 %v5280
        %v5282 = vlaneseq
        %v5283 = vshrl.u32 %v5282, 7
        %v5284 = vsub.s32 %v5281, %v5283
        %v5285 = vrot.slane %v5277, %v5284
        %v5287 = vunpack.c.l.s4 1983009808
        %v5288 = vunpack.c.0.s8 %v5287
        %v5289 = vlaneseq
        %v5290 = vshrl.u32 %v5289, 7
        %v5291 = vsub.s32 %v5288, %v5290
        %v5292 = vrot.slane %v5278, %v5291
        %v5293 = vcombine.low %v5285, %v5292
        %v5294 = vcombine.low %v4919, %v4920
        %v5295 = vcombine.low %v4921, %v4922
        %v5297 = vunpack.c.l.s4 1983009808
        %v5298 = vunpack.c.0.s8 %v5297
        %v5299 = vlaneseq
        %v5300 = vshrl.u32 %v5299, 7
        %v5301 = vsub.s32 %v5298, %v5300
        %v5302 = vrot.slane %v5294, %v5301
        %v5304 = vunpack.c.l.s4 1983009808
        %v5305 = vunpack.c.0.s8 %v5304
        %v5306 = vlaneseq
        %v5307 = vshrl.u32 %v5306, 7
        %v5308 = vsub.s32 %v5305, %v5307
        %v5309 = vrot.slane %v5295, %v5308
        %v5310 = vcombine.low %v5302, %v5309
        %v5311 = vcombine.low %v4923, %v4924
        %v5312 = vcombine.low %v4925, %v4926
        %v5314 = vunpack.c.l.s4 1983009808
        %v5315 = vunpack.c.0.s8 %v5314
        %v5316 = vlaneseq
        %v5317 = vshrl.u32 %v5316, 7
        %v5318 = vsub.s32 %v5315, %v5317
        %v5319 = vrot.slane %v5311, %v5318
        %v5321 = vunpack.c.l.s4 1983009808
        %v5322 = vunpack.c.0.s8 %v5321
        %v5323 = vlaneseq
        %v5324 = vshrl.u32 %v5323, 7
        %v5325 = vsub.s32 %v5322, %v5324
        %v5326 = vrot.slane %v5312, %v5325
        %v5327 = vcombine.low %v5319, %v5326
        %v5328 = vcombine.low %v4927, %v4928
        %v5329 = vcombine.low %v4929, %v4930
        %v5331 = vunpack.c.l.s4 1983009808
        %v5332 = vunpack.c.0.s8 %v5331
        %v5333 = vlaneseq
        %v5334 = vshrl.u32 %v5333, 7
        %v5335 = vsub.s32 %v5332, %v5334
        %v5336 = vrot.slane %v5328, %v5335
        %v5338 = vunpack.c.l.s4 1983009808
        %v5339 = vunpack.c.0.s8 %v5338
        %v5340 = vlaneseq
        %v5341 = vshrl.u32 %v5340, 7
        %v5342 = vsub.s32 %v5339, %v5341
        %v5343 = vrot.slane %v5329, %v5342
        %v5344 = vcombine.low %v5336, %v5343
        %v5345 = vcombine.low %v4931, %v4932
        %v5346 = vcombine.low %v4933, %v4934
        %v5348 = vunpack.c.l.s4 1983009808
        %v5349 = vunpack.c.0.s8 %v5348
        %v5350 = vlaneseq
        %v5351 = vshrl.u32 %v5350, 7
        %v5352 = vsub.s32 %v5349, %v5351
        %v5353 = vrot.slane %v5345, %v5352
        %v5355 = vunpack.c.l.s4 1983009808
        %v5356 = vunpack.c.0.s8 %v5355
        %v5357 = vlaneseq
        %v5358 = vshrl.u32 %v5357, 7
        %v5359 = vsub.s32 %v5356, %v5358
        %v5360 = vrot.slane %v5346, %v5359
        %v5361 = vcombine.low %v5353, %v5360
        %v5362 = vcombine.low %v4935, %v4936
        %v5363 = vcombine.low %v4937, %v4938
        %v5365 = vunpack.c.l.s4 1983009808
        %v5366 = vunpack.c.0.s8 %v5365
        %v5367 = vlaneseq
        %v5368 = vshrl.u32 %v5367, 7
        %v5369 = vsub.s32 %v5366, %v5368
        %v5370 = vrot.slane %v5362, %v5369
        %v5372 = vunpack.c.l.s4 1983009808
        %v5373 = vunpack.c.0.s8 %v5372
        %v5374 = vlaneseq
        %v5375 = vshrl.u32 %v5374, 7
        %v5376 = vsub.s32 %v5373, %v5375
        %v5377 = vrot.slane %v5363, %v5376
        %v5378 = vcombine.low %v5370, %v5377
        %v5379 = vcombine.low %v4939, %v4940
        %v5380 = vcombine.low %v4941, %v4942
        %v5382 = vunpack.c.l.s4 1983009808
        %v5383 = vunpack.c.0.s8 %v5382
        %v5384 = vlaneseq
        %v5385 = vshrl.u32 %v5384, 7
        %v5386 = vsub.s32 %v5383, %v5385
        %v5387 = vrot.slane %v5379, %v5386
        %v5389 = vunpack.c.l.s4 1983009808
        %v5390 = vunpack.c.0.s8 %v5389
        %v5391 = vlaneseq
        %v5392 = vshrl.u32 %v5391, 7
        %v5393 = vsub.s32 %v5390, %v5392
        %v5394 = vrot.slane %v5380, %v5393
        %v5395 = vcombine.low %v5387, %v5394
        %v5396 = vcombine.low %v4943, %v4944
        %v5397 = vcombine.low %v4945, %v4946
        %v5399 = vunpack.c.l.s4 1983009808
        %v5400 = vunpack.c.0.s8 %v5399
        %v5401 = vlaneseq
        %v5402 = vshrl.u32 %v5401, 7
        %v5403 = vsub.s32 %v5400, %v5402
        %v5404 = vrot.slane %v5396, %v5403
        %v5406 = vunpack.c.l.s4 1983009808
        %v5407 = vunpack.c.0.s8 %v5406
        %v5408 = vlaneseq
        %v5409 = vshrl.u32 %v5408, 7
        %v5410 = vsub.s32 %v5407, %v5409
        %v5411 = vrot.slane %v5397, %v5410
        %v5412 = vcombine.low %v5404, %v5411
        %v5413 = vcombine.low %v4947, %v4948
        %v5414 = vcombine.low %v4949, %v4950
        %v5416 = vunpack.c.l.s4 1983009808
        %v5417 = vunpack.c.0.s8 %v5416
        %v5418 = vlaneseq
        %v5419 = vshrl.u32 %v5418, 7
        %v5420 = vsub.s32 %v5417, %v5419
        %v5421 = vrot.slane %v5413, %v5420
        %v5423 = vunpack.c.l.s4 1983009808
        %v5424 = vunpack.c.0.s8 %v5423
        %v5425 = vlaneseq
        %v5426 = vshrl.u32 %v5425, 7
        %v5427 = vsub.s32 %v5424, %v5426
        %v5428 = vrot.slane %v5414, %v5427
        %v5429 = vcombine.low %v5421, %v5428
        %v5430 = vcombine.low %v4951, %v4952
        %v5431 = vcombine.low %v4953, %v4954
        %v5433 = vunpack.c.l.s4 1983009808
        %v5434 = vunpack.c.0.s8 %v5433
        %v5435 = vlaneseq
        %v5436 = vshrl.u32 %v5435, 7
        %v5437 = vsub.s32 %v5434, %v5436
        %v5438 = vrot.slane %v5430, %v5437
        %v5440 = vunpack.c.l.s4 1983009808
        %v5441 = vunpack.c.0.s8 %v5440
        %v5442 = vlaneseq
        %v5443 = vshrl.u32 %v5442, 7
        %v5444 = vsub.s32 %v5441, %v5443
        %v5445 = vrot.slane %v5431, %v5444
        %v5446 = vcombine.low %v5438, %v5445
        %v5447 = vcombine.low %v4955, %v4956
        %v5448 = vcombine.low %v4957, %v4958
        %v5450 = vunpack.c.l.s4 1983009808
        %v5451 = vunpack.c.0.s8 %v5450
        %v5452 = vlaneseq
        %v5453 = vshrl.u32 %v5452, 7
        %v5454 = vsub.s32 %v5451, %v5453
        %v5455 = vrot.slane %v5447, %v5454
        %v5457 = vunpack.c.l.s4 1983009808
        %v5458 = vunpack.c.0.s8 %v5457
        %v5459 = vlaneseq
        %v5460 = vshrl.u32 %v5459, 7
        %v5461 = vsub.s32 %v5458, %v5460
        %v5462 = vrot.slane %v5448, %v5461
        %v5463 = vcombine.low %v5455, %v5462
        %v5464 = vcombine.low %v4959, %v4960
        %v5465 = vcombine.low %v4961, %v4962
        %v5467 = vunpack.c.l.s4 1983009808
        %v5468 = vunpack.c.0.s8 %v5467
        %v5469 = vlaneseq
        %v5470 = vshrl.u32 %v5469, 7
        %v5471 = vsub.s32 %v5468, %v5470
        %v5472 = vrot.slane %v5464, %v5471
        %v5474 = vunpack.c.l.s4 1983009808
        %v5475 = vunpack.c.0.s8 %v5474
        %v5476 = vlaneseq
        %v5477 = vshrl.u32 %v5476, 7
        %v5478 = vsub.s32 %v5475, %v5477
        %v5479 = vrot.slane %v5465, %v5478
        %v5480 = vcombine.low %v5472, %v5479
        %v5481 = vcombine.low %v4963, %v4964
        %v5482 = vcombine.low %v4965, %v4966
        %v5484 = vunpack.c.l.s4 1983009808
        %v5485 = vunpack.c.0.s8 %v5484
        %v5486 = vlaneseq
        %v5487 = vshrl.u32 %v5486, 7
        %v5488 = vsub.s32 %v5485, %v5487
        %v5489 = vrot.slane %v5481, %v5488
        %v5491 = vunpack.c.l.s4 1983009808
        %v5492 = vunpack.c.0.s8 %v5491
        %v5493 = vlaneseq
        %v5494 = vshrl.u32 %v5493, 7
        %v5495 = vsub.s32 %v5492, %v5494
        %v5496 = vrot.slane %v5482, %v5495
        %v5497 = vcombine.low %v5489, %v5496
        %v5498 = vcombine.low %v4967, %v4968
        %v5499 = vcombine.low %v4969, %v4970
        %v5501 = vunpack.c.l.s4 1983009808
        %v5502 = vunpack.c.0.s8 %v5501
        %v5503 = vlaneseq
        %v5504 = vshrl.u32 %v5503, 7
        %v5505 = vsub.s32 %v5502, %v5504
        %v5506 = vrot.slane %v5498, %v5505
        %v5508 = vunpack.c.l.s4 1983009808
        %v5509 = vunpack.c.0.s8 %v5508
        %v5510 = vlaneseq
        %v5511 = vshrl.u32 %v5510, 7
        %v5512 = vsub.s32 %v5509, %v5511
        %v5513 = vrot.slane %v5499, %v5512
        %v5514 = vcombine.low %v5506, %v5513
        %v5515 = vcombine.low %v4971, %v4972
        %v5516 = vcombine.low %v4973, %v4974
        %v5518 = vunpack.c.l.s4 1983009808
        %v5519 = vunpack.c.0.s8 %v5518
        %v5520 = vlaneseq
        %v5521 = vshrl.u32 %v5520, 7
        %v5522 = vsub.s32 %v5519, %v5521
        %v5523 = vrot.slane %v5515, %v5522
        %v5525 = vunpack.c.l.s4 1983009808
        %v5526 = vunpack.c.0.s8 %v5525
        %v5527 = vlaneseq
        %v5528 = vshrl.u32 %v5527, 7
        %v5529 = vsub.s32 %v5526, %v5528
        %v5530 = vrot.slane %v5516, %v5529
        %v5531 = vcombine.low %v5523, %v5530
        %v5532 = vcombine.low %v4975, %v4976
        %v5533 = vcombine.low %v4977, %v4978
        %v5535 = vunpack.c.l.s4 1983009808
        %v5536 = vunpack.c.0.s8 %v5535
        %v5537 = vlaneseq
        %v5538 = vshrl.u32 %v5537, 7
        %v5539 = vsub.s32 %v5536, %v5538
        %v5540 = vrot.slane %v5532, %v5539
        %v5542 = vunpack.c.l.s4 1983009808
        %v5543 = vunpack.c.0.s8 %v5542
        %v5544 = vlaneseq
        %v5545 = vshrl.u32 %v5544, 7
        %v5546 = vsub.s32 %v5543, %v5545
        %v5547 = vrot.slane %v5533, %v5546
        %v5548 = vcombine.low %v5540, %v5547
        %v5549 = vcombine.low %v4979, %v4980
        %v5550 = vcombine.low %v4981, %v4982
        %v5552 = vunpack.c.l.s4 1983009808
        %v5553 = vunpack.c.0.s8 %v5552
        %v5554 = vlaneseq
        %v5555 = vshrl.u32 %v5554, 7
        %v5556 = vsub.s32 %v5553, %v5555
        %v5557 = vrot.slane %v5549, %v5556
        %v5559 = vunpack.c.l.s4 1983009808
        %v5560 = vunpack.c.0.s8 %v5559
        %v5561 = vlaneseq
        %v5562 = vshrl.u32 %v5561, 7
        %v5563 = vsub.s32 %v5560, %v5562
        %v5564 = vrot.slane %v5550, %v5563
        %v5565 = vcombine.low %v5557, %v5564
        %v5566 = vcombine.low %v4983, %v4984
        %v5567 = vcombine.low %v4985, %v4986
        %v5569 = vunpack.c.l.s4 1983009808
        %v5570 = vunpack.c.0.s8 %v5569
        %v5571 = vlaneseq
        %v5572 = vshrl.u32 %v5571, 7
        %v5573 = vsub.s32 %v5570, %v5572
        %v5574 = vrot.slane %v5566, %v5573
        %v5576 = vunpack.c.l.s4 1983009808
        %v5577 = vunpack.c.0.s8 %v5576
        %v5578 = vlaneseq
        %v5579 = vshrl.u32 %v5578, 7
        %v5580 = vsub.s32 %v5577, %v5579
        %v5581 = vrot.slane %v5567, %v5580
        %v5582 = vcombine.low %v5574, %v5581
        %v5583 = vcombine.low %v4987, %v4988
        %v5584 = vcombine.low %v4989, %v4990
        %v5586 = vunpack.c.l.s4 1983009808
        %v5587 = vunpack.c.0.s8 %v5586
        %v5588 = vlaneseq
        %v5589 = vshrl.u32 %v5588, 7
        %v5590 = vsub.s32 %v5587, %v5589
        %v5591 = vrot.slane %v5583, %v5590
        %v5593 = vunpack.c.l.s4 1983009808
        %v5594 = vunpack.c.0.s8 %v5593
        %v5595 = vlaneseq
        %v5596 = vshrl.u32 %v5595, 7
        %v5597 = vsub.s32 %v5594, %v5596
        %v5598 = vrot.slane %v5584, %v5597
        %v5599 = vcombine.low %v5591, %v5598
        %v5600 = vcombine.low %v4991, %v4992
        %v5601 = vcombine.low %v4993, %v4994
        %v5603 = vunpack.c.l.s4 1983009808
        %v5604 = vunpack.c.0.s8 %v5603
        %v5605 = vlaneseq
        %v5606 = vshrl.u32 %v5605, 7
        %v5607 = vsub.s32 %v5604, %v5606
        %v5608 = vrot.slane %v5600, %v5607
        %v5610 = vunpack.c.l.s4 1983009808
        %v5611 = vunpack.c.0.s8 %v5610
        %v5612 = vlaneseq
        %v5613 = vshrl.u32 %v5612, 7
        %v5614 = vsub.s32 %v5611, %v5613
        %v5615 = vrot.slane %v5601, %v5614
        %v5616 = vcombine.low %v5608, %v5615
        %v5617 = vcombine.low %v4995, %v4996
        %v5618 = vcombine.low %v4997, %v4998
        %v5620 = vunpack.c.l.s4 1983009808
        %v5621 = vunpack.c.0.s8 %v5620
        %v5622 = vlaneseq
        %v5623 = vshrl.u32 %v5622, 7
        %v5624 = vsub.s32 %v5621, %v5623
        %v5625 = vrot.slane %v5617, %v5624
        %v5627 = vunpack.c.l.s4 1983009808
        %v5628 = vunpack.c.0.s8 %v5627
        %v5629 = vlaneseq
        %v5630 = vshrl.u32 %v5629, 7
        %v5631 = vsub.s32 %v5628, %v5630
        %v5632 = vrot.slane %v5618, %v5631
        %v5633 = vcombine.low %v5625, %v5632
        %v5634 = vcombine.low %v4999, %v5000
        %v5635 = vcombine.low %v5001, %v5002
        %v5637 = vunpack.c.l.s4 1983009808
        %v5638 = vunpack.c.0.s8 %v5637
        %v5639 = vlaneseq
        %v5640 = vshrl.u32 %v5639, 7
        %v5641 = vsub.s32 %v5638, %v5640
        %v5642 = vrot.slane %v5634, %v5641
        %v5644 = vunpack.c.l.s4 1983009808
        %v5645 = vunpack.c.0.s8 %v5644
        %v5646 = vlaneseq
        %v5647 = vshrl.u32 %v5646, 7
        %v5648 = vsub.s32 %v5645, %v5647
        %v5649 = vrot.slane %v5635, %v5648
        %v5650 = vcombine.low %v5642, %v5649
        %v5651 = vcombine.low %v5003, %v5004
        %v5652 = vcombine.low %v5005, %v5006
        %v5654 = vunpack.c.l.s4 1983009808
        %v5655 = vunpack.c.0.s8 %v5654
        %v5656 = vlaneseq
        %v5657 = vshrl.u32 %v5656, 7
        %v5658 = vsub.s32 %v5655, %v5657
        %v5659 = vrot.slane %v5651, %v5658
        %v5661 = vunpack.c.l.s4 1983009808
        %v5662 = vunpack.c.0.s8 %v5661
        %v5663 = vlaneseq
        %v5664 = vshrl.u32 %v5663, 7
        %v5665 = vsub.s32 %v5662, %v5664
        %v5666 = vrot.slane %v5652, %v5665
        %v5667 = vcombine.low %v5659, %v5666
        %v5668 = vcombine.low %v5007, %v5008
        %v5669 = vcombine.low %v5009, %v5010
        %v5671 = vunpack.c.l.s4 1983009808
        %v5672 = vunpack.c.0.s8 %v5671
        %v5673 = vlaneseq
        %v5674 = vshrl.u32 %v5673, 7
        %v5675 = vsub.s32 %v5672, %v5674
        %v5676 = vrot.slane %v5668, %v5675
        %v5678 = vunpack.c.l.s4 1983009808
        %v5679 = vunpack.c.0.s8 %v5678
        %v5680 = vlaneseq
        %v5681 = vshrl.u32 %v5680, 7
        %v5682 = vsub.s32 %v5679, %v5681
        %v5683 = vrot.slane %v5669, %v5682
        %v5684 = vcombine.low %v5676, %v5683
        %v5685 = vcombine.low %v5011, %v5012
        %v5686 = vcombine.low %v5013, %v5014
        %v5688 = vunpack.c.l.s4 1983009808
        %v5689 = vunpack.c.0.s8 %v5688
        %v5690 = vlaneseq
        %v5691 = vshrl.u32 %v5690, 7
        %v5692 = vsub.s32 %v5689, %v5691
        %v5693 = vrot.slane %v5685, %v5692
        %v5695 = vunpack.c.l.s4 1983009808
        %v5696 = vunpack.c.0.s8 %v5695
        %v5697 = vlaneseq
        %v5698 = vshrl.u32 %v5697, 7
        %v5699 = vsub.s32 %v5696, %v5698
        %v5700 = vrot.slane %v5686, %v5699
        %v5701 = vcombine.low %v5693, %v5700
        %v5702 = vcombine.low %v5015, %v5016
        %v5703 = vcombine.low %v5017, %v5018
        %v5705 = vunpack.c.l.s4 1983009808
        %v5706 = vunpack.c.0.s8 %v5705
        %v5707 = vlaneseq
        %v5708 = vshrl.u32 %v5707, 7
        %v5709 = vsub.s32 %v5706, %v5708
        %v5710 = vrot.slane %v5702, %v5709
        %v5712 = vunpack.c.l.s4 1983009808
        %v5713 = vunpack.c.0.s8 %v5712
        %v5714 = vlaneseq
        %v5715 = vshrl.u32 %v5714, 7
        %v5716 = vsub.s32 %v5713, %v5715
        %v5717 = vrot.slane %v5703, %v5716
        %v5718 = vcombine.low %v5710, %v5717
        %v5719 = vcombine.low %v5019, %v5020
        %v5720 = vcombine.low %v5021, %v5022
        %v5722 = vunpack.c.l.s4 1983009808
        %v5723 = vunpack.c.0.s8 %v5722
        %v5724 = vlaneseq
        %v5725 = vshrl.u32 %v5724, 7
        %v5726 = vsub.s32 %v5723, %v5725
        %v5727 = vrot.slane %v5719, %v5726
        %v5729 = vunpack.c.l.s4 1983009808
        %v5730 = vunpack.c.0.s8 %v5729
        %v5731 = vlaneseq
        %v5732 = vshrl.u32 %v5731, 7
        %v5733 = vsub.s32 %v5730, %v5732
        %v5734 = vrot.slane %v5720, %v5733
        %v5735 = vcombine.low %v5727, %v5734
        %v5736 = vcombine.low %v5023, %v5024
        %v5737 = vcombine.low %v5025, %v5026
        %v5739 = vunpack.c.l.s4 1983009808
        %v5740 = vunpack.c.0.s8 %v5739
        %v5741 = vlaneseq
        %v5742 = vshrl.u32 %v5741, 7
        %v5743 = vsub.s32 %v5740, %v5742
        %v5744 = vrot.slane %v5736, %v5743
        %v5746 = vunpack.c.l.s4 1983009808
        %v5747 = vunpack.c.0.s8 %v5746
        %v5748 = vlaneseq
        %v5749 = vshrl.u32 %v5748, 7
        %v5750 = vsub.s32 %v5747, %v5749
        %v5751 = vrot.slane %v5737, %v5750
        %v5752 = vcombine.low %v5744, %v5751
        %s5785 = scalar_lea.vmem [#allocation4], 24
        %5786 = vst.msk [vmem:[%s5785 + $0x1] sm:$0xff] %vm987, %v5225
        %5787 = vst.msk [vmem:[%s5785 + $0x9] sm:$0xff] %vm987, %v5242
        %5788 = vst.msk [vmem:[%s5785 + $0x19] sm:$0xff] %vm987, %v5259
        %5789 = vst.msk [vmem:[%s5785 + $0x21] sm:$0xff] %vm987, %v5276
        %5790 = vst.msk [vmem:[%s5785 + $0x31] sm:$0xff] %vm987, %v5293
        %5791 = vst.msk [vmem:[%s5785 + $0x39] sm:$0xff] %vm987, %v5310
        %5792 = vst.msk [vmem:[%s5785 + $0x49] sm:$0xff] %vm987, %v5327
        %5793 = vst.msk [vmem:[%s5785 + $0x51] sm:$0xff] %vm987, %v5344
        %5794 = vst.msk [vmem:[%s5785 + $0x61] sm:$0xff] %vm987, %v5361
        %5795 = vst.msk [vmem:[%s5785 + $0x69] sm:$0xff] %vm987, %v5378
        %5796 = vst.msk [vmem:[%s5785 + $0x79] sm:$0xff] %vm987, %v5395
        %5797 = vst.msk [vmem:[%s5785 + $0x81] sm:$0xff] %vm987, %v5412
        %5798 = vst.msk [vmem:[%s5785 + $0x91] sm:$0xff] %vm987, %v5429
        %5799 = vst.msk [vmem:[%s5785 + $0x99] sm:$0xff] %vm987, %v5446
        %5800 = vst.msk [vmem:[%s5785 + $0xa9] sm:$0xff] %vm987, %v5463
        %5801 = vst.msk [vmem:[%s5785 + $0xb1] sm:$0xff] %vm987, %v5480
        %5802 = vst.msk [vmem:[%s5785 + $0xc1] sm:$0xff] %vm987, %v5497
        %5803 = vst.msk [vmem:[%s5785 + $0xc9] sm:$0xff] %vm987, %v5514
        %5804 = vst.msk [vmem:[%s5785 + $0xd9] sm:$0xff] %vm987, %v5531
        %5805 = vst.msk [vmem:[%s5785 + $0xe1] sm:$0xff] %vm987, %v5548
        %5806 = vst.msk [vmem:[%s5785 + $0xf1] sm:$0xff] %vm987, %v5565
        %5807 = vst.msk [vmem:[%s5785 + $0xf9] sm:$0xff] %vm987, %v5582
        %5808 = vst.msk [vmem:[%s5785 + $0x109] sm:$0xff] %vm987, %v5599
        %5809 = vst.msk [vmem:[%s5785 + $0x111] sm:$0xff] %vm987, %v5616
        %5810 = vst.msk [vmem:[%s5785 + $0x121] sm:$0xff] %vm987, %v5633
        %5811 = vst.msk [vmem:[%s5785 + $0x129] sm:$0xff] %vm987, %v5650
        %5812 = vst.msk [vmem:[%s5785 + $0x139] sm:$0xff] %vm987, %v5667
        %5813 = vst.msk [vmem:[%s5785 + $0x141] sm:$0xff] %vm987, %v5684
        %5814 = vst.msk [vmem:[%s5785 + $0x151] sm:$0xff] %vm987, %v5701
        %5815 = vst.msk [vmem:[%s5785 + $0x159] sm:$0xff] %vm987, %v5718
        %5816 = vst.msk [vmem:[%s5785 + $0x169] sm:$0xff] %vm987, %v5735
        %5817 = vst.msk [vmem:[%s5785 + $0x171] sm:$0xff] %vm987, %v5752
        %v5818 = vld [vmem:[#allocation4] sm:$0xff]
        %v5819 = vld [vmem:[#allocation4 + $0x8] sm:$0xff]
        %v5820 = vld [vmem:[#allocation4 + $0x10] sm:$0x3]
        %v5821 = vld [vmem:[#allocation4 + $0x18] sm:$0xff]
        %v5822 = vld [vmem:[#allocation4 + $0x20] sm:$0xff]
        %v5823 = vld [vmem:[#allocation4 + $0x28] sm:$0x3]
        %v5824 = vld [vmem:[#allocation4 + $0x30] sm:$0xff]
        %v5825 = vld [vmem:[#allocation4 + $0x38] sm:$0xff]
        %v5826 = vld [vmem:[#allocation4 + $0x40] sm:$0x3]
        %v5827 = vld [vmem:[#allocation4 + $0x48] sm:$0xff]
        %v5828 = vld [vmem:[#allocation4 + $0x50] sm:$0xff]
        %v5829 = vld [vmem:[#allocation4 + $0x58] sm:$0x3]
        %v5830 = vld [vmem:[#allocation4 + $0x60] sm:$0xff]
        %v5831 = vld [vmem:[#allocation4 + $0x68] sm:$0xff]
        %v5832 = vld [vmem:[#allocation4 + $0x70] sm:$0x3]
        %v5833 = vld [vmem:[#allocation4 + $0x78] sm:$0xff]
        %v5834 = vld [vmem:[#allocation4 + $0x80] sm:$0xff]
        %v5835 = vld [vmem:[#allocation4 + $0x88] sm:$0x3]
        %v5836 = vld [vmem:[#allocation4 + $0x90] sm:$0xff]
        %v5837 = vld [vmem:[#allocation4 + $0x98] sm:$0xff]
        %v5838 = vld [vmem:[#allocation4 + $0xa0] sm:$0x3]
        %v5839 = vld [vmem:[#allocation4 + $0xa8] sm:$0xff]
        %v5840 = vld [vmem:[#allocation4 + $0xb0] sm:$0xff]
        %v5841 = vld [vmem:[#allocation4 + $0xb8] sm:$0x3]
        %v5842 = vld [vmem:[#allocation4 + $0xc0] sm:$0xff]
        %v5843 = vld [vmem:[#allocation4 + $0xc8] sm:$0xff]
        %v5844 = vld [vmem:[#allocation4 + $0xd0] sm:$0x3]
        %v5845 = vld [vmem:[#allocation4 + $0xd8] sm:$0xff]
        %v5846 = vld [vmem:[#allocation4 + $0xe0] sm:$0xff]
        %v5847 = vld [vmem:[#allocation4 + $0xe8] sm:$0x3]
        %v5848 = vld [vmem:[#allocation4 + $0xf0] sm:$0xff]
        %v5849 = vld [vmem:[#allocation4 + $0xf8] sm:$0xff]
        %v5850 = vld [vmem:[#allocation4 + $0x100] sm:$0x3]
        %v5851 = vld [vmem:[#allocation4 + $0x108] sm:$0xff]
        %v5852 = vld [vmem:[#allocation4 + $0x110] sm:$0xff]
        %v5853 = vld [vmem:[#allocation4 + $0x118] sm:$0x3]
        %v5854 = vld [vmem:[#allocation4 + $0x120] sm:$0xff]
        %v5855 = vld [vmem:[#allocation4 + $0x128] sm:$0xff]
        %v5856 = vld [vmem:[#allocation4 + $0x130] sm:$0x3]
        %v5857 = vld [vmem:[#allocation4 + $0x138] sm:$0xff]
        %v5858 = vld [vmem:[#allocation4 + $0x140] sm:$0xff]
        %v5859 = vld [vmem:[#allocation4 + $0x148] sm:$0x3]
        %v5860 = vld [vmem:[#allocation4 + $0x150] sm:$0xff]
        %v5861 = vld [vmem:[#allocation4 + $0x158] sm:$0xff]
        %v5862 = vld [vmem:[#allocation4 + $0x160] sm:$0x3]
        %v5863 = vld [vmem:[#allocation4 + $0x168] sm:$0xff]
        %v5864 = vld [vmem:[#allocation4 + $0x170] sm:$0xff]
        %v5865 = vld [vmem:[#allocation4 + $0x178] sm:$0x3]
        %v5866 = vld [vmem:[#allocation4 + $0x180] sm:$0xff]
        %v5867 = vld [vmem:[#allocation4 + $0x188] sm:$0xff]
        %v5868 = vld [vmem:[#allocation4 + $0x190] sm:$0x3]
        %v5869 = vld [vmem:[#allocation4 + $0x198] sm:$0xff]
        %v5870 = vld [vmem:[#allocation4 + $0x1a0] sm:$0xff]
        %v5871 = vld [vmem:[#allocation4 + $0x1a8] sm:$0x3]
        %v5920 = vrot.slane %v5818, 1
        %v5921 = vrot.slane %v5819, 1
        %v5922 = vsel %vm419, %v5920, %v5921
        %v5923 = vrot.slane %v5820, 1
        %v5924 = vsel %vm419, %v5921, %v5923
        %v5925 = vrot.slane %v5821, 1
        %v5926 = vrot.slane %v5822, 1
        %v5927 = vsel %vm419, %v5925, %v5926
        %v5928 = vrot.slane %v5823, 1
        %v5929 = vsel %vm419, %v5926, %v5928
        %v5930 = vrot.slane %v5824, 1
        %v5931 = vrot.slane %v5825, 1
        %v5932 = vsel %vm419, %v5930, %v5931
        %v5933 = vrot.slane %v5826, 1
        %v5934 = vsel %vm419, %v5931, %v5933
        %v5935 = vrot.slane %v5827, 1
        %v5936 = vrot.slane %v5828, 1
        %v5937 = vsel %vm419, %v5935, %v5936
        %v5938 = vrot.slane %v5829, 1
        %v5939 = vsel %vm419, %v5936, %v5938
        %v5940 = vrot.slane %v5830, 1
        %v5941 = vrot.slane %v5831, 1
        %v5942 = vsel %vm419, %v5940, %v5941
        %v5943 = vrot.slane %v5832, 1
        %v5944 = vsel %vm419, %v5941, %v5943
        %v5945 = vrot.slane %v5833, 1
        %v5946 = vrot.slane %v5834, 1
        %v5947 = vsel %vm419, %v5945, %v5946
        %v5948 = vrot.slane %v5835, 1
        %v5949 = vsel %vm419, %v5946, %v5948
        %v5950 = vrot.slane %v5836, 1
        %v5951 = vrot.slane %v5837, 1
        %v5952 = vsel %vm419, %v5950, %v5951
        %v5953 = vrot.slane %v5838, 1
        %v5954 = vsel %vm419, %v5951, %v5953
        %v5955 = vrot.slane %v5839, 1
        %v5956 = vrot.slane %v5840, 1
        %v5957 = vsel %vm419, %v5955, %v5956
        %v5958 = vrot.slane %v5841, 1
        %v5959 = vsel %vm419, %v5956, %v5958
        %v5960 = vrot.slane %v5842, 1
        %v5961 = vrot.slane %v5843, 1
        %v5962 = vsel %vm419, %v5960, %v5961
        %v5963 = vrot.slane %v5844, 1
        %v5964 = vsel %vm419, %v5961, %v5963
        %v5965 = vrot.slane %v5845, 1
        %v5966 = vrot.slane %v5846, 1
        %v5967 = vsel %vm419, %v5965, %v5966
        %v5968 = vrot.slane %v5847, 1
        %v5969 = vsel %vm419, %v5966, %v5968
        %v5970 = vrot.slane %v5848, 1
        %v5971 = vrot.slane %v5849, 1
        %v5972 = vsel %vm419, %v5970, %v5971
        %v5973 = vrot.slane %v5850, 1
        %v5974 = vsel %vm419, %v5971, %v5973
        %v5975 = vrot.slane %v5851, 1
        %v5976 = vrot.slane %v5852, 1
        %v5977 = vsel %vm419, %v5975, %v5976
        %v5978 = vrot.slane %v5853, 1
        %v5979 = vsel %vm419, %v5976, %v5978
        %v5980 = vrot.slane %v5854, 1
        %v5981 = vrot.slane %v5855, 1
        %v5982 = vsel %vm419, %v5980, %v5981
        %v5983 = vrot.slane %v5856, 1
        %v5984 = vsel %vm419, %v5981, %v5983
        %v5985 = vrot.slane %v5857, 1
        %v5986 = vrot.slane %v5858, 1
        %v5987 = vsel %vm419, %v5985, %v5986
        %v5988 = vrot.slane %v5859, 1
        %v5989 = vsel %vm419, %v5986, %v5988
        %v5990 = vrot.slane %v5860, 1
        %v5991 = vrot.slane %v5861, 1
        %v5992 = vsel %vm419, %v5990, %v5991
        %v5993 = vrot.slane %v5862, 1
        %v5994 = vsel %vm419, %v5991, %v5993
        %v5995 = vrot.slane %v5863, 1
        %v5996 = vrot.slane %v5864, 1
        %v5997 = vsel %vm419, %v5995, %v5996
        %v5998 = vrot.slane %v5865, 1
        %v5999 = vsel %vm419, %v5996, %v5998
        %v6000 = vrot.slane %v5818, 2
        %v6001 = vrot.slane %v5819, 2
        %v6002 = vsel %vm444, %v6000, %v6001
        %v6003 = vrot.slane %v5820, 2
        %v6004 = vsel %vm444, %v6001, %v6003
        %v6005 = vrot.slane %v5821, 2
        %v6006 = vrot.slane %v5822, 2
        %v6007 = vsel %vm444, %v6005, %v6006
        %v6008 = vrot.slane %v5823, 2
        %v6009 = vsel %vm444, %v6006, %v6008
        %v6010 = vrot.slane %v5824, 2
        %v6011 = vrot.slane %v5825, 2
        %v6012 = vsel %vm444, %v6010, %v6011
        %v6013 = vrot.slane %v5826, 2
        %v6014 = vsel %vm444, %v6011, %v6013
        %v6015 = vrot.slane %v5827, 2
        %v6016 = vrot.slane %v5828, 2
        %v6017 = vsel %vm444, %v6015, %v6016
        %v6018 = vrot.slane %v5829, 2
        %v6019 = vsel %vm444, %v6016, %v6018
        %v6020 = vrot.slane %v5830, 2
        %v6021 = vrot.slane %v5831, 2
        %v6022 = vsel %vm444, %v6020, %v6021
        %v6023 = vrot.slane %v5832, 2
        %v6024 = vsel %vm444, %v6021, %v6023
        %v6025 = vrot.slane %v5833, 2
        %v6026 = vrot.slane %v5834, 2
        %v6027 = vsel %vm444, %v6025, %v6026
        %v6028 = vrot.slane %v5835, 2
        %v6029 = vsel %vm444, %v6026, %v6028
        %v6030 = vrot.slane %v5836, 2
        %v6031 = vrot.slane %v5837, 2
        %v6032 = vsel %vm444, %v6030, %v6031
        %v6033 = vrot.slane %v5838, 2
        %v6034 = vsel %vm444, %v6031, %v6033
        %v6035 = vrot.slane %v5839, 2
        %v6036 = vrot.slane %v5840, 2
        %v6037 = vsel %vm444, %v6035, %v6036
        %v6038 = vrot.slane %v5841, 2
        %v6039 = vsel %vm444, %v6036, %v6038
        %v6040 = vrot.slane %v5842, 2
        %v6041 = vrot.slane %v5843, 2
        %v6042 = vsel %vm444, %v6040, %v6041
        %v6043 = vrot.slane %v5844, 2
        %v6044 = vsel %vm444, %v6041, %v6043
        %v6045 = vrot.slane %v5845, 2
        %v6046 = vrot.slane %v5846, 2
        %v6047 = vsel %vm444, %v6045, %v6046
        %v6048 = vrot.slane %v5847, 2
        %v6049 = vsel %vm444, %v6046, %v6048
        %v6050 = vrot.slane %v5848, 2
        %v6051 = vrot.slane %v5849, 2
        %v6052 = vsel %vm444, %v6050, %v6051
        %v6053 = vrot.slane %v5850, 2
        %v6054 = vsel %vm444, %v6051, %v6053
        %v6055 = vrot.slane %v5851, 2
        %v6056 = vrot.slane %v5852, 2
        %v6057 = vsel %vm444, %v6055, %v6056
        %v6058 = vrot.slane %v5853, 2
        %v6059 = vsel %vm444, %v6056, %v6058
        %v6060 = vrot.slane %v5854, 2
        %v6061 = vrot.slane %v5855, 2
        %v6062 = vsel %vm444, %v6060, %v6061
        %v6063 = vrot.slane %v5856, 2
        %v6064 = vsel %vm444, %v6061, %v6063
        %v6065 = vrot.slane %v5857, 2
        %v6066 = vrot.slane %v5858, 2
        %v6067 = vsel %vm444, %v6065, %v6066
        %v6068 = vrot.slane %v5859, 2
        %v6069 = vsel %vm444, %v6066, %v6068
        %v6070 = vrot.slane %v5860, 2
        %v6071 = vrot.slane %v5861, 2
        %v6072 = vsel %vm444, %v6070, %v6071
        %v6073 = vrot.slane %v5862, 2
        %v6074 = vsel %vm444, %v6071, %v6073
        %v6075 = vrot.slane %v5863, 2
        %v6076 = vrot.slane %v5864, 2
        %v6077 = vsel %vm444, %v6075, %v6076
        %v6078 = vrot.slane %v5865, 2
        %v6079 = vsel %vm444, %v6076, %v6078
        %v6083 = vrot.slane %v5866, 1
        %v6084 = vrot.slane %v5867, 1
        %v6085 = vsel %vm419, %v6083, %v6084
        %v6086 = vrot.slane %v5868, 1
        %v6087 = vsel %vm419, %v6084, %v6086
        %v6088 = vrot.slane %v5866, 2
        %v6089 = vrot.slane %v5867, 2
        %v6090 = vsel %vm444, %v6088, %v6089
        %v6091 = vrot.slane %v5868, 2
        %v6092 = vsel %vm444, %v6089, %v6091
        %v6096 = vrot.slane %v5869, 1
        %v6097 = vrot.slane %v5870, 1
        %v6098 = vsel %vm419, %v6096, %v6097
        %v6099 = vrot.slane %v5871, 1
        %v6100 = vsel %vm419, %v6097, %v6099
        %v6101 = vrot.slane %v5869, 2
        %v6102 = vrot.slane %v5870, 2
        %v6103 = vsel %vm444, %v6101, %v6102
        %v6104 = vrot.slane %v5871, 2
        %v6105 = vsel %vm444, %v6102, %v6104
        %6106 = vrot.lane.b32.xlu0 %v5922, 16
        %v6107 = vpop.permute.xlu0 %6106
        %6108 = vrot.lane.b32.xlu0 %v5924, 16
        %v6109 = vpop.permute.xlu0 %6108
        %6110 = vrot.lane.b32.xlu0 %v5927, 16
        %v6111 = vpop.permute.xlu0 %6110
        %6112 = vrot.lane.b32.xlu0 %v5929, 16
        %v6113 = vpop.permute.xlu0 %6112
        %6114 = vrot.lane.b32.xlu0 %v5932, 16
        %v6115 = vpop.permute.xlu0 %6114
        %6116 = vrot.lane.b32.xlu0 %v5934, 16
        %v6117 = vpop.permute.xlu0 %6116
        %6118 = vrot.lane.b32.xlu0 %v5937, 16
        %v6119 = vpop.permute.xlu0 %6118
        %6120 = vrot.lane.b32.xlu0 %v5939, 16
        %v6121 = vpop.permute.xlu0 %6120
        %6122 = vrot.lane.b32.xlu0 %v5942, 16
        %v6123 = vpop.permute.xlu0 %6122
        %6124 = vrot.lane.b32.xlu0 %v5944, 16
        %v6125 = vpop.permute.xlu0 %6124
        %6126 = vrot.lane.b32.xlu0 %v5947, 16
        %v6127 = vpop.permute.xlu0 %6126
        %6128 = vrot.lane.b32.xlu0 %v5949, 16
        %v6129 = vpop.permute.xlu0 %6128
        %6130 = vrot.lane.b32.xlu0 %v5952, 16
        %v6131 = vpop.permute.xlu0 %6130
        %6132 = vrot.lane.b32.xlu0 %v5954, 16
        %v6133 = vpop.permute.xlu0 %6132
        %6134 = vrot.lane.b32.xlu0 %v5957, 16
        %v6135 = vpop.permute.xlu0 %6134
        %6136 = vrot.lane.b32.xlu0 %v5959, 16
        %v6137 = vpop.permute.xlu0 %6136
        %6138 = vrot.lane.b32.xlu0 %v5962, 16
        %v6139 = vpop.permute.xlu0 %6138
        %6140 = vrot.lane.b32.xlu0 %v5964, 16
        %v6141 = vpop.permute.xlu0 %6140
        %6142 = vrot.lane.b32.xlu0 %v5967, 16
        %v6143 = vpop.permute.xlu0 %6142
        %6144 = vrot.lane.b32.xlu0 %v5969, 16
        %v6145 = vpop.permute.xlu0 %6144
        %6146 = vrot.lane.b32.xlu0 %v5972, 16
        %v6147 = vpop.permute.xlu0 %6146
        %6148 = vrot.lane.b32.xlu0 %v5974, 16
        %v6149 = vpop.permute.xlu0 %6148
        %6150 = vrot.lane.b32.xlu0 %v5977, 16
        %v6151 = vpop.permute.xlu0 %6150
        %6152 = vrot.lane.b32.xlu0 %v5979, 16
        %v6153 = vpop.permute.xlu0 %6152
        %6154 = vrot.lane.b32.xlu0 %v5982, 16
        %v6155 = vpop.permute.xlu0 %6154
        %6156 = vrot.lane.b32.xlu0 %v5984, 16
        %v6157 = vpop.permute.xlu0 %6156
        %6158 = vrot.lane.b32.xlu0 %v5987, 16
        %v6159 = vpop.permute.xlu0 %6158
        %6160 = vrot.lane.b32.xlu0 %v5989, 16
        %v6161 = vpop.permute.xlu0 %6160
        %6162 = vrot.lane.b32.xlu0 %v5992, 16
        %v6163 = vpop.permute.xlu0 %6162
        %6164 = vrot.lane.b32.xlu0 %v5994, 16
        %v6165 = vpop.permute.xlu0 %6164
        %6166 = vrot.lane.b32.xlu0 %v5997, 16
        %v6167 = vpop.permute.xlu0 %6166
        %6168 = vrot.lane.b32.xlu0 %v5999, 16
        %v6169 = vpop.permute.xlu0 %6168
        %6202 = vrot.lane.b32.xlu0 %v6002, 32
        %v6203 = vpop.permute.xlu0 %6202
        %6204 = vrot.lane.b32.xlu0 %v6004, 32
        %v6205 = vpop.permute.xlu0 %6204
        %6206 = vrot.lane.b32.xlu0 %v6007, 32
        %v6207 = vpop.permute.xlu0 %6206
        %6208 = vrot.lane.b32.xlu0 %v6009, 32
        %v6209 = vpop.permute.xlu0 %6208
        %6210 = vrot.lane.b32.xlu0 %v6012, 32
        %v6211 = vpop.permute.xlu0 %6210
        %6212 = vrot.lane.b32.xlu0 %v6014, 32
        %v6213 = vpop.permute.xlu0 %6212
        %6214 = vrot.lane.b32.xlu0 %v6017, 32
        %v6215 = vpop.permute.xlu0 %6214
        %6216 = vrot.lane.b32.xlu0 %v6019, 32
        %v6217 = vpop.permute.xlu0 %6216
        %6218 = vrot.lane.b32.xlu0 %v6022, 32
        %v6219 = vpop.permute.xlu0 %6218
        %6220 = vrot.lane.b32.xlu0 %v6024, 32
        %v6221 = vpop.permute.xlu0 %6220
        %6222 = vrot.lane.b32.xlu0 %v6027, 32
        %v6223 = vpop.permute.xlu0 %6222
        %6224 = vrot.lane.b32.xlu0 %v6029, 32
        %v6225 = vpop.permute.xlu0 %6224
        %6226 = vrot.lane.b32.xlu0 %v6032, 32
        %v6227 = vpop.permute.xlu0 %6226
        %6228 = vrot.lane.b32.xlu0 %v6034, 32
        %v6229 = vpop.permute.xlu0 %6228
        %6230 = vrot.lane.b32.xlu0 %v6037, 32
        %v6231 = vpop.permute.xlu0 %6230
        %6232 = vrot.lane.b32.xlu0 %v6039, 32
        %v6233 = vpop.permute.xlu0 %6232
        %6234 = vrot.lane.b32.xlu0 %v6042, 32
        %v6235 = vpop.permute.xlu0 %6234
        %6236 = vrot.lane.b32.xlu0 %v6044, 32
        %v6237 = vpop.permute.xlu0 %6236
        %6238 = vrot.lane.b32.xlu0 %v6047, 32
        %v6239 = vpop.permute.xlu0 %6238
        %6240 = vrot.lane.b32.xlu0 %v6049, 32
        %v6241 = vpop.permute.xlu0 %6240
        %6242 = vrot.lane.b32.xlu0 %v6052, 32
        %v6243 = vpop.permute.xlu0 %6242
        %6244 = vrot.lane.b32.xlu0 %v6054, 32
        %v6245 = vpop.permute.xlu0 %6244
        %6246 = vrot.lane.b32.xlu0 %v6057, 32
        %v6247 = vpop.permute.xlu0 %6246
        %6248 = vrot.lane.b32.xlu0 %v6059, 32
        %v6249 = vpop.permute.xlu0 %6248
        %6250 = vrot.lane.b32.xlu0 %v6062, 32
        %v6251 = vpop.permute.xlu0 %6250
        %6252 = vrot.lane.b32.xlu0 %v6064, 32
        %v6253 = vpop.permute.xlu0 %6252
        %6254 = vrot.lane.b32.xlu0 %v6067, 32
        %v6255 = vpop.permute.xlu0 %6254
        %6256 = vrot.lane.b32.xlu0 %v6069, 32
        %v6257 = vpop.permute.xlu0 %6256
        %6258 = vrot.lane.b32.xlu0 %v6072, 32
        %v6259 = vpop.permute.xlu0 %6258
        %6260 = vrot.lane.b32.xlu0 %v6074, 32
        %v6261 = vpop.permute.xlu0 %6260
        %6262 = vrot.lane.b32.xlu0 %v6077, 32
        %v6263 = vpop.permute.xlu0 %6262
        %6264 = vrot.lane.b32.xlu0 %v6079, 32
        %v6265 = vpop.permute.xlu0 %6264
        %6298 = vrot.lane.b32.xlu0 %v5821, 48
        %v6299 = vpop.permute.xlu0 %6298
        %6300 = vrot.lane.b32.xlu0 %v5822, 48
        %v6301 = vpop.permute.xlu0 %6300
        %6302 = vrot.lane.b32.xlu0 %v5824, 48
        %v6303 = vpop.permute.xlu0 %6302
        %6304 = vrot.lane.b32.xlu0 %v5825, 48
        %v6305 = vpop.permute.xlu0 %6304
        %6306 = vrot.lane.b32.xlu0 %v5827, 48
        %v6307 = vpop.permute.xlu0 %6306
        %6308 = vrot.lane.b32.xlu0 %v5828, 48
        %v6309 = vpop.permute.xlu0 %6308
        %6310 = vrot.lane.b32.xlu0 %v5830, 48
        %v6311 = vpop.permute.xlu0 %6310
        %6312 = vrot.lane.b32.xlu0 %v5831, 48
        %v6313 = vpop.permute.xlu0 %6312
        %6314 = vrot.lane.b32.xlu0 %v5833, 48
        %v6315 = vpop.permute.xlu0 %6314
        %6316 = vrot.lane.b32.xlu0 %v5834, 48
        %v6317 = vpop.permute.xlu0 %6316
        %6318 = vrot.lane.b32.xlu0 %v5836, 48
        %v6319 = vpop.permute.xlu0 %6318
        %6320 = vrot.lane.b32.xlu0 %v5837, 48
        %v6321 = vpop.permute.xlu0 %6320
        %6322 = vrot.lane.b32.xlu0 %v5839, 48
        %v6323 = vpop.permute.xlu0 %6322
        %6324 = vrot.lane.b32.xlu0 %v5840, 48
        %v6325 = vpop.permute.xlu0 %6324
        %6326 = vrot.lane.b32.xlu0 %v5842, 48
        %v6327 = vpop.permute.xlu0 %6326
        %6328 = vrot.lane.b32.xlu0 %v5843, 48
        %v6329 = vpop.permute.xlu0 %6328
        %6330 = vrot.lane.b32.xlu0 %v5845, 48
        %v6331 = vpop.permute.xlu0 %6330
        %6332 = vrot.lane.b32.xlu0 %v5846, 48
        %v6333 = vpop.permute.xlu0 %6332
        %6334 = vrot.lane.b32.xlu0 %v5848, 48
        %v6335 = vpop.permute.xlu0 %6334
        %6336 = vrot.lane.b32.xlu0 %v5849, 48
        %v6337 = vpop.permute.xlu0 %6336
        %6338 = vrot.lane.b32.xlu0 %v5851, 48
        %v6339 = vpop.permute.xlu0 %6338
        %6340 = vrot.lane.b32.xlu0 %v5852, 48
        %v6341 = vpop.permute.xlu0 %6340
        %6342 = vrot.lane.b32.xlu0 %v5854, 48
        %v6343 = vpop.permute.xlu0 %6342
        %6344 = vrot.lane.b32.xlu0 %v5855, 48
        %v6345 = vpop.permute.xlu0 %6344
        %6346 = vrot.lane.b32.xlu0 %v5857, 48
        %v6347 = vpop.permute.xlu0 %6346
        %6348 = vrot.lane.b32.xlu0 %v5858, 48
        %v6349 = vpop.permute.xlu0 %6348
        %6350 = vrot.lane.b32.xlu0 %v5860, 48
        %v6351 = vpop.permute.xlu0 %6350
        %6352 = vrot.lane.b32.xlu0 %v5861, 48
        %v6353 = vpop.permute.xlu0 %6352
        %6354 = vrot.lane.b32.xlu0 %v5863, 48
        %v6355 = vpop.permute.xlu0 %6354
        %6356 = vrot.lane.b32.xlu0 %v5864, 48
        %v6357 = vpop.permute.xlu0 %6356
        %6358 = vrot.lane.b32.xlu0 %v5866, 48
        %v6359 = vpop.permute.xlu0 %6358
        %6360 = vrot.lane.b32.xlu0 %v5867, 48
        %v6361 = vpop.permute.xlu0 %6360
        %6394 = vrot.lane.b32.xlu0 %v5927, 64
        %v6395 = vpop.permute.xlu0 %6394
        %6396 = vrot.lane.b32.xlu0 %v5929, 64
        %v6397 = vpop.permute.xlu0 %6396
        %6398 = vrot.lane.b32.xlu0 %v5932, 64
        %v6399 = vpop.permute.xlu0 %6398
        %6400 = vrot.lane.b32.xlu0 %v5934, 64
        %v6401 = vpop.permute.xlu0 %6400
        %6402 = vrot.lane.b32.xlu0 %v5937, 64
        %v6403 = vpop.permute.xlu0 %6402
        %6404 = vrot.lane.b32.xlu0 %v5939, 64
        %v6405 = vpop.permute.xlu0 %6404
        %6406 = vrot.lane.b32.xlu0 %v5942, 64
        %v6407 = vpop.permute.xlu0 %6406
        %6408 = vrot.lane.b32.xlu0 %v5944, 64
        %v6409 = vpop.permute.xlu0 %6408
        %6410 = vrot.lane.b32.xlu0 %v5947, 64
        %v6411 = vpop.permute.xlu0 %6410
        %6412 = vrot.lane.b32.xlu0 %v5949, 64
        %v6413 = vpop.permute.xlu0 %6412
        %6414 = vrot.lane.b32.xlu0 %v5952, 64
        %v6415 = vpop.permute.xlu0 %6414
        %6416 = vrot.lane.b32.xlu0 %v5954, 64
        %v6417 = vpop.permute.xlu0 %6416
        %6418 = vrot.lane.b32.xlu0 %v5957, 64
        %v6419 = vpop.permute.xlu0 %6418
        %6420 = vrot.lane.b32.xlu0 %v5959, 64
        %v6421 = vpop.permute.xlu0 %6420
        %6422 = vrot.lane.b32.xlu0 %v5962, 64
        %v6423 = vpop.permute.xlu0 %6422
        %6424 = vrot.lane.b32.xlu0 %v5964, 64
        %v6425 = vpop.permute.xlu0 %6424
        %6426 = vrot.lane.b32.xlu0 %v5967, 64
        %v6427 = vpop.permute.xlu0 %6426
        %6428 = vrot.lane.b32.xlu0 %v5969, 64
        %v6429 = vpop.permute.xlu0 %6428
        %6430 = vrot.lane.b32.xlu0 %v5972, 64
        %v6431 = vpop.permute.xlu0 %6430
        %6432 = vrot.lane.b32.xlu0 %v5974, 64
        %v6433 = vpop.permute.xlu0 %6432
        %6434 = vrot.lane.b32.xlu0 %v5977, 64
        %v6435 = vpop.permute.xlu0 %6434
        %6436 = vrot.lane.b32.xlu0 %v5979, 64
        %v6437 = vpop.permute.xlu0 %6436
        %6438 = vrot.lane.b32.xlu0 %v5982, 64
        %v6439 = vpop.permute.xlu0 %6438
        %6440 = vrot.lane.b32.xlu0 %v5984, 64
        %v6441 = vpop.permute.xlu0 %6440
        %6442 = vrot.lane.b32.xlu0 %v5987, 64
        %v6443 = vpop.permute.xlu0 %6442
        %6444 = vrot.lane.b32.xlu0 %v5989, 64
        %v6445 = vpop.permute.xlu0 %6444
        %6446 = vrot.lane.b32.xlu0 %v5992, 64
        %v6447 = vpop.permute.xlu0 %6446
        %6448 = vrot.lane.b32.xlu0 %v5994, 64
        %v6449 = vpop.permute.xlu0 %6448
        %6450 = vrot.lane.b32.xlu0 %v5997, 64
        %v6451 = vpop.permute.xlu0 %6450
        %6452 = vrot.lane.b32.xlu0 %v5999, 64
        %v6453 = vpop.permute.xlu0 %6452
        %6454 = vrot.lane.b32.xlu0 %v6085, 64
        %v6455 = vpop.permute.xlu0 %6454
        %6456 = vrot.lane.b32.xlu0 %v6087, 64
        %v6457 = vpop.permute.xlu0 %6456
        %6490 = vrot.lane.b32.xlu0 %v6007, 80
        %v6491 = vpop.permute.xlu0 %6490
        %6492 = vrot.lane.b32.xlu0 %v6009, 80
        %v6493 = vpop.permute.xlu0 %6492
        %6494 = vrot.lane.b32.xlu0 %v6012, 80
        %v6495 = vpop.permute.xlu0 %6494
        %6496 = vrot.lane.b32.xlu0 %v6014, 80
        %v6497 = vpop.permute.xlu0 %6496
        %6498 = vrot.lane.b32.xlu0 %v6017, 80
        %v6499 = vpop.permute.xlu0 %6498
        %6500 = vrot.lane.b32.xlu0 %v6019, 80
        %v6501 = vpop.permute.xlu0 %6500
        %6502 = vrot.lane.b32.xlu0 %v6022, 80
        %v6503 = vpop.permute.xlu0 %6502
        %6504 = vrot.lane.b32.xlu0 %v6024, 80
        %v6505 = vpop.permute.xlu0 %6504
        %6506 = vrot.lane.b32.xlu0 %v6027, 80
        %v6507 = vpop.permute.xlu0 %6506
        %6508 = vrot.lane.b32.xlu0 %v6029, 80
        %v6509 = vpop.permute.xlu0 %6508
        %6510 = vrot.lane.b32.xlu0 %v6032, 80
        %v6511 = vpop.permute.xlu0 %6510
        %6512 = vrot.lane.b32.xlu0 %v6034, 80
        %v6513 = vpop.permute.xlu0 %6512
        %6514 = vrot.lane.b32.xlu0 %v6037, 80
        %v6515 = vpop.permute.xlu0 %6514
        %6516 = vrot.lane.b32.xlu0 %v6039, 80
        %v6517 = vpop.permute.xlu0 %6516
        %6518 = vrot.lane.b32.xlu0 %v6042, 80
        %v6519 = vpop.permute.xlu0 %6518
        %6520 = vrot.lane.b32.xlu0 %v6044, 80
        %v6521 = vpop.permute.xlu0 %6520
        %6522 = vrot.lane.b32.xlu0 %v6047, 80
        %v6523 = vpop.permute.xlu0 %6522
        %6524 = vrot.lane.b32.xlu0 %v6049, 80
        %v6525 = vpop.permute.xlu0 %6524
        %6526 = vrot.lane.b32.xlu0 %v6052, 80
        %v6527 = vpop.permute.xlu0 %6526
        %6528 = vrot.lane.b32.xlu0 %v6054, 80
        %v6529 = vpop.permute.xlu0 %6528
        %6530 = vrot.lane.b32.xlu0 %v6057, 80
        %v6531 = vpop.permute.xlu0 %6530
        %6532 = vrot.lane.b32.xlu0 %v6059, 80
        %v6533 = vpop.permute.xlu0 %6532
        %6534 = vrot.lane.b32.xlu0 %v6062, 80
        %v6535 = vpop.permute.xlu0 %6534
        %6536 = vrot.lane.b32.xlu0 %v6064, 80
        %v6537 = vpop.permute.xlu0 %6536
        %6538 = vrot.lane.b32.xlu0 %v6067, 80
        %v6539 = vpop.permute.xlu0 %6538
        %6540 = vrot.lane.b32.xlu0 %v6069, 80
        %v6541 = vpop.permute.xlu0 %6540
        %6542 = vrot.lane.b32.xlu0 %v6072, 80
        %v6543 = vpop.permute.xlu0 %6542
        %6544 = vrot.lane.b32.xlu0 %v6074, 80
        %v6545 = vpop.permute.xlu0 %6544
        %6546 = vrot.lane.b32.xlu0 %v6077, 80
        %v6547 = vpop.permute.xlu0 %6546
        %6548 = vrot.lane.b32.xlu0 %v6079, 80
        %v6549 = vpop.permute.xlu0 %6548
        %6550 = vrot.lane.b32.xlu0 %v6090, 80
        %v6551 = vpop.permute.xlu0 %6550
        %6552 = vrot.lane.b32.xlu0 %v6092, 80
        %v6553 = vpop.permute.xlu0 %6552
        %6586 = vrot.lane.b32.xlu0 %v5824, 96
        %v6587 = vpop.permute.xlu0 %6586
        %6588 = vrot.lane.b32.xlu0 %v5825, 96
        %v6589 = vpop.permute.xlu0 %6588
        %6590 = vrot.lane.b32.xlu0 %v5827, 96
        %v6591 = vpop.permute.xlu0 %6590
        %6592 = vrot.lane.b32.xlu0 %v5828, 96
        %v6593 = vpop.permute.xlu0 %6592
        %6594 = vrot.lane.b32.xlu0 %v5830, 96
        %v6595 = vpop.permute.xlu0 %6594
        %6596 = vrot.lane.b32.xlu0 %v5831, 96
        %v6597 = vpop.permute.xlu0 %6596
        %6598 = vrot.lane.b32.xlu0 %v5833, 96
        %v6599 = vpop.permute.xlu0 %6598
        %6600 = vrot.lane.b32.xlu0 %v5834, 96
        %v6601 = vpop.permute.xlu0 %6600
        %6602 = vrot.lane.b32.xlu0 %v5836, 96
        %v6603 = vpop.permute.xlu0 %6602
        %6604 = vrot.lane.b32.xlu0 %v5837, 96
        %v6605 = vpop.permute.xlu0 %6604
        %6606 = vrot.lane.b32.xlu0 %v5839, 96
        %v6607 = vpop.permute.xlu0 %6606
        %6608 = vrot.lane.b32.xlu0 %v5840, 96
        %v6609 = vpop.permute.xlu0 %6608
        %6610 = vrot.lane.b32.xlu0 %v5842, 96
        %v6611 = vpop.permute.xlu0 %6610
        %6612 = vrot.lane.b32.xlu0 %v5843, 96
        %v6613 = vpop.permute.xlu0 %6612
        %6614 = vrot.lane.b32.xlu0 %v5845, 96
        %v6615 = vpop.permute.xlu0 %6614
        %6616 = vrot.lane.b32.xlu0 %v5846, 96
        %v6617 = vpop.permute.xlu0 %6616
        %6618 = vrot.lane.b32.xlu0 %v5848, 96
        %v6619 = vpop.permute.xlu0 %6618
        %6620 = vrot.lane.b32.xlu0 %v5849, 96
        %v6621 = vpop.permute.xlu0 %6620
        %6622 = vrot.lane.b32.xlu0 %v5851, 96
        %v6623 = vpop.permute.xlu0 %6622
        %6624 = vrot.lane.b32.xlu0 %v5852, 96
        %v6625 = vpop.permute.xlu0 %6624
        %6626 = vrot.lane.b32.xlu0 %v5854, 96
        %v6627 = vpop.permute.xlu0 %6626
        %6628 = vrot.lane.b32.xlu0 %v5855, 96
        %v6629 = vpop.permute.xlu0 %6628
        %6630 = vrot.lane.b32.xlu0 %v5857, 96
        %v6631 = vpop.permute.xlu0 %6630
        %6632 = vrot.lane.b32.xlu0 %v5858, 96
        %v6633 = vpop.permute.xlu0 %6632
        %6634 = vrot.lane.b32.xlu0 %v5860, 96
        %v6635 = vpop.permute.xlu0 %6634
        %6636 = vrot.lane.b32.xlu0 %v5861, 96
        %v6637 = vpop.permute.xlu0 %6636
        %6638 = vrot.lane.b32.xlu0 %v5863, 96
        %v6639 = vpop.permute.xlu0 %6638
        %6640 = vrot.lane.b32.xlu0 %v5864, 96
        %v6641 = vpop.permute.xlu0 %6640
        %6642 = vrot.lane.b32.xlu0 %v5866, 96
        %v6643 = vpop.permute.xlu0 %6642
        %6644 = vrot.lane.b32.xlu0 %v5867, 96
        %v6645 = vpop.permute.xlu0 %6644
        %6646 = vrot.lane.b32.xlu0 %v5869, 96
        %v6647 = vpop.permute.xlu0 %6646
        %6648 = vrot.lane.b32.xlu0 %v5870, 96
        %v6649 = vpop.permute.xlu0 %6648
        %6682 = vrot.lane.b32.xlu0 %v5932, 112
        %v6683 = vpop.permute.xlu0 %6682
        %6684 = vrot.lane.b32.xlu0 %v5934, 112
        %v6685 = vpop.permute.xlu0 %6684
        %6686 = vrot.lane.b32.xlu0 %v5937, 112
        %v6687 = vpop.permute.xlu0 %6686
        %6688 = vrot.lane.b32.xlu0 %v5939, 112
        %v6689 = vpop.permute.xlu0 %6688
        %6690 = vrot.lane.b32.xlu0 %v5942, 112
        %v6691 = vpop.permute.xlu0 %6690
        %6692 = vrot.lane.b32.xlu0 %v5944, 112
        %v6693 = vpop.permute.xlu0 %6692
        %6694 = vrot.lane.b32.xlu0 %v5947, 112
        %v6695 = vpop.permute.xlu0 %6694
        %6696 = vrot.lane.b32.xlu0 %v5949, 112
        %v6697 = vpop.permute.xlu0 %6696
        %6698 = vrot.lane.b32.xlu0 %v5952, 112
        %v6699 = vpop.permute.xlu0 %6698
        %6700 = vrot.lane.b32.xlu0 %v5954, 112
        %v6701 = vpop.permute.xlu0 %6700
        %6702 = vrot.lane.b32.xlu0 %v5957, 112
        %v6703 = vpop.permute.xlu0 %6702
        %6704 = vrot.lane.b32.xlu0 %v5959, 112
        %v6705 = vpop.permute.xlu0 %6704
        %6706 = vrot.lane.b32.xlu0 %v5962, 112
        %v6707 = vpop.permute.xlu0 %6706
        %6708 = vrot.lane.b32.xlu0 %v5964, 112
        %v6709 = vpop.permute.xlu0 %6708
        %6710 = vrot.lane.b32.xlu0 %v5967, 112
        %v6711 = vpop.permute.xlu0 %6710
        %6712 = vrot.lane.b32.xlu0 %v5969, 112
        %v6713 = vpop.permute.xlu0 %6712
        %6714 = vrot.lane.b32.xlu0 %v5972, 112
        %v6715 = vpop.permute.xlu0 %6714
        %6716 = vrot.lane.b32.xlu0 %v5974, 112
        %v6717 = vpop.permute.xlu0 %6716
        %6718 = vrot.lane.b32.xlu0 %v5977, 112
        %v6719 = vpop.permute.xlu0 %6718
        %6720 = vrot.lane.b32.xlu0 %v5979, 112
        %v6721 = vpop.permute.xlu0 %6720
        %6722 = vrot.lane.b32.xlu0 %v5982, 112
        %v6723 = vpop.permute.xlu0 %6722
        %6724 = vrot.lane.b32.xlu0 %v5984, 112
        %v6725 = vpop.permute.xlu0 %6724
        %6726 = vrot.lane.b32.xlu0 %v5987, 112
        %v6727 = vpop.permute.xlu0 %6726
        %6728 = vrot.lane.b32.xlu0 %v5989, 112
        %v6729 = vpop.permute.xlu0 %6728
        %6730 = vrot.lane.b32.xlu0 %v5992, 112
        %v6731 = vpop.permute.xlu0 %6730
        %6732 = vrot.lane.b32.xlu0 %v5994, 112
        %v6733 = vpop.permute.xlu0 %6732
        %6734 = vrot.lane.b32.xlu0 %v5997, 112
        %v6735 = vpop.permute.xlu0 %6734
        %6736 = vrot.lane.b32.xlu0 %v5999, 112
        %v6737 = vpop.permute.xlu0 %6736
        %6738 = vrot.lane.b32.xlu0 %v6085, 112
        %v6739 = vpop.permute.xlu0 %6738
        %6740 = vrot.lane.b32.xlu0 %v6087, 112
        %v6741 = vpop.permute.xlu0 %6740
        %6742 = vrot.lane.b32.xlu0 %v6098, 112
        %v6743 = vpop.permute.xlu0 %6742
        %6744 = vrot.lane.b32.xlu0 %v6100, 112
        %v6745 = vpop.permute.xlu0 %6744
        %v6778 = vsel %vm987, %v5818, %v6107
        %v6779 = vsel %vm987, %v5819, %v6109
        %v6780 = vsel %vm987, %v5821, %v6111
        %v6781 = vsel %vm987, %v5822, %v6113
        %v6782 = vsel %vm987, %v5824, %v6115
        %v6783 = vsel %vm987, %v5825, %v6117
        %v6784 = vsel %vm987, %v5827, %v6119
        %v6785 = vsel %vm987, %v5828, %v6121
        %v6786 = vsel %vm987, %v5830, %v6123
        %v6787 = vsel %vm987, %v5831, %v6125
        %v6788 = vsel %vm987, %v5833, %v6127
        %v6789 = vsel %vm987, %v5834, %v6129
        %v6790 = vsel %vm987, %v5836, %v6131
        %v6791 = vsel %vm987, %v5837, %v6133
        %v6792 = vsel %vm987, %v5839, %v6135
        %v6793 = vsel %vm987, %v5840, %v6137
        %v6794 = vsel %vm987, %v5842, %v6139
        %v6795 = vsel %vm987, %v5843, %v6141
        %v6796 = vsel %vm987, %v5845, %v6143
        %v6797 = vsel %vm987, %v5846, %v6145
        %v6798 = vsel %vm987, %v5848, %v6147
        %v6799 = vsel %vm987, %v5849, %v6149
        %v6800 = vsel %vm987, %v5851, %v6151
        %v6801 = vsel %vm987, %v5852, %v6153
        %v6802 = vsel %vm987, %v5854, %v6155
        %v6803 = vsel %vm987, %v5855, %v6157
        %v6804 = vsel %vm987, %v5857, %v6159
        %v6805 = vsel %vm987, %v5858, %v6161
        %v6806 = vsel %vm987, %v5860, %v6163
        %v6807 = vsel %vm987, %v5861, %v6165
        %v6808 = vsel %vm987, %v5863, %v6167
        %v6809 = vsel %vm987, %v5864, %v6169
        %v6810 = vsel %vm344, %v6778, %v6203
        %v6811 = vsel %vm344, %v6779, %v6205
        %v6812 = vsel %vm344, %v6780, %v6207
        %v6813 = vsel %vm344, %v6781, %v6209
        %v6814 = vsel %vm344, %v6782, %v6211
        %v6815 = vsel %vm344, %v6783, %v6213
        %v6816 = vsel %vm344, %v6784, %v6215
        %v6817 = vsel %vm344, %v6785, %v6217
        %v6818 = vsel %vm344, %v6786, %v6219
        %v6819 = vsel %vm344, %v6787, %v6221
        %v6820 = vsel %vm344, %v6788, %v6223
        %v6821 = vsel %vm344, %v6789, %v6225
        %v6822 = vsel %vm344, %v6790, %v6227
        %v6823 = vsel %vm344, %v6791, %v6229
        %v6824 = vsel %vm344, %v6792, %v6231
        %v6825 = vsel %vm344, %v6793, %v6233
        %v6826 = vsel %vm344, %v6794, %v6235
        %v6827 = vsel %vm344, %v6795, %v6237
        %v6828 = vsel %vm344, %v6796, %v6239
        %v6829 = vsel %vm344, %v6797, %v6241
        %v6830 = vsel %vm344, %v6798, %v6243
        %v6831 = vsel %vm344, %v6799, %v6245
        %v6832 = vsel %vm344, %v6800, %v6247
        %v6833 = vsel %vm344, %v6801, %v6249
        %v6834 = vsel %vm344, %v6802, %v6251
        %v6835 = vsel %vm344, %v6803, %v6253
        %v6836 = vsel %vm344, %v6804, %v6255
        %v6837 = vsel %vm344, %v6805, %v6257
        %v6838 = vsel %vm344, %v6806, %v6259
        %v6839 = vsel %vm344, %v6807, %v6261
        %v6840 = vsel %vm344, %v6808, %v6263
        %v6841 = vsel %vm344, %v6809, %v6265
        %vm6842 = vcmask 392192
        %v6843 = vsel %vm6842, %v6810, %v6299
        %v6844 = vsel %vm6842, %v6811, %v6301
        %v6845 = vsel %vm6842, %v6812, %v6303
        %v6846 = vsel %vm6842, %v6813, %v6305
        %v6847 = vsel %vm6842, %v6814, %v6307
        %v6848 = vsel %vm6842, %v6815, %v6309
        %v6849 = vsel %vm6842, %v6816, %v6311
        %v6850 = vsel %vm6842, %v6817, %v6313
        %v6851 = vsel %vm6842, %v6818, %v6315
        %v6852 = vsel %vm6842, %v6819, %v6317
        %v6853 = vsel %vm6842, %v6820, %v6319
        %v6854 = vsel %vm6842, %v6821, %v6321
        %v6855 = vsel %vm6842, %v6822, %v6323
        %v6856 = vsel %vm6842, %v6823, %v6325
        %v6857 = vsel %vm6842, %v6824, %v6327
        %v6858 = vsel %vm6842, %v6825, %v6329
        %v6859 = vsel %vm6842, %v6826, %v6331
        %v6860 = vsel %vm6842, %v6827, %v6333
        %v6861 = vsel %vm6842, %v6828, %v6335
        %v6862 = vsel %vm6842, %v6829, %v6337
        %v6863 = vsel %vm6842, %v6830, %v6339
        %v6864 = vsel %vm6842, %v6831, %v6341
        %v6865 = vsel %vm6842, %v6832, %v6343
        %v6866 = vsel %vm6842, %v6833, %v6345
        %v6867 = vsel %vm6842, %v6834, %v6347
        %v6868 = vsel %vm6842, %v6835, %v6349
        %v6869 = vsel %vm6842, %v6836, %v6351
        %v6870 = vsel %vm6842, %v6837, %v6353
        %v6871 = vsel %vm6842, %v6838, %v6355
        %v6872 = vsel %vm6842, %v6839, %v6357
        %v6873 = vsel %vm6842, %v6840, %v6359
        %v6874 = vsel %vm6842, %v6841, %v6361
        %v6875 = vsel %vm645, %v6843, %v6395
        %v6876 = vsel %vm645, %v6844, %v6397
        %v6877 = vsel %vm645, %v6845, %v6399
        %v6878 = vsel %vm645, %v6846, %v6401
        %v6879 = vsel %vm645, %v6847, %v6403
        %v6880 = vsel %vm645, %v6848, %v6405
        %v6881 = vsel %vm645, %v6849, %v6407
        %v6882 = vsel %vm645, %v6850, %v6409
        %v6883 = vsel %vm645, %v6851, %v6411
        %v6884 = vsel %vm645, %v6852, %v6413
        %v6885 = vsel %vm645, %v6853, %v6415
        %v6886 = vsel %vm645, %v6854, %v6417
        %v6887 = vsel %vm645, %v6855, %v6419
        %v6888 = vsel %vm645, %v6856, %v6421
        %v6889 = vsel %vm645, %v6857, %v6423
        %v6890 = vsel %vm645, %v6858, %v6425
        %v6891 = vsel %vm645, %v6859, %v6427
        %v6892 = vsel %vm645, %v6860, %v6429
        %v6893 = vsel %vm645, %v6861, %v6431
        %v6894 = vsel %vm645, %v6862, %v6433
        %v6895 = vsel %vm645, %v6863, %v6435
        %v6896 = vsel %vm645, %v6864, %v6437
        %v6897 = vsel %vm645, %v6865, %v6439
        %v6898 = vsel %vm645, %v6866, %v6441
        %v6899 = vsel %vm645, %v6867, %v6443
        %v6900 = vsel %vm645, %v6868, %v6445
        %v6901 = vsel %vm645, %v6869, %v6447
        %v6902 = vsel %vm645, %v6870, %v6449
        %v6903 = vsel %vm645, %v6871, %v6451
        %v6904 = vsel %vm645, %v6872, %v6453
        %v6905 = vsel %vm645, %v6873, %v6455
        %v6906 = vsel %vm645, %v6874, %v6457
        %vm6907 = vcmask 654336
        %v6908 = vsel %vm6907, %v6875, %v6491
        %v6909 = vsel %vm6907, %v6876, %v6493
        %v6910 = vsel %vm6907, %v6877, %v6495
        %v6911 = vsel %vm6907, %v6878, %v6497
        %v6912 = vsel %vm6907, %v6879, %v6499
        %v6913 = vsel %vm6907, %v6880, %v6501
        %v6914 = vsel %vm6907, %v6881, %v6503
        %v6915 = vsel %vm6907, %v6882, %v6505
        %v6916 = vsel %vm6907, %v6883, %v6507
        %v6917 = vsel %vm6907, %v6884, %v6509
        %v6918 = vsel %vm6907, %v6885, %v6511
        %v6919 = vsel %vm6907, %v6886, %v6513
        %v6920 = vsel %vm6907, %v6887, %v6515
        %v6921 = vsel %vm6907, %v6888, %v6517
        %v6922 = vsel %vm6907, %v6889, %v6519
        %v6923 = vsel %vm6907, %v6890, %v6521
        %v6924 = vsel %vm6907, %v6891, %v6523
        %v6925 = vsel %vm6907, %v6892, %v6525
        %v6926 = vsel %vm6907, %v6893, %v6527
        %v6927 = vsel %vm6907, %v6894, %v6529
        %v6928 = vsel %vm6907, %v6895, %v6531
        %v6929 = vsel %vm6907, %v6896, %v6533
        %v6930 = vsel %vm6907, %v6897, %v6535
        %v6931 = vsel %vm6907, %v6898, %v6537
        %v6932 = vsel %vm6907, %v6899, %v6539
        %v6933 = vsel %vm6907, %v6900, %v6541
        %v6934 = vsel %vm6907, %v6901, %v6543
        %v6935 = vsel %vm6907, %v6902, %v6545
        %v6936 = vsel %vm6907, %v6903, %v6547
        %v6937 = vsel %vm6907, %v6904, %v6549
        %v6938 = vsel %vm6907, %v6905, %v6551
        %v6939 = vsel %vm6907, %v6906, %v6553
        %v6940 = vsel %vm654, %v6908, %v6587
        %v6941 = vsel %vm654, %v6909, %v6589
        %v6942 = vsel %vm654, %v6910, %v6591
        %v6943 = vsel %vm654, %v6911, %v6593
        %v6944 = vsel %vm654, %v6912, %v6595
        %v6945 = vsel %vm654, %v6913, %v6597
        %v6946 = vsel %vm654, %v6914, %v6599
        %v6947 = vsel %vm654, %v6915, %v6601
        %v6948 = vsel %vm654, %v6916, %v6603
        %v6949 = vsel %vm654, %v6917, %v6605
        %v6950 = vsel %vm654, %v6918, %v6607
        %v6951 = vsel %vm654, %v6919, %v6609
        %v6952 = vsel %vm654, %v6920, %v6611
        %v6953 = vsel %vm654, %v6921, %v6613
        %v6954 = vsel %vm654, %v6922, %v6615
        %v6955 = vsel %vm654, %v6923, %v6617
        %v6956 = vsel %vm654, %v6924, %v6619
        %v6957 = vsel %vm654, %v6925, %v6621
        %v6958 = vsel %vm654, %v6926, %v6623
        %v6959 = vsel %vm654, %v6927, %v6625
        %v6960 = vsel %vm654, %v6928, %v6627
        %v6961 = vsel %vm654, %v6929, %v6629
        %v6962 = vsel %vm654, %v6930, %v6631
        %v6963 = vsel %vm654, %v6931, %v6633
        %v6964 = vsel %vm654, %v6932, %v6635
        %v6965 = vsel %vm654, %v6933, %v6637
        %v6966 = vsel %vm654, %v6934, %v6639
        %v6967 = vsel %vm654, %v6935, %v6641
        %v6968 = vsel %vm654, %v6936, %v6643
        %v6969 = vsel %vm654, %v6937, %v6645
        %v6970 = vsel %vm654, %v6938, %v6647
        %v6971 = vsel %vm654, %v6939, %v6649
        %vm6972 = vcmask 916480
        %v6973 = vsel %vm6972, %v6940, %v6683
        %v6974 = vsel %vm6972, %v6941, %v6685
        %v6975 = vsel %vm6972, %v6942, %v6687
        %v6976 = vsel %vm6972, %v6943, %v6689
        %v6977 = vsel %vm6972, %v6944, %v6691
        %v6978 = vsel %vm6972, %v6945, %v6693
        %v6979 = vsel %vm6972, %v6946, %v6695
        %v6980 = vsel %vm6972, %v6947, %v6697
        %v6981 = vsel %vm6972, %v6948, %v6699
        %v6982 = vsel %vm6972, %v6949, %v6701
        %v6983 = vsel %vm6972, %v6950, %v6703
        %v6984 = vsel %vm6972, %v6951, %v6705
        %v6985 = vsel %vm6972, %v6952, %v6707
        %v6986 = vsel %vm6972, %v6953, %v6709
        %v6987 = vsel %vm6972, %v6954, %v6711
        %v6988 = vsel %vm6972, %v6955, %v6713
        %v6989 = vsel %vm6972, %v6956, %v6715
        %v6990 = vsel %vm6972, %v6957, %v6717
        %v6991 = vsel %vm6972, %v6958, %v6719
        %v6992 = vsel %vm6972, %v6959, %v6721
        %v6993 = vsel %vm6972, %v6960, %v6723
        %v6994 = vsel %vm6972, %v6961, %v6725
        %v6995 = vsel %vm6972, %v6962, %v6727
        %v6996 = vsel %vm6972, %v6963, %v6729
        %v6997 = vsel %vm6972, %v6964, %v6731
        %v6998 = vsel %vm6972, %v6965, %v6733
        %v6999 = vsel %vm6972, %v6966, %v6735
        %v7000 = vsel %vm6972, %v6967, %v6737
        %v7001 = vsel %vm6972, %v6968, %v6739
        %v7002 = vsel %vm6972, %v6969, %v6741
        %v7003 = vsel %vm6972, %v6970, %v6743
        %v7004 = vsel %vm6972, %v6971, %v6745
        %v7005 = vld [vmem:[%s5] sm:$0xff]
        %v7006 = vld [vmem:[%s5 + $0x8] sm:$0xff]
        %v7007 = vld [vmem:[%s5 + $0x10] sm:$0xff]
        %v7008 = vld [vmem:[%s5 + $0x18] sm:$0xff]
        %v7009 = vld [vmem:[%s5 + $0x20] sm:$0xff]
        %v7010 = vld [vmem:[%s5 + $0x28] sm:$0xff]
        %v7011 = vld [vmem:[%s5 + $0x30] sm:$0xff]
        %v7012 = vld [vmem:[%s5 + $0x38] sm:$0xff]
        %v7013 = vld [vmem:[%s5 + $0x40] sm:$0xff]
        %v7014 = vld [vmem:[%s5 + $0x48] sm:$0xff]
        %v7015 = vld [vmem:[%s5 + $0x50] sm:$0xff]
        %v7016 = vld [vmem:[%s5 + $0x58] sm:$0xff]
        %v7017 = vld [vmem:[%s5 + $0x60] sm:$0xff]
        %v7018 = vld [vmem:[%s5 + $0x68] sm:$0xff]
        %v7019 = vld [vmem:[%s5 + $0x70] sm:$0xff]
        %v7020 = vld [vmem:[%s5 + $0x78] sm:$0xff]
        %v7021 = vld [vmem:[%s5 + $0x80] sm:$0xff]
        %v7022 = vld [vmem:[%s5 + $0x88] sm:$0xff]
        %v7023 = vsel %vm987, %v6012, 0
        %v7025 = vsel %vm987, %v6014, 0
        %v7027 = vsel %vm987, %v6017, 0
        %v7029 = vsel %vm987, %v6019, 0
        %v7031 = vsel %vm987, %v6022, 0
        %v7033 = vsel %vm987, %v6024, 0
        %v7035 = vsel %vm987, %v6027, 0
        %v7037 = vsel %vm987, %v6029, 0
        %v7039 = vsel %vm987, %v6032, 0
        %v7041 = vsel %vm987, %v6034, 0
        %v7043 = vsel %vm987, %v6037, 0
        %v7045 = vsel %vm987, %v6039, 0
        %v7047 = vsel %vm987, %v6042, 0
        %v7049 = vsel %vm987, %v6044, 0
        %v7051 = vsel %vm987, %v6047, 0
        %v7053 = vsel %vm987, %v6049, 0
        %v7055 = vsel %vm987, %v6052, 0
        %v7057 = vsel %vm987, %v6054, 0
        %v7059 = vsel %vm987, %v6057, 0
        %v7061 = vsel %vm987, %v6059, 0
        %v7063 = vsel %vm987, %v6062, 0
        %v7065 = vsel %vm987, %v6064, 0
        %v7067 = vsel %vm987, %v6067, 0
        %v7069 = vsel %vm987, %v6069, 0
        %v7071 = vsel %vm987, %v6072, 0
        %v7073 = vsel %vm987, %v6074, 0
        %v7075 = vsel %vm987, %v6077, 0
        %v7077 = vsel %vm987, %v6079, 0
        %v7079 = vsel %vm987, %v6090, 0
        %v7081 = vsel %vm987, %v6092, 0
        %v7083 = vsel %vm987, %v6103, 0
        %v7085 = vsel %vm987, %v6105, 0
        %7087 = vmatprep.subr.mxu0 0.0
        %7088 = vmatpush1.msra.mxu0 %v7005
        %7089 = vmatprep.subr.mxu0 0.0
        %7090 = vmatpush1.msra.mxu0 %v7006
        %7091 = vmatprep.subr.mxu0 0.0
        %7092 = vmatpush1.msra.mxu0 %v7007
        %7093 = vmatprep.subr.mxu0 0.0
        %7094 = vmatpush1.msra.mxu0 %v7008
        %7095 = vmatprep.subr.mxu0 0.0
        %7096 = vmatpush1.msra.mxu0 %v7009
        %7097 = vmatprep.subr.mxu0 0.0
        %7098 = vmatpush1.msra.mxu0 %v7010
        %7099 = vmatprep.subr.mxu0 0.0
        %7100 = vmatpush1.msra.mxu0 %v7011
        %7101 = vmatprep.subr.mxu0 0.0
        %7102 = vmatpush1.msra.mxu0 %v7012
        %7103 = vmatprep.subr.mxu0 0.0
        %7104 = vmatpush1.msra.mxu0 %v7013
        %7105 = vmatprep.subr.mxu0 0.0
        %7106 = vmatpush1.msra.mxu0 %v7014
        %7107 = vmatprep.subr.mxu0 0.0
        %7108 = vmatpush1.msra.mxu0 %v7015
        %7109 = vmatprep.subr.mxu0 0.0
        %7110 = vmatpush1.msra.mxu0 %v7016
        %7111 = vmatprep.subr.mxu0 0.0
        %7112 = vmatpush1.msra.mxu0 %v7017
        %7113 = vmatprep.subr.mxu0 0.0
        %7114 = vmatpush1.msra.mxu0 %v7018
        %7115 = vmatprep.subr.mxu0 0.0
        %7116 = vmatpush1.msra.mxu0 %v7019
        %7117 = vmatprep.subr.mxu0 0.0
        %7118 = vmatpush1.msra.mxu0 %v7020
        %7119 = vmatprep.subr.mxu0 0.0
        %7120 = vmatpush1.msra.mxu0 %v7021
        %7121 = vmatprep.subr.mxu0 0.0
        %7122 = vmatpush1.msra.mxu0 %v7022
        %7123 = vmatprep.subr.mxu0 0.0
        %7124 = vmatpush1.msra.mxu0 0.0
        %7125 = vmatprep.subr.mxu0 0.0
        %7126 = vmatpush1.msra.mxu0 0.0
        %7127 = vmatprep.subr.mxu0 0.0
        %7128 = vmatpush1.msra.mxu0 0.0
        %7129 = vmatprep.subr.mxu0 0.0
        %7130 = vmatpush1.msra.mxu0 0.0
        %7131 = vmatprep.subr.mxu0 0.0
        %7132 = vmatpush1.msra.mxu0 0.0
        %7133 = vmatprep.subr.mxu0 0.0
        %7134 = vmatpush1.msra.mxu0 0.0
        %7135 = vmatprep.subr.mxu0 0.0
        %7136 = vmatpush1.msra.mxu0 0.0
        %7137 = vmatprep.subr.mxu0 0.0
        %7138 = vmatpush1.msra.mxu0 0.0
        %7139 = vmatprep.subr.mxu0 0.0
        %7140 = vmatpush1.msra.mxu0 0.0
        %7141 = vmatprep.subr.mxu0 0.0
        %7142 = vmatpush1.msra.mxu0 0.0
        %7143 = vmatprep.subr.mxu0 0.0
        %7144 = vmatpush1.msra.mxu0 0.0
        %7145 = vmatprep.subr.mxu0 0.0
        %7146 = vmatpush1.msra.mxu0 0.0
        %7147 = vmatprep.subr.mxu0 0.0
        %7148 = vmatpush1.msra.mxu0 0.0
        %7149 = vmatprep.subr.mxu0 0.0
        %7150 = vmatpush1.msra.mxu0 0.0
        %7151 = vmatprep.mubr.f32.mxu0 %v7023
        %7152 = vmatmul.mubr.f32.gmra.mrb[0].mxu0 %v6973
        %v7153 = vpop.f32.mrb[0].mxu0
        %v7154 = vadd.f32 0.0, %v7153
        %v7155 = vpop.f32.mrb[0].mxu0
        %7156 = vmatprep.mubr.f32.mxu0 %v7025
        %7157 = vmatmul.mubr.f32.gmra.mrb[0].mxu0 %v6974
        %v7158 = vpop.f32.mrb[0].mxu0
        %v7159 = vadd.f32 0.0, %v7158
        %v7160 = vpop.f32.mrb[0].mxu0
        %7161 = vmatprep.mubr.f32.mxu0 %v7027
        %7162 = vmatmul.mubr.f32.gmra.mrb[0].mxu0 %v6975
        %v7163 = vpop.f32.mrb[0].mxu0
        %v7164 = vadd.f32 0.0, %v7163
        %v7165 = vpop.f32.mrb[0].mxu0
        %7166 = vmatprep.mubr.f32.mxu0 %v7029
        %7167 = vmatmul.mubr.f32.gmra.mrb[0].mxu0 %v6976
        %v7168 = vpop.f32.mrb[0].mxu0
        %v7169 = vadd.f32 0.0, %v7168
        %v7170 = vpop.f32.mrb[0].mxu0
        %7171 = vmatprep.mubr.f32.mxu0 %v7031
        %7172 = vmatmul.mubr.f32.gmra.mrb[0].mxu0 %v6977
        %v7173 = vpop.f32.mrb[0].mxu0
        %v7174 = vadd.f32 0.0, %v7173
        %v7175 = vpop.f32.mrb[0].mxu0
        %7176 = vmatprep.mubr.f32.mxu0 %v7033
        %7177 = vmatmul.mubr.f32.gmra.mrb[0].mxu0 %v6978
        %v7178 = vpop.f32.mrb[0].mxu0
        %v7179 = vadd.f32 0.0, %v7178
        %v7180 = vpop.f32.mrb[0].mxu0
        %7181 = vmatprep.mubr.f32.mxu0 %v7035
        %7182 = vmatmul.mubr.f32.gmra.mrb[0].mxu0 %v6979
        %v7183 = vpop.f32.mrb[0].mxu0
        %v7184 = vadd.f32 0.0, %v7183
        %v7185 = vpop.f32.mrb[0].mxu0
        %7186 = vmatprep.mubr.f32.mxu0 %v7037
        %7187 = vmatmul.mubr.f32.gmra.mrb[0].mxu0 %v6980
        %v7188 = vpop.f32.mrb[0].mxu0
        %v7189 = vadd.f32 0.0, %v7188
        %v7190 = vpop.f32.mrb[0].mxu0
        %7191 = vmatprep.mubr.f32.mxu0 %v7039
        %7192 = vmatmul.mubr.f32.gmra.mrb[0].mxu0 %v6981
        %v7193 = vpop.f32.mrb[0].mxu0
        %v7194 = vadd.f32 0.0, %v7193
        %v7195 = vpop.f32.mrb[0].mxu0
        %7196 = vmatprep.mubr.f32.mxu0 %v7041
        %7197 = vmatmul.mubr.f32.gmra.mrb[0].mxu0 %v6982
        %v7198 = vpop.f32.mrb[0].mxu0
        %v7199 = vadd.f32 0.0, %v7198
        %v7200 = vpop.f32.mrb[0].mxu0
        %7201 = vmatprep.mubr.f32.mxu0 %v7043
        %7202 = vmatmul.mubr.f32.gmra.mrb[0].mxu0 %v6983
        %v7203 = vpop.f32.mrb[0].mxu0
        %v7204 = vadd.f32 0.0, %v7203
        %v7205 = vpop.f32.mrb[0].mxu0
        %7206 = vmatprep.mubr.f32.mxu0 %v7045
        %7207 = vmatmul.mubr.f32.gmra.mrb[0].mxu0 %v6984
        %v7208 = vpop.f32.mrb[0].mxu0
        %v7209 = vadd.f32 0.0, %v7208
        %v7210 = vpop.f32.mrb[0].mxu0
        %7211 = vmatprep.mubr.f32.mxu0 %v7047
        %7212 = vmatmul.mubr.f32.gmra.mrb[0].mxu0 %v6985
        %v7213 = vpop.f32.mrb[0].mxu0
        %v7214 = vadd.f32 0.0, %v7213
        %v7215 = vpop.f32.mrb[0].mxu0
        %7216 = vmatprep.mubr.f32.mxu0 %v7049
        %7217 = vmatmul.mubr.f32.gmra.mrb[0].mxu0 %v6986
        %v7218 = vpop.f32.mrb[0].mxu0
        %v7219 = vadd.f32 0.0, %v7218
        %v7220 = vpop.f32.mrb[0].mxu0
        %7221 = vmatprep.mubr.f32.mxu0 %v7051
        %7222 = vmatmul.mubr.f32.gmra.mrb[0].mxu0 %v6987
        %v7223 = vpop.f32.mrb[0].mxu0
        %v7224 = vadd.f32 0.0, %v7223
        %v7225 = vpop.f32.mrb[0].mxu0
        %7226 = vmatprep.mubr.f32.mxu0 %v7053
        %7227 = vmatmul.mubr.f32.gmra.mrb[0].mxu0 %v6988
        %v7228 = vpop.f32.mrb[0].mxu0
        %v7229 = vadd.f32 0.0, %v7228
        %v7230 = vpop.f32.mrb[0].mxu0
        %7231 = vmatprep.mubr.f32.mxu0 %v7055
        %7232 = vmatmul.mubr.f32.gmra.mrb[0].mxu0 %v6989
        %v7233 = vpop.f32.mrb[0].mxu0
        %v7234 = vadd.f32 0.0, %v7233
        %v7235 = vpop.f32.mrb[0].mxu0
        %7236 = vmatprep.mubr.f32.mxu0 %v7057
        %7237 = vmatmul.mubr.f32.gmra.mrb[0].mxu0 %v6990
        %v7238 = vpop.f32.mrb[0].mxu0
        %v7239 = vadd.f32 0.0, %v7238
        %v7240 = vpop.f32.mrb[0].mxu0
        %7241 = vmatprep.mubr.f32.mxu0 %v7059
        %7242 = vmatmul.mubr.f32.gmra.mrb[0].mxu0 %v6991
        %v7243 = vpop.f32.mrb[0].mxu0
        %v7244 = vadd.f32 0.0, %v7243
        %v7245 = vpop.f32.mrb[0].mxu0
        %7246 = vmatprep.mubr.f32.mxu0 %v7061
        %7247 = vmatmul.mubr.f32.gmra.mrb[0].mxu0 %v6992
        %v7248 = vpop.f32.mrb[0].mxu0
        %v7249 = vadd.f32 0.0, %v7248
        %v7250 = vpop.f32.mrb[0].mxu0
        %7251 = vmatprep.mubr.f32.mxu0 %v7063
        %7252 = vmatmul.mubr.f32.gmra.mrb[0].mxu0 %v6993
        %v7253 = vpop.f32.mrb[0].mxu0
        %v7254 = vadd.f32 0.0, %v7253
        %v7255 = vpop.f32.mrb[0].mxu0
        %7256 = vmatprep.mubr.f32.mxu0 %v7065
        %7257 = vmatmul.mubr.f32.gmra.mrb[0].mxu0 %v6994
        %v7258 = vpop.f32.mrb[0].mxu0
        %v7259 = vadd.f32 0.0, %v7258
        %v7260 = vpop.f32.mrb[0].mxu0
        %7261 = vmatprep.mubr.f32.mxu0 %v7067
        %7262 = vmatmul.mubr.f32.gmra.mrb[0].mxu0 %v6995
        %v7263 = vpop.f32.mrb[0].mxu0
        %v7264 = vadd.f32 0.0, %v7263
        %v7265 = vpop.f32.mrb[0].mxu0
        %7266 = vmatprep.mubr.f32.mxu0 %v7069
        %7267 = vmatmul.mubr.f32.gmra.mrb[0].mxu0 %v6996
        %v7268 = vpop.f32.mrb[0].mxu0
        %v7269 = vadd.f32 0.0, %v7268
        %v7270 = vpop.f32.mrb[0].mxu0
        %7271 = vmatprep.mubr.f32.mxu0 %v7071
        %7272 = vmatmul.mubr.f32.gmra.mrb[0].mxu0 %v6997
        %v7273 = vpop.f32.mrb[0].mxu0
        %v7274 = vadd.f32 0.0, %v7273
        %v7275 = vpop.f32.mrb[0].mxu0
        %7276 = vmatprep.mubr.f32.mxu0 %v7073
        %7277 = vmatmul.mubr.f32.gmra.mrb[0].mxu0 %v6998
        %v7278 = vpop.f32.mrb[0].mxu0
        %v7279 = vadd.f32 0.0, %v7278
        %v7280 = vpop.f32.mrb[0].mxu0
        %7281 = vmatprep.mubr.f32.mxu0 %v7075
        %7282 = vmatmul.mubr.f32.gmra.mrb[0].mxu0 %v6999
        %v7283 = vpop.f32.mrb[0].mxu0
        %v7284 = vadd.f32 0.0, %v7283
        %v7285 = vpop.f32.mrb[0].mxu0
        %7286 = vmatprep.mubr.f32.mxu0 %v7077
        %7287 = vmatmul.mubr.f32.gmra.mrb[0].mxu0 %v7000
        %v7288 = vpop.f32.mrb[0].mxu0
        %v7289 = vadd.f32 0.0, %v7288
        %v7290 = vpop.f32.mrb[0].mxu0
        %7291 = vmatprep.mubr.f32.mxu0 %v7079
        %7292 = vmatmul.mubr.f32.gmra.mrb[0].mxu0 %v7001
        %v7293 = vpop.f32.mrb[0].mxu0
        %v7294 = vadd.f32 0.0, %v7293
        %v7295 = vpop.f32.mrb[0].mxu0
        %7296 = vmatprep.mubr.f32.mxu0 %v7081
        %7297 = vmatmul.mubr.f32.gmra.mrb[0].mxu0 %v7002
        %v7298 = vpop.f32.mrb[0].mxu0
        %v7299 = vadd.f32 0.0, %v7298
        %v7300 = vpop.f32.mrb[0].mxu0
        %7301 = vmatprep.mubr.f32.mxu0 %v7083
        %7302 = vmatmul.mubr.f32.gmra.mrb[0].mxu0 %v7003
        %v7303 = vpop.f32.mrb[0].mxu0
        %v7304 = vadd.f32 0.0, %v7303
        %v7305 = vpop.f32.mrb[0].mxu0
        %7306 = vmatprep.mubr.f32.mxu0 %v7085
        %7307 = vmatmul.mubr.f32.gmra.mrb[0].mxu0 %v7004
        %v7308 = vpop.f32.mrb[0].mxu0
        %v7309 = vadd.f32 0.0, %v7308
        %v7310 = vpop.f32.mrb[0].mxu0
        %7311 = vdwg.mxu0
        %v7312 = vld [vmem:[%s6] sm:$0x1]
        %v7314 = vlaneseq
        %v7315 = vshrl.u32 %v7314, 7
        %v7316 = vsub.s32 0, %v7315
        %v7317 = vrot.slane %v7312, %v7316
        %v7319 = vmul.f32 %v7154, %v7317
        %v7320 = vmul.f32 %v7159, %v7317
        %v7321 = vmul.f32 %v7164, %v7317
        %v7322 = vmul.f32 %v7169, %v7317
        %v7323 = vmul.f32 %v7174, %v7317
        %v7324 = vmul.f32 %v7179, %v7317
        %v7325 = vmul.f32 %v7184, %v7317
        %v7326 = vmul.f32 %v7189, %v7317
        %v7327 = vmul.f32 %v7194, %v7317
        %v7328 = vmul.f32 %v7199, %v7317
        %v7329 = vmul.f32 %v7204, %v7317
        %v7330 = vmul.f32 %v7209, %v7317
        %v7331 = vmul.f32 %v7214, %v7317
        %v7332 = vmul.f32 %v7219, %v7317
        %v7333 = vmul.f32 %v7224, %v7317
        %v7334 = vmul.f32 %v7229, %v7317
        %v7335 = vmul.f32 %v7234, %v7317
        %v7336 = vmul.f32 %v7239, %v7317
        %v7337 = vmul.f32 %v7244, %v7317
        %v7338 = vmul.f32 %v7249, %v7317
        %v7339 = vmul.f32 %v7254, %v7317
        %v7340 = vmul.f32 %v7259, %v7317
        %v7341 = vmul.f32 %v7264, %v7317
        %v7342 = vmul.f32 %v7269, %v7317
        %v7343 = vmul.f32 %v7274, %v7317
        %v7344 = vmul.f32 %v7279, %v7317
        %v7345 = vmul.f32 %v7284, %v7317
        %v7346 = vmul.f32 %v7289, %v7317
        %v7347 = vmul.f32 %v7294, %v7317
        %v7348 = vmul.f32 %v7299, %v7317
        %v7349 = vmul.f32 %v7304, %v7317
        %v7350 = vmul.f32 %v7309, %v7317
        %v7351 = vld [vmem:[%s7] sm:$0x1]
        %v7353 = vlaneseq
        %v7354 = vshrl.u32 %v7353, 7
        %v7355 = vsub.s32 0, %v7354
        %v7356 = vrot.slane %v7351, %v7355
        %v7358 = vadd.f32 %v7319, %v7356
        %v7359 = vadd.f32 %v7320, %v7356
        %v7360 = vadd.f32 %v7321, %v7356
        %v7361 = vadd.f32 %v7322, %v7356
        %v7362 = vadd.f32 %v7323, %v7356
        %v7363 = vadd.f32 %v7324, %v7356
        %v7364 = vadd.f32 %v7325, %v7356
        %v7365 = vadd.f32 %v7326, %v7356
        %v7366 = vadd.f32 %v7327, %v7356
        %v7367 = vadd.f32 %v7328, %v7356
        %v7368 = vadd.f32 %v7329, %v7356
        %v7369 = vadd.f32 %v7330, %v7356
        %v7370 = vadd.f32 %v7331, %v7356
        %v7371 = vadd.f32 %v7332, %v7356
        %v7372 = vadd.f32 %v7333, %v7356
        %v7373 = vadd.f32 %v7334, %v7356
        %v7374 = vadd.f32 %v7335, %v7356
        %v7375 = vadd.f32 %v7336, %v7356
        %v7376 = vadd.f32 %v7337, %v7356
        %v7377 = vadd.f32 %v7338, %v7356
        %v7378 = vadd.f32 %v7339, %v7356
        %v7379 = vadd.f32 %v7340, %v7356
        %v7380 = vadd.f32 %v7341, %v7356
        %v7381 = vadd.f32 %v7342, %v7356
        %v7382 = vadd.f32 %v7343, %v7356
        %v7383 = vadd.f32 %v7344, %v7356
        %v7384 = vadd.f32 %v7345, %v7356
        %v7385 = vadd.f32 %v7346, %v7356
        %v7386 = vadd.f32 %v7347, %v7356
        %v7387 = vadd.f32 %v7348, %v7356
        %v7388 = vadd.f32 %v7349, %v7356
        %v7389 = vadd.f32 %v7350, %v7356
        %v7390 = vmax.f32 %v7358, 0.0
        %v7391 = vmax.f32 %v7359, 0.0
        %v7392 = vmax.f32 %v7360, 0.0
        %v7393 = vmax.f32 %v7361, 0.0
        %v7394 = vmax.f32 %v7362, 0.0
        %v7395 = vmax.f32 %v7363, 0.0
        %v7396 = vmax.f32 %v7364, 0.0
        %v7397 = vmax.f32 %v7365, 0.0
        %v7398 = vmax.f32 %v7366, 0.0
        %v7399 = vmax.f32 %v7367, 0.0
        %v7400 = vmax.f32 %v7368, 0.0
        %v7401 = vmax.f32 %v7369, 0.0
        %v7402 = vmax.f32 %v7370, 0.0
        %v7403 = vmax.f32 %v7371, 0.0
        %v7404 = vmax.f32 %v7372, 0.0
        %v7405 = vmax.f32 %v7373, 0.0
        %v7406 = vmax.f32 %v7374, 0.0
        %v7407 = vmax.f32 %v7375, 0.0
        %v7408 = vmax.f32 %v7376, 0.0
        %v7409 = vmax.f32 %v7377, 0.0
        %v7410 = vmax.f32 %v7378, 0.0
        %v7411 = vmax.f32 %v7379, 0.0
        %v7412 = vmax.f32 %v7380, 0.0
        %v7413 = vmax.f32 %v7381, 0.0
        %v7414 = vmax.f32 %v7382, 0.0
        %v7415 = vmax.f32 %v7383, 0.0
        %v7416 = vmax.f32 %v7384, 0.0
        %v7417 = vmax.f32 %v7385, 0.0
        %v7418 = vmax.f32 %v7386, 0.0
        %v7419 = vmax.f32 %v7387, 0.0
        %v7420 = vmax.f32 %v7388, 0.0
        %v7421 = vmax.f32 %v7389, 0.0
        %v7438 = vrot.slane %v7392, 7
        %vm7439 = vcmask 1041409
        %v7440 = vsel %vm7439, %v7438, %v7390
        %v7441 = vrot.slane %v7394, 6
        %vm7442 = vcmask 1042434
        %v7443 = vsel %vm7442, %v7441, %v7440
        %v7444 = vrot.slane %v7396, 5
        %vm7445 = vcmask 1043459
        %v7446 = vsel %vm7445, %v7444, %v7443
        %v7447 = vrot.slane %v7398, 4
        %vm7448 = vcmask 1044484
        %v7449 = vsel %vm7448, %v7447, %v7446
        %v7450 = vrot.slane %v7400, 3
        %vm7451 = vcmask 1045509
        %v7452 = vsel %vm7451, %v7450, %v7449
        %v7453 = vrot.slane %v7402, 2
        %vm7454 = vcmask 1046534
        %v7455 = vsel %vm7454, %v7453, %v7452
        %v7456 = vrot.slane %v7404, 1
        %vm7457 = vcmask 1047559
        %v7458 = vsel %vm7457, %v7456, %v7455
        %v7459 = vrot.slane %v7408, 7
        %v7460 = vsel %vm7439, %v7459, %v7406
        %v7461 = vrot.slane %v7410, 6
        %v7462 = vsel %vm7442, %v7461, %v7460
        %v7463 = vrot.slane %v7412, 5
        %v7464 = vsel %vm7445, %v7463, %v7462
        %v7465 = vrot.slane %v7414, 4
        %v7466 = vsel %vm7448, %v7465, %v7464
        %v7467 = vrot.slane %v7416, 3
        %v7468 = vsel %vm7451, %v7467, %v7466
        %v7469 = vrot.slane %v7418, 2
        %v7470 = vsel %vm7454, %v7469, %v7468
        %v7471 = vrot.slane %v7420, 1
        %v7472 = vsel %vm7457, %v7471, %v7470
        %v7475 = vrot.slane %v7390, 1
        %v7476 = vsel %vm7439, %v7392, %v7475
        %v7477 = vrot.slane %v7394, 7
        %v7478 = vsel %vm7442, %v7477, %v7476
        %v7479 = vrot.slane %v7396, 6
        %v7480 = vsel %vm7445, %v7479, %v7478
        %v7481 = vrot.slane %v7398, 5
        %v7482 = vsel %vm7448, %v7481, %v7480
        %v7483 = vrot.slane %v7400, 4
        %v7484 = vsel %vm7451, %v7483, %v7482
        %v7485 = vrot.slane %v7402, 3
        %v7486 = vsel %vm7454, %v7485, %v7484
        %v7487 = vrot.slane %v7404, 2
        %v7488 = vsel %vm7457, %v7487, %v7486
        %v7489 = vrot.slane %v7406, 1
        %v7490 = vsel %vm7439, %v7408, %v7489
        %v7491 = vrot.slane %v7410, 7
        %v7492 = vsel %vm7442, %v7491, %v7490
        %v7493 = vrot.slane %v7412, 6
        %v7494 = vsel %vm7445, %v7493, %v7492
        %v7495 = vrot.slane %v7414, 5
        %v7496 = vsel %vm7448, %v7495, %v7494
        %v7497 = vrot.slane %v7416, 4
        %v7498 = vsel %vm7451, %v7497, %v7496
        %v7499 = vrot.slane %v7418, 3
        %v7500 = vsel %vm7454, %v7499, %v7498
        %v7501 = vrot.slane %v7420, 2
        %v7502 = vsel %vm7457, %v7501, %v7500
        %7503 = vrot.lane.b32.xlu0 %v7488, 16
        %v7504 = vpop.permute.xlu0 %7503
        %7505 = vrot.lane.b32.xlu0 %v7502, 16
        %v7506 = vpop.permute.xlu0 %7505
        %v7509 = vrot.slane %v7390, 2
        %v7510 = vrot.slane %v7392, 1
        %v7511 = vsel %vm7439, %v7510, %v7509
        %v7512 = vsel %vm7442, %v7394, %v7511
        %v7513 = vrot.slane %v7396, 7
        %v7514 = vsel %vm7445, %v7513, %v7512
        %v7515 = vrot.slane %v7398, 6
        %v7516 = vsel %vm7448, %v7515, %v7514
        %v7517 = vrot.slane %v7400, 5
        %v7518 = vsel %vm7451, %v7517, %v7516
        %v7519 = vrot.slane %v7402, 4
        %v7520 = vsel %vm7454, %v7519, %v7518
        %v7521 = vrot.slane %v7404, 3
        %v7522 = vsel %vm7457, %v7521, %v7520
        %v7523 = vrot.slane %v7406, 2
        %v7524 = vrot.slane %v7408, 1
        %v7525 = vsel %vm7439, %v7524, %v7523
        %v7526 = vsel %vm7442, %v7410, %v7525
        %v7527 = vrot.slane %v7412, 7
        %v7528 = vsel %vm7445, %v7527, %v7526
        %v7529 = vrot.slane %v7414, 6
        %v7530 = vsel %vm7448, %v7529, %v7528
        %v7531 = vrot.slane %v7416, 5
        %v7532 = vsel %vm7451, %v7531, %v7530
        %v7533 = vrot.slane %v7418, 4
        %v7534 = vsel %vm7454, %v7533, %v7532
        %v7535 = vrot.slane %v7420, 3
        %v7536 = vsel %vm7457, %v7535, %v7534
        %7537 = vrot.lane.b32.xlu0 %v7522, 32
        %v7538 = vpop.permute.xlu0 %7537
        %7539 = vrot.lane.b32.xlu0 %v7536, 32
        %v7540 = vpop.permute.xlu0 %7539
        %v7543 = vrot.slane %v7390, 3
        %v7544 = vrot.slane %v7392, 2
        %v7545 = vsel %vm7439, %v7544, %v7543
        %v7546 = vrot.slane %v7394, 1
        %v7547 = vsel %vm7442, %v7546, %v7545
        %v7548 = vsel %vm7445, %v7396, %v7547
        %v7549 = vrot.slane %v7398, 7
        %v7550 = vsel %vm7448, %v7549, %v7548
        %v7551 = vrot.slane %v7400, 6
        %v7552 = vsel %vm7451, %v7551, %v7550
        %v7553 = vrot.slane %v7402, 5
        %v7554 = vsel %vm7454, %v7553, %v7552
        %v7555 = vrot.slane %v7404, 4
        %v7556 = vsel %vm7457, %v7555, %v7554
        %v7557 = vrot.slane %v7406, 3
        %v7558 = vrot.slane %v7408, 2
        %v7559 = vsel %vm7439, %v7558, %v7557
        %v7560 = vrot.slane %v7410, 1
        %v7561 = vsel %vm7442, %v7560, %v7559
        %v7562 = vsel %vm7445, %v7412, %v7561
        %v7563 = vrot.slane %v7414, 7
        %v7564 = vsel %vm7448, %v7563, %v7562
        %v7565 = vrot.slane %v7416, 6
        %v7566 = vsel %vm7451, %v7565, %v7564
        %v7567 = vrot.slane %v7418, 5
        %v7568 = vsel %vm7454, %v7567, %v7566
        %v7569 = vrot.slane %v7420, 4
        %v7570 = vsel %vm7457, %v7569, %v7568
        %7571 = vrot.lane.b32.xlu0 %v7556, 48
        %v7572 = vpop.permute.xlu0 %7571
        %7573 = vrot.lane.b32.xlu0 %v7570, 48
        %v7574 = vpop.permute.xlu0 %7573
        %v7577 = vrot.slane %v7390, 4
        %v7578 = vrot.slane %v7392, 3
        %v7579 = vsel %vm7439, %v7578, %v7577
        %v7580 = vrot.slane %v7394, 2
        %v7581 = vsel %vm7442, %v7580, %v7579
        %v7582 = vrot.slane %v7396, 1
        %v7583 = vsel %vm7445, %v7582, %v7581
        %v7584 = vsel %vm7448, %v7398, %v7583
        %v7585 = vrot.slane %v7400, 7
        %v7586 = vsel %vm7451, %v7585, %v7584
        %v7587 = vrot.slane %v7402, 6
        %v7588 = vsel %vm7454, %v7587, %v7586
        %v7589 = vrot.slane %v7404, 5
        %v7590 = vsel %vm7457, %v7589, %v7588
        %v7591 = vrot.slane %v7406, 4
        %v7592 = vrot.slane %v7408, 3
        %v7593 = vsel %vm7439, %v7592, %v7591
        %v7594 = vrot.slane %v7410, 2
        %v7595 = vsel %vm7442, %v7594, %v7593
        %v7596 = vrot.slane %v7412, 1
        %v7597 = vsel %vm7445, %v7596, %v7595
        %v7598 = vsel %vm7448, %v7414, %v7597
        %v7599 = vrot.slane %v7416, 7
        %v7600 = vsel %vm7451, %v7599, %v7598
        %v7601 = vrot.slane %v7418, 6
        %v7602 = vsel %vm7454, %v7601, %v7600
        %v7603 = vrot.slane %v7420, 5
        %v7604 = vsel %vm7457, %v7603, %v7602
        %7605 = vrot.lane.b32.xlu0 %v7590, 64
        %v7606 = vpop.permute.xlu0 %7605
        %7607 = vrot.lane.b32.xlu0 %v7604, 64
        %v7608 = vpop.permute.xlu0 %7607
        %v7611 = vrot.slane %v7390, 5
        %v7612 = vrot.slane %v7392, 4
        %v7613 = vsel %vm7439, %v7612, %v7611
        %v7614 = vrot.slane %v7394, 3
        %v7615 = vsel %vm7442, %v7614, %v7613
        %v7616 = vrot.slane %v7396, 2
        %v7617 = vsel %vm7445, %v7616, %v7615
        %v7618 = vrot.slane %v7398, 1
        %v7619 = vsel %vm7448, %v7618, %v7617
        %v7620 = vsel %vm7451, %v7400, %v7619
        %v7621 = vrot.slane %v7402, 7
        %v7622 = vsel %vm7454, %v7621, %v7620
        %v7623 = vrot.slane %v7404, 6
        %v7624 = vsel %vm7457, %v7623, %v7622
        %v7625 = vrot.slane %v7406, 5
        %v7626 = vrot.slane %v7408, 4
        %v7627 = vsel %vm7439, %v7626, %v7625
        %v7628 = vrot.slane %v7410, 3
        %v7629 = vsel %vm7442, %v7628, %v7627
        %v7630 = vrot.slane %v7412, 2
        %v7631 = vsel %vm7445, %v7630, %v7629
        %v7632 = vrot.slane %v7414, 1
        %v7633 = vsel %vm7448, %v7632, %v7631
        %v7634 = vsel %vm7451, %v7416, %v7633
        %v7635 = vrot.slane %v7418, 7
        %v7636 = vsel %vm7454, %v7635, %v7634
        %v7637 = vrot.slane %v7420, 6
        %v7638 = vsel %vm7457, %v7637, %v7636
        %7639 = vrot.lane.b32.xlu0 %v7624, 80
        %v7640 = vpop.permute.xlu0 %7639
        %7641 = vrot.lane.b32.xlu0 %v7638, 80
        %v7642 = vpop.permute.xlu0 %7641
        %v7645 = vrot.slane %v7390, 6
        %v7646 = vrot.slane %v7392, 5
        %v7647 = vsel %vm7439, %v7646, %v7645
        %v7648 = vrot.slane %v7394, 4
        %v7649 = vsel %vm7442, %v7648, %v7647
        %v7650 = vrot.slane %v7396, 3
        %v7651 = vsel %vm7445, %v7650, %v7649
        %v7652 = vrot.slane %v7398, 2
        %v7653 = vsel %vm7448, %v7652, %v7651
        %v7654 = vrot.slane %v7400, 1
        %v7655 = vsel %vm7451, %v7654, %v7653
        %v7656 = vsel %vm7454, %v7402, %v7655
        %v7657 = vrot.slane %v7404, 7
        %v7658 = vsel %vm7457, %v7657, %v7656
        %v7659 = vrot.slane %v7406, 6
        %v7660 = vrot.slane %v7408, 5
        %v7661 = vsel %vm7439, %v7660, %v7659
        %v7662 = vrot.slane %v7410, 4
        %v7663 = vsel %vm7442, %v7662, %v7661
        %v7664 = vrot.slane %v7412, 3
        %v7665 = vsel %vm7445, %v7664, %v7663
        %v7666 = vrot.slane %v7414, 2
        %v7667 = vsel %vm7448, %v7666, %v7665
        %v7668 = vrot.slane %v7416, 1
        %v7669 = vsel %vm7451, %v7668, %v7667
        %v7670 = vsel %vm7454, %v7418, %v7669
        %v7671 = vrot.slane %v7420, 7
        %v7672 = vsel %vm7457, %v7671, %v7670
        %7673 = vrot.lane.b32.xlu0 %v7658, 96
        %v7674 = vpop.permute.xlu0 %7673
        %7675 = vrot.lane.b32.xlu0 %v7672, 96
        %v7676 = vpop.permute.xlu0 %7675
        %v7679 = vrot.slane %v7390, 7
        %v7680 = vrot.slane %v7392, 6
        %v7681 = vsel %vm7439, %v7680, %v7679
        %v7682 = vrot.slane %v7394, 5
        %v7683 = vsel %vm7442, %v7682, %v7681
        %v7684 = vrot.slane %v7396, 4
        %v7685 = vsel %vm7445, %v7684, %v7683
        %v7686 = vrot.slane %v7398, 3
        %v7687 = vsel %vm7448, %v7686, %v7685
        %v7688 = vrot.slane %v7400, 2
        %v7689 = vsel %vm7451, %v7688, %v7687
        %v7690 = vrot.slane %v7402, 1
        %v7691 = vsel %vm7454, %v7690, %v7689
        %v7692 = vsel %vm7457, %v7404, %v7691
        %v7693 = vrot.slane %v7406, 7
        %v7694 = vrot.slane %v7408, 6
        %v7695 = vsel %vm7439, %v7694, %v7693
        %v7696 = vrot.slane %v7410, 5
        %v7697 = vsel %vm7442, %v7696, %v7695
        %v7698 = vrot.slane %v7412, 4
        %v7699 = vsel %vm7445, %v7698, %v7697
        %v7700 = vrot.slane %v7414, 3
        %v7701 = vsel %vm7448, %v7700, %v7699
        %v7702 = vrot.slane %v7416, 2
        %v7703 = vsel %vm7451, %v7702, %v7701
        %v7704 = vrot.slane %v7418, 1
        %v7705 = vsel %vm7454, %v7704, %v7703
        %v7706 = vsel %vm7457, %v7420, %v7705
        %7707 = vrot.lane.b32.xlu0 %v7692, 112
        %v7708 = vpop.permute.xlu0 %7707
        %7709 = vrot.lane.b32.xlu0 %v7706, 112
        %v7710 = vpop.permute.xlu0 %7709
        %v7729 = vrot.slane %v7393, 7
        %v7730 = vsel %vm7439, %v7729, %v7391
        %v7731 = vrot.slane %v7395, 6
        %v7732 = vsel %vm7442, %v7731, %v7730
        %v7733 = vrot.slane %v7397, 5
        %v7734 = vsel %vm7445, %v7733, %v7732
        %v7735 = vrot.slane %v7399, 4
        %v7736 = vsel %vm7448, %v7735, %v7734
        %v7737 = vrot.slane %v7401, 3
        %v7738 = vsel %vm7451, %v7737, %v7736
        %v7739 = vrot.slane %v7403, 2
        %v7740 = vsel %vm7454, %v7739, %v7738
        %v7741 = vrot.slane %v7405, 1
        %v7742 = vsel %vm7457, %v7741, %v7740
        %v7743 = vrot.slane %v7409, 7
        %v7744 = vsel %vm7439, %v7743, %v7407
        %v7745 = vrot.slane %v7411, 6
        %v7746 = vsel %vm7442, %v7745, %v7744
        %v7747 = vrot.slane %v7413, 5
        %v7748 = vsel %vm7445, %v7747, %v7746
        %v7749 = vrot.slane %v7415, 4
        %v7750 = vsel %vm7448, %v7749, %v7748
        %v7751 = vrot.slane %v7417, 3
        %v7752 = vsel %vm7451, %v7751, %v7750
        %v7753 = vrot.slane %v7419, 2
        %v7754 = vsel %vm7454, %v7753, %v7752
        %v7755 = vrot.slane %v7421, 1
        %v7756 = vsel %vm7457, %v7755, %v7754
        %v7759 = vrot.slane %v7391, 1
        %v7760 = vsel %vm7439, %v7393, %v7759
        %v7761 = vrot.slane %v7395, 7
        %v7762 = vsel %vm7442, %v7761, %v7760
        %v7763 = vrot.slane %v7397, 6
        %v7764 = vsel %vm7445, %v7763, %v7762
        %v7765 = vrot.slane %v7399, 5
        %v7766 = vsel %vm7448, %v7765, %v7764
        %v7767 = vrot.slane %v7401, 4
        %v7768 = vsel %vm7451, %v7767, %v7766
        %v7769 = vrot.slane %v7403, 3
        %v7770 = vsel %vm7454, %v7769, %v7768
        %v7771 = vrot.slane %v7405, 2
        %v7772 = vsel %vm7457, %v7771, %v7770
        %v7773 = vrot.slane %v7407, 1
        %v7774 = vsel %vm7439, %v7409, %v7773
        %v7775 = vrot.slane %v7411, 7
        %v7776 = vsel %vm7442, %v7775, %v7774
        %v7777 = vrot.slane %v7413, 6
        %v7778 = vsel %vm7445, %v7777, %v7776
        %v7779 = vrot.slane %v7415, 5
        %v7780 = vsel %vm7448, %v7779, %v7778
        %v7781 = vrot.slane %v7417, 4
        %v7782 = vsel %vm7451, %v7781, %v7780
        %v7783 = vrot.slane %v7419, 3
        %v7784 = vsel %vm7454, %v7783, %v7782
        %v7785 = vrot.slane %v7421, 2
        %v7786 = vsel %vm7457, %v7785, %v7784
        %7787 = vrot.lane.b32.xlu0 %v7772, 16
        %v7788 = vpop.permute.xlu0 %7787
        %7789 = vrot.lane.b32.xlu0 %v7786, 16
        %v7790 = vpop.permute.xlu0 %7789
        %v7793 = vrot.slane %v7391, 2
        %v7794 = vrot.slane %v7393, 1
        %v7795 = vsel %vm7439, %v7794, %v7793
        %v7796 = vsel %vm7442, %v7395, %v7795
        %v7797 = vrot.slane %v7397, 7
        %v7798 = vsel %vm7445, %v7797, %v7796
        %v7799 = vrot.slane %v7399, 6
        %v7800 = vsel %vm7448, %v7799, %v7798
        %v7801 = vrot.slane %v7401, 5
        %v7802 = vsel %vm7451, %v7801, %v7800
        %v7803 = vrot.slane %v7403, 4
        %v7804 = vsel %vm7454, %v7803, %v7802
        %v7805 = vrot.slane %v7405, 3
        %v7806 = vsel %vm7457, %v7805, %v7804
        %v7807 = vrot.slane %v7407, 2
        %v7808 = vrot.slane %v7409, 1
        %v7809 = vsel %vm7439, %v7808, %v7807
        %v7810 = vsel %vm7442, %v7411, %v7809
        %v7811 = vrot.slane %v7413, 7
        %v7812 = vsel %vm7445, %v7811, %v7810
        %v7813 = vrot.slane %v7415, 6
        %v7814 = vsel %vm7448, %v7813, %v7812
        %v7815 = vrot.slane %v7417, 5
        %v7816 = vsel %vm7451, %v7815, %v7814
        %v7817 = vrot.slane %v7419, 4
        %v7818 = vsel %vm7454, %v7817, %v7816
        %v7819 = vrot.slane %v7421, 3
        %v7820 = vsel %vm7457, %v7819, %v7818
        %7821 = vrot.lane.b32.xlu0 %v7806, 32
        %v7822 = vpop.permute.xlu0 %7821
        %7823 = vrot.lane.b32.xlu0 %v7820, 32
        %v7824 = vpop.permute.xlu0 %7823
        %v7827 = vrot.slane %v7391, 3
        %v7828 = vrot.slane %v7393, 2
        %v7829 = vsel %vm7439, %v7828, %v7827
        %v7830 = vrot.slane %v7395, 1
        %v7831 = vsel %vm7442, %v7830, %v7829
        %v7832 = vsel %vm7445, %v7397, %v7831
        %v7833 = vrot.slane %v7399, 7
        %v7834 = vsel %vm7448, %v7833, %v7832
        %v7835 = vrot.slane %v7401, 6
        %v7836 = vsel %vm7451, %v7835, %v7834
        %v7837 = vrot.slane %v7403, 5
        %v7838 = vsel %vm7454, %v7837, %v7836
        %v7839 = vrot.slane %v7405, 4
        %v7840 = vsel %vm7457, %v7839, %v7838
        %v7841 = vrot.slane %v7407, 3
        %v7842 = vrot.slane %v7409, 2
        %v7843 = vsel %vm7439, %v7842, %v7841
        %v7844 = vrot.slane %v7411, 1
        %v7845 = vsel %vm7442, %v7844, %v7843
        %v7846 = vsel %vm7445, %v7413, %v7845
        %v7847 = vrot.slane %v7415, 7
        %v7848 = vsel %vm7448, %v7847, %v7846
        %v7849 = vrot.slane %v7417, 6
        %v7850 = vsel %vm7451, %v7849, %v7848
        %v7851 = vrot.slane %v7419, 5
        %v7852 = vsel %vm7454, %v7851, %v7850
        %v7853 = vrot.slane %v7421, 4
        %v7854 = vsel %vm7457, %v7853, %v7852
        %7855 = vrot.lane.b32.xlu0 %v7840, 48
        %v7856 = vpop.permute.xlu0 %7855
        %7857 = vrot.lane.b32.xlu0 %v7854, 48
        %v7858 = vpop.permute.xlu0 %7857
        %v7861 = vrot.slane %v7391, 4
        %v7862 = vrot.slane %v7393, 3
        %v7863 = vsel %vm7439, %v7862, %v7861
        %v7864 = vrot.slane %v7395, 2
        %v7865 = vsel %vm7442, %v7864, %v7863
        %v7866 = vrot.slane %v7397, 1
        %v7867 = vsel %vm7445, %v7866, %v7865
        %v7868 = vsel %vm7448, %v7399, %v7867
        %v7869 = vrot.slane %v7401, 7
        %v7870 = vsel %vm7451, %v7869, %v7868
        %v7871 = vrot.slane %v7403, 6
        %v7872 = vsel %vm7454, %v7871, %v7870
        %v7873 = vrot.slane %v7405, 5
        %v7874 = vsel %vm7457, %v7873, %v7872
        %v7875 = vrot.slane %v7407, 4
        %v7876 = vrot.slane %v7409, 3
        %v7877 = vsel %vm7439, %v7876, %v7875
        %v7878 = vrot.slane %v7411, 2
        %v7879 = vsel %vm7442, %v7878, %v7877
        %v7880 = vrot.slane %v7413, 1
        %v7881 = vsel %vm7445, %v7880, %v7879
        %v7882 = vsel %vm7448, %v7415, %v7881
        %v7883 = vrot.slane %v7417, 7
        %v7884 = vsel %vm7451, %v7883, %v7882
        %v7885 = vrot.slane %v7419, 6
        %v7886 = vsel %vm7454, %v7885, %v7884
        %v7887 = vrot.slane %v7421, 5
        %v7888 = vsel %vm7457, %v7887, %v7886
        %7889 = vrot.lane.b32.xlu0 %v7874, 64
        %v7890 = vpop.permute.xlu0 %7889
        %7891 = vrot.lane.b32.xlu0 %v7888, 64
        %v7892 = vpop.permute.xlu0 %7891
        %v7895 = vrot.slane %v7391, 5
        %v7896 = vrot.slane %v7393, 4
        %v7897 = vsel %vm7439, %v7896, %v7895
        %v7898 = vrot.slane %v7395, 3
        %v7899 = vsel %vm7442, %v7898, %v7897
        %v7900 = vrot.slane %v7397, 2
        %v7901 = vsel %vm7445, %v7900, %v7899
        %v7902 = vrot.slane %v7399, 1
        %v7903 = vsel %vm7448, %v7902, %v7901
        %v7904 = vsel %vm7451, %v7401, %v7903
        %v7905 = vrot.slane %v7403, 7
        %v7906 = vsel %vm7454, %v7905, %v7904
        %v7907 = vrot.slane %v7405, 6
        %v7908 = vsel %vm7457, %v7907, %v7906
        %v7909 = vrot.slane %v7407, 5
        %v7910 = vrot.slane %v7409, 4
        %v7911 = vsel %vm7439, %v7910, %v7909
        %v7912 = vrot.slane %v7411, 3
        %v7913 = vsel %vm7442, %v7912, %v7911
        %v7914 = vrot.slane %v7413, 2
        %v7915 = vsel %vm7445, %v7914, %v7913
        %v7916 = vrot.slane %v7415, 1
        %v7917 = vsel %vm7448, %v7916, %v7915
        %v7918 = vsel %vm7451, %v7417, %v7917
        %v7919 = vrot.slane %v7419, 7
        %v7920 = vsel %vm7454, %v7919, %v7918
        %v7921 = vrot.slane %v7421, 6
        %v7922 = vsel %vm7457, %v7921, %v7920
        %7923 = vrot.lane.b32.xlu0 %v7908, 80
        %v7924 = vpop.permute.xlu0 %7923
        %7925 = vrot.lane.b32.xlu0 %v7922, 80
        %v7926 = vpop.permute.xlu0 %7925
        %v7929 = vrot.slane %v7391, 6
        %v7930 = vrot.slane %v7393, 5
        %v7931 = vsel %vm7439, %v7930, %v7929
        %v7932 = vrot.slane %v7395, 4
        %v7933 = vsel %vm7442, %v7932, %v7931
        %v7934 = vrot.slane %v7397, 3
        %v7935 = vsel %vm7445, %v7934, %v7933
        %v7936 = vrot.slane %v7399, 2
        %v7937 = vsel %vm7448, %v7936, %v7935
        %v7938 = vrot.slane %v7401, 1
        %v7939 = vsel %vm7451, %v7938, %v7937
        %v7940 = vsel %vm7454, %v7403, %v7939
        %v7941 = vrot.slane %v7405, 7
        %v7942 = vsel %vm7457, %v7941, %v7940
        %v7943 = vrot.slane %v7407, 6
        %v7944 = vrot.slane %v7409, 5
        %v7945 = vsel %vm7439, %v7944, %v7943
        %v7946 = vrot.slane %v7411, 4
        %v7947 = vsel %vm7442, %v7946, %v7945
        %v7948 = vrot.slane %v7413, 3
        %v7949 = vsel %vm7445, %v7948, %v7947
        %v7950 = vrot.slane %v7415, 2
        %v7951 = vsel %vm7448, %v7950, %v7949
        %v7952 = vrot.slane %v7417, 1
        %v7953 = vsel %vm7451, %v7952, %v7951
        %v7954 = vsel %vm7454, %v7419, %v7953
        %v7955 = vrot.slane %v7421, 7
        %v7956 = vsel %vm7457, %v7955, %v7954
        %7957 = vrot.lane.b32.xlu0 %v7942, 96
        %v7958 = vpop.permute.xlu0 %7957
        %7959 = vrot.lane.b32.xlu0 %v7956, 96
        %v7960 = vpop.permute.xlu0 %7959
        %v7963 = vrot.slane %v7391, 7
        %v7964 = vrot.slane %v7393, 6
        %v7965 = vsel %vm7439, %v7964, %v7963
        %v7966 = vrot.slane %v7395, 5
        %v7967 = vsel %vm7442, %v7966, %v7965
        %v7968 = vrot.slane %v7397, 4
        %v7969 = vsel %vm7445, %v7968, %v7967
        %v7970 = vrot.slane %v7399, 3
        %v7971 = vsel %vm7448, %v7970, %v7969
        %v7972 = vrot.slane %v7401, 2
        %v7973 = vsel %vm7451, %v7972, %v7971
        %v7974 = vrot.slane %v7403, 1
        %v7975 = vsel %vm7454, %v7974, %v7973
        %v7976 = vsel %vm7457, %v7405, %v7975
        %v7977 = vrot.slane %v7407, 7
        %v7978 = vrot.slane %v7409, 6
        %v7979 = vsel %vm7439, %v7978, %v7977
        %v7980 = vrot.slane %v7411, 5
        %v7981 = vsel %vm7442, %v7980, %v7979
        %v7982 = vrot.slane %v7413, 4
        %v7983 = vsel %vm7445, %v7982, %v7981
        %v7984 = vrot.slane %v7415, 3
        %v7985 = vsel %vm7448, %v7984, %v7983
        %v7986 = vrot.slane %v7417, 2
        %v7987 = vsel %vm7451, %v7986, %v7985
        %v7988 = vrot.slane %v7419, 1
        %v7989 = vsel %vm7454, %v7988, %v7987
        %v7990 = vsel %vm7457, %v7421, %v7989
        %7991 = vrot.lane.b32.xlu0 %v7976, 112
        %v7992 = vpop.permute.xlu0 %7991
        %7993 = vrot.lane.b32.xlu0 %v7990, 112
        %v7994 = vpop.permute.xlu0 %7993
        %v7997 = vsel %vm987, %v7458, %v7504
        %v7998 = vsel %vm987, %v7472, %v7506
        %v7999 = vsel %vm344, %v7997, %v7538
        %v8000 = vsel %vm344, %v7998, %v7540
        %v8001 = vsel %vm6842, %v7999, %v7572
        %v8002 = vsel %vm6842, %v8000, %v7574
        %v8003 = vsel %vm645, %v8001, %v7606
        %v8004 = vsel %vm645, %v8002, %v7608
        %v8005 = vsel %vm6907, %v8003, %v7640
        %v8006 = vsel %vm6907, %v8004, %v7642
        %v8007 = vsel %vm654, %v8005, %v7674
        %v8008 = vsel %vm654, %v8006, %v7676
        %v8009 = vsel %vm6972, %v8007, %v7708
        %v8010 = vsel %vm6972, %v8008, %v7710
        %v8011 = vsel %vm987, %v7742, %v7788
        %v8012 = vsel %vm987, %v7756, %v7790
        %v8013 = vsel %vm344, %v8011, %v7822
        %v8014 = vsel %vm344, %v8012, %v7824
        %v8015 = vsel %vm6842, %v8013, %v7856
        %v8016 = vsel %vm6842, %v8014, %v7858
        %v8017 = vsel %vm645, %v8015, %v7890
        %v8018 = vsel %vm645, %v8016, %v7892
        %v8019 = vsel %vm6907, %v8017, %v7924
        %v8020 = vsel %vm6907, %v8018, %v7926
        %v8021 = vsel %vm654, %v8019, %v7958
        %v8022 = vsel %vm654, %v8020, %v7960
        %v8023 = vsel %vm6972, %v8021, %v7992
        %v8024 = vsel %vm6972, %v8022, %v7994
        %8025 = vst [vmem:[%s338] sm:$0xff] %v8009
        %8026 = vst [vmem:[%s338 + $0x8] sm:$0xff] %v8023
        %8027 = vst [vmem:[%s338 + $0x10] sm:$0xff] %v8010
        %8028 = vst [vmem:[%s338 + $0x18] sm:$0xff] %v8024
        %s8029 = sand.u32 %s211, 1
        %s8030 = scalar_lea.sflag [#allocation7], %s8029
        %s8031 = sand.u32 %s211, 1
        %s8032 = smul.addr %s8031, 32
        %s8033 = scalar_lea.vmem [#allocation8], %s8032
        // Predicated region
        $region57: #{tpu_custom_call.1} parent=51 // pred_check
          %p8034 = pneg %p221
        $region58: #{tpu_custom_call.1} parent=51 // pred_check_branch
          %8036 = sbr.rel (%p8034) target = $region60
        $region59: #{tpu_custom_call.1} parent=51 // pred_region
          %s8038 = ssub.s32 512, 512
          %8039 = vsyncadd %s8030, %s8038
          %s8040 = smul.addr %s25, 4
          %s8041 = smul.addr %s8040, 128
          %s8042 = scalar_lea.hbm %s8, %s8041
          %s8043 = sshll.u32 %s8033, 4
          %s8044 = int_to_ptr.vmem [resolvable:$true] %s8043
          %8049 = dma.vmem_to_hbm [thread:$0]  %s8044, 512, %s8042, %s8030, 256, 256, 16
        $region60: #{tpu_custom_call.1} parent=51 // pred_fallthru
          _
      $region52: #{tpu_custom_call.1} parent=5 // pred_fallthru
        _
      %p8050 = scmp.le.s32.totalorder 2, %s20
      // Predicated region
      $region61: #{tpu_custom_call.1} parent=5 // pred_check
        %p8051 = pneg %p8050
      $region62: #{tpu_custom_call.1} parent=5 // pred_check_branch
        %8053 = sbr.rel (%p8051) target = $region64
      $region63: #{tpu_custom_call.1} parent=5 // pred_region
        %s8054 = ssub.s32 %s20, 2
        // Predicated region
        $region65: #{tpu_custom_call.1} parent=63 // pred_check
          %p8055 = pneg %p227
        $region66: #{tpu_custom_call.1} parent=63 // pred_check_branch
          %8057 = sbr.rel (%p8055) target = $region68
        $region67: #{tpu_custom_call.1} parent=63 // pred_region
          %s8058 = sand.u32 %s212, 1
          %s8059 = scalar_lea.sflag [#allocation7], %s8058
          %s8060 = sand.u32 %s212, 1
          %s8061 = smul.addr %s8060, 32
          %s8062 = scalar_lea.vmem [#allocation8], %s8061
          %8063 = dma.done %s8059, 512
        $region68: #{tpu_custom_call.1} parent=63 // pred_fallthru
          _
      $region64: #{tpu_custom_call.1} parent=5 // pred_fallthru
        _
    $region6: #{tpu_custom_call.1} parent=1 // loop_footer
      %s24 = sadd.s32 1, %s20
    $region7: #{tpu_custom_call.1} parent=1 // loop_footer_branch
      %19 = sbr.rel target = $region3
    $region8: #{tpu_custom_call.1} parent=1 // loop_exit
      _
    %8064 = vsyncpa [#allocation6], 1
    %s8065 = scalar_lea.sflag [#allocation6], 1
    %8066 = vsyncpa %s8065, 1
    %8067 = vsyncpa [#allocation7], 1
    %s8068 = scalar_lea.sflag [#allocation7], 1
    %8069 = vsyncpa %s8068, 1

</llo_original>
